<compile_context>
chip_gen: v6e
topology: v6e:2x2x1
jax: 0.10.0
libtpu: 0.0.40
codegen_flags: <defaults>
</compile_context>

<pallas_src>
import jax
import jax.numpy as jnp
from jax.experimental import pallas as pl
from jax.experimental.pallas import tpu as pltpu

BT_MAX = 64  # max batch tile; keeps worst-case VMEM ~20 MB (safe on v7x's 64 MiB)


def _pick_bt(B):
    """Batch tile (multiple of 16) and padded batch size."""
    Bp = ((B + 15) // 16) * 16
    if Bp >= 2 * BT_MAX:
        BT = BT_MAX
        Bp = ((B + BT - 1) // BT) * BT
    elif Bp % 32 == 0:
        BT = Bp // 2          # grid of 2 -> both TensorCores on v7x megacore
    else:
        BT = Bp               # single grid step
    return BT, Bp


def _net_kernel(q_ref, w1_ref, b1_ref, w2_ref, b2_ref, wl_ref, bl_ref, o_ref):
    bt = o_ref.shape[0]

    # ---- conv1 + 2x2 maxpool + relu -----------------------------------------
    # q rows = (hp, wp, ip, jq, b) over the 12x12 pooled grid (batch innermost),
    # lanes = the 6x6 input superpatch covering all 4 pool offsets x 5x5 taps.
    # Pool = running max over the 4 per-offset (zero-padded, shifted) kernels.
    q = q_ref[...].reshape(144 * bt, 36)                      # layout-preserving (bt%16==0)
    z1 = jnp.dot(q, w1_ref[0], preferred_element_type=jnp.float32)
    for g in range(1, 4):
        z1 = jnp.maximum(z1, jnp.dot(q, w1_ref[g], preferred_element_type=jnp.float32))
    # bias + relu after the max is equivalent (bias const per window, relu monotone)
    y1 = jnp.maximum(z1 + b1_ref[...], 0.0).astype(jnp.bfloat16)
    y1 = y1.reshape(2, 2, 6, 6, bt, 10)       # [hp, wp, ip, jq, b, c] == 12x12x10 fmap

    # ---- conv2 + 2x2 maxpool + relu -----------------------------------------
    # In-kernel im2col: 36 contiguous leading-dim slices, lane-concatenated to K=360.
    # Rows = (r, s, b) over the 4x4 pooled output grid.
    slabs = [y1[u % 2, v % 2, u // 2:u // 2 + 4, v // 2:v // 2 + 4]   # (4, 4, bt, 10)
             for u in range(6) for v in range(6)]
    p2 = jnp.concatenate(slabs, axis=-1).reshape(16 * bt, 360)        # (16*bt, 360) bf16
    z2 = jnp.dot(p2, w2_ref[0], preferred_element_type=jnp.float32)
    for g in range(1, 4):
        z2 = jnp.maximum(z2, jnp.dot(p2, w2_ref[g], preferred_element_type=jnp.float32))
    y2 = jnp.maximum(z2 + b2_ref[...], 0.0).astype(jnp.bfloat16)
    y2 = y2.reshape(16, bt, 20)               # [(r,s), b, c] == 4x4x20 fmap

    # ---- linear(320 -> 10): single matmul -----------------------------------
    # NCHW flatten folded into wl's row order (rs-major, channel-minor).
    x320 = jnp.concatenate([y2[rs] for rs in range(16)], axis=-1)     # (bt, 320) bf16
    o_ref[...] = jnp.dot(x320, wl_ref[...],
                         preferred_element_type=jnp.float32) + bl_ref[...]


def _build_q(x):
    """x: (Bp, 28, 28) bf16 -> q: (144, Bp, 36).

    q[(hp*2+wp)*36 + ip*6 + jq, b, u*6+v] = x[b, 4*ip + 2*hp + u, 4*jq + 2*wp + v].
    Only the raw input is transposed; the 6.6x-expanded q is written once in
    its final layout via per-parity stride-4 slices."""
    Bp = x.shape[0]
    xt = jnp.transpose(x, (1, 2, 0))                          # (28, 28, Bp) -- raw-size only
    groups = []
    for hp in range(2):
        for wp in range(2):
            planes = [xt[2 * hp + u: 2 * hp + u + 21: 4,
                         2 * wp + v: 2 * wp + v + 21: 4, :]   # (6, 6, Bp) = [ip, jq, b]
                      for u in range(6) for v in range(6)]
            groups.append(jnp.stack(planes, axis=-1))         # (6, 6, Bp, 36)
    q = jnp.stack(groups, axis=0)                             # (4, 6, 6, Bp, 36)
    return q.reshape(144, Bp, 36)                             # free (merge leading dims)


def init_torch_params(key):
    """Deterministic synthetic parameters in PyTorch layout."""
    k1, k2, k3, k4, k5, k6 = jax.random.split(key, 6)
    return dict(
        conv1_w=jax.random.normal(k1, (10, 1, 5, 5), jnp.float32) * 0.1,
        conv1_b=jax.random.normal(k2, (10,), jnp.float32) * 0.1,
        conv2_w=jax.random.normal(k3, (20, 10, 5, 5), jnp.float32) * 0.05,
        conv2_b=jax.random.normal(k4, (20,), jnp.float32) * 0.05,
        lin_w=jax.random.normal(k5, (10, 320), jnp.float32) * 0.05,
        lin_b=jax.random.normal(k6, (10,), jnp.float32) * 0.05,
    )


def pack_params(tp):
    """Repack PyTorch-layout params for the kernel (pool offsets on a leading dim)."""
    # conv1: (10,1,5,5) -> (kh,kw,co); per pool offset g=(pa,pb): shifted, zero-padded 6x6.
    w1 = jnp.transpose(tp["conv1_w"][:, 0], (1, 2, 0))                 # (5,5,10)
    w1p = jnp.pad(w1, ((0, 1), (0, 1), (0, 0)))                        # (6,6,10)
    w1g = jnp.stack([jnp.roll(w1p, (pa, pb), axis=(0, 1)).reshape(36, 10)
                     for pa in range(2) for pb in range(2)])           # (4,36,10)
    # conv2: (20,10,5,5) -> (kh,kw,ci,co); same per-offset shift -> (4,360,20).
    w2 = jnp.transpose(tp["conv2_w"], (2, 3, 1, 0))                    # (5,5,10,20)
    w2p = jnp.pad(w2, ((0, 1), (0, 1), (0, 0), (0, 0)))                # (6,6,10,20)
    w2g = jnp.stack([jnp.roll(w2p, (da, db), axis=(0, 1)).reshape(360, 20)
                     for da in range(2) for db in range(2)])           # (4,360,20)
    # linear: PyTorch feature index = c*16 + r*4 + s  ->  rows ordered (rs, c).
    wl = tp["lin_w"].reshape(10, 20, 4, 4).transpose(2, 3, 1, 0).reshape(320, 10)
    return dict(w1=w1g.astype(jnp.bfloat16), b1=tp["conv1_b"].reshape(1, 10),
                w2=w2g.astype(jnp.bfloat16), b2=tp["conv2_b"].reshape(1, 20),
                wl=wl.astype(jnp.bfloat16), bl=tp["lin_b"].reshape(1, 10))


@jax.jit
def net_forward(x_nchw, kp):
    # x_nchw: (B, 1, 28, 28), same convention as the PyTorch module.
    B = x_nchw.shape[0]
    BT, Bp = _pick_bt(B)
    nb = Bp // BT
    x = x_nchw.reshape(B, 28, 28).astype(jnp.bfloat16)
    if Bp != B:
        x = jnp.pad(x, ((0, Bp - B), (0, 0), (0, 0)))
    q = _build_q(x)                                                    # (144, Bp, 36) bf16

    out = pl.pallas_call(
        _net_kernel,
        out_shape=jax.ShapeDtypeStruct((Bp, 10), jnp.float32),
        grid=(nb,),
        in_specs=[
            pl.BlockSpec((144, BT, 36), lambda i: (0, i, 0)),          # superpatches (streamed)
            pl.BlockSpec((4, 36, 10), lambda i: (0, 0, 0)),            # conv1 per-offset weights
            pl.BlockSpec((1, 10), lambda i: (0, 0)),                   # conv1 bias
            pl.BlockSpec((4, 360, 20), lambda i: (0, 0, 0)),           # conv2 per-offset weights
            pl.BlockSpec((1, 20), lambda i: (0, 0)),                   # conv2 bias
            pl.BlockSpec((320, 10), lambda i: (0, 0)),                 # linear weight
            pl.BlockSpec((1, 10), lambda i: (0, 0)),                   # linear bias
        ],
        out_specs=pl.BlockSpec((BT, 10), lambda i: (i, 0)),
        compiler_params=pltpu.CompilerParams(
            dimension_semantics=("parallel",),
            vmem_limit_bytes=32 * 1024 * 1024),
    )(q, kp["w1"], kp["b1"], kp["w2"], kp["b2"], kp["wl"], kp["bl"])
    return out[:B]


def reference_forward(x_nchw, tp):
    """Pure-JAX f32 reference matching the PyTorch module."""
    dn = ("NCHW", "OIHW", "NCHW")
    hi = jax.lax.Precision.HIGHEST
    y = jax.lax.conv_general_dilated(x_nchw.astype(jnp.float32), tp["conv1_w"],
                                     (1, 1), "VALID", dimension_numbers=dn, precision=hi)
    y = y + tp["conv1_b"][None, :, None, None]
    y = jax.lax.reduce_window(y, -jnp.inf, jax.lax.max, (1, 1, 2, 2), (1, 1, 2, 2), "VALID")
    y = jax.nn.relu(y)
    y = jax.lax.conv_general_dilated(y, tp["conv2_w"],
                                     (1, 1), "VALID", dimension_numbers=dn, precision=hi)
    y = y + tp["conv2_b"][None, :, None, None]
    y = jax.lax.reduce_window(y, -jnp.inf, jax.lax.max, (1, 1, 2, 2), (1, 1, 2, 2), "VALID")
    y = jax.nn.relu(y).reshape(y.shape[0], -1)
    return y @ tp["lin_w"].T + tp["lin_b"][None, :]


if __name__ == "__main__":
    key = jax.random.PRNGKey(0)
    kx, kparam = jax.random.split(key)
    # linear(320) implies a 28x28 single-channel input (MNIST); small batch of 2.
    x = jax.random.normal(kx, (2, 1, 28, 28), jnp.float32)
    tp = init_torch_params(kparam)
    packed = pack_params(tp)

    out = jax.block_until_ready(net_forward(x, packed))
    ref = jax.block_until_ready(reference_forward(x, tp))

    assert out.shape == (2, 10) and out.dtype == jnp.float32
    max_err = float(jnp.max(jnp.abs(out - ref)))
    assert max_err < 5e-2, f"mismatch vs reference: max abs err = {max_err}"
    print("KERNEL_OK")
</pallas_src>

<mosaic_0001>
module attributes {stable_mosaic.version = 11 : i64} {
  func.func @_net_kernel(%arg0: i32, %arg1: memref<144x16x36xbf16, #tpu.memory_space<vmem>>, %arg2: memref<4x36x10xbf16, #tpu.memory_space<vmem>>, %arg3: memref<1x10xf32, #tpu.memory_space<vmem>>, %arg4: memref<4x360x20xbf16, #tpu.memory_space<vmem>>, %arg5: memref<1x20xf32, #tpu.memory_space<vmem>>, %arg6: memref<320x10xbf16, #tpu.memory_space<vmem>>, %arg7: memref<1x10xf32, #tpu.memory_space<vmem>>, %arg8: memref<16x10xf32, #tpu.memory_space<vmem>>) attributes {dimension_semantics = [#tpu.dimension_semantics<parallel>], iteration_bounds = array<i64: 1>, scalar_prefetch = 0 : i64, scratch_operands = 0 : i64, tpu.core_type = #tpu.core_type<tc>, window_params = [{transform_indices = @transform_0, window_bounds = array<i64: 144, 16, 36>}, {pipeline_mode = #tpu.pipeline_mode<synchronous>, transform_indices = @transform_1, window_bounds = array<i64: 4, 36, 10>}, {pipeline_mode = #tpu.pipeline_mode<synchronous>, transform_indices = @transform_2, window_bounds = array<i64: 1, 10>}, {pipeline_mode = #tpu.pipeline_mode<synchronous>, transform_indices = @transform_3, window_bounds = array<i64: 4, 360, 20>}, {pipeline_mode = #tpu.pipeline_mode<synchronous>, transform_indices = @transform_4, window_bounds = array<i64: 1, 20>}, {pipeline_mode = #tpu.pipeline_mode<synchronous>, transform_indices = @transform_5, window_bounds = array<i64: 320, 10>}, {pipeline_mode = #tpu.pipeline_mode<synchronous>, transform_indices = @transform_6, window_bounds = array<i64: 1, 10>}, {transform_indices = @transform_7, window_bounds = array<i64: 16, 10>}]} {
    %c0 = arith.constant 0 : index
    %c0_0 = arith.constant 0 : index
    %c0_1 = arith.constant 0 : index
    %0 = vector.load %arg1[%c0, %c0_0, %c0_1] : memref<144x16x36xbf16, #tpu.memory_space<vmem>>, vector<144x16x36xbf16>
    %1 = vector.shape_cast %0 : vector<144x16x36xbf16> to vector<2304x36xbf16>
    %c0_2 = arith.constant 0 : index
    %c0_3 = arith.constant 0 : index
    %c0_4 = arith.constant 0 : index
    %2 = vector.load %arg2[%c0_2, %c0_3, %c0_4] : memref<4x36x10xbf16, #tpu.memory_space<vmem>>, vector<1x36x10xbf16>
    %3 = vector.shape_cast %2 : vector<1x36x10xbf16> to vector<36x10xbf16>
    %cst = arith.constant dense<0.000000e+00> : vector<2304x10xf32>
    %4 = tpu.matmul %1, %3, %cst {dimension_numbers = #tpu.dot_dimension_numbers<[1], [0], [0], [1], [0, 0, 1, 1], [], []>} : vector<2304x36xbf16>, vector<36x10xbf16>, vector<2304x10xf32> -> vector<2304x10xf32>
    %c1 = arith.constant 1 : index
    %c0_5 = arith.constant 0 : index
    %c0_6 = arith.constant 0 : index
    %5 = vector.load %arg2[%c1, %c0_5, %c0_6] : memref<4x36x10xbf16, #tpu.memory_space<vmem>>, vector<1x36x10xbf16>
    %6 = vector.shape_cast %5 : vector<1x36x10xbf16> to vector<36x10xbf16>
    %cst_7 = arith.constant dense<0.000000e+00> : vector<2304x10xf32>
    %7 = tpu.matmul %1, %6, %cst_7 {dimension_numbers = #tpu.dot_dimension_numbers<[1], [0], [0], [1], [0, 0, 1, 1], [], []>} : vector<2304x36xbf16>, vector<36x10xbf16>, vector<2304x10xf32> -> vector<2304x10xf32>
    %8 = arith.maximumf %4, %7 : vector<2304x10xf32>
    %c2 = arith.constant 2 : index
    %c0_8 = arith.constant 0 : index
    %c0_9 = arith.constant 0 : index
    %9 = vector.load %arg2[%c2, %c0_8, %c0_9] : memref<4x36x10xbf16, #tpu.memory_space<vmem>>, vector<1x36x10xbf16>
    %10 = vector.shape_cast %9 : vector<1x36x10xbf16> to vector<36x10xbf16>
    %cst_10 = arith.constant dense<0.000000e+00> : vector<2304x10xf32>
    %11 = tpu.matmul %1, %10, %cst_10 {dimension_numbers = #tpu.dot_dimension_numbers<[1], [0], [0], [1], [0, 0, 1, 1], [], []>} : vector<2304x36xbf16>, vector<36x10xbf16>, vector<2304x10xf32> -> vector<2304x10xf32>
    %12 = arith.maximumf %8, %11 : vector<2304x10xf32>
    %c3 = arith.constant 3 : index
    %c0_11 = arith.constant 0 : index
    %c0_12 = arith.constant 0 : index
    %13 = vector.load %arg2[%c3, %c0_11, %c0_12] : memref<4x36x10xbf16, #tpu.memory_space<vmem>>, vector<1x36x10xbf16>
    %14 = vector.shape_cast %13 : vector<1x36x10xbf16> to vector<36x10xbf16>
    %cst_13 = arith.constant dense<0.000000e+00> : vector<2304x10xf32>
    %15 = tpu.matmul %1, %14, %cst_13 {dimension_numbers = #tpu.dot_dimension_numbers<[1], [0], [0], [1], [0, 0, 1, 1], [], []>} : vector<2304x36xbf16>, vector<36x10xbf16>, vector<2304x10xf32> -> vector<2304x10xf32>
    %16 = arith.maximumf %12, %15 : vector<2304x10xf32>
    %c0_14 = arith.constant 0 : index
    %c0_15 = arith.constant 0 : index
    %17 = vector.load %arg3[%c0_14, %c0_15] : memref<1x10xf32, #tpu.memory_space<vmem>>, vector<1x10xf32>
    %18 = vector.broadcast %17 : vector<1x10xf32> to vector<2304x10xf32>
    %19 = arith.addf %16, %18 : vector<2304x10xf32>
    %cst_16 = arith.constant 0.000000e+00 : f32
    %20 = vector.broadcast %cst_16 : f32 to vector<2304x10xf32>
    %21 = arith.maximumf %19, %20 : vector<2304x10xf32>
    %22 = arith.truncf %21 : vector<2304x10xf32> to vector<2304x10xbf16>
    %23 = vector.shape_cast %22 : vector<2304x10xbf16> to vector<2x2x6x6x16x10xbf16>
    %24 = vector.extract_strided_slice %23 {offsets = [0, 0, 0, 0, 0, 0], sizes = [1, 1, 4, 4, 16, 10], strides = [1, 1, 1, 1, 1, 1]} : vector<2x2x6x6x16x10xbf16> to vector<1x1x4x4x16x10xbf16>
    %25 = vector.shape_cast %24 : vector<1x1x4x4x16x10xbf16> to vector<4x4x16x10xbf16>
    %26 = vector.extract_strided_slice %23 {offsets = [0, 1, 0, 0, 0, 0], sizes = [1, 1, 4, 4, 16, 10], strides = [1, 1, 1, 1, 1, 1]} : vector<2x2x6x6x16x10xbf16> to vector<1x1x4x4x16x10xbf16>
    %27 = vector.shape_cast %26 : vector<1x1x4x4x16x10xbf16> to vector<4x4x16x10xbf16>
    %28 = vector.extract_strided_slice %23 {offsets = [0, 0, 0, 1, 0, 0], sizes = [1, 1, 4, 4, 16, 10], strides = [1, 1, 1, 1, 1, 1]} : vector<2x2x6x6x16x10xbf16> to vector<1x1x4x4x16x10xbf16>
    %29 = vector.shape_cast %28 : vector<1x1x4x4x16x10xbf16> to vector<4x4x16x10xbf16>
    %30 = vector.extract_strided_slice %23 {offsets = [0, 1, 0, 1, 0, 0], sizes = [1, 1, 4, 4, 16, 10], strides = [1, 1, 1, 1, 1, 1]} : vector<2x2x6x6x16x10xbf16> to vector<1x1x4x4x16x10xbf16>
    %31 = vector.shape_cast %30 : vector<1x1x4x4x16x10xbf16> to vector<4x4x16x10xbf16>
    %32 = vector.extract_strided_slice %23 {offsets = [0, 0, 0, 2, 0, 0], sizes = [1, 1, 4, 4, 16, 10], strides = [1, 1, 1, 1, 1, 1]} : vector<2x2x6x6x16x10xbf16> to vector<1x1x4x4x16x10xbf16>
    %33 = vector.shape_cast %32 : vector<1x1x4x4x16x10xbf16> to vector<4x4x16x10xbf16>
    %34 = vector.extract_strided_slice %23 {offsets = [0, 1, 0, 2, 0, 0], sizes = [1, 1, 4, 4, 16, 10], strides = [1, 1, 1, 1, 1, 1]} : vector<2x2x6x6x16x10xbf16> to vector<1x1x4x4x16x10xbf16>
    %35 = vector.shape_cast %34 : vector<1x1x4x4x16x10xbf16> to vector<4x4x16x10xbf16>
    %36 = vector.extract_strided_slice %23 {offsets = [1, 0, 0, 0, 0, 0], sizes = [1, 1, 4, 4, 16, 10], strides = [1, 1, 1, 1, 1, 1]} : vector<2x2x6x6x16x10xbf16> to vector<1x1x4x4x16x10xbf16>
    %37 = vector.shape_cast %36 : vector<1x1x4x4x16x10xbf16> to vector<4x4x16x10xbf16>
    %38 = vector.extract_strided_slice %23 {offsets = [1, 1, 0, 0, 0, 0], sizes = [1, 1, 4, 4, 16, 10], strides = [1, 1, 1, 1, 1, 1]} : vector<2x2x6x6x16x10xbf16> to vector<1x1x4x4x16x10xbf16>
    %39 = vector.shape_cast %38 : vector<1x1x4x4x16x10xbf16> to vector<4x4x16x10xbf16>
    %40 = vector.extract_strided_slice %23 {offsets = [1, 0, 0, 1, 0, 0], sizes = [1, 1, 4, 4, 16, 10], strides = [1, 1, 1, 1, 1, 1]} : vector<2x2x6x6x16x10xbf16> to vector<1x1x4x4x16x10xbf16>
    %41 = vector.shape_cast %40 : vector<1x1x4x4x16x10xbf16> to vector<4x4x16x10xbf16>
    %42 = vector.extract_strided_slice %23 {offsets = [1, 1, 0, 1, 0, 0], sizes = [1, 1, 4, 4, 16, 10], strides = [1, 1, 1, 1, 1, 1]} : vector<2x2x6x6x16x10xbf16> to vector<1x1x4x4x16x10xbf16>
    %43 = vector.shape_cast %42 : vector<1x1x4x4x16x10xbf16> to vector<4x4x16x10xbf16>
    %44 = vector.extract_strided_slice %23 {offsets = [1, 0, 0, 2, 0, 0], sizes = [1, 1, 4, 4, 16, 10], strides = [1, 1, 1, 1, 1, 1]} : vector<2x2x6x6x16x10xbf16> to vector<1x1x4x4x16x10xbf16>
    %45 = vector.shape_cast %44 : vector<1x1x4x4x16x10xbf16> to vector<4x4x16x10xbf16>
    %46 = vector.extract_strided_slice %23 {offsets = [1, 1, 0, 2, 0, 0], sizes = [1, 1, 4, 4, 16, 10], strides = [1, 1, 1, 1, 1, 1]} : vector<2x2x6x6x16x10xbf16> to vector<1x1x4x4x16x10xbf16>
    %47 = vector.shape_cast %46 : vector<1x1x4x4x16x10xbf16> to vector<4x4x16x10xbf16>
    %48 = vector.extract_strided_slice %23 {offsets = [0, 0, 1, 0, 0, 0], sizes = [1, 1, 4, 4, 16, 10], strides = [1, 1, 1, 1, 1, 1]} : vector<2x2x6x6x16x10xbf16> to vector<1x1x4x4x16x10xbf16>
    %49 = vector.shape_cast %48 : vector<1x1x4x4x16x10xbf16> to vector<4x4x16x10xbf16>
    %50 = vector.extract_strided_slice %23 {offsets = [0, 1, 1, 0, 0, 0], sizes = [1, 1, 4, 4, 16, 10], strides = [1, 1, 1, 1, 1, 1]} : vector<2x2x6x6x16x10xbf16> to vector<1x1x4x4x16x10xbf16>
    %51 = vector.shape_cast %50 : vector<1x1x4x4x16x10xbf16> to vector<4x4x16x10xbf16>
    %52 = vector.extract_strided_slice %23 {offsets = [0, 0, 1, 1, 0, 0], sizes = [1, 1, 4, 4, 16, 10], strides = [1, 1, 1, 1, 1, 1]} : vector<2x2x6x6x16x10xbf16> to vector<1x1x4x4x16x10xbf16>
    %53 = vector.shape_cast %52 : vector<1x1x4x4x16x10xbf16> to vector<4x4x16x10xbf16>
    %54 = vector.extract_strided_slice %23 {offsets = [0, 1, 1, 1, 0, 0], sizes = [1, 1, 4, 4, 16, 10], strides = [1, 1, 1, 1, 1, 1]} : vector<2x2x6x6x16x10xbf16> to vector<1x1x4x4x16x10xbf16>
    %55 = vector.shape_cast %54 : vector<1x1x4x4x16x10xbf16> to vector<4x4x16x10xbf16>
    %56 = vector.extract_strided_slice %23 {offsets = [0, 0, 1, 2, 0, 0], sizes = [1, 1, 4, 4, 16, 10], strides = [1, 1, 1, 1, 1, 1]} : vector<2x2x6x6x16x10xbf16> to vector<1x1x4x4x16x10xbf16>
    %57 = vector.shape_cast %56 : vector<1x1x4x4x16x10xbf16> to vector<4x4x16x10xbf16>
    %58 = vector.extract_strided_slice %23 {offsets = [0, 1, 1, 2, 0, 0], sizes = [1, 1, 4, 4, 16, 10], strides = [1, 1, 1, 1, 1, 1]} : vector<2x2x6x6x16x10xbf16> to vector<1x1x4x4x16x10xbf16>
    %59 = vector.shape_cast %58 : vector<1x1x4x4x16x10xbf16> to vector<4x4x16x10xbf16>
    %60 = vector.extract_strided_slice %23 {offsets = [1, 0, 1, 0, 0, 0], sizes = [1, 1, 4, 4, 16, 10], strides = [1, 1, 1, 1, 1, 1]} : vector<2x2x6x6x16x10xbf16> to vector<1x1x4x4x16x10xbf16>
    %61 = vector.shape_cast %60 : vector<1x1x4x4x16x10xbf16> to vector<4x4x16x10xbf16>
    %62 = vector.extract_strided_slice %23 {offsets = [1, 1, 1, 0, 0, 0], sizes = [1, 1, 4, 4, 16, 10], strides = [1, 1, 1, 1, 1, 1]} : vector<2x2x6x6x16x10xbf16> to vector<1x1x4x4x16x10xbf16>
    %63 = vector.shape_cast %62 : vector<1x1x4x4x16x10xbf16> to vector<4x4x16x10xbf16>
    %64 = vector.extract_strided_slice %23 {offsets = [1, 0, 1, 1, 0, 0], sizes = [1, 1, 4, 4, 16, 10], strides = [1, 1, 1, 1, 1, 1]} : vector<2x2x6x6x16x10xbf16> to vector<1x1x4x4x16x10xbf16>
    %65 = vector.shape_cast %64 : vector<1x1x4x4x16x10xbf16> to vector<4x4x16x10xbf16>
    %66 = vector.extract_strided_slice %23 {offsets = [1, 1, 1, 1, 0, 0], sizes = [1, 1, 4, 4, 16, 10], strides = [1, 1, 1, 1, 1, 1]} : vector<2x2x6x6x16x10xbf16> to vector<1x1x4x4x16x10xbf16>
    %67 = vector.shape_cast %66 : vector<1x1x4x4x16x10xbf16> to vector<4x4x16x10xbf16>
    %68 = vector.extract_strided_slice %23 {offsets = [1, 0, 1, 2, 0, 0], sizes = [1, 1, 4, 4, 16, 10], strides = [1, 1, 1, 1, 1, 1]} : vector<2x2x6x6x16x10xbf16> to vector<1x1x4x4x16x10xbf16>
    %69 = vector.shape_cast %68 : vector<1x1x4x4x16x10xbf16> to vector<4x4x16x10xbf16>
    %70 = vector.extract_strided_slice %23 {offsets = [1, 1, 1, 2, 0, 0], sizes = [1, 1, 4, 4, 16, 10], strides = [1, 1, 1, 1, 1, 1]} : vector<2x2x6x6x16x10xbf16> to vector<1x1x4x4x16x10xbf16>
    %71 = vector.shape_cast %70 : vector<1x1x4x4x16x10xbf16> to vector<4x4x16x10xbf16>
    %72 = vector.extract_strided_slice %23 {offsets = [0, 0, 2, 0, 0, 0], sizes = [1, 1, 4, 4, 16, 10], strides = [1, 1, 1, 1, 1, 1]} : vector<2x2x6x6x16x10xbf16> to vector<1x1x4x4x16x10xbf16>
    %73 = vector.shape_cast %72 : vector<1x1x4x4x16x10xbf16> to vector<4x4x16x10xbf16>
    %74 = vector.extract_strided_slice %23 {offsets = [0, 1, 2, 0, 0, 0], sizes = [1, 1, 4, 4, 16, 10], strides = [1, 1, 1, 1, 1, 1]} : vector<2x2x6x6x16x10xbf16> to vector<1x1x4x4x16x10xbf16>
    %75 = vector.shape_cast %74 : vector<1x1x4x4x16x10xbf16> to vector<4x4x16x10xbf16>
    %76 = vector.extract_strided_slice %23 {offsets = [0, 0, 2, 1, 0, 0], sizes = [1, 1, 4, 4, 16, 10], strides = [1, 1, 1, 1, 1, 1]} : vector<2x2x6x6x16x10xbf16> to vector<1x1x4x4x16x10xbf16>
    %77 = vector.shape_cast %76 : vector<1x1x4x4x16x10xbf16> to vector<4x4x16x10xbf16>
    %78 = vector.extract_strided_slice %23 {offsets = [0, 1, 2, 1, 0, 0], sizes = [1, 1, 4, 4, 16, 10], strides = [1, 1, 1, 1, 1, 1]} : vector<2x2x6x6x16x10xbf16> to vector<1x1x4x4x16x10xbf16>
    %79 = vector.shape_cast %78 : vector<1x1x4x4x16x10xbf16> to vector<4x4x16x10xbf16>
    %80 = vector.extract_strided_slice %23 {offsets = [0, 0, 2, 2, 0, 0], sizes = [1, 1, 4, 4, 16, 10], strides = [1, 1, 1, 1, 1, 1]} : vector<2x2x6x6x16x10xbf16> to vector<1x1x4x4x16x10xbf16>
    %81 = vector.shape_cast %80 : vector<1x1x4x4x16x10xbf16> to vector<4x4x16x10xbf16>
    %82 = vector.extract_strided_slice %23 {offsets = [0, 1, 2, 2, 0, 0], sizes = [1, 1, 4, 4, 16, 10], strides = [1, 1, 1, 1, 1, 1]} : vector<2x2x6x6x16x10xbf16> to vector<1x1x4x4x16x10xbf16>
    %83 = vector.shape_cast %82 : vector<1x1x4x4x16x10xbf16> to vector<4x4x16x10xbf16>
    %84 = vector.extract_strided_slice %23 {offsets = [1, 0, 2, 0, 0, 0], sizes = [1, 1, 4, 4, 16, 10], strides = [1, 1, 1, 1, 1, 1]} : vector<2x2x6x6x16x10xbf16> to vector<1x1x4x4x16x10xbf16>
    %85 = vector.shape_cast %84 : vector<1x1x4x4x16x10xbf16> to vector<4x4x16x10xbf16>
    %86 = vector.extract_strided_slice %23 {offsets = [1, 1, 2, 0, 0, 0], sizes = [1, 1, 4, 4, 16, 10], strides = [1, 1, 1, 1, 1, 1]} : vector<2x2x6x6x16x10xbf16> to vector<1x1x4x4x16x10xbf16>
    %87 = vector.shape_cast %86 : vector<1x1x4x4x16x10xbf16> to vector<4x4x16x10xbf16>
    %88 = vector.extract_strided_slice %23 {offsets = [1, 0, 2, 1, 0, 0], sizes = [1, 1, 4, 4, 16, 10], strides = [1, 1, 1, 1, 1, 1]} : vector<2x2x6x6x16x10xbf16> to vector<1x1x4x4x16x10xbf16>
    %89 = vector.shape_cast %88 : vector<1x1x4x4x16x10xbf16> to vector<4x4x16x10xbf16>
    %90 = vector.extract_strided_slice %23 {offsets = [1, 1, 2, 1, 0, 0], sizes = [1, 1, 4, 4, 16, 10], strides = [1, 1, 1, 1, 1, 1]} : vector<2x2x6x6x16x10xbf16> to vector<1x1x4x4x16x10xbf16>
    %91 = vector.shape_cast %90 : vector<1x1x4x4x16x10xbf16> to vector<4x4x16x10xbf16>
    %92 = vector.extract_strided_slice %23 {offsets = [1, 0, 2, 2, 0, 0], sizes = [1, 1, 4, 4, 16, 10], strides = [1, 1, 1, 1, 1, 1]} : vector<2x2x6x6x16x10xbf16> to vector<1x1x4x4x16x10xbf16>
    %93 = vector.shape_cast %92 : vector<1x1x4x4x16x10xbf16> to vector<4x4x16x10xbf16>
    %94 = vector.extract_strided_slice %23 {offsets = [1, 1, 2, 2, 0, 0], sizes = [1, 1, 4, 4, 16, 10], strides = [1, 1, 1, 1, 1, 1]} : vector<2x2x6x6x16x10xbf16> to vector<1x1x4x4x16x10xbf16>
    %95 = vector.shape_cast %94 : vector<1x1x4x4x16x10xbf16> to vector<4x4x16x10xbf16>
    %96 = tpu.concatenate %25, %27, %29, %31, %33, %35, %37, %39, %41, %43, %45, %47, %49, %51, %53, %55 in 3 : vector<4x4x16x10xbf16>, vector<4x4x16x10xbf16>, vector<4x4x16x10xbf16>, vector<4x4x16x10xbf16>, vector<4x4x16x10xbf16>, vector<4x4x16x10xbf16>, vector<4x4x16x10xbf16>, vector<4x4x16x10xbf16>, vector<4x4x16x10xbf16>, vector<4x4x16x10xbf16>, vector<4x4x16x10xbf16>, vector<4x4x16x10xbf16>, vector<4x4x16x10xbf16>, vector<4x4x16x10xbf16>, vector<4x4x16x10xbf16>, vector<4x4x16x10xbf16> -> vector<4x4x16x160xbf16>
    %97 = tpu.concatenate %57, %59, %61, %63, %65, %67, %69, %71, %73, %75, %77, %79, %81, %83, %85, %87 in 3 : vector<4x4x16x10xbf16>, vector<4x4x16x10xbf16>, vector<4x4x16x10xbf16>, vector<4x4x16x10xbf16>, vector<4x4x16x10xbf16>, vector<4x4x16x10xbf16>, vector<4x4x16x10xbf16>, vector<4x4x16x10xbf16>, vector<4x4x16x10xbf16>, vector<4x4x16x10xbf16>, vector<4x4x16x10xbf16>, vector<4x4x16x10xbf16>, vector<4x4x16x10xbf16>, vector<4x4x16x10xbf16>, vector<4x4x16x10xbf16>, vector<4x4x16x10xbf16> -> vector<4x4x16x160xbf16>
    %98 = tpu.concatenate %89, %91, %93, %95 in 3 : vector<4x4x16x10xbf16>, vector<4x4x16x10xbf16>, vector<4x4x16x10xbf16>, vector<4x4x16x10xbf16> -> vector<4x4x16x40xbf16>
    %99 = tpu.concatenate %96, %97, %98 in 3 : vector<4x4x16x160xbf16>, vector<4x4x16x160xbf16>, vector<4x4x16x40xbf16> -> vector<4x4x16x360xbf16>
    %100 = vector.shape_cast %99 : vector<4x4x16x360xbf16> to vector<256x360xbf16>
    %c0_17 = arith.constant 0 : index
    %c0_18 = arith.constant 0 : index
    %c0_19 = arith.constant 0 : index
    %101 = vector.load %arg4[%c0_17, %c0_18, %c0_19] : memref<4x360x20xbf16, #tpu.memory_space<vmem>>, vector<1x360x20xbf16>
    %102 = vector.shape_cast %101 : vector<1x360x20xbf16> to vector<360x20xbf16>
    %cst_20 = arith.constant dense<0.000000e+00> : vector<256x20xf32>
    %103 = tpu.matmul %100, %102, %cst_20 {dimension_numbers = #tpu.dot_dimension_numbers<[1], [0], [0], [1], [0, 0, 1, 1], [], []>} : vector<256x360xbf16>, vector<360x20xbf16>, vector<256x20xf32> -> vector<256x20xf32>
    %c1_21 = arith.constant 1 : index
    %c0_22 = arith.constant 0 : index
    %c0_23 = arith.constant 0 : index
    %104 = vector.load %arg4[%c1_21, %c0_22, %c0_23] : memref<4x360x20xbf16, #tpu.memory_space<vmem>>, vector<1x360x20xbf16>
    %105 = vector.shape_cast %104 : vector<1x360x20xbf16> to vector<360x20xbf16>
    %cst_24 = arith.constant dense<0.000000e+00> : vector<256x20xf32>
    %106 = tpu.matmul %100, %105, %cst_24 {dimension_numbers = #tpu.dot_dimension_numbers<[1], [0], [0], [1], [0, 0, 1, 1], [], []>} : vector<256x360xbf16>, vector<360x20xbf16>, vector<256x20xf32> -> vector<256x20xf32>
    %107 = arith.maximumf %103, %106 : vector<256x20xf32>
    %c2_25 = arith.constant 2 : index
    %c0_26 = arith.constant 0 : index
    %c0_27 = arith.constant 0 : index
    %108 = vector.load %arg4[%c2_25, %c0_26, %c0_27] : memref<4x360x20xbf16, #tpu.memory_space<vmem>>, vector<1x360x20xbf16>
    %109 = vector.shape_cast %108 : vector<1x360x20xbf16> to vector<360x20xbf16>
    %cst_28 = arith.constant dense<0.000000e+00> : vector<256x20xf32>
    %110 = tpu.matmul %100, %109, %cst_28 {dimension_numbers = #tpu.dot_dimension_numbers<[1], [0], [0], [1], [0, 0, 1, 1], [], []>} : vector<256x360xbf16>, vector<360x20xbf16>, vector<256x20xf32> -> vector<256x20xf32>
    %111 = arith.maximumf %107, %110 : vector<256x20xf32>
    %c3_29 = arith.constant 3 : index
    %c0_30 = arith.constant 0 : index
    %c0_31 = arith.constant 0 : index
    %112 = vector.load %arg4[%c3_29, %c0_30, %c0_31] : memref<4x360x20xbf16, #tpu.memory_space<vmem>>, vector<1x360x20xbf16>
    %113 = vector.shape_cast %112 : vector<1x360x20xbf16> to vector<360x20xbf16>
    %cst_32 = arith.constant dense<0.000000e+00> : vector<256x20xf32>
    %114 = tpu.matmul %100, %113, %cst_32 {dimension_numbers = #tpu.dot_dimension_numbers<[1], [0], [0], [1], [0, 0, 1, 1], [], []>} : vector<256x360xbf16>, vector<360x20xbf16>, vector<256x20xf32> -> vector<256x20xf32>
    %115 = arith.maximumf %111, %114 : vector<256x20xf32>
    %c0_33 = arith.constant 0 : index
    %c0_34 = arith.constant 0 : index
    %116 = vector.load %arg5[%c0_33, %c0_34] : memref<1x20xf32, #tpu.memory_space<vmem>>, vector<1x20xf32>
    %117 = vector.broadcast %116 : vector<1x20xf32> to vector<256x20xf32>
    %118 = arith.addf %115, %117 : vector<256x20xf32>
    %cst_35 = arith.constant 0.000000e+00 : f32
    %119 = vector.broadcast %cst_35 : f32 to vector<256x20xf32>
    %120 = arith.maximumf %118, %119 : vector<256x20xf32>
    %121 = arith.truncf %120 : vector<256x20xf32> to vector<256x20xbf16>
    %122 = vector.shape_cast %121 : vector<256x20xbf16> to vector<16x16x20xbf16>
    %123 = vector.extract_strided_slice %122 {offsets = [0, 0, 0], sizes = [1, 16, 20], strides = [1, 1, 1]} : vector<16x16x20xbf16> to vector<1x16x20xbf16>
    %124 = vector.shape_cast %123 : vector<1x16x20xbf16> to vector<16x20xbf16>
    %125 = vector.extract_strided_slice %122 {offsets = [1, 0, 0], sizes = [1, 16, 20], strides = [1, 1, 1]} : vector<16x16x20xbf16> to vector<1x16x20xbf16>
    %126 = vector.shape_cast %125 : vector<1x16x20xbf16> to vector<16x20xbf16>
    %127 = vector.extract_strided_slice %122 {offsets = [2, 0, 0], sizes = [1, 16, 20], strides = [1, 1, 1]} : vector<16x16x20xbf16> to vector<1x16x20xbf16>
    %128 = vector.shape_cast %127 : vector<1x16x20xbf16> to vector<16x20xbf16>
    %129 = vector.extract_strided_slice %122 {offsets = [3, 0, 0], sizes = [1, 16, 20], strides = [1, 1, 1]} : vector<16x16x20xbf16> to vector<1x16x20xbf16>
    %130 = vector.shape_cast %129 : vector<1x16x20xbf16> to vector<16x20xbf16>
    %131 = vector.extract_strided_slice %122 {offsets = [4, 0, 0], sizes = [1, 16, 20], strides = [1, 1, 1]} : vector<16x16x20xbf16> to vector<1x16x20xbf16>
    %132 = vector.shape_cast %131 : vector<1x16x20xbf16> to vector<16x20xbf16>
    %133 = vector.extract_strided_slice %122 {offsets = [5, 0, 0], sizes = [1, 16, 20], strides = [1, 1, 1]} : vector<16x16x20xbf16> to vector<1x16x20xbf16>
    %134 = vector.shape_cast %133 : vector<1x16x20xbf16> to vector<16x20xbf16>
    %135 = vector.extract_strided_slice %122 {offsets = [6, 0, 0], sizes = [1, 16, 20], strides = [1, 1, 1]} : vector<16x16x20xbf16> to vector<1x16x20xbf16>
    %136 = vector.shape_cast %135 : vector<1x16x20xbf16> to vector<16x20xbf16>
    %137 = vector.extract_strided_slice %122 {offsets = [7, 0, 0], sizes = [1, 16, 20], strides = [1, 1, 1]} : vector<16x16x20xbf16> to vector<1x16x20xbf16>
    %138 = vector.shape_cast %137 : vector<1x16x20xbf16> to vector<16x20xbf16>
    %139 = vector.extract_strided_slice %122 {offsets = [8, 0, 0], sizes = [1, 16, 20], strides = [1, 1, 1]} : vector<16x16x20xbf16> to vector<1x16x20xbf16>
    %140 = vector.shape_cast %139 : vector<1x16x20xbf16> to vector<16x20xbf16>
    %141 = vector.extract_strided_slice %122 {offsets = [9, 0, 0], sizes = [1, 16, 20], strides = [1, 1, 1]} : vector<16x16x20xbf16> to vector<1x16x20xbf16>
    %142 = vector.shape_cast %141 : vector<1x16x20xbf16> to vector<16x20xbf16>
    %143 = vector.extract_strided_slice %122 {offsets = [10, 0, 0], sizes = [1, 16, 20], strides = [1, 1, 1]} : vector<16x16x20xbf16> to vector<1x16x20xbf16>
    %144 = vector.shape_cast %143 : vector<1x16x20xbf16> to vector<16x20xbf16>
    %145 = vector.extract_strided_slice %122 {offsets = [11, 0, 0], sizes = [1, 16, 20], strides = [1, 1, 1]} : vector<16x16x20xbf16> to vector<1x16x20xbf16>
    %146 = vector.shape_cast %145 : vector<1x16x20xbf16> to vector<16x20xbf16>
    %147 = vector.extract_strided_slice %122 {offsets = [12, 0, 0], sizes = [1, 16, 20], strides = [1, 1, 1]} : vector<16x16x20xbf16> to vector<1x16x20xbf16>
    %148 = vector.shape_cast %147 : vector<1x16x20xbf16> to vector<16x20xbf16>
    %149 = vector.extract_strided_slice %122 {offsets = [13, 0, 0], sizes = [1, 16, 20], strides = [1, 1, 1]} : vector<16x16x20xbf16> to vector<1x16x20xbf16>
    %150 = vector.shape_cast %149 : vector<1x16x20xbf16> to vector<16x20xbf16>
    %151 = vector.extract_strided_slice %122 {offsets = [14, 0, 0], sizes = [1, 16, 20], strides = [1, 1, 1]} : vector<16x16x20xbf16> to vector<1x16x20xbf16>
    %152 = vector.shape_cast %151 : vector<1x16x20xbf16> to vector<16x20xbf16>
    %153 = vector.extract_strided_slice %122 {offsets = [15, 0, 0], sizes = [1, 16, 20], strides = [1, 1, 1]} : vector<16x16x20xbf16> to vector<1x16x20xbf16>
    %154 = vector.shape_cast %153 : vector<1x16x20xbf16> to vector<16x20xbf16>
    %155 = tpu.concatenate %124, %126, %128, %130, %132, %134, %136, %138, %140, %142, %144, %146, %148, %150, %152, %154 in 1 : vector<16x20xbf16>, vector<16x20xbf16>, vector<16x20xbf16>, vector<16x20xbf16>, vector<16x20xbf16>, vector<16x20xbf16>, vector<16x20xbf16>, vector<16x20xbf16>, vector<16x20xbf16>, vector<16x20xbf16>, vector<16x20xbf16>, vector<16x20xbf16>, vector<16x20xbf16>, vector<16x20xbf16>, vector<16x20xbf16>, vector<16x20xbf16> -> vector<16x320xbf16>
    %c0_36 = arith.constant 0 : index
    %c0_37 = arith.constant 0 : index
    %156 = vector.load %arg6[%c0_36, %c0_37] : memref<320x10xbf16, #tpu.memory_space<vmem>>, vector<320x10xbf16>
    %cst_38 = arith.constant dense<0.000000e+00> : vector<16x10xf32>
    %157 = tpu.matmul %155, %156, %cst_38 {dimension_numbers = #tpu.dot_dimension_numbers<[1], [0], [0], [1], [0, 0, 1, 1], [], []>} : vector<16x320xbf16>, vector<320x10xbf16>, vector<16x10xf32> -> vector<16x10xf32>
    %c0_39 = arith.constant 0 : index
    %c0_40 = arith.constant 0 : index
    %158 = vector.load %arg7[%c0_39, %c0_40] : memref<1x10xf32, #tpu.memory_space<vmem>>, vector<1x10xf32>
    %159 = vector.broadcast %158 : vector<1x10xf32> to vector<16x10xf32>
    %160 = arith.addf %157, %159 : vector<16x10xf32>
    %c0_41 = arith.constant 0 : index
    %c0_42 = arith.constant 0 : index
    %161 = vector.load %arg8[%c0_41, %c0_42] : memref<16x10xf32, #tpu.memory_space<vmem>>, vector<16x10xf32>
    tpu.vector_store %arg8[%c0_41, %c0_42], %160 {strides = array<i32>} : memref<16x10xf32, #tpu.memory_space<vmem>>, vector<16x10xf32>,
    return
  }
  func.func @transform_0(%arg0: i32) -> (i32, i32, i32) {
    %c0_i32 = arith.constant 0 : i32
    %c0_i32_0 = arith.constant 0 : i32
    %c0_i32_1 = arith.constant 0 : i32
    return %c0_i32, %arg0, %c0_i32_0 : i32, i32, i32
  }
  func.func @transform_1(%arg0: i32) -> (i32, i32, i32) {
    %c0_i32 = arith.constant 0 : i32
    %c0_i32_0 = arith.constant 0 : i32
    %c0_i32_1 = arith.constant 0 : i32
    %c0_i32_2 = arith.constant 0 : i32
    return %c0_i32, %c0_i32_0, %c0_i32_1 : i32, i32, i32
  }
  func.func @transform_2(%arg0: i32) -> (i32, i32) {
    %c0_i32 = arith.constant 0 : i32
    %c0_i32_0 = arith.constant 0 : i32
    %c0_i32_1 = arith.constant 0 : i32
    return %c0_i32, %c0_i32_0 : i32, i32
  }
  func.func @transform_3(%arg0: i32) -> (i32, i32, i32) {
    %c0_i32 = arith.constant 0 : i32
    %c0_i32_0 = arith.constant 0 : i32
    %c0_i32_1 = arith.constant 0 : i32
    %c0_i32_2 = arith.constant 0 : i32
    return %c0_i32, %c0_i32_0, %c0_i32_1 : i32, i32, i32
  }
  func.func @transform_4(%arg0: i32) -> (i32, i32) {
    %c0_i32 = arith.constant 0 : i32
    %c0_i32_0 = arith.constant 0 : i32
    %c0_i32_1 = arith.constant 0 : i32
    return %c0_i32, %c0_i32_0 : i32, i32
  }
  func.func @transform_5(%arg0: i32) -> (i32, i32) {
    %c0_i32 = arith.constant 0 : i32
    %c0_i32_0 = arith.constant 0 : i32
    %c0_i32_1 = arith.constant 0 : i32
    return %c0_i32, %c0_i32_0 : i32, i32
  }
  func.func @transform_6(%arg0: i32) -> (i32, i32) {
    %c0_i32 = arith.constant 0 : i32
    %c0_i32_0 = arith.constant 0 : i32
    %c0_i32_1 = arith.constant 0 : i32
    return %c0_i32, %c0_i32_0 : i32, i32
  }
  func.func @transform_7(%arg0: i32) -> (i32, i32) {
    %c0_i32 = arith.constant 0 : i32
    %c0_i32_0 = arith.constant 0 : i32
    return %arg0, %c0_i32 : i32, i32
  }
}

</mosaic_0001>

<llo_original>
// kernel: net_forward.1
$region0: #{net_forward.1}
  #allocation0 [shape = 'u32[]', space=smem, size = 0x4, offset = 0x4, fixed_abs, tag = 'smem constant byte address 0x4 - core index']
  #allocation1 [shape = 'u32[144,128]{1,0:T(1,128)}', space=vmem, size = 0x12000, scoped, tag = 'internal scratch']
  %s0 = inlined_call_operand.vmem [shape: bf16[144,16,36], index: 0, kind: input, shape index: {}]
  %s1 = inlined_call_operand.vmem [shape: bf16[4,36,10], index: 1, kind: input, shape index: {}]
  %s2 = inlined_call_operand.vmem [shape: f32[1,10], index: 2, kind: input, shape index: {}]
  %s3 = inlined_call_operand.vmem [shape: bf16[4,360,20], index: 3, kind: input, shape index: {}]
  %s4 = inlined_call_operand.vmem [shape: f32[1,20], index: 4, kind: input, shape index: {}]
  %s5 = inlined_call_operand.vmem [shape: bf16[320,10], index: 5, kind: input, shape index: {}]
  %s6 = inlined_call_operand.vmem [shape: f32[1,10], index: 6, kind: input, shape index: {}]
  %s7 = inlined_call_operand.vmem [shape: f32[16,10], index: 7, kind: output, shape index: {}]
  %s8 = sld [smem:[#allocation0]]
  $region38: #{net_forward.1} parent=0
    _
  %s10 = ssub.s32 1, %s8
  %s11 = scalar_select 0, %s10, %s8
  // Predicated region
  $region2: #{net_forward.1} parent=0 // pred_check
    _
  $region3: #{net_forward.1} parent=0 // pred_check_branch
    %13 = sbr.rel (0) target = $region5
  $region4: #{net_forward.1} parent=0 // pred_region
    _
  $region5: #{net_forward.1} parent=0 // pred_fallthru
    _
  // Predicated region
  $region6: #{net_forward.1} parent=0 // pred_check
    _
  $region7: #{net_forward.1} parent=0 // pred_check_branch
    %15 = sbr.rel (0) target = $region9
  $region8: #{net_forward.1} parent=0 // pred_region
    _
  $region9: #{net_forward.1} parent=0 // pred_fallthru
    _
  // Predicated region
  $region10: #{net_forward.1} parent=0 // pred_check
    _
  $region11: #{net_forward.1} parent=0 // pred_check_branch
    %17 = sbr.rel (0) target = $region13
  $region12: #{net_forward.1} parent=0 // pred_region
    _
  $region13: #{net_forward.1} parent=0 // pred_fallthru
    _
  // Predicated region
  $region14: #{net_forward.1} parent=0 // pred_check
    _
  $region15: #{net_forward.1} parent=0 // pred_check_branch
    %19 = sbr.rel (0) target = $region17
  $region16: #{net_forward.1} parent=0 // pred_region
    _
  $region17: #{net_forward.1} parent=0 // pred_fallthru
    _
  // Predicated region
  $region18: #{net_forward.1} parent=0 // pred_check
    _
  $region19: #{net_forward.1} parent=0 // pred_check_branch
    %21 = sbr.rel (0) target = $region21
  $region20: #{net_forward.1} parent=0 // pred_region
    _
  $region21: #{net_forward.1} parent=0 // pred_fallthru
    _
  // Predicated region
  $region22: #{net_forward.1} parent=0 // pred_check
    _
  $region23: #{net_forward.1} parent=0 // pred_check_branch
    %23 = sbr.rel (0) target = $region25
  $region24: #{net_forward.1} parent=0 // pred_region
    _
  $region25: #{net_forward.1} parent=0 // pred_fallthru
    _
  // Predicated region
  $region26: #{net_forward.1} parent=0 // pred_check
    _
  $region27: #{net_forward.1} parent=0 // pred_check_branch
    %25 = sbr.rel (0) target = $region29
  $region28: #{net_forward.1} parent=0 // pred_region
    _
  $region29: #{net_forward.1} parent=0 // pred_fallthru
    _
  %v27 = vld [vmem:[%s0] sm:$0xf]
  %v28 = vld [vmem:[%s0 + $0x4] sm:$0xf]
  %v29 = vld [vmem:[%s0 + $0x8] sm:$0xf]
  %v30 = vld [vmem:[%s0 + $0xc] sm:$0xf]
  %v31 = vld [vmem:[%s0 + $0x10] sm:$0xf]
  %v32 = vld [vmem:[%s0 + $0x14] sm:$0xf]
  %v33 = vld [vmem:[%s0 + $0x18] sm:$0xf]
  %v34 = vld [vmem:[%s0 + $0x1c] sm:$0xf]
  %v35 = vld [vmem:[%s0 + $0x20] sm:$0xf]
  %v36 = vld [vmem:[%s0 + $0x24] sm:$0xf]
  %v37 = vld [vmem:[%s0 + $0x28] sm:$0xf]
  %v38 = vld [vmem:[%s0 + $0x2c] sm:$0xf]
  %v39 = vld [vmem:[%s0 + $0x30] sm:$0xf]
  %v40 = vld [vmem:[%s0 + $0x34] sm:$0xf]
  %v41 = vld [vmem:[%s0 + $0x38] sm:$0xf]
  %v42 = vld [vmem:[%s0 + $0x3c] sm:$0xf]
  %v43 = vld [vmem:[%s0 + $0x40] sm:$0xf]
  %v44 = vld [vmem:[%s0 + $0x44] sm:$0xf]
  %v45 = vld [vmem:[%s0 + $0x48] sm:$0xf]
  %v46 = vld [vmem:[%s0 + $0x4c] sm:$0xf]
  %v47 = vld [vmem:[%s0 + $0x50] sm:$0xf]
  %v48 = vld [vmem:[%s0 + $0x54] sm:$0xf]
  %v49 = vld [vmem:[%s0 + $0x58] sm:$0xf]
  %v50 = vld [vmem:[%s0 + $0x5c] sm:$0xf]
  %v51 = vld [vmem:[%s0 + $0x60] sm:$0xf]
  %v52 = vld [vmem:[%s0 + $0x64] sm:$0xf]
  %v53 = vld [vmem:[%s0 + $0x68] sm:$0xf]
  %v54 = vld [vmem:[%s0 + $0x6c] sm:$0xf]
  %v55 = vld [vmem:[%s0 + $0x70] sm:$0xf]
  %v56 = vld [vmem:[%s0 + $0x74] sm:$0xf]
  %v57 = vld [vmem:[%s0 + $0x78] sm:$0xf]
  %v58 = vld [vmem:[%s0 + $0x7c] sm:$0xf]
  %v59 = vld [vmem:[%s0 + $0x80] sm:$0xf]
  %v60 = vld [vmem:[%s0 + $0x84] sm:$0xf]
  %v61 = vld [vmem:[%s0 + $0x88] sm:$0xf]
  %v62 = vld [vmem:[%s0 + $0x8c] sm:$0xf]
  %v63 = vld [vmem:[%s0 + $0x90] sm:$0xf]
  %v64 = vld [vmem:[%s0 + $0x94] sm:$0xf]
  %v65 = vld [vmem:[%s0 + $0x98] sm:$0xf]
  %v66 = vld [vmem:[%s0 + $0x9c] sm:$0xf]
  %v67 = vld [vmem:[%s0 + $0xa0] sm:$0xf]
  %v68 = vld [vmem:[%s0 + $0xa4] sm:$0xf]
  %v69 = vld [vmem:[%s0 + $0xa8] sm:$0xf]
  %v70 = vld [vmem:[%s0 + $0xac] sm:$0xf]
  %v71 = vld [vmem:[%s0 + $0xb0] sm:$0xf]
  %v72 = vld [vmem:[%s0 + $0xb4] sm:$0xf]
  %v73 = vld [vmem:[%s0 + $0xb8] sm:$0xf]
  %v74 = vld [vmem:[%s0 + $0xbc] sm:$0xf]
  %v75 = vld [vmem:[%s0 + $0xc0] sm:$0xf]
  %v76 = vld [vmem:[%s0 + $0xc4] sm:$0xf]
  %v77 = vld [vmem:[%s0 + $0xc8] sm:$0xf]
  %v78 = vld [vmem:[%s0 + $0xcc] sm:$0xf]
  %v79 = vld [vmem:[%s0 + $0xd0] sm:$0xf]
  %v80 = vld [vmem:[%s0 + $0xd4] sm:$0xf]
  %v81 = vld [vmem:[%s0 + $0xd8] sm:$0xf]
  %v82 = vld [vmem:[%s0 + $0xdc] sm:$0xf]
  %v83 = vld [vmem:[%s0 + $0xe0] sm:$0xf]
  %v84 = vld [vmem:[%s0 + $0xe4] sm:$0xf]
  %v85 = vld [vmem:[%s0 + $0xe8] sm:$0xf]
  %v86 = vld [vmem:[%s0 + $0xec] sm:$0xf]
  %v87 = vld [vmem:[%s0 + $0xf0] sm:$0xf]
  %v88 = vld [vmem:[%s0 + $0xf4] sm:$0xf]
  %v89 = vld [vmem:[%s0 + $0xf8] sm:$0xf]
  %v90 = vld [vmem:[%s0 + $0xfc] sm:$0xf]
  %v91 = vld [vmem:[%s0 + $0x100] sm:$0xf]
  %v92 = vld [vmem:[%s0 + $0x104] sm:$0xf]
  %v93 = vld [vmem:[%s0 + $0x108] sm:$0xf]
  %v94 = vld [vmem:[%s0 + $0x10c] sm:$0xf]
  %v95 = vld [vmem:[%s0 + $0x110] sm:$0xf]
  %v96 = vld [vmem:[%s0 + $0x114] sm:$0xf]
  %v97 = vld [vmem:[%s0 + $0x118] sm:$0xf]
  %v98 = vld [vmem:[%s0 + $0x11c] sm:$0xf]
  %v99 = vld [vmem:[%s0 + $0x120] sm:$0xf]
  %v100 = vld [vmem:[%s0 + $0x124] sm:$0xf]
  %v101 = vld [vmem:[%s0 + $0x128] sm:$0xf]
  %v102 = vld [vmem:[%s0 + $0x12c] sm:$0xf]
  %v103 = vld [vmem:[%s0 + $0x130] sm:$0xf]
  %v104 = vld [vmem:[%s0 + $0x134] sm:$0xf]
  %v105 = vld [vmem:[%s0 + $0x138] sm:$0xf]
  %v106 = vld [vmem:[%s0 + $0x13c] sm:$0xf]
  %v107 = vld [vmem:[%s0 + $0x140] sm:$0xf]
  %v108 = vld [vmem:[%s0 + $0x144] sm:$0xf]
  %v109 = vld [vmem:[%s0 + $0x148] sm:$0xf]
  %v110 = vld [vmem:[%s0 + $0x14c] sm:$0xf]
  %v111 = vld [vmem:[%s0 + $0x150] sm:$0xf]
  %v112 = vld [vmem:[%s0 + $0x154] sm:$0xf]
  %v113 = vld [vmem:[%s0 + $0x158] sm:$0xf]
  %v114 = vld [vmem:[%s0 + $0x15c] sm:$0xf]
  %v115 = vld [vmem:[%s0 + $0x160] sm:$0xf]
  %v116 = vld [vmem:[%s0 + $0x164] sm:$0xf]
  %v117 = vld [vmem:[%s0 + $0x168] sm:$0xf]
  %v118 = vld [vmem:[%s0 + $0x16c] sm:$0xf]
  %v119 = vld [vmem:[%s0 + $0x170] sm:$0xf]
  %v120 = vld [vmem:[%s0 + $0x174] sm:$0xf]
  %v121 = vld [vmem:[%s0 + $0x178] sm:$0xf]
  %v122 = vld [vmem:[%s0 + $0x17c] sm:$0xf]
  %v123 = vld [vmem:[%s0 + $0x180] sm:$0xf]
  %v124 = vld [vmem:[%s0 + $0x184] sm:$0xf]
  %v125 = vld [vmem:[%s0 + $0x188] sm:$0xf]
  %v126 = vld [vmem:[%s0 + $0x18c] sm:$0xf]
  %v127 = vld [vmem:[%s0 + $0x190] sm:$0xf]
  %v128 = vld [vmem:[%s0 + $0x194] sm:$0xf]
  %v129 = vld [vmem:[%s0 + $0x198] sm:$0xf]
  %v130 = vld [vmem:[%s0 + $0x19c] sm:$0xf]
  %v131 = vld [vmem:[%s0 + $0x1a0] sm:$0xf]
  %v132 = vld [vmem:[%s0 + $0x1a4] sm:$0xf]
  %v133 = vld [vmem:[%s0 + $0x1a8] sm:$0xf]
  %v134 = vld [vmem:[%s0 + $0x1ac] sm:$0xf]
  %v135 = vld [vmem:[%s0 + $0x1b0] sm:$0xf]
  %v136 = vld [vmem:[%s0 + $0x1b4] sm:$0xf]
  %v137 = vld [vmem:[%s0 + $0x1b8] sm:$0xf]
  %v138 = vld [vmem:[%s0 + $0x1bc] sm:$0xf]
  %v139 = vld [vmem:[%s0 + $0x1c0] sm:$0xf]
  %v140 = vld [vmem:[%s0 + $0x1c4] sm:$0xf]
  %v141 = vld [vmem:[%s0 + $0x1c8] sm:$0xf]
  %v142 = vld [vmem:[%s0 + $0x1cc] sm:$0xf]
  %v143 = vld [vmem:[%s0 + $0x1d0] sm:$0xf]
  %v144 = vld [vmem:[%s0 + $0x1d4] sm:$0xf]
  %v145 = vld [vmem:[%s0 + $0x1d8] sm:$0xf]
  %v146 = vld [vmem:[%s0 + $0x1dc] sm:$0xf]
  %v147 = vld [vmem:[%s0 + $0x1e0] sm:$0xf]
  %v148 = vld [vmem:[%s0 + $0x1e4] sm:$0xf]
  %v149 = vld [vmem:[%s0 + $0x1e8] sm:$0xf]
  %v150 = vld [vmem:[%s0 + $0x1ec] sm:$0xf]
  %v151 = vld [vmem:[%s0 + $0x1f0] sm:$0xf]
  %v152 = vld [vmem:[%s0 + $0x1f4] sm:$0xf]
  %v153 = vld [vmem:[%s0 + $0x1f8] sm:$0xf]
  %v154 = vld [vmem:[%s0 + $0x1fc] sm:$0xf]
  %v155 = vld [vmem:[%s0 + $0x200] sm:$0xf]
  %v156 = vld [vmem:[%s0 + $0x204] sm:$0xf]
  %v157 = vld [vmem:[%s0 + $0x208] sm:$0xf]
  %v158 = vld [vmem:[%s0 + $0x20c] sm:$0xf]
  %v159 = vld [vmem:[%s0 + $0x210] sm:$0xf]
  %v160 = vld [vmem:[%s0 + $0x214] sm:$0xf]
  %v161 = vld [vmem:[%s0 + $0x218] sm:$0xf]
  %v162 = vld [vmem:[%s0 + $0x21c] sm:$0xf]
  %v163 = vld [vmem:[%s0 + $0x220] sm:$0xf]
  %v164 = vld [vmem:[%s0 + $0x224] sm:$0xf]
  %v165 = vld [vmem:[%s0 + $0x228] sm:$0xf]
  %v166 = vld [vmem:[%s0 + $0x22c] sm:$0xf]
  %v167 = vld [vmem:[%s0 + $0x230] sm:$0xf]
  %v168 = vld [vmem:[%s0 + $0x234] sm:$0xf]
  %v169 = vld [vmem:[%s0 + $0x238] sm:$0xf]
  %v170 = vld [vmem:[%s0 + $0x23c] sm:$0xf]
  %v171 = vld [vmem:[%s0 + $0x240] sm:$0xf]
  %v172 = vld [vmem:[%s0 + $0x244] sm:$0xf]
  %v173 = vld [vmem:[%s0 + $0x248] sm:$0xf]
  %v174 = vld [vmem:[%s0 + $0x24c] sm:$0xf]
  %v175 = vld [vmem:[%s0 + $0x250] sm:$0xf]
  %v176 = vld [vmem:[%s0 + $0x254] sm:$0xf]
  %v177 = vld [vmem:[%s0 + $0x258] sm:$0xf]
  %v178 = vld [vmem:[%s0 + $0x25c] sm:$0xf]
  %v179 = vld [vmem:[%s0 + $0x260] sm:$0xf]
  %v180 = vld [vmem:[%s0 + $0x264] sm:$0xf]
  %v181 = vld [vmem:[%s0 + $0x268] sm:$0xf]
  %v182 = vld [vmem:[%s0 + $0x26c] sm:$0xf]
  %v183 = vld [vmem:[%s0 + $0x270] sm:$0xf]
  %v184 = vld [vmem:[%s0 + $0x274] sm:$0xf]
  %v185 = vld [vmem:[%s0 + $0x278] sm:$0xf]
  %v186 = vld [vmem:[%s0 + $0x27c] sm:$0xf]
  %v187 = vld [vmem:[%s0 + $0x280] sm:$0xf]
  %v188 = vld [vmem:[%s0 + $0x284] sm:$0xf]
  %v189 = vld [vmem:[%s0 + $0x288] sm:$0xf]
  %v190 = vld [vmem:[%s0 + $0x28c] sm:$0xf]
  %v191 = vld [vmem:[%s0 + $0x290] sm:$0xf]
  %v192 = vld [vmem:[%s0 + $0x294] sm:$0xf]
  %v193 = vld [vmem:[%s0 + $0x298] sm:$0xf]
  %v194 = vld [vmem:[%s0 + $0x29c] sm:$0xf]
  %v195 = vld [vmem:[%s0 + $0x2a0] sm:$0xf]
  %v196 = vld [vmem:[%s0 + $0x2a4] sm:$0xf]
  %v197 = vld [vmem:[%s0 + $0x2a8] sm:$0xf]
  %v198 = vld [vmem:[%s0 + $0x2ac] sm:$0xf]
  %v199 = vld [vmem:[%s0 + $0x2b0] sm:$0xf]
  %v200 = vld [vmem:[%s0 + $0x2b4] sm:$0xf]
  %v201 = vld [vmem:[%s0 + $0x2b8] sm:$0xf]
  %v202 = vld [vmem:[%s0 + $0x2bc] sm:$0xf]
  %v203 = vld [vmem:[%s0 + $0x2c0] sm:$0xf]
  %v204 = vld [vmem:[%s0 + $0x2c4] sm:$0xf]
  %v205 = vld [vmem:[%s0 + $0x2c8] sm:$0xf]
  %v206 = vld [vmem:[%s0 + $0x2cc] sm:$0xf]
  %v207 = vld [vmem:[%s0 + $0x2d0] sm:$0xf]
  %v208 = vld [vmem:[%s0 + $0x2d4] sm:$0xf]
  %v209 = vld [vmem:[%s0 + $0x2d8] sm:$0xf]
  %v210 = vld [vmem:[%s0 + $0x2dc] sm:$0xf]
  %v211 = vld [vmem:[%s0 + $0x2e0] sm:$0xf]
  %v212 = vld [vmem:[%s0 + $0x2e4] sm:$0xf]
  %v213 = vld [vmem:[%s0 + $0x2e8] sm:$0xf]
  %v214 = vld [vmem:[%s0 + $0x2ec] sm:$0xf]
  %v215 = vld [vmem:[%s0 + $0x2f0] sm:$0xf]
  %v216 = vld [vmem:[%s0 + $0x2f4] sm:$0xf]
  %v217 = vld [vmem:[%s0 + $0x2f8] sm:$0xf]
  %v218 = vld [vmem:[%s0 + $0x2fc] sm:$0xf]
  %v219 = vld [vmem:[%s0 + $0x300] sm:$0xf]
  %v220 = vld [vmem:[%s0 + $0x304] sm:$0xf]
  %v221 = vld [vmem:[%s0 + $0x308] sm:$0xf]
  %v222 = vld [vmem:[%s0 + $0x30c] sm:$0xf]
  %v223 = vld [vmem:[%s0 + $0x310] sm:$0xf]
  %v224 = vld [vmem:[%s0 + $0x314] sm:$0xf]
  %v225 = vld [vmem:[%s0 + $0x318] sm:$0xf]
  %v226 = vld [vmem:[%s0 + $0x31c] sm:$0xf]
  %v227 = vld [vmem:[%s0 + $0x320] sm:$0xf]
  %v228 = vld [vmem:[%s0 + $0x324] sm:$0xf]
  %v229 = vld [vmem:[%s0 + $0x328] sm:$0xf]
  %v230 = vld [vmem:[%s0 + $0x32c] sm:$0xf]
  %v231 = vld [vmem:[%s0 + $0x330] sm:$0xf]
  %v232 = vld [vmem:[%s0 + $0x334] sm:$0xf]
  %v233 = vld [vmem:[%s0 + $0x338] sm:$0xf]
  %v234 = vld [vmem:[%s0 + $0x33c] sm:$0xf]
  %v235 = vld [vmem:[%s0 + $0x340] sm:$0xf]
  %v236 = vld [vmem:[%s0 + $0x344] sm:$0xf]
  %v237 = vld [vmem:[%s0 + $0x348] sm:$0xf]
  %v238 = vld [vmem:[%s0 + $0x34c] sm:$0xf]
  %v239 = vld [vmem:[%s0 + $0x350] sm:$0xf]
  %v240 = vld [vmem:[%s0 + $0x354] sm:$0xf]
  %v241 = vld [vmem:[%s0 + $0x358] sm:$0xf]
  %v242 = vld [vmem:[%s0 + $0x35c] sm:$0xf]
  %v243 = vld [vmem:[%s0 + $0x360] sm:$0xf]
  %v244 = vld [vmem:[%s0 + $0x364] sm:$0xf]
  %v245 = vld [vmem:[%s0 + $0x368] sm:$0xf]
  %v246 = vld [vmem:[%s0 + $0x36c] sm:$0xf]
  %v247 = vld [vmem:[%s0 + $0x370] sm:$0xf]
  %v248 = vld [vmem:[%s0 + $0x374] sm:$0xf]
  %v249 = vld [vmem:[%s0 + $0x378] sm:$0xf]
  %v250 = vld [vmem:[%s0 + $0x37c] sm:$0xf]
  %v251 = vld [vmem:[%s0 + $0x380] sm:$0xf]
  %v252 = vld [vmem:[%s0 + $0x384] sm:$0xf]
  %v253 = vld [vmem:[%s0 + $0x388] sm:$0xf]
  %v254 = vld [vmem:[%s0 + $0x38c] sm:$0xf]
  %v255 = vld [vmem:[%s0 + $0x390] sm:$0xf]
  %v256 = vld [vmem:[%s0 + $0x394] sm:$0xf]
  %v257 = vld [vmem:[%s0 + $0x398] sm:$0xf]
  %v258 = vld [vmem:[%s0 + $0x39c] sm:$0xf]
  %v259 = vld [vmem:[%s0 + $0x3a0] sm:$0xf]
  %v260 = vld [vmem:[%s0 + $0x3a4] sm:$0xf]
  %v261 = vld [vmem:[%s0 + $0x3a8] sm:$0xf]
  %v262 = vld [vmem:[%s0 + $0x3ac] sm:$0xf]
  %v263 = vld [vmem:[%s0 + $0x3b0] sm:$0xf]
  %v264 = vld [vmem:[%s0 + $0x3b4] sm:$0xf]
  %v265 = vld [vmem:[%s0 + $0x3b8] sm:$0xf]
  %v266 = vld [vmem:[%s0 + $0x3bc] sm:$0xf]
  %v267 = vld [vmem:[%s0 + $0x3c0] sm:$0xf]
  %v268 = vld [vmem:[%s0 + $0x3c4] sm:$0xf]
  %v269 = vld [vmem:[%s0 + $0x3c8] sm:$0xf]
  %v270 = vld [vmem:[%s0 + $0x3cc] sm:$0xf]
  %v271 = vld [vmem:[%s0 + $0x3d0] sm:$0xf]
  %v272 = vld [vmem:[%s0 + $0x3d4] sm:$0xf]
  %v273 = vld [vmem:[%s0 + $0x3d8] sm:$0xf]
  %v274 = vld [vmem:[%s0 + $0x3dc] sm:$0xf]
  %v275 = vld [vmem:[%s0 + $0x3e0] sm:$0xf]
  %v276 = vld [vmem:[%s0 + $0x3e4] sm:$0xf]
  %v277 = vld [vmem:[%s0 + $0x3e8] sm:$0xf]
  %v278 = vld [vmem:[%s0 + $0x3ec] sm:$0xf]
  %v279 = vld [vmem:[%s0 + $0x3f0] sm:$0xf]
  %v280 = vld [vmem:[%s0 + $0x3f4] sm:$0xf]
  %v281 = vld [vmem:[%s0 + $0x3f8] sm:$0xf]
  %v282 = vld [vmem:[%s0 + $0x3fc] sm:$0xf]
  %v283 = vld [vmem:[%s0 + $0x400] sm:$0xf]
  %v284 = vld [vmem:[%s0 + $0x404] sm:$0xf]
  %v285 = vld [vmem:[%s0 + $0x408] sm:$0xf]
  %v286 = vld [vmem:[%s0 + $0x40c] sm:$0xf]
  %v287 = vld [vmem:[%s0 + $0x410] sm:$0xf]
  %v288 = vld [vmem:[%s0 + $0x414] sm:$0xf]
  %v289 = vld [vmem:[%s0 + $0x418] sm:$0xf]
  %v290 = vld [vmem:[%s0 + $0x41c] sm:$0xf]
  %v291 = vld [vmem:[%s0 + $0x420] sm:$0xf]
  %v292 = vld [vmem:[%s0 + $0x424] sm:$0xf]
  %v293 = vld [vmem:[%s0 + $0x428] sm:$0xf]
  %v294 = vld [vmem:[%s0 + $0x42c] sm:$0xf]
  %v295 = vld [vmem:[%s0 + $0x430] sm:$0xf]
  %v296 = vld [vmem:[%s0 + $0x434] sm:$0xf]
  %v297 = vld [vmem:[%s0 + $0x438] sm:$0xf]
  %v298 = vld [vmem:[%s0 + $0x43c] sm:$0xf]
  %v299 = vld [vmem:[%s0 + $0x440] sm:$0xf]
  %v300 = vld [vmem:[%s0 + $0x444] sm:$0xf]
  %v301 = vld [vmem:[%s0 + $0x448] sm:$0xf]
  %v302 = vld [vmem:[%s0 + $0x44c] sm:$0xf]
  %v303 = vld [vmem:[%s0 + $0x450] sm:$0xf]
  %v304 = vld [vmem:[%s0 + $0x454] sm:$0xf]
  %v305 = vld [vmem:[%s0 + $0x458] sm:$0xf]
  %v306 = vld [vmem:[%s0 + $0x45c] sm:$0xf]
  %v307 = vld [vmem:[%s0 + $0x460] sm:$0xf]
  %v308 = vld [vmem:[%s0 + $0x464] sm:$0xf]
  %v309 = vld [vmem:[%s0 + $0x468] sm:$0xf]
  %v310 = vld [vmem:[%s0 + $0x46c] sm:$0xf]
  %v311 = vld [vmem:[%s0 + $0x470] sm:$0xf]
  %v312 = vld [vmem:[%s0 + $0x474] sm:$0xf]
  %v313 = vld [vmem:[%s0 + $0x478] sm:$0xf]
  %v314 = vld [vmem:[%s0 + $0x47c] sm:$0xf]
  %v315 = vld [vmem:[%s1] sm:$0xf]
  %v316 = vld [vmem:[%s1 + $0x4] sm:$0xf]
  %v317 = vld [vmem:[%s1 + $0x8] sm:$0xf]
  %v318 = vld [vmem:[%s1 + $0xc] sm:$0xf]
  %v319 = vld [vmem:[%s1 + $0x10] sm:$0x3]
  %v608 = vunpack.c.l.b16 %v27
  %v609 = vunpack.c.l.b16 %v28
  %v610 = vunpack.c.l.b16 %v29
  %v611 = vunpack.c.l.b16 %v30
  %v612 = vunpack.c.l.b16 %v31
  %v613 = vunpack.c.l.b16 %v32
  %v614 = vunpack.c.l.b16 %v33
  %v615 = vunpack.c.l.b16 %v34
  %v616 = vunpack.c.l.b16 %v35
  %v617 = vunpack.c.l.b16 %v36
  %v618 = vunpack.c.l.b16 %v37
  %v619 = vunpack.c.l.b16 %v38
  %v620 = vunpack.c.l.b16 %v39
  %v621 = vunpack.c.l.b16 %v40
  %v622 = vunpack.c.l.b16 %v41
  %v623 = vunpack.c.l.b16 %v42
  %v624 = vunpack.c.l.b16 %v43
  %v625 = vunpack.c.l.b16 %v44
  %v626 = vunpack.c.l.b16 %v45
  %v627 = vunpack.c.l.b16 %v46
  %v628 = vunpack.c.l.b16 %v47
  %v629 = vunpack.c.l.b16 %v48
  %v630 = vunpack.c.l.b16 %v49
  %v631 = vunpack.c.l.b16 %v50
  %v632 = vunpack.c.l.b16 %v51
  %v633 = vunpack.c.l.b16 %v52
  %v634 = vunpack.c.l.b16 %v53
  %v635 = vunpack.c.l.b16 %v54
  %v636 = vunpack.c.l.b16 %v55
  %v637 = vunpack.c.l.b16 %v56
  %v638 = vunpack.c.l.b16 %v57
  %v639 = vunpack.c.l.b16 %v58
  %v640 = vunpack.c.l.b16 %v59
  %v641 = vunpack.c.l.b16 %v60
  %v642 = vunpack.c.l.b16 %v61
  %v643 = vunpack.c.l.b16 %v62
  %v644 = vunpack.c.l.b16 %v63
  %v645 = vunpack.c.l.b16 %v64
  %v646 = vunpack.c.l.b16 %v65
  %v647 = vunpack.c.l.b16 %v66
  %v648 = vunpack.c.l.b16 %v67
  %v649 = vunpack.c.l.b16 %v68
  %v650 = vunpack.c.l.b16 %v69
  %v651 = vunpack.c.l.b16 %v70
  %v652 = vunpack.c.l.b16 %v71
  %v653 = vunpack.c.l.b16 %v72
  %v654 = vunpack.c.l.b16 %v73
  %v655 = vunpack.c.l.b16 %v74
  %v656 = vunpack.c.l.b16 %v75
  %v657 = vunpack.c.l.b16 %v76
  %v658 = vunpack.c.l.b16 %v77
  %v659 = vunpack.c.l.b16 %v78
  %v660 = vunpack.c.l.b16 %v79
  %v661 = vunpack.c.l.b16 %v80
  %v662 = vunpack.c.l.b16 %v81
  %v663 = vunpack.c.l.b16 %v82
  %v664 = vunpack.c.l.b16 %v83
  %v665 = vunpack.c.l.b16 %v84
  %v666 = vunpack.c.l.b16 %v85
  %v667 = vunpack.c.l.b16 %v86
  %v668 = vunpack.c.l.b16 %v87
  %v669 = vunpack.c.l.b16 %v88
  %v670 = vunpack.c.l.b16 %v89
  %v671 = vunpack.c.l.b16 %v90
  %v672 = vunpack.c.l.b16 %v91
  %v673 = vunpack.c.l.b16 %v92
  %v674 = vunpack.c.l.b16 %v93
  %v675 = vunpack.c.l.b16 %v94
  %v676 = vunpack.c.l.b16 %v95
  %v677 = vunpack.c.l.b16 %v96
  %v678 = vunpack.c.l.b16 %v97
  %v679 = vunpack.c.l.b16 %v98
  %v680 = vunpack.c.l.b16 %v99
  %v681 = vunpack.c.l.b16 %v100
  %v682 = vunpack.c.l.b16 %v101
  %v683 = vunpack.c.l.b16 %v102
  %v684 = vunpack.c.l.b16 %v103
  %v685 = vunpack.c.l.b16 %v104
  %v686 = vunpack.c.l.b16 %v105
  %v687 = vunpack.c.l.b16 %v106
  %v688 = vunpack.c.l.b16 %v107
  %v689 = vunpack.c.l.b16 %v108
  %v690 = vunpack.c.l.b16 %v109
  %v691 = vunpack.c.l.b16 %v110
  %v692 = vunpack.c.l.b16 %v111
  %v693 = vunpack.c.l.b16 %v112
  %v694 = vunpack.c.l.b16 %v113
  %v695 = vunpack.c.l.b16 %v114
  %v696 = vunpack.c.l.b16 %v115
  %v697 = vunpack.c.l.b16 %v116
  %v698 = vunpack.c.l.b16 %v117
  %v699 = vunpack.c.l.b16 %v118
  %v700 = vunpack.c.l.b16 %v119
  %v701 = vunpack.c.l.b16 %v120
  %v702 = vunpack.c.l.b16 %v121
  %v703 = vunpack.c.l.b16 %v122
  %v704 = vunpack.c.l.b16 %v123
  %v705 = vunpack.c.l.b16 %v124
  %v706 = vunpack.c.l.b16 %v125
  %v707 = vunpack.c.l.b16 %v126
  %v708 = vunpack.c.l.b16 %v127
  %v709 = vunpack.c.l.b16 %v128
  %v710 = vunpack.c.l.b16 %v129
  %v711 = vunpack.c.l.b16 %v130
  %v712 = vunpack.c.l.b16 %v131
  %v713 = vunpack.c.l.b16 %v132
  %v714 = vunpack.c.l.b16 %v133
  %v715 = vunpack.c.l.b16 %v134
  %v716 = vunpack.c.l.b16 %v135
  %v717 = vunpack.c.l.b16 %v136
  %v718 = vunpack.c.l.b16 %v137
  %v719 = vunpack.c.l.b16 %v138
  %v720 = vunpack.c.l.b16 %v139
  %v721 = vunpack.c.l.b16 %v140
  %v722 = vunpack.c.l.b16 %v141
  %v723 = vunpack.c.l.b16 %v142
  %v724 = vunpack.c.l.b16 %v143
  %v725 = vunpack.c.l.b16 %v144
  %v726 = vunpack.c.l.b16 %v145
  %v727 = vunpack.c.l.b16 %v146
  %v728 = vunpack.c.l.b16 %v147
  %v729 = vunpack.c.l.b16 %v148
  %v730 = vunpack.c.l.b16 %v149
  %v731 = vunpack.c.l.b16 %v150
  %v732 = vunpack.c.l.b16 %v151
  %v733 = vunpack.c.l.b16 %v152
  %v734 = vunpack.c.l.b16 %v153
  %v735 = vunpack.c.l.b16 %v154
  %v736 = vunpack.c.l.b16 %v155
  %v737 = vunpack.c.l.b16 %v156
  %v738 = vunpack.c.l.b16 %v157
  %v739 = vunpack.c.l.b16 %v158
  %v740 = vunpack.c.l.b16 %v159
  %v741 = vunpack.c.l.b16 %v160
  %v742 = vunpack.c.l.b16 %v161
  %v743 = vunpack.c.l.b16 %v162
  %v744 = vunpack.c.l.b16 %v163
  %v745 = vunpack.c.l.b16 %v164
  %v746 = vunpack.c.l.b16 %v165
  %v747 = vunpack.c.l.b16 %v166
  %v748 = vunpack.c.l.b16 %v167
  %v749 = vunpack.c.l.b16 %v168
  %v750 = vunpack.c.l.b16 %v169
  %v751 = vunpack.c.l.b16 %v170
  %v752 = vunpack.c.l.b16 %v171
  %v753 = vunpack.c.l.b16 %v172
  %v754 = vunpack.c.l.b16 %v173
  %v755 = vunpack.c.l.b16 %v174
  %v756 = vunpack.c.l.b16 %v175
  %v757 = vunpack.c.l.b16 %v176
  %v758 = vunpack.c.l.b16 %v177
  %v759 = vunpack.c.l.b16 %v178
  %v760 = vunpack.c.l.b16 %v179
  %v761 = vunpack.c.l.b16 %v180
  %v762 = vunpack.c.l.b16 %v181
  %v763 = vunpack.c.l.b16 %v182
  %v764 = vunpack.c.l.b16 %v183
  %v765 = vunpack.c.l.b16 %v184
  %v766 = vunpack.c.l.b16 %v185
  %v767 = vunpack.c.l.b16 %v186
  %v768 = vunpack.c.l.b16 %v187
  %v769 = vunpack.c.l.b16 %v188
  %v770 = vunpack.c.l.b16 %v189
  %v771 = vunpack.c.l.b16 %v190
  %v772 = vunpack.c.l.b16 %v191
  %v773 = vunpack.c.l.b16 %v192
  %v774 = vunpack.c.l.b16 %v193
  %v775 = vunpack.c.l.b16 %v194
  %v776 = vunpack.c.l.b16 %v195
  %v777 = vunpack.c.l.b16 %v196
  %v778 = vunpack.c.l.b16 %v197
  %v779 = vunpack.c.l.b16 %v198
  %v780 = vunpack.c.l.b16 %v199
  %v781 = vunpack.c.l.b16 %v200
  %v782 = vunpack.c.l.b16 %v201
  %v783 = vunpack.c.l.b16 %v202
  %v784 = vunpack.c.l.b16 %v203
  %v785 = vunpack.c.l.b16 %v204
  %v786 = vunpack.c.l.b16 %v205
  %v787 = vunpack.c.l.b16 %v206
  %v788 = vunpack.c.l.b16 %v207
  %v789 = vunpack.c.l.b16 %v208
  %v790 = vunpack.c.l.b16 %v209
  %v791 = vunpack.c.l.b16 %v210
  %v792 = vunpack.c.l.b16 %v211
  %v793 = vunpack.c.l.b16 %v212
  %v794 = vunpack.c.l.b16 %v213
  %v795 = vunpack.c.l.b16 %v214
  %v796 = vunpack.c.l.b16 %v215
  %v797 = vunpack.c.l.b16 %v216
  %v798 = vunpack.c.l.b16 %v217
  %v799 = vunpack.c.l.b16 %v218
  %v800 = vunpack.c.l.b16 %v219
  %v801 = vunpack.c.l.b16 %v220
  %v802 = vunpack.c.l.b16 %v221
  %v803 = vunpack.c.l.b16 %v222
  %v804 = vunpack.c.l.b16 %v223
  %v805 = vunpack.c.l.b16 %v224
  %v806 = vunpack.c.l.b16 %v225
  %v807 = vunpack.c.l.b16 %v226
  %v808 = vunpack.c.l.b16 %v227
  %v809 = vunpack.c.l.b16 %v228
  %v810 = vunpack.c.l.b16 %v229
  %v811 = vunpack.c.l.b16 %v230
  %v812 = vunpack.c.l.b16 %v231
  %v813 = vunpack.c.l.b16 %v232
  %v814 = vunpack.c.l.b16 %v233
  %v815 = vunpack.c.l.b16 %v234
  %v816 = vunpack.c.l.b16 %v235
  %v817 = vunpack.c.l.b16 %v236
  %v818 = vunpack.c.l.b16 %v237
  %v819 = vunpack.c.l.b16 %v238
  %v820 = vunpack.c.l.b16 %v239
  %v821 = vunpack.c.l.b16 %v240
  %v822 = vunpack.c.l.b16 %v241
  %v823 = vunpack.c.l.b16 %v242
  %v824 = vunpack.c.l.b16 %v243
  %v825 = vunpack.c.l.b16 %v244
  %v826 = vunpack.c.l.b16 %v245
  %v827 = vunpack.c.l.b16 %v246
  %v828 = vunpack.c.l.b16 %v247
  %v829 = vunpack.c.l.b16 %v248
  %v830 = vunpack.c.l.b16 %v249
  %v831 = vunpack.c.l.b16 %v250
  %v832 = vunpack.c.l.b16 %v251
  %v833 = vunpack.c.l.b16 %v252
  %v834 = vunpack.c.l.b16 %v253
  %v835 = vunpack.c.l.b16 %v254
  %v836 = vunpack.c.l.b16 %v255
  %v837 = vunpack.c.l.b16 %v256
  %v838 = vunpack.c.l.b16 %v257
  %v839 = vunpack.c.l.b16 %v258
  %v840 = vunpack.c.l.b16 %v259
  %v841 = vunpack.c.l.b16 %v260
  %v842 = vunpack.c.l.b16 %v261
  %v843 = vunpack.c.l.b16 %v262
  %v844 = vunpack.c.l.b16 %v263
  %v845 = vunpack.c.l.b16 %v264
  %v846 = vunpack.c.l.b16 %v265
  %v847 = vunpack.c.l.b16 %v266
  %v848 = vunpack.c.l.b16 %v267
  %v849 = vunpack.c.l.b16 %v268
  %v850 = vunpack.c.l.b16 %v269
  %v851 = vunpack.c.l.b16 %v270
  %v852 = vunpack.c.l.b16 %v271
  %v853 = vunpack.c.l.b16 %v272
  %v854 = vunpack.c.l.b16 %v273
  %v855 = vunpack.c.l.b16 %v274
  %v856 = vunpack.c.l.b16 %v275
  %v857 = vunpack.c.l.b16 %v276
  %v858 = vunpack.c.l.b16 %v277
  %v859 = vunpack.c.l.b16 %v278
  %v860 = vunpack.c.l.b16 %v279
  %v861 = vunpack.c.l.b16 %v280
  %v862 = vunpack.c.l.b16 %v281
  %v863 = vunpack.c.l.b16 %v282
  %v864 = vunpack.c.l.b16 %v283
  %v865 = vunpack.c.l.b16 %v284
  %v866 = vunpack.c.l.b16 %v285
  %v867 = vunpack.c.l.b16 %v286
  %v868 = vunpack.c.l.b16 %v287
  %v869 = vunpack.c.l.b16 %v288
  %v870 = vunpack.c.l.b16 %v289
  %v871 = vunpack.c.l.b16 %v290
  %v872 = vunpack.c.l.b16 %v291
  %v873 = vunpack.c.l.b16 %v292
  %v874 = vunpack.c.l.b16 %v293
  %v875 = vunpack.c.l.b16 %v294
  %v876 = vunpack.c.l.b16 %v295
  %v877 = vunpack.c.l.b16 %v296
  %v878 = vunpack.c.l.b16 %v297
  %v879 = vunpack.c.l.b16 %v298
  %v880 = vunpack.c.l.b16 %v299
  %v881 = vunpack.c.l.b16 %v300
  %v882 = vunpack.c.l.b16 %v301
  %v883 = vunpack.c.l.b16 %v302
  %v884 = vunpack.c.l.b16 %v303
  %v885 = vunpack.c.l.b16 %v304
  %v886 = vunpack.c.l.b16 %v305
  %v887 = vunpack.c.l.b16 %v306
  %v888 = vunpack.c.l.b16 %v307
  %v889 = vunpack.c.l.b16 %v308
  %v890 = vunpack.c.l.b16 %v309
  %v891 = vunpack.c.l.b16 %v310
  %v892 = vunpack.c.l.b16 %v311
  %v893 = vunpack.c.l.b16 %v312
  %v894 = vunpack.c.l.b16 %v313
  %v895 = vunpack.c.l.b16 %v314
  %v896 = vpack.c.b16 %v609, %v608
  %v897 = vpack.c.b16 %v611, %v610
  %v898 = vpack.c.b16 %v613, %v612
  %v899 = vpack.c.b16 %v615, %v614
  %v900 = vpack.c.b16 %v617, %v616
  %v901 = vpack.c.b16 %v619, %v618
  %v902 = vpack.c.b16 %v621, %v620
  %v903 = vpack.c.b16 %v623, %v622
  %v904 = vpack.c.b16 %v625, %v624
  %v905 = vpack.c.b16 %v627, %v626
  %v906 = vpack.c.b16 %v629, %v628
  %v907 = vpack.c.b16 %v631, %v630
  %v908 = vpack.c.b16 %v633, %v632
  %v909 = vpack.c.b16 %v635, %v634
  %v910 = vpack.c.b16 %v637, %v636
  %v911 = vpack.c.b16 %v639, %v638
  %v912 = vpack.c.b16 %v641, %v640
  %v913 = vpack.c.b16 %v643, %v642
  %v914 = vpack.c.b16 %v645, %v644
  %v915 = vpack.c.b16 %v647, %v646
  %v916 = vpack.c.b16 %v649, %v648
  %v917 = vpack.c.b16 %v651, %v650
  %v918 = vpack.c.b16 %v653, %v652
  %v919 = vpack.c.b16 %v655, %v654
  %v920 = vpack.c.b16 %v657, %v656
  %v921 = vpack.c.b16 %v659, %v658
  %v922 = vpack.c.b16 %v661, %v660
  %v923 = vpack.c.b16 %v663, %v662
  %v924 = vpack.c.b16 %v665, %v664
  %v925 = vpack.c.b16 %v667, %v666
  %v926 = vpack.c.b16 %v669, %v668
  %v927 = vpack.c.b16 %v671, %v670
  %v928 = vpack.c.b16 %v673, %v672
  %v929 = vpack.c.b16 %v675, %v674
  %v930 = vpack.c.b16 %v677, %v676
  %v931 = vpack.c.b16 %v679, %v678
  %v932 = vpack.c.b16 %v681, %v680
  %v933 = vpack.c.b16 %v683, %v682
  %v934 = vpack.c.b16 %v685, %v684
  %v935 = vpack.c.b16 %v687, %v686
  %v936 = vpack.c.b16 %v689, %v688
  %v937 = vpack.c.b16 %v691, %v690
  %v938 = vpack.c.b16 %v693, %v692
  %v939 = vpack.c.b16 %v695, %v694
  %v940 = vpack.c.b16 %v697, %v696
  %v941 = vpack.c.b16 %v699, %v698
  %v942 = vpack.c.b16 %v701, %v700
  %v943 = vpack.c.b16 %v703, %v702
  %v944 = vpack.c.b16 %v705, %v704
  %v945 = vpack.c.b16 %v707, %v706
  %v946 = vpack.c.b16 %v709, %v708
  %v947 = vpack.c.b16 %v711, %v710
  %v948 = vpack.c.b16 %v713, %v712
  %v949 = vpack.c.b16 %v715, %v714
  %v950 = vpack.c.b16 %v717, %v716
  %v951 = vpack.c.b16 %v719, %v718
  %v952 = vpack.c.b16 %v721, %v720
  %v953 = vpack.c.b16 %v723, %v722
  %v954 = vpack.c.b16 %v725, %v724
  %v955 = vpack.c.b16 %v727, %v726
  %v956 = vpack.c.b16 %v729, %v728
  %v957 = vpack.c.b16 %v731, %v730
  %v958 = vpack.c.b16 %v733, %v732
  %v959 = vpack.c.b16 %v735, %v734
  %v960 = vpack.c.b16 %v737, %v736
  %v961 = vpack.c.b16 %v739, %v738
  %v962 = vpack.c.b16 %v741, %v740
  %v963 = vpack.c.b16 %v743, %v742
  %v964 = vpack.c.b16 %v745, %v744
  %v965 = vpack.c.b16 %v747, %v746
  %v966 = vpack.c.b16 %v749, %v748
  %v967 = vpack.c.b16 %v751, %v750
  %v968 = vpack.c.b16 %v753, %v752
  %v969 = vpack.c.b16 %v755, %v754
  %v970 = vpack.c.b16 %v757, %v756
  %v971 = vpack.c.b16 %v759, %v758
  %v972 = vpack.c.b16 %v761, %v760
  %v973 = vpack.c.b16 %v763, %v762
  %v974 = vpack.c.b16 %v765, %v764
  %v975 = vpack.c.b16 %v767, %v766
  %v976 = vpack.c.b16 %v769, %v768
  %v977 = vpack.c.b16 %v771, %v770
  %v978 = vpack.c.b16 %v773, %v772
  %v979 = vpack.c.b16 %v775, %v774
  %v980 = vpack.c.b16 %v777, %v776
  %v981 = vpack.c.b16 %v779, %v778
  %v982 = vpack.c.b16 %v781, %v780
  %v983 = vpack.c.b16 %v783, %v782
  %v984 = vpack.c.b16 %v785, %v784
  %v985 = vpack.c.b16 %v787, %v786
  %v986 = vpack.c.b16 %v789, %v788
  %v987 = vpack.c.b16 %v791, %v790
  %v988 = vpack.c.b16 %v793, %v792
  %v989 = vpack.c.b16 %v795, %v794
  %v990 = vpack.c.b16 %v797, %v796
  %v991 = vpack.c.b16 %v799, %v798
  %v992 = vpack.c.b16 %v801, %v800
  %v993 = vpack.c.b16 %v803, %v802
  %v994 = vpack.c.b16 %v805, %v804
  %v995 = vpack.c.b16 %v807, %v806
  %v996 = vpack.c.b16 %v809, %v808
  %v997 = vpack.c.b16 %v811, %v810
  %v998 = vpack.c.b16 %v813, %v812
  %v999 = vpack.c.b16 %v815, %v814
  %v1000 = vpack.c.b16 %v817, %v816
  %v1001 = vpack.c.b16 %v819, %v818
  %v1002 = vpack.c.b16 %v821, %v820
  %v1003 = vpack.c.b16 %v823, %v822
  %v1004 = vpack.c.b16 %v825, %v824
  %v1005 = vpack.c.b16 %v827, %v826
  %v1006 = vpack.c.b16 %v829, %v828
  %v1007 = vpack.c.b16 %v831, %v830
  %v1008 = vpack.c.b16 %v833, %v832
  %v1009 = vpack.c.b16 %v835, %v834
  %v1010 = vpack.c.b16 %v837, %v836
  %v1011 = vpack.c.b16 %v839, %v838
  %v1012 = vpack.c.b16 %v841, %v840
  %v1013 = vpack.c.b16 %v843, %v842
  %v1014 = vpack.c.b16 %v845, %v844
  %v1015 = vpack.c.b16 %v847, %v846
  %v1016 = vpack.c.b16 %v849, %v848
  %v1017 = vpack.c.b16 %v851, %v850
  %v1018 = vpack.c.b16 %v853, %v852
  %v1019 = vpack.c.b16 %v855, %v854
  %v1020 = vpack.c.b16 %v857, %v856
  %v1021 = vpack.c.b16 %v859, %v858
  %v1022 = vpack.c.b16 %v861, %v860
  %v1023 = vpack.c.b16 %v863, %v862
  %v1024 = vpack.c.b16 %v865, %v864
  %v1025 = vpack.c.b16 %v867, %v866
  %v1026 = vpack.c.b16 %v869, %v868
  %v1027 = vpack.c.b16 %v871, %v870
  %v1028 = vpack.c.b16 %v873, %v872
  %v1029 = vpack.c.b16 %v875, %v874
  %v1030 = vpack.c.b16 %v877, %v876
  %v1031 = vpack.c.b16 %v879, %v878
  %v1032 = vpack.c.b16 %v881, %v880
  %v1033 = vpack.c.b16 %v883, %v882
  %v1034 = vpack.c.b16 %v885, %v884
  %v1035 = vpack.c.b16 %v887, %v886
  %v1036 = vpack.c.b16 %v889, %v888
  %v1037 = vpack.c.b16 %v891, %v890
  %v1038 = vpack.c.b16 %v893, %v892
  %v1039 = vpack.c.b16 %v895, %v894
  %v1045 = vunpack.c.l.b16 %v315
  %v1046 = vunpack.c.l.b16 %v316
  %v1047 = vunpack.c.l.b16 %v317
  %v1048 = vunpack.c.l.b16 %v318
  %v1049 = vunpack.c.l.b16 %v319
  %v1050 = vpack.c.b16 %v1046, %v1045
  %v1051 = vpack.c.b16 %v1048, %v1047
  %v1052 = vpack.c.b16 %v1049, %v1049
  %vm1055 = vcmask 293888
  %v1057 = vsel %vm1055, %v896, 0
  %v1060 = vsel %vm1055, %v897, 0
  %v1063 = vsel %vm1055, %v898, 0
  %v1066 = vsel %vm1055, %v899, 0
  %v1069 = vsel %vm1055, %v900, 0
  %v1072 = vsel %vm1055, %v901, 0
  %v1075 = vsel %vm1055, %v902, 0
  %v1078 = vsel %vm1055, %v903, 0
  %v1081 = vsel %vm1055, %v904, 0
  %v1084 = vsel %vm1055, %v905, 0
  %v1087 = vsel %vm1055, %v906, 0
  %v1090 = vsel %vm1055, %v907, 0
  %v1093 = vsel %vm1055, %v908, 0
  %v1096 = vsel %vm1055, %v909, 0
  %v1099 = vsel %vm1055, %v910, 0
  %v1102 = vsel %vm1055, %v911, 0
  %v1105 = vsel %vm1055, %v912, 0
  %v1108 = vsel %vm1055, %v913, 0
  %v1111 = vsel %vm1055, %v914, 0
  %v1114 = vsel %vm1055, %v915, 0
  %v1117 = vsel %vm1055, %v916, 0
  %v1120 = vsel %vm1055, %v917, 0
  %v1123 = vsel %vm1055, %v918, 0
  %v1126 = vsel %vm1055, %v919, 0
  %v1129 = vsel %vm1055, %v920, 0
  %v1132 = vsel %vm1055, %v921, 0
  %v1135 = vsel %vm1055, %v922, 0
  %v1138 = vsel %vm1055, %v923, 0
  %v1141 = vsel %vm1055, %v924, 0
  %v1144 = vsel %vm1055, %v925, 0
  %v1147 = vsel %vm1055, %v926, 0
  %v1150 = vsel %vm1055, %v927, 0
  %v1153 = vsel %vm1055, %v928, 0
  %v1156 = vsel %vm1055, %v929, 0
  %v1159 = vsel %vm1055, %v930, 0
  %v1162 = vsel %vm1055, %v931, 0
  %v1165 = vsel %vm1055, %v932, 0
  %v1168 = vsel %vm1055, %v933, 0
  %v1171 = vsel %vm1055, %v934, 0
  %v1174 = vsel %vm1055, %v935, 0
  %v1177 = vsel %vm1055, %v936, 0
  %v1180 = vsel %vm1055, %v937, 0
  %v1183 = vsel %vm1055, %v938, 0
  %v1186 = vsel %vm1055, %v939, 0
  %v1189 = vsel %vm1055, %v940, 0
  %v1192 = vsel %vm1055, %v941, 0
  %v1195 = vsel %vm1055, %v942, 0
  %v1198 = vsel %vm1055, %v943, 0
  %v1201 = vsel %vm1055, %v944, 0
  %v1204 = vsel %vm1055, %v945, 0
  %v1207 = vsel %vm1055, %v946, 0
  %v1210 = vsel %vm1055, %v947, 0
  %v1213 = vsel %vm1055, %v948, 0
  %v1216 = vsel %vm1055, %v949, 0
  %v1219 = vsel %vm1055, %v950, 0
  %v1222 = vsel %vm1055, %v951, 0
  %v1225 = vsel %vm1055, %v952, 0
  %v1228 = vsel %vm1055, %v953, 0
  %v1231 = vsel %vm1055, %v954, 0
  %v1234 = vsel %vm1055, %v955, 0
  %v1237 = vsel %vm1055, %v956, 0
  %v1240 = vsel %vm1055, %v957, 0
  %v1243 = vsel %vm1055, %v958, 0
  %v1246 = vsel %vm1055, %v959, 0
  %v1249 = vsel %vm1055, %v960, 0
  %v1252 = vsel %vm1055, %v961, 0
  %v1255 = vsel %vm1055, %v962, 0
  %v1258 = vsel %vm1055, %v963, 0
  %v1261 = vsel %vm1055, %v964, 0
  %v1264 = vsel %vm1055, %v965, 0
  %v1267 = vsel %vm1055, %v966, 0
  %v1270 = vsel %vm1055, %v967, 0
  %v1273 = vsel %vm1055, %v968, 0
  %v1276 = vsel %vm1055, %v969, 0
  %v1279 = vsel %vm1055, %v970, 0
  %v1282 = vsel %vm1055, %v971, 0
  %v1285 = vsel %vm1055, %v972, 0
  %v1288 = vsel %vm1055, %v973, 0
  %v1291 = vsel %vm1055, %v974, 0
  %v1294 = vsel %vm1055, %v975, 0
  %v1297 = vsel %vm1055, %v976, 0
  %v1300 = vsel %vm1055, %v977, 0
  %v1303 = vsel %vm1055, %v978, 0
  %v1306 = vsel %vm1055, %v979, 0
  %v1309 = vsel %vm1055, %v980, 0
  %v1312 = vsel %vm1055, %v981, 0
  %v1315 = vsel %vm1055, %v982, 0
  %v1318 = vsel %vm1055, %v983, 0
  %v1321 = vsel %vm1055, %v984, 0
  %v1324 = vsel %vm1055, %v985, 0
  %v1327 = vsel %vm1055, %v986, 0
  %v1330 = vsel %vm1055, %v987, 0
  %v1333 = vsel %vm1055, %v988, 0
  %v1336 = vsel %vm1055, %v989, 0
  %v1339 = vsel %vm1055, %v990, 0
  %v1342 = vsel %vm1055, %v991, 0
  %v1345 = vsel %vm1055, %v992, 0
  %v1348 = vsel %vm1055, %v993, 0
  %v1351 = vsel %vm1055, %v994, 0
  %v1354 = vsel %vm1055, %v995, 0
  %v1357 = vsel %vm1055, %v996, 0
  %v1360 = vsel %vm1055, %v997, 0
  %v1363 = vsel %vm1055, %v998, 0
  %v1366 = vsel %vm1055, %v999, 0
  %v1369 = vsel %vm1055, %v1000, 0
  %v1372 = vsel %vm1055, %v1001, 0
  %v1375 = vsel %vm1055, %v1002, 0
  %v1378 = vsel %vm1055, %v1003, 0
  %v1381 = vsel %vm1055, %v1004, 0
  %v1384 = vsel %vm1055, %v1005, 0
  %v1387 = vsel %vm1055, %v1006, 0
  %v1390 = vsel %vm1055, %v1007, 0
  %v1393 = vsel %vm1055, %v1008, 0
  %v1396 = vsel %vm1055, %v1009, 0
  %v1399 = vsel %vm1055, %v1010, 0
  %v1402 = vsel %vm1055, %v1011, 0
  %v1405 = vsel %vm1055, %v1012, 0
  %v1408 = vsel %vm1055, %v1013, 0
  %v1411 = vsel %vm1055, %v1014, 0
  %v1414 = vsel %vm1055, %v1015, 0
  %v1417 = vsel %vm1055, %v1016, 0
  %v1420 = vsel %vm1055, %v1017, 0
  %v1423 = vsel %vm1055, %v1018, 0
  %v1426 = vsel %vm1055, %v1019, 0
  %v1429 = vsel %vm1055, %v1020, 0
  %v1432 = vsel %vm1055, %v1021, 0
  %v1435 = vsel %vm1055, %v1022, 0
  %v1438 = vsel %vm1055, %v1023, 0
  %v1441 = vsel %vm1055, %v1024, 0
  %v1444 = vsel %vm1055, %v1025, 0
  %v1447 = vsel %vm1055, %v1026, 0
  %v1450 = vsel %vm1055, %v1027, 0
  %v1453 = vsel %vm1055, %v1028, 0
  %v1456 = vsel %vm1055, %v1029, 0
  %v1459 = vsel %vm1055, %v1030, 0
  %v1462 = vsel %vm1055, %v1031, 0
  %v1465 = vsel %vm1055, %v1032, 0
  %v1468 = vsel %vm1055, %v1033, 0
  %v1471 = vsel %vm1055, %v1034, 0
  %v1474 = vsel %vm1055, %v1035, 0
  %v1477 = vsel %vm1055, %v1036, 0
  %v1480 = vsel %vm1055, %v1037, 0
  %v1483 = vsel %vm1055, %v1038, 0
  %v1486 = vsel %vm1055, %v1039, 0
  %vm1488 = vcmask 1041408
  %v1490 = vsel %vm1488, %v1052, 0
  %1492 = vmatprep.subr.bf16.mxu0 0
  %1493 = vmatpush1.bf16.msra.mxu0 0
  %1494 = vmatprep.subr.bf16.mxu0 0
  %1495 = vmatpush1.bf16.msra.mxu0 0
  %1496 = vmatprep.subr.bf16.mxu0 0
  %1497 = vmatpush1.bf16.msra.mxu0 0
  %1498 = vmatprep.subr.bf16.mxu0 0
  %1499 = vmatpush1.bf16.msra.mxu0 0
  %1500 = vmatprep.subr.bf16.mxu0 0
  %1501 = vmatpush1.bf16.msra.mxu0 0
  %1502 = vmatprep.subr.bf16.mxu0 0
  %1503 = vmatpush1.bf16.msra.mxu0 %v1490
  %1504 = vmatprep.subr.bf16.mxu0 0
  %1505 = vmatpush1.bf16.msra.mxu0 %v1051
  %1506 = vmatprep.subr.bf16.mxu0 0
  %1507 = vmatpush1.bf16.msra.mxu0 %v1050
  %1508 = vmatprep.subr.bf16.mxu0 0
  %1509 = vmatpush2.bf16.msra.mxu0 0
  %1510 = vmatprep.subr.bf16.mxu0 0
  %1511 = vmatpush2.bf16.msra.mxu0 0
  %1512 = vmatprep.subr.bf16.mxu0 0
  %1513 = vmatpush2.bf16.msra.mxu0 0
  %1514 = vmatprep.subr.bf16.mxu0 0
  %1515 = vmatpush2.bf16.msra.mxu0 0
  %1516 = vmatprep.subr.bf16.mxu0 0
  %1517 = vmatpush2.bf16.msra.mxu0 0
  %1518 = vmatprep.subr.bf16.mxu0 0
  %1519 = vmatpush2.bf16.msra.mxu0 0
  %1520 = vmatprep.subr.bf16.mxu0 0
  %1521 = vmatpush2.bf16.msra.mxu0 0
  %1522 = vmatprep.subr.bf16.mxu0 0
  %1523 = vmatpush2.bf16.msra.mxu0 0
  %1524 = vmatprep.mubr.bf16.mxu0 0
  %1525 = vmatmul.mubr.bf16.gmra.mxu0 %v1057
  %v1526 = vpop.f32.mrf.mxu0
  %v1527 = vadd.f32 0.0, %v1526
  %v1528 = vpop.f32.mrf.mxu0
  %v1529 = vpop.f32.mrf.mxu0
  %v1530 = vadd.f32 0.0, %v1529
  %v1531 = vpop.f32.mrf.mxu0
  %1532 = vmatprep.mubr.bf16.mxu0 0
  %1533 = vmatmul.mubr.bf16.gmra.mxu0 %v1060
  %v1534 = vpop.f32.mrf.mxu0
  %v1535 = vadd.f32 0.0, %v1534
  %v1536 = vpop.f32.mrf.mxu0
  %v1537 = vpop.f32.mrf.mxu0
  %v1538 = vadd.f32 0.0, %v1537
  %v1539 = vpop.f32.mrf.mxu0
  %1540 = vmatprep.mubr.bf16.mxu0 0
  %1541 = vmatmul.mubr.bf16.gmra.mxu0 %v1063
  %v1542 = vpop.f32.mrf.mxu0
  %v1543 = vadd.f32 0.0, %v1542
  %v1544 = vpop.f32.mrf.mxu0
  %v1545 = vpop.f32.mrf.mxu0
  %v1546 = vadd.f32 0.0, %v1545
  %v1547 = vpop.f32.mrf.mxu0
  %1548 = vmatprep.mubr.bf16.mxu0 0
  %1549 = vmatmul.mubr.bf16.gmra.mxu0 %v1066
  %v1550 = vpop.f32.mrf.mxu0
  %v1551 = vadd.f32 0.0, %v1550
  %v1552 = vpop.f32.mrf.mxu0
  %v1553 = vpop.f32.mrf.mxu0
  %v1554 = vadd.f32 0.0, %v1553
  %v1555 = vpop.f32.mrf.mxu0
  %1556 = vmatprep.mubr.bf16.mxu0 0
  %1557 = vmatmul.mubr.bf16.gmra.mxu0 %v1069
  %v1558 = vpop.f32.mrf.mxu0
  %v1559 = vadd.f32 0.0, %v1558
  %v1560 = vpop.f32.mrf.mxu0
  %v1561 = vpop.f32.mrf.mxu0
  %v1562 = vadd.f32 0.0, %v1561
  %v1563 = vpop.f32.mrf.mxu0
  %1564 = vmatprep.mubr.bf16.mxu0 0
  %1565 = vmatmul.mubr.bf16.gmra.mxu0 %v1072
  %v1566 = vpop.f32.mrf.mxu0
  %v1567 = vadd.f32 0.0, %v1566
  %v1568 = vpop.f32.mrf.mxu0
  %v1569 = vpop.f32.mrf.mxu0
  %v1570 = vadd.f32 0.0, %v1569
  %v1571 = vpop.f32.mrf.mxu0
  %1572 = vmatprep.mubr.bf16.mxu0 0
  %1573 = vmatmul.mubr.bf16.gmra.mxu0 %v1075
  %v1574 = vpop.f32.mrf.mxu0
  %v1575 = vadd.f32 0.0, %v1574
  %v1576 = vpop.f32.mrf.mxu0
  %v1577 = vpop.f32.mrf.mxu0
  %v1578 = vadd.f32 0.0, %v1577
  %v1579 = vpop.f32.mrf.mxu0
  %1580 = vmatprep.mubr.bf16.mxu0 0
  %1581 = vmatmul.mubr.bf16.gmra.mxu0 %v1078
  %v1582 = vpop.f32.mrf.mxu0
  %v1583 = vadd.f32 0.0, %v1582
  %v1584 = vpop.f32.mrf.mxu0
  %v1585 = vpop.f32.mrf.mxu0
  %v1586 = vadd.f32 0.0, %v1585
  %v1587 = vpop.f32.mrf.mxu0
  %1588 = vmatprep.mubr.bf16.mxu0 0
  %1589 = vmatmul.mubr.bf16.gmra.mxu0 %v1081
  %v1590 = vpop.f32.mrf.mxu0
  %v1591 = vadd.f32 0.0, %v1590
  %v1592 = vpop.f32.mrf.mxu0
  %v1593 = vpop.f32.mrf.mxu0
  %v1594 = vadd.f32 0.0, %v1593
  %v1595 = vpop.f32.mrf.mxu0
  %1596 = vmatprep.mubr.bf16.mxu0 0
  %1597 = vmatmul.mubr.bf16.gmra.mxu0 %v1084
  %v1598 = vpop.f32.mrf.mxu0
  %v1599 = vadd.f32 0.0, %v1598
  %v1600 = vpop.f32.mrf.mxu0
  %v1601 = vpop.f32.mrf.mxu0
  %v1602 = vadd.f32 0.0, %v1601
  %v1603 = vpop.f32.mrf.mxu0
  %1604 = vmatprep.mubr.bf16.mxu0 0
  %1605 = vmatmul.mubr.bf16.gmra.mxu0 %v1087
  %v1606 = vpop.f32.mrf.mxu0
  %v1607 = vadd.f32 0.0, %v1606
  %v1608 = vpop.f32.mrf.mxu0
  %v1609 = vpop.f32.mrf.mxu0
  %v1610 = vadd.f32 0.0, %v1609
  %v1611 = vpop.f32.mrf.mxu0
  %1612 = vmatprep.mubr.bf16.mxu0 0
  %1613 = vmatmul.mubr.bf16.gmra.mxu0 %v1090
  %v1614 = vpop.f32.mrf.mxu0
  %v1615 = vadd.f32 0.0, %v1614
  %v1616 = vpop.f32.mrf.mxu0
  %v1617 = vpop.f32.mrf.mxu0
  %v1618 = vadd.f32 0.0, %v1617
  %v1619 = vpop.f32.mrf.mxu0
  %1620 = vmatprep.mubr.bf16.mxu0 0
  %1621 = vmatmul.mubr.bf16.gmra.mxu0 %v1093
  %v1622 = vpop.f32.mrf.mxu0
  %v1623 = vadd.f32 0.0, %v1622
  %v1624 = vpop.f32.mrf.mxu0
  %v1625 = vpop.f32.mrf.mxu0
  %v1626 = vadd.f32 0.0, %v1625
  %v1627 = vpop.f32.mrf.mxu0
  %1628 = vmatprep.mubr.bf16.mxu0 0
  %1629 = vmatmul.mubr.bf16.gmra.mxu0 %v1096
  %v1630 = vpop.f32.mrf.mxu0
  %v1631 = vadd.f32 0.0, %v1630
  %v1632 = vpop.f32.mrf.mxu0
  %v1633 = vpop.f32.mrf.mxu0
  %v1634 = vadd.f32 0.0, %v1633
  %v1635 = vpop.f32.mrf.mxu0
  %1636 = vmatprep.mubr.bf16.mxu0 0
  %1637 = vmatmul.mubr.bf16.gmra.mxu0 %v1099
  %v1638 = vpop.f32.mrf.mxu0
  %v1639 = vadd.f32 0.0, %v1638
  %v1640 = vpop.f32.mrf.mxu0
  %v1641 = vpop.f32.mrf.mxu0
  %v1642 = vadd.f32 0.0, %v1641
  %v1643 = vpop.f32.mrf.mxu0
  %1644 = vmatprep.mubr.bf16.mxu0 0
  %1645 = vmatmul.mubr.bf16.gmra.mxu0 %v1102
  %v1646 = vpop.f32.mrf.mxu0
  %v1647 = vadd.f32 0.0, %v1646
  %v1648 = vpop.f32.mrf.mxu0
  %v1649 = vpop.f32.mrf.mxu0
  %v1650 = vadd.f32 0.0, %v1649
  %v1651 = vpop.f32.mrf.mxu0
  %1652 = vmatprep.mubr.bf16.mxu0 0
  %1653 = vmatmul.mubr.bf16.gmra.mxu0 %v1105
  %v1654 = vpop.f32.mrf.mxu0
  %v1655 = vadd.f32 0.0, %v1654
  %v1656 = vpop.f32.mrf.mxu0
  %v1657 = vpop.f32.mrf.mxu0
  %v1658 = vadd.f32 0.0, %v1657
  %v1659 = vpop.f32.mrf.mxu0
  %1660 = vmatprep.mubr.bf16.mxu0 0
  %1661 = vmatmul.mubr.bf16.gmra.mxu0 %v1108
  %v1662 = vpop.f32.mrf.mxu0
  %v1663 = vadd.f32 0.0, %v1662
  %v1664 = vpop.f32.mrf.mxu0
  %v1665 = vpop.f32.mrf.mxu0
  %v1666 = vadd.f32 0.0, %v1665
  %v1667 = vpop.f32.mrf.mxu0
  %1668 = vmatprep.mubr.bf16.mxu0 0
  %1669 = vmatmul.mubr.bf16.gmra.mxu0 %v1111
  %v1670 = vpop.f32.mrf.mxu0
  %v1671 = vadd.f32 0.0, %v1670
  %v1672 = vpop.f32.mrf.mxu0
  %v1673 = vpop.f32.mrf.mxu0
  %v1674 = vadd.f32 0.0, %v1673
  %v1675 = vpop.f32.mrf.mxu0
  %1676 = vmatprep.mubr.bf16.mxu0 0
  %1677 = vmatmul.mubr.bf16.gmra.mxu0 %v1114
  %v1678 = vpop.f32.mrf.mxu0
  %v1679 = vadd.f32 0.0, %v1678
  %v1680 = vpop.f32.mrf.mxu0
  %v1681 = vpop.f32.mrf.mxu0
  %v1682 = vadd.f32 0.0, %v1681
  %v1683 = vpop.f32.mrf.mxu0
  %1684 = vmatprep.mubr.bf16.mxu0 0
  %1685 = vmatmul.mubr.bf16.gmra.mxu0 %v1117
  %v1686 = vpop.f32.mrf.mxu0
  %v1687 = vadd.f32 0.0, %v1686
  %v1688 = vpop.f32.mrf.mxu0
  %v1689 = vpop.f32.mrf.mxu0
  %v1690 = vadd.f32 0.0, %v1689
  %v1691 = vpop.f32.mrf.mxu0
  %1692 = vmatprep.mubr.bf16.mxu0 0
  %1693 = vmatmul.mubr.bf16.gmra.mxu0 %v1120
  %v1694 = vpop.f32.mrf.mxu0
  %v1695 = vadd.f32 0.0, %v1694
  %v1696 = vpop.f32.mrf.mxu0
  %v1697 = vpop.f32.mrf.mxu0
  %v1698 = vadd.f32 0.0, %v1697
  %v1699 = vpop.f32.mrf.mxu0
  %1700 = vmatprep.mubr.bf16.mxu0 0
  %1701 = vmatmul.mubr.bf16.gmra.mxu0 %v1123
  %v1702 = vpop.f32.mrf.mxu0
  %v1703 = vadd.f32 0.0, %v1702
  %v1704 = vpop.f32.mrf.mxu0
  %v1705 = vpop.f32.mrf.mxu0
  %v1706 = vadd.f32 0.0, %v1705
  %v1707 = vpop.f32.mrf.mxu0
  %1708 = vmatprep.mubr.bf16.mxu0 0
  %1709 = vmatmul.mubr.bf16.gmra.mxu0 %v1126
  %v1710 = vpop.f32.mrf.mxu0
  %v1711 = vadd.f32 0.0, %v1710
  %v1712 = vpop.f32.mrf.mxu0
  %v1713 = vpop.f32.mrf.mxu0
  %v1714 = vadd.f32 0.0, %v1713
  %v1715 = vpop.f32.mrf.mxu0
  %1716 = vmatprep.mubr.bf16.mxu0 0
  %1717 = vmatmul.mubr.bf16.gmra.mxu0 %v1129
  %v1718 = vpop.f32.mrf.mxu0
  %v1719 = vadd.f32 0.0, %v1718
  %v1720 = vpop.f32.mrf.mxu0
  %v1721 = vpop.f32.mrf.mxu0
  %v1722 = vadd.f32 0.0, %v1721
  %v1723 = vpop.f32.mrf.mxu0
  %1724 = vmatprep.mubr.bf16.mxu0 0
  %1725 = vmatmul.mubr.bf16.gmra.mxu0 %v1132
  %v1726 = vpop.f32.mrf.mxu0
  %v1727 = vadd.f32 0.0, %v1726
  %v1728 = vpop.f32.mrf.mxu0
  %v1729 = vpop.f32.mrf.mxu0
  %v1730 = vadd.f32 0.0, %v1729
  %v1731 = vpop.f32.mrf.mxu0
  %1732 = vmatprep.mubr.bf16.mxu0 0
  %1733 = vmatmul.mubr.bf16.gmra.mxu0 %v1135
  %v1734 = vpop.f32.mrf.mxu0
  %v1735 = vadd.f32 0.0, %v1734
  %v1736 = vpop.f32.mrf.mxu0
  %v1737 = vpop.f32.mrf.mxu0
  %v1738 = vadd.f32 0.0, %v1737
  %v1739 = vpop.f32.mrf.mxu0
  %1740 = vmatprep.mubr.bf16.mxu0 0
  %1741 = vmatmul.mubr.bf16.gmra.mxu0 %v1138
  %v1742 = vpop.f32.mrf.mxu0
  %v1743 = vadd.f32 0.0, %v1742
  %v1744 = vpop.f32.mrf.mxu0
  %v1745 = vpop.f32.mrf.mxu0
  %v1746 = vadd.f32 0.0, %v1745
  %v1747 = vpop.f32.mrf.mxu0
  %1748 = vmatprep.mubr.bf16.mxu0 0
  %1749 = vmatmul.mubr.bf16.gmra.mxu0 %v1141
  %v1750 = vpop.f32.mrf.mxu0
  %v1751 = vadd.f32 0.0, %v1750
  %v1752 = vpop.f32.mrf.mxu0
  %v1753 = vpop.f32.mrf.mxu0
  %v1754 = vadd.f32 0.0, %v1753
  %v1755 = vpop.f32.mrf.mxu0
  %1756 = vmatprep.mubr.bf16.mxu0 0
  %1757 = vmatmul.mubr.bf16.gmra.mxu0 %v1144
  %v1758 = vpop.f32.mrf.mxu0
  %v1759 = vadd.f32 0.0, %v1758
  %v1760 = vpop.f32.mrf.mxu0
  %v1761 = vpop.f32.mrf.mxu0
  %v1762 = vadd.f32 0.0, %v1761
  %v1763 = vpop.f32.mrf.mxu0
  %1764 = vmatprep.mubr.bf16.mxu0 0
  %1765 = vmatmul.mubr.bf16.gmra.mxu0 %v1147
  %v1766 = vpop.f32.mrf.mxu0
  %v1767 = vadd.f32 0.0, %v1766
  %v1768 = vpop.f32.mrf.mxu0
  %v1769 = vpop.f32.mrf.mxu0
  %v1770 = vadd.f32 0.0, %v1769
  %v1771 = vpop.f32.mrf.mxu0
  %1772 = vmatprep.mubr.bf16.mxu0 0
  %1773 = vmatmul.mubr.bf16.gmra.mxu0 %v1150
  %v1774 = vpop.f32.mrf.mxu0
  %v1775 = vadd.f32 0.0, %v1774
  %v1776 = vpop.f32.mrf.mxu0
  %v1777 = vpop.f32.mrf.mxu0
  %v1778 = vadd.f32 0.0, %v1777
  %v1779 = vpop.f32.mrf.mxu0
  %1780 = vmatprep.mubr.bf16.mxu0 0
  %1781 = vmatmul.mubr.bf16.gmra.mxu0 %v1153
  %v1782 = vpop.f32.mrf.mxu0
  %v1783 = vadd.f32 0.0, %v1782
  %v1784 = vpop.f32.mrf.mxu0
  %v1785 = vpop.f32.mrf.mxu0
  %v1786 = vadd.f32 0.0, %v1785
  %v1787 = vpop.f32.mrf.mxu0
  %1788 = vmatprep.mubr.bf16.mxu0 0
  %1789 = vmatmul.mubr.bf16.gmra.mxu0 %v1156
  %v1790 = vpop.f32.mrf.mxu0
  %v1791 = vadd.f32 0.0, %v1790
  %v1792 = vpop.f32.mrf.mxu0
  %v1793 = vpop.f32.mrf.mxu0
  %v1794 = vadd.f32 0.0, %v1793
  %v1795 = vpop.f32.mrf.mxu0
  %1796 = vmatprep.mubr.bf16.mxu0 0
  %1797 = vmatmul.mubr.bf16.gmra.mxu0 %v1159
  %v1798 = vpop.f32.mrf.mxu0
  %v1799 = vadd.f32 0.0, %v1798
  %v1800 = vpop.f32.mrf.mxu0
  %v1801 = vpop.f32.mrf.mxu0
  %v1802 = vadd.f32 0.0, %v1801
  %v1803 = vpop.f32.mrf.mxu0
  %1804 = vmatprep.mubr.bf16.mxu0 0
  %1805 = vmatmul.mubr.bf16.gmra.mxu0 %v1162
  %v1806 = vpop.f32.mrf.mxu0
  %v1807 = vadd.f32 0.0, %v1806
  %v1808 = vpop.f32.mrf.mxu0
  %v1809 = vpop.f32.mrf.mxu0
  %v1810 = vadd.f32 0.0, %v1809
  %v1811 = vpop.f32.mrf.mxu0
  %1812 = vmatprep.mubr.bf16.mxu0 0
  %1813 = vmatmul.mubr.bf16.gmra.mxu0 %v1165
  %v1814 = vpop.f32.mrf.mxu0
  %v1815 = vadd.f32 0.0, %v1814
  %v1816 = vpop.f32.mrf.mxu0
  %v1817 = vpop.f32.mrf.mxu0
  %v1818 = vadd.f32 0.0, %v1817
  %v1819 = vpop.f32.mrf.mxu0
  %1820 = vmatprep.mubr.bf16.mxu0 0
  %1821 = vmatmul.mubr.bf16.gmra.mxu0 %v1168
  %v1822 = vpop.f32.mrf.mxu0
  %v1823 = vadd.f32 0.0, %v1822
  %v1824 = vpop.f32.mrf.mxu0
  %v1825 = vpop.f32.mrf.mxu0
  %v1826 = vadd.f32 0.0, %v1825
  %v1827 = vpop.f32.mrf.mxu0
  %1828 = vmatprep.mubr.bf16.mxu0 0
  %1829 = vmatmul.mubr.bf16.gmra.mxu0 %v1171
  %v1830 = vpop.f32.mrf.mxu0
  %v1831 = vadd.f32 0.0, %v1830
  %v1832 = vpop.f32.mrf.mxu0
  %v1833 = vpop.f32.mrf.mxu0
  %v1834 = vadd.f32 0.0, %v1833
  %v1835 = vpop.f32.mrf.mxu0
  %1836 = vmatprep.mubr.bf16.mxu0 0
  %1837 = vmatmul.mubr.bf16.gmra.mxu0 %v1174
  %v1838 = vpop.f32.mrf.mxu0
  %v1839 = vadd.f32 0.0, %v1838
  %v1840 = vpop.f32.mrf.mxu0
  %v1841 = vpop.f32.mrf.mxu0
  %v1842 = vadd.f32 0.0, %v1841
  %v1843 = vpop.f32.mrf.mxu0
  %1844 = vmatprep.mubr.bf16.mxu0 0
  %1845 = vmatmul.mubr.bf16.gmra.mxu0 %v1177
  %v1846 = vpop.f32.mrf.mxu0
  %v1847 = vadd.f32 0.0, %v1846
  %v1848 = vpop.f32.mrf.mxu0
  %v1849 = vpop.f32.mrf.mxu0
  %v1850 = vadd.f32 0.0, %v1849
  %v1851 = vpop.f32.mrf.mxu0
  %1852 = vmatprep.mubr.bf16.mxu0 0
  %1853 = vmatmul.mubr.bf16.gmra.mxu0 %v1180
  %v1854 = vpop.f32.mrf.mxu0
  %v1855 = vadd.f32 0.0, %v1854
  %v1856 = vpop.f32.mrf.mxu0
  %v1857 = vpop.f32.mrf.mxu0
  %v1858 = vadd.f32 0.0, %v1857
  %v1859 = vpop.f32.mrf.mxu0
  %1860 = vmatprep.mubr.bf16.mxu0 0
  %1861 = vmatmul.mubr.bf16.gmra.mxu0 %v1183
  %v1862 = vpop.f32.mrf.mxu0
  %v1863 = vadd.f32 0.0, %v1862
  %v1864 = vpop.f32.mrf.mxu0
  %v1865 = vpop.f32.mrf.mxu0
  %v1866 = vadd.f32 0.0, %v1865
  %v1867 = vpop.f32.mrf.mxu0
  %1868 = vmatprep.mubr.bf16.mxu0 0
  %1869 = vmatmul.mubr.bf16.gmra.mxu0 %v1186
  %v1870 = vpop.f32.mrf.mxu0
  %v1871 = vadd.f32 0.0, %v1870
  %v1872 = vpop.f32.mrf.mxu0
  %v1873 = vpop.f32.mrf.mxu0
  %v1874 = vadd.f32 0.0, %v1873
  %v1875 = vpop.f32.mrf.mxu0
  %1876 = vmatprep.mubr.bf16.mxu0 0
  %1877 = vmatmul.mubr.bf16.gmra.mxu0 %v1189
  %v1878 = vpop.f32.mrf.mxu0
  %v1879 = vadd.f32 0.0, %v1878
  %v1880 = vpop.f32.mrf.mxu0
  %v1881 = vpop.f32.mrf.mxu0
  %v1882 = vadd.f32 0.0, %v1881
  %v1883 = vpop.f32.mrf.mxu0
  %1884 = vmatprep.mubr.bf16.mxu0 0
  %1885 = vmatmul.mubr.bf16.gmra.mxu0 %v1192
  %v1886 = vpop.f32.mrf.mxu0
  %v1887 = vadd.f32 0.0, %v1886
  %v1888 = vpop.f32.mrf.mxu0
  %v1889 = vpop.f32.mrf.mxu0
  %v1890 = vadd.f32 0.0, %v1889
  %v1891 = vpop.f32.mrf.mxu0
  %1892 = vmatprep.mubr.bf16.mxu0 0
  %1893 = vmatmul.mubr.bf16.gmra.mxu0 %v1195
  %v1894 = vpop.f32.mrf.mxu0
  %v1895 = vadd.f32 0.0, %v1894
  %v1896 = vpop.f32.mrf.mxu0
  %v1897 = vpop.f32.mrf.mxu0
  %v1898 = vadd.f32 0.0, %v1897
  %v1899 = vpop.f32.mrf.mxu0
  %1900 = vmatprep.mubr.bf16.mxu0 0
  %1901 = vmatmul.mubr.bf16.gmra.mxu0 %v1198
  %v1902 = vpop.f32.mrf.mxu0
  %v1903 = vadd.f32 0.0, %v1902
  %v1904 = vpop.f32.mrf.mxu0
  %v1905 = vpop.f32.mrf.mxu0
  %v1906 = vadd.f32 0.0, %v1905
  %v1907 = vpop.f32.mrf.mxu0
  %1908 = vmatprep.mubr.bf16.mxu0 0
  %1909 = vmatmul.mubr.bf16.gmra.mxu0 %v1201
  %v1910 = vpop.f32.mrf.mxu0
  %v1911 = vadd.f32 0.0, %v1910
  %v1912 = vpop.f32.mrf.mxu0
  %v1913 = vpop.f32.mrf.mxu0
  %v1914 = vadd.f32 0.0, %v1913
  %v1915 = vpop.f32.mrf.mxu0
  %1916 = vmatprep.mubr.bf16.mxu0 0
  %1917 = vmatmul.mubr.bf16.gmra.mxu0 %v1204
  %v1918 = vpop.f32.mrf.mxu0
  %v1919 = vadd.f32 0.0, %v1918
  %v1920 = vpop.f32.mrf.mxu0
  %v1921 = vpop.f32.mrf.mxu0
  %v1922 = vadd.f32 0.0, %v1921
  %v1923 = vpop.f32.mrf.mxu0
  %1924 = vmatprep.mubr.bf16.mxu0 0
  %1925 = vmatmul.mubr.bf16.gmra.mxu0 %v1207
  %v1926 = vpop.f32.mrf.mxu0
  %v1927 = vadd.f32 0.0, %v1926
  %v1928 = vpop.f32.mrf.mxu0
  %v1929 = vpop.f32.mrf.mxu0
  %v1930 = vadd.f32 0.0, %v1929
  %v1931 = vpop.f32.mrf.mxu0
  %1932 = vmatprep.mubr.bf16.mxu0 0
  %1933 = vmatmul.mubr.bf16.gmra.mxu0 %v1210
  %v1934 = vpop.f32.mrf.mxu0
  %v1935 = vadd.f32 0.0, %v1934
  %v1936 = vpop.f32.mrf.mxu0
  %v1937 = vpop.f32.mrf.mxu0
  %v1938 = vadd.f32 0.0, %v1937
  %v1939 = vpop.f32.mrf.mxu0
  %1940 = vmatprep.mubr.bf16.mxu0 0
  %1941 = vmatmul.mubr.bf16.gmra.mxu0 %v1213
  %v1942 = vpop.f32.mrf.mxu0
  %v1943 = vadd.f32 0.0, %v1942
  %v1944 = vpop.f32.mrf.mxu0
  %v1945 = vpop.f32.mrf.mxu0
  %v1946 = vadd.f32 0.0, %v1945
  %v1947 = vpop.f32.mrf.mxu0
  %1948 = vmatprep.mubr.bf16.mxu0 0
  %1949 = vmatmul.mubr.bf16.gmra.mxu0 %v1216
  %v1950 = vpop.f32.mrf.mxu0
  %v1951 = vadd.f32 0.0, %v1950
  %v1952 = vpop.f32.mrf.mxu0
  %v1953 = vpop.f32.mrf.mxu0
  %v1954 = vadd.f32 0.0, %v1953
  %v1955 = vpop.f32.mrf.mxu0
  %1956 = vmatprep.mubr.bf16.mxu0 0
  %1957 = vmatmul.mubr.bf16.gmra.mxu0 %v1219
  %v1958 = vpop.f32.mrf.mxu0
  %v1959 = vadd.f32 0.0, %v1958
  %v1960 = vpop.f32.mrf.mxu0
  %v1961 = vpop.f32.mrf.mxu0
  %v1962 = vadd.f32 0.0, %v1961
  %v1963 = vpop.f32.mrf.mxu0
  %1964 = vmatprep.mubr.bf16.mxu0 0
  %1965 = vmatmul.mubr.bf16.gmra.mxu0 %v1222
  %v1966 = vpop.f32.mrf.mxu0
  %v1967 = vadd.f32 0.0, %v1966
  %v1968 = vpop.f32.mrf.mxu0
  %v1969 = vpop.f32.mrf.mxu0
  %v1970 = vadd.f32 0.0, %v1969
  %v1971 = vpop.f32.mrf.mxu0
  %1972 = vmatprep.mubr.bf16.mxu0 0
  %1973 = vmatmul.mubr.bf16.gmra.mxu0 %v1225
  %v1974 = vpop.f32.mrf.mxu0
  %v1975 = vadd.f32 0.0, %v1974
  %v1976 = vpop.f32.mrf.mxu0
  %v1977 = vpop.f32.mrf.mxu0
  %v1978 = vadd.f32 0.0, %v1977
  %v1979 = vpop.f32.mrf.mxu0
  %1980 = vmatprep.mubr.bf16.mxu0 0
  %1981 = vmatmul.mubr.bf16.gmra.mxu0 %v1228
  %v1982 = vpop.f32.mrf.mxu0
  %v1983 = vadd.f32 0.0, %v1982
  %v1984 = vpop.f32.mrf.mxu0
  %v1985 = vpop.f32.mrf.mxu0
  %v1986 = vadd.f32 0.0, %v1985
  %v1987 = vpop.f32.mrf.mxu0
  %1988 = vmatprep.mubr.bf16.mxu0 0
  %1989 = vmatmul.mubr.bf16.gmra.mxu0 %v1231
  %v1990 = vpop.f32.mrf.mxu0
  %v1991 = vadd.f32 0.0, %v1990
  %v1992 = vpop.f32.mrf.mxu0
  %v1993 = vpop.f32.mrf.mxu0
  %v1994 = vadd.f32 0.0, %v1993
  %v1995 = vpop.f32.mrf.mxu0
  %1996 = vmatprep.mubr.bf16.mxu0 0
  %1997 = vmatmul.mubr.bf16.gmra.mxu0 %v1234
  %v1998 = vpop.f32.mrf.mxu0
  %v1999 = vadd.f32 0.0, %v1998
  %v2000 = vpop.f32.mrf.mxu0
  %v2001 = vpop.f32.mrf.mxu0
  %v2002 = vadd.f32 0.0, %v2001
  %v2003 = vpop.f32.mrf.mxu0
  %2004 = vmatprep.mubr.bf16.mxu0 0
  %2005 = vmatmul.mubr.bf16.gmra.mxu0 %v1237
  %v2006 = vpop.f32.mrf.mxu0
  %v2007 = vadd.f32 0.0, %v2006
  %v2008 = vpop.f32.mrf.mxu0
  %v2009 = vpop.f32.mrf.mxu0
  %v2010 = vadd.f32 0.0, %v2009
  %v2011 = vpop.f32.mrf.mxu0
  %2012 = vmatprep.mubr.bf16.mxu0 0
  %2013 = vmatmul.mubr.bf16.gmra.mxu0 %v1240
  %v2014 = vpop.f32.mrf.mxu0
  %v2015 = vadd.f32 0.0, %v2014
  %v2016 = vpop.f32.mrf.mxu0
  %v2017 = vpop.f32.mrf.mxu0
  %v2018 = vadd.f32 0.0, %v2017
  %v2019 = vpop.f32.mrf.mxu0
  %2020 = vmatprep.mubr.bf16.mxu0 0
  %2021 = vmatmul.mubr.bf16.gmra.mxu0 %v1243
  %v2022 = vpop.f32.mrf.mxu0
  %v2023 = vadd.f32 0.0, %v2022
  %v2024 = vpop.f32.mrf.mxu0
  %v2025 = vpop.f32.mrf.mxu0
  %v2026 = vadd.f32 0.0, %v2025
  %v2027 = vpop.f32.mrf.mxu0
  %2028 = vmatprep.mubr.bf16.mxu0 0
  %2029 = vmatmul.mubr.bf16.gmra.mxu0 %v1246
  %v2030 = vpop.f32.mrf.mxu0
  %v2031 = vadd.f32 0.0, %v2030
  %v2032 = vpop.f32.mrf.mxu0
  %v2033 = vpop.f32.mrf.mxu0
  %v2034 = vadd.f32 0.0, %v2033
  %v2035 = vpop.f32.mrf.mxu0
  %2036 = vmatprep.mubr.bf16.mxu0 0
  %2037 = vmatmul.mubr.bf16.gmra.mxu0 %v1249
  %v2038 = vpop.f32.mrf.mxu0
  %v2039 = vadd.f32 0.0, %v2038
  %v2040 = vpop.f32.mrf.mxu0
  %v2041 = vpop.f32.mrf.mxu0
  %v2042 = vadd.f32 0.0, %v2041
  %v2043 = vpop.f32.mrf.mxu0
  %2044 = vmatprep.mubr.bf16.mxu0 0
  %2045 = vmatmul.mubr.bf16.gmra.mxu0 %v1252
  %v2046 = vpop.f32.mrf.mxu0
  %v2047 = vadd.f32 0.0, %v2046
  %v2048 = vpop.f32.mrf.mxu0
  %v2049 = vpop.f32.mrf.mxu0
  %v2050 = vadd.f32 0.0, %v2049
  %v2051 = vpop.f32.mrf.mxu0
  %2052 = vmatprep.mubr.bf16.mxu0 0
  %2053 = vmatmul.mubr.bf16.gmra.mxu0 %v1255
  %v2054 = vpop.f32.mrf.mxu0
  %v2055 = vadd.f32 0.0, %v2054
  %v2056 = vpop.f32.mrf.mxu0
  %v2057 = vpop.f32.mrf.mxu0
  %v2058 = vadd.f32 0.0, %v2057
  %v2059 = vpop.f32.mrf.mxu0
  %2060 = vmatprep.mubr.bf16.mxu0 0
  %2061 = vmatmul.mubr.bf16.gmra.mxu0 %v1258
  %v2062 = vpop.f32.mrf.mxu0
  %v2063 = vadd.f32 0.0, %v2062
  %v2064 = vpop.f32.mrf.mxu0
  %v2065 = vpop.f32.mrf.mxu0
  %v2066 = vadd.f32 0.0, %v2065
  %v2067 = vpop.f32.mrf.mxu0
  %2068 = vmatprep.mubr.bf16.mxu0 0
  %2069 = vmatmul.mubr.bf16.gmra.mxu0 %v1261
  %v2070 = vpop.f32.mrf.mxu0
  %v2071 = vadd.f32 0.0, %v2070
  %v2072 = vpop.f32.mrf.mxu0
  %v2073 = vpop.f32.mrf.mxu0
  %v2074 = vadd.f32 0.0, %v2073
  %v2075 = vpop.f32.mrf.mxu0
  %2076 = vmatprep.mubr.bf16.mxu0 0
  %2077 = vmatmul.mubr.bf16.gmra.mxu0 %v1264
  %v2078 = vpop.f32.mrf.mxu0
  %v2079 = vadd.f32 0.0, %v2078
  %v2080 = vpop.f32.mrf.mxu0
  %v2081 = vpop.f32.mrf.mxu0
  %v2082 = vadd.f32 0.0, %v2081
  %v2083 = vpop.f32.mrf.mxu0
  %2084 = vmatprep.mubr.bf16.mxu0 0
  %2085 = vmatmul.mubr.bf16.gmra.mxu0 %v1267
  %v2086 = vpop.f32.mrf.mxu0
  %v2087 = vadd.f32 0.0, %v2086
  %v2088 = vpop.f32.mrf.mxu0
  %v2089 = vpop.f32.mrf.mxu0
  %v2090 = vadd.f32 0.0, %v2089
  %v2091 = vpop.f32.mrf.mxu0
  %2092 = vmatprep.mubr.bf16.mxu0 0
  %2093 = vmatmul.mubr.bf16.gmra.mxu0 %v1270
  %v2094 = vpop.f32.mrf.mxu0
  %v2095 = vadd.f32 0.0, %v2094
  %v2096 = vpop.f32.mrf.mxu0
  %v2097 = vpop.f32.mrf.mxu0
  %v2098 = vadd.f32 0.0, %v2097
  %v2099 = vpop.f32.mrf.mxu0
  %2100 = vmatprep.mubr.bf16.mxu0 0
  %2101 = vmatmul.mubr.bf16.gmra.mxu0 %v1273
  %v2102 = vpop.f32.mrf.mxu0
  %v2103 = vadd.f32 0.0, %v2102
  %v2104 = vpop.f32.mrf.mxu0
  %v2105 = vpop.f32.mrf.mxu0
  %v2106 = vadd.f32 0.0, %v2105
  %v2107 = vpop.f32.mrf.mxu0
  %2108 = vmatprep.mubr.bf16.mxu0 0
  %2109 = vmatmul.mubr.bf16.gmra.mxu0 %v1276
  %v2110 = vpop.f32.mrf.mxu0
  %v2111 = vadd.f32 0.0, %v2110
  %v2112 = vpop.f32.mrf.mxu0
  %v2113 = vpop.f32.mrf.mxu0
  %v2114 = vadd.f32 0.0, %v2113
  %v2115 = vpop.f32.mrf.mxu0
  %2116 = vmatprep.mubr.bf16.mxu0 0
  %2117 = vmatmul.mubr.bf16.gmra.mxu0 %v1279
  %v2118 = vpop.f32.mrf.mxu0
  %v2119 = vadd.f32 0.0, %v2118
  %v2120 = vpop.f32.mrf.mxu0
  %v2121 = vpop.f32.mrf.mxu0
  %v2122 = vadd.f32 0.0, %v2121
  %v2123 = vpop.f32.mrf.mxu0
  %2124 = vmatprep.mubr.bf16.mxu0 0
  %2125 = vmatmul.mubr.bf16.gmra.mxu0 %v1282
  %v2126 = vpop.f32.mrf.mxu0
  %v2127 = vadd.f32 0.0, %v2126
  %v2128 = vpop.f32.mrf.mxu0
  %v2129 = vpop.f32.mrf.mxu0
  %v2130 = vadd.f32 0.0, %v2129
  %v2131 = vpop.f32.mrf.mxu0
  %2132 = vmatprep.mubr.bf16.mxu0 0
  %2133 = vmatmul.mubr.bf16.gmra.mxu0 %v1285
  %v2134 = vpop.f32.mrf.mxu0
  %v2135 = vadd.f32 0.0, %v2134
  %v2136 = vpop.f32.mrf.mxu0
  %v2137 = vpop.f32.mrf.mxu0
  %v2138 = vadd.f32 0.0, %v2137
  %v2139 = vpop.f32.mrf.mxu0
  %2140 = vmatprep.mubr.bf16.mxu0 0
  %2141 = vmatmul.mubr.bf16.gmra.mxu0 %v1288
  %v2142 = vpop.f32.mrf.mxu0
  %v2143 = vadd.f32 0.0, %v2142
  %v2144 = vpop.f32.mrf.mxu0
  %v2145 = vpop.f32.mrf.mxu0
  %v2146 = vadd.f32 0.0, %v2145
  %v2147 = vpop.f32.mrf.mxu0
  %2148 = vmatprep.mubr.bf16.mxu0 0
  %2149 = vmatmul.mubr.bf16.gmra.mxu0 %v1291
  %v2150 = vpop.f32.mrf.mxu0
  %v2151 = vadd.f32 0.0, %v2150
  %v2152 = vpop.f32.mrf.mxu0
  %v2153 = vpop.f32.mrf.mxu0
  %v2154 = vadd.f32 0.0, %v2153
  %v2155 = vpop.f32.mrf.mxu0
  %2156 = vmatprep.mubr.bf16.mxu0 0
  %2157 = vmatmul.mubr.bf16.gmra.mxu0 %v1294
  %v2158 = vpop.f32.mrf.mxu0
  %v2159 = vadd.f32 0.0, %v2158
  %v2160 = vpop.f32.mrf.mxu0
  %v2161 = vpop.f32.mrf.mxu0
  %v2162 = vadd.f32 0.0, %v2161
  %v2163 = vpop.f32.mrf.mxu0
  %2164 = vmatprep.mubr.bf16.mxu0 0
  %2165 = vmatmul.mubr.bf16.gmra.mxu0 %v1297
  %v2166 = vpop.f32.mrf.mxu0
  %v2167 = vadd.f32 0.0, %v2166
  %v2168 = vpop.f32.mrf.mxu0
  %v2169 = vpop.f32.mrf.mxu0
  %v2170 = vadd.f32 0.0, %v2169
  %v2171 = vpop.f32.mrf.mxu0
  %2172 = vmatprep.mubr.bf16.mxu0 0
  %2173 = vmatmul.mubr.bf16.gmra.mxu0 %v1300
  %v2174 = vpop.f32.mrf.mxu0
  %v2175 = vadd.f32 0.0, %v2174
  %v2176 = vpop.f32.mrf.mxu0
  %v2177 = vpop.f32.mrf.mxu0
  %v2178 = vadd.f32 0.0, %v2177
  %v2179 = vpop.f32.mrf.mxu0
  %2180 = vmatprep.mubr.bf16.mxu0 0
  %2181 = vmatmul.mubr.bf16.gmra.mxu0 %v1303
  %v2182 = vpop.f32.mrf.mxu0
  %v2183 = vadd.f32 0.0, %v2182
  %v2184 = vpop.f32.mrf.mxu0
  %v2185 = vpop.f32.mrf.mxu0
  %v2186 = vadd.f32 0.0, %v2185
  %v2187 = vpop.f32.mrf.mxu0
  %2188 = vmatprep.mubr.bf16.mxu0 0
  %2189 = vmatmul.mubr.bf16.gmra.mxu0 %v1306
  %v2190 = vpop.f32.mrf.mxu0
  %v2191 = vadd.f32 0.0, %v2190
  %v2192 = vpop.f32.mrf.mxu0
  %v2193 = vpop.f32.mrf.mxu0
  %v2194 = vadd.f32 0.0, %v2193
  %v2195 = vpop.f32.mrf.mxu0
  %2196 = vmatprep.mubr.bf16.mxu0 0
  %2197 = vmatmul.mubr.bf16.gmra.mxu0 %v1309
  %v2198 = vpop.f32.mrf.mxu0
  %v2199 = vadd.f32 0.0, %v2198
  %v2200 = vpop.f32.mrf.mxu0
  %v2201 = vpop.f32.mrf.mxu0
  %v2202 = vadd.f32 0.0, %v2201
  %v2203 = vpop.f32.mrf.mxu0
  %2204 = vmatprep.mubr.bf16.mxu0 0
  %2205 = vmatmul.mubr.bf16.gmra.mxu0 %v1312
  %v2206 = vpop.f32.mrf.mxu0
  %v2207 = vadd.f32 0.0, %v2206
  %v2208 = vpop.f32.mrf.mxu0
  %v2209 = vpop.f32.mrf.mxu0
  %v2210 = vadd.f32 0.0, %v2209
  %v2211 = vpop.f32.mrf.mxu0
  %2212 = vmatprep.mubr.bf16.mxu0 0
  %2213 = vmatmul.mubr.bf16.gmra.mxu0 %v1315
  %v2214 = vpop.f32.mrf.mxu0
  %v2215 = vadd.f32 0.0, %v2214
  %v2216 = vpop.f32.mrf.mxu0
  %v2217 = vpop.f32.mrf.mxu0
  %v2218 = vadd.f32 0.0, %v2217
  %v2219 = vpop.f32.mrf.mxu0
  %2220 = vmatprep.mubr.bf16.mxu0 0
  %2221 = vmatmul.mubr.bf16.gmra.mxu0 %v1318
  %v2222 = vpop.f32.mrf.mxu0
  %v2223 = vadd.f32 0.0, %v2222
  %v2224 = vpop.f32.mrf.mxu0
  %v2225 = vpop.f32.mrf.mxu0
  %v2226 = vadd.f32 0.0, %v2225
  %v2227 = vpop.f32.mrf.mxu0
  %2228 = vmatprep.mubr.bf16.mxu0 0
  %2229 = vmatmul.mubr.bf16.gmra.mxu0 %v1321
  %v2230 = vpop.f32.mrf.mxu0
  %v2231 = vadd.f32 0.0, %v2230
  %v2232 = vpop.f32.mrf.mxu0
  %v2233 = vpop.f32.mrf.mxu0
  %v2234 = vadd.f32 0.0, %v2233
  %v2235 = vpop.f32.mrf.mxu0
  %2236 = vmatprep.mubr.bf16.mxu0 0
  %2237 = vmatmul.mubr.bf16.gmra.mxu0 %v1324
  %v2238 = vpop.f32.mrf.mxu0
  %v2239 = vadd.f32 0.0, %v2238
  %v2240 = vpop.f32.mrf.mxu0
  %v2241 = vpop.f32.mrf.mxu0
  %v2242 = vadd.f32 0.0, %v2241
  %v2243 = vpop.f32.mrf.mxu0
  %2244 = vmatprep.mubr.bf16.mxu0 0
  %2245 = vmatmul.mubr.bf16.gmra.mxu0 %v1327
  %v2246 = vpop.f32.mrf.mxu0
  %v2247 = vadd.f32 0.0, %v2246
  %v2248 = vpop.f32.mrf.mxu0
  %v2249 = vpop.f32.mrf.mxu0
  %v2250 = vadd.f32 0.0, %v2249
  %v2251 = vpop.f32.mrf.mxu0
  %2252 = vmatprep.mubr.bf16.mxu0 0
  %2253 = vmatmul.mubr.bf16.gmra.mxu0 %v1330
  %v2254 = vpop.f32.mrf.mxu0
  %v2255 = vadd.f32 0.0, %v2254
  %v2256 = vpop.f32.mrf.mxu0
  %v2257 = vpop.f32.mrf.mxu0
  %v2258 = vadd.f32 0.0, %v2257
  %v2259 = vpop.f32.mrf.mxu0
  %2260 = vmatprep.mubr.bf16.mxu0 0
  %2261 = vmatmul.mubr.bf16.gmra.mxu0 %v1333
  %v2262 = vpop.f32.mrf.mxu0
  %v2263 = vadd.f32 0.0, %v2262
  %v2264 = vpop.f32.mrf.mxu0
  %v2265 = vpop.f32.mrf.mxu0
  %v2266 = vadd.f32 0.0, %v2265
  %v2267 = vpop.f32.mrf.mxu0
  %2268 = vmatprep.mubr.bf16.mxu0 0
  %2269 = vmatmul.mubr.bf16.gmra.mxu0 %v1336
  %v2270 = vpop.f32.mrf.mxu0
  %v2271 = vadd.f32 0.0, %v2270
  %v2272 = vpop.f32.mrf.mxu0
  %v2273 = vpop.f32.mrf.mxu0
  %v2274 = vadd.f32 0.0, %v2273
  %v2275 = vpop.f32.mrf.mxu0
  %2276 = vmatprep.mubr.bf16.mxu0 0
  %2277 = vmatmul.mubr.bf16.gmra.mxu0 %v1339
  %v2278 = vpop.f32.mrf.mxu0
  %v2279 = vadd.f32 0.0, %v2278
  %v2280 = vpop.f32.mrf.mxu0
  %v2281 = vpop.f32.mrf.mxu0
  %v2282 = vadd.f32 0.0, %v2281
  %v2283 = vpop.f32.mrf.mxu0
  %2284 = vmatprep.mubr.bf16.mxu0 0
  %2285 = vmatmul.mubr.bf16.gmra.mxu0 %v1342
  %v2286 = vpop.f32.mrf.mxu0
  %v2287 = vadd.f32 0.0, %v2286
  %v2288 = vpop.f32.mrf.mxu0
  %v2289 = vpop.f32.mrf.mxu0
  %v2290 = vadd.f32 0.0, %v2289
  %v2291 = vpop.f32.mrf.mxu0
  %2292 = vmatprep.mubr.bf16.mxu0 0
  %2293 = vmatmul.mubr.bf16.gmra.mxu0 %v1345
  %v2294 = vpop.f32.mrf.mxu0
  %v2295 = vadd.f32 0.0, %v2294
  %v2296 = vpop.f32.mrf.mxu0
  %v2297 = vpop.f32.mrf.mxu0
  %v2298 = vadd.f32 0.0, %v2297
  %v2299 = vpop.f32.mrf.mxu0
  %2300 = vmatprep.mubr.bf16.mxu0 0
  %2301 = vmatmul.mubr.bf16.gmra.mxu0 %v1348
  %v2302 = vpop.f32.mrf.mxu0
  %v2303 = vadd.f32 0.0, %v2302
  %v2304 = vpop.f32.mrf.mxu0
  %v2305 = vpop.f32.mrf.mxu0
  %v2306 = vadd.f32 0.0, %v2305
  %v2307 = vpop.f32.mrf.mxu0
  %2308 = vmatprep.mubr.bf16.mxu0 0
  %2309 = vmatmul.mubr.bf16.gmra.mxu0 %v1351
  %v2310 = vpop.f32.mrf.mxu0
  %v2311 = vadd.f32 0.0, %v2310
  %v2312 = vpop.f32.mrf.mxu0
  %v2313 = vpop.f32.mrf.mxu0
  %v2314 = vadd.f32 0.0, %v2313
  %v2315 = vpop.f32.mrf.mxu0
  %2316 = vmatprep.mubr.bf16.mxu0 0
  %2317 = vmatmul.mubr.bf16.gmra.mxu0 %v1354
  %v2318 = vpop.f32.mrf.mxu0
  %v2319 = vadd.f32 0.0, %v2318
  %v2320 = vpop.f32.mrf.mxu0
  %v2321 = vpop.f32.mrf.mxu0
  %v2322 = vadd.f32 0.0, %v2321
  %v2323 = vpop.f32.mrf.mxu0
  %2324 = vmatprep.mubr.bf16.mxu0 0
  %2325 = vmatmul.mubr.bf16.gmra.mxu0 %v1357
  %v2326 = vpop.f32.mrf.mxu0
  %v2327 = vadd.f32 0.0, %v2326
  %v2328 = vpop.f32.mrf.mxu0
  %v2329 = vpop.f32.mrf.mxu0
  %v2330 = vadd.f32 0.0, %v2329
  %v2331 = vpop.f32.mrf.mxu0
  %2332 = vmatprep.mubr.bf16.mxu0 0
  %2333 = vmatmul.mubr.bf16.gmra.mxu0 %v1360
  %v2334 = vpop.f32.mrf.mxu0
  %v2335 = vadd.f32 0.0, %v2334
  %v2336 = vpop.f32.mrf.mxu0
  %v2337 = vpop.f32.mrf.mxu0
  %v2338 = vadd.f32 0.0, %v2337
  %v2339 = vpop.f32.mrf.mxu0
  %2340 = vmatprep.mubr.bf16.mxu0 0
  %2341 = vmatmul.mubr.bf16.gmra.mxu0 %v1363
  %v2342 = vpop.f32.mrf.mxu0
  %v2343 = vadd.f32 0.0, %v2342
  %v2344 = vpop.f32.mrf.mxu0
  %v2345 = vpop.f32.mrf.mxu0
  %v2346 = vadd.f32 0.0, %v2345
  %v2347 = vpop.f32.mrf.mxu0
  %2348 = vmatprep.mubr.bf16.mxu0 0
  %2349 = vmatmul.mubr.bf16.gmra.mxu0 %v1366
  %v2350 = vpop.f32.mrf.mxu0
  %v2351 = vadd.f32 0.0, %v2350
  %v2352 = vpop.f32.mrf.mxu0
  %v2353 = vpop.f32.mrf.mxu0
  %v2354 = vadd.f32 0.0, %v2353
  %v2355 = vpop.f32.mrf.mxu0
  %2356 = vmatprep.mubr.bf16.mxu0 0
  %2357 = vmatmul.mubr.bf16.gmra.mxu0 %v1369
  %v2358 = vpop.f32.mrf.mxu0
  %v2359 = vadd.f32 0.0, %v2358
  %v2360 = vpop.f32.mrf.mxu0
  %v2361 = vpop.f32.mrf.mxu0
  %v2362 = vadd.f32 0.0, %v2361
  %v2363 = vpop.f32.mrf.mxu0
  %2364 = vmatprep.mubr.bf16.mxu0 0
  %2365 = vmatmul.mubr.bf16.gmra.mxu0 %v1372
  %v2366 = vpop.f32.mrf.mxu0
  %v2367 = vadd.f32 0.0, %v2366
  %v2368 = vpop.f32.mrf.mxu0
  %v2369 = vpop.f32.mrf.mxu0
  %v2370 = vadd.f32 0.0, %v2369
  %v2371 = vpop.f32.mrf.mxu0
  %2372 = vmatprep.mubr.bf16.mxu0 0
  %2373 = vmatmul.mubr.bf16.gmra.mxu0 %v1375
  %v2374 = vpop.f32.mrf.mxu0
  %v2375 = vadd.f32 0.0, %v2374
  %v2376 = vpop.f32.mrf.mxu0
  %v2377 = vpop.f32.mrf.mxu0
  %v2378 = vadd.f32 0.0, %v2377
  %v2379 = vpop.f32.mrf.mxu0
  %2380 = vmatprep.mubr.bf16.mxu0 0
  %2381 = vmatmul.mubr.bf16.gmra.mxu0 %v1378
  %v2382 = vpop.f32.mrf.mxu0
  %v2383 = vadd.f32 0.0, %v2382
  %v2384 = vpop.f32.mrf.mxu0
  %v2385 = vpop.f32.mrf.mxu0
  %v2386 = vadd.f32 0.0, %v2385
  %v2387 = vpop.f32.mrf.mxu0
  %2388 = vmatprep.mubr.bf16.mxu0 0
  %2389 = vmatmul.mubr.bf16.gmra.mxu0 %v1381
  %v2390 = vpop.f32.mrf.mxu0
  %v2391 = vadd.f32 0.0, %v2390
  %v2392 = vpop.f32.mrf.mxu0
  %v2393 = vpop.f32.mrf.mxu0
  %v2394 = vadd.f32 0.0, %v2393
  %v2395 = vpop.f32.mrf.mxu0
  %2396 = vmatprep.mubr.bf16.mxu0 0
  %2397 = vmatmul.mubr.bf16.gmra.mxu0 %v1384
  %v2398 = vpop.f32.mrf.mxu0
  %v2399 = vadd.f32 0.0, %v2398
  %v2400 = vpop.f32.mrf.mxu0
  %v2401 = vpop.f32.mrf.mxu0
  %v2402 = vadd.f32 0.0, %v2401
  %v2403 = vpop.f32.mrf.mxu0
  %2404 = vmatprep.mubr.bf16.mxu0 0
  %2405 = vmatmul.mubr.bf16.gmra.mxu0 %v1387
  %v2406 = vpop.f32.mrf.mxu0
  %v2407 = vadd.f32 0.0, %v2406
  %v2408 = vpop.f32.mrf.mxu0
  %v2409 = vpop.f32.mrf.mxu0
  %v2410 = vadd.f32 0.0, %v2409
  %v2411 = vpop.f32.mrf.mxu0
  %2412 = vmatprep.mubr.bf16.mxu0 0
  %2413 = vmatmul.mubr.bf16.gmra.mxu0 %v1390
  %v2414 = vpop.f32.mrf.mxu0
  %v2415 = vadd.f32 0.0, %v2414
  %v2416 = vpop.f32.mrf.mxu0
  %v2417 = vpop.f32.mrf.mxu0
  %v2418 = vadd.f32 0.0, %v2417
  %v2419 = vpop.f32.mrf.mxu0
  %2420 = vmatprep.mubr.bf16.mxu0 0
  %2421 = vmatmul.mubr.bf16.gmra.mxu0 %v1393
  %v2422 = vpop.f32.mrf.mxu0
  %v2423 = vadd.f32 0.0, %v2422
  %v2424 = vpop.f32.mrf.mxu0
  %v2425 = vpop.f32.mrf.mxu0
  %v2426 = vadd.f32 0.0, %v2425
  %v2427 = vpop.f32.mrf.mxu0
  %2428 = vmatprep.mubr.bf16.mxu0 0
  %2429 = vmatmul.mubr.bf16.gmra.mxu0 %v1396
  %v2430 = vpop.f32.mrf.mxu0
  %v2431 = vadd.f32 0.0, %v2430
  %v2432 = vpop.f32.mrf.mxu0
  %v2433 = vpop.f32.mrf.mxu0
  %v2434 = vadd.f32 0.0, %v2433
  %v2435 = vpop.f32.mrf.mxu0
  %2436 = vmatprep.mubr.bf16.mxu0 0
  %2437 = vmatmul.mubr.bf16.gmra.mxu0 %v1399
  %v2438 = vpop.f32.mrf.mxu0
  %v2439 = vadd.f32 0.0, %v2438
  %v2440 = vpop.f32.mrf.mxu0
  %v2441 = vpop.f32.mrf.mxu0
  %v2442 = vadd.f32 0.0, %v2441
  %v2443 = vpop.f32.mrf.mxu0
  %2444 = vmatprep.mubr.bf16.mxu0 0
  %2445 = vmatmul.mubr.bf16.gmra.mxu0 %v1402
  %v2446 = vpop.f32.mrf.mxu0
  %v2447 = vadd.f32 0.0, %v2446
  %v2448 = vpop.f32.mrf.mxu0
  %v2449 = vpop.f32.mrf.mxu0
  %v2450 = vadd.f32 0.0, %v2449
  %v2451 = vpop.f32.mrf.mxu0
  %2452 = vmatprep.mubr.bf16.mxu0 0
  %2453 = vmatmul.mubr.bf16.gmra.mxu0 %v1405
  %v2454 = vpop.f32.mrf.mxu0
  %v2455 = vadd.f32 0.0, %v2454
  %v2456 = vpop.f32.mrf.mxu0
  %v2457 = vpop.f32.mrf.mxu0
  %v2458 = vadd.f32 0.0, %v2457
  %v2459 = vpop.f32.mrf.mxu0
  %2460 = vmatprep.mubr.bf16.mxu0 0
  %2461 = vmatmul.mubr.bf16.gmra.mxu0 %v1408
  %v2462 = vpop.f32.mrf.mxu0
  %v2463 = vadd.f32 0.0, %v2462
  %v2464 = vpop.f32.mrf.mxu0
  %v2465 = vpop.f32.mrf.mxu0
  %v2466 = vadd.f32 0.0, %v2465
  %v2467 = vpop.f32.mrf.mxu0
  %2468 = vmatprep.mubr.bf16.mxu0 0
  %2469 = vmatmul.mubr.bf16.gmra.mxu0 %v1411
  %v2470 = vpop.f32.mrf.mxu0
  %v2471 = vadd.f32 0.0, %v2470
  %v2472 = vpop.f32.mrf.mxu0
  %v2473 = vpop.f32.mrf.mxu0
  %v2474 = vadd.f32 0.0, %v2473
  %v2475 = vpop.f32.mrf.mxu0
  %2476 = vmatprep.mubr.bf16.mxu0 0
  %2477 = vmatmul.mubr.bf16.gmra.mxu0 %v1414
  %v2478 = vpop.f32.mrf.mxu0
  %v2479 = vadd.f32 0.0, %v2478
  %v2480 = vpop.f32.mrf.mxu0
  %v2481 = vpop.f32.mrf.mxu0
  %v2482 = vadd.f32 0.0, %v2481
  %v2483 = vpop.f32.mrf.mxu0
  %2484 = vmatprep.mubr.bf16.mxu0 0
  %2485 = vmatmul.mubr.bf16.gmra.mxu0 %v1417
  %v2486 = vpop.f32.mrf.mxu0
  %v2487 = vadd.f32 0.0, %v2486
  %v2488 = vpop.f32.mrf.mxu0
  %v2489 = vpop.f32.mrf.mxu0
  %v2490 = vadd.f32 0.0, %v2489
  %v2491 = vpop.f32.mrf.mxu0
  %2492 = vmatprep.mubr.bf16.mxu0 0
  %2493 = vmatmul.mubr.bf16.gmra.mxu0 %v1420
  %v2494 = vpop.f32.mrf.mxu0
  %v2495 = vadd.f32 0.0, %v2494
  %v2496 = vpop.f32.mrf.mxu0
  %v2497 = vpop.f32.mrf.mxu0
  %v2498 = vadd.f32 0.0, %v2497
  %v2499 = vpop.f32.mrf.mxu0
  %2500 = vmatprep.mubr.bf16.mxu0 0
  %2501 = vmatmul.mubr.bf16.gmra.mxu0 %v1423
  %v2502 = vpop.f32.mrf.mxu0
  %v2503 = vadd.f32 0.0, %v2502
  %v2504 = vpop.f32.mrf.mxu0
  %v2505 = vpop.f32.mrf.mxu0
  %v2506 = vadd.f32 0.0, %v2505
  %v2507 = vpop.f32.mrf.mxu0
  %2508 = vmatprep.mubr.bf16.mxu0 0
  %2509 = vmatmul.mubr.bf16.gmra.mxu0 %v1426
  %v2510 = vpop.f32.mrf.mxu0
  %v2511 = vadd.f32 0.0, %v2510
  %v2512 = vpop.f32.mrf.mxu0
  %v2513 = vpop.f32.mrf.mxu0
  %v2514 = vadd.f32 0.0, %v2513
  %v2515 = vpop.f32.mrf.mxu0
  %2516 = vmatprep.mubr.bf16.mxu0 0
  %2517 = vmatmul.mubr.bf16.gmra.mxu0 %v1429
  %v2518 = vpop.f32.mrf.mxu0
  %v2519 = vadd.f32 0.0, %v2518
  %v2520 = vpop.f32.mrf.mxu0
  %v2521 = vpop.f32.mrf.mxu0
  %v2522 = vadd.f32 0.0, %v2521
  %v2523 = vpop.f32.mrf.mxu0
  %2524 = vmatprep.mubr.bf16.mxu0 0
  %2525 = vmatmul.mubr.bf16.gmra.mxu0 %v1432
  %v2526 = vpop.f32.mrf.mxu0
  %v2527 = vadd.f32 0.0, %v2526
  %v2528 = vpop.f32.mrf.mxu0
  %v2529 = vpop.f32.mrf.mxu0
  %v2530 = vadd.f32 0.0, %v2529
  %v2531 = vpop.f32.mrf.mxu0
  %2532 = vmatprep.mubr.bf16.mxu0 0
  %2533 = vmatmul.mubr.bf16.gmra.mxu0 %v1435
  %v2534 = vpop.f32.mrf.mxu0
  %v2535 = vadd.f32 0.0, %v2534
  %v2536 = vpop.f32.mrf.mxu0
  %v2537 = vpop.f32.mrf.mxu0
  %v2538 = vadd.f32 0.0, %v2537
  %v2539 = vpop.f32.mrf.mxu0
  %2540 = vmatprep.mubr.bf16.mxu0 0
  %2541 = vmatmul.mubr.bf16.gmra.mxu0 %v1438
  %v2542 = vpop.f32.mrf.mxu0
  %v2543 = vadd.f32 0.0, %v2542
  %v2544 = vpop.f32.mrf.mxu0
  %v2545 = vpop.f32.mrf.mxu0
  %v2546 = vadd.f32 0.0, %v2545
  %v2547 = vpop.f32.mrf.mxu0
  %2548 = vmatprep.mubr.bf16.mxu0 0
  %2549 = vmatmul.mubr.bf16.gmra.mxu0 %v1441
  %v2550 = vpop.f32.mrf.mxu0
  %v2551 = vadd.f32 0.0, %v2550
  %v2552 = vpop.f32.mrf.mxu0
  %v2553 = vpop.f32.mrf.mxu0
  %v2554 = vadd.f32 0.0, %v2553
  %v2555 = vpop.f32.mrf.mxu0
  %2556 = vmatprep.mubr.bf16.mxu0 0
  %2557 = vmatmul.mubr.bf16.gmra.mxu0 %v1444
  %v2558 = vpop.f32.mrf.mxu0
  %v2559 = vadd.f32 0.0, %v2558
  %v2560 = vpop.f32.mrf.mxu0
  %v2561 = vpop.f32.mrf.mxu0
  %v2562 = vadd.f32 0.0, %v2561
  %v2563 = vpop.f32.mrf.mxu0
  %2564 = vmatprep.mubr.bf16.mxu0 0
  %2565 = vmatmul.mubr.bf16.gmra.mxu0 %v1447
  %v2566 = vpop.f32.mrf.mxu0
  %v2567 = vadd.f32 0.0, %v2566
  %v2568 = vpop.f32.mrf.mxu0
  %v2569 = vpop.f32.mrf.mxu0
  %v2570 = vadd.f32 0.0, %v2569
  %v2571 = vpop.f32.mrf.mxu0
  %2572 = vmatprep.mubr.bf16.mxu0 0
  %2573 = vmatmul.mubr.bf16.gmra.mxu0 %v1450
  %v2574 = vpop.f32.mrf.mxu0
  %v2575 = vadd.f32 0.0, %v2574
  %v2576 = vpop.f32.mrf.mxu0
  %v2577 = vpop.f32.mrf.mxu0
  %v2578 = vadd.f32 0.0, %v2577
  %v2579 = vpop.f32.mrf.mxu0
  %2580 = vmatprep.mubr.bf16.mxu0 0
  %2581 = vmatmul.mubr.bf16.gmra.mxu0 %v1453
  %v2582 = vpop.f32.mrf.mxu0
  %v2583 = vadd.f32 0.0, %v2582
  %v2584 = vpop.f32.mrf.mxu0
  %v2585 = vpop.f32.mrf.mxu0
  %v2586 = vadd.f32 0.0, %v2585
  %v2587 = vpop.f32.mrf.mxu0
  %2588 = vmatprep.mubr.bf16.mxu0 0
  %2589 = vmatmul.mubr.bf16.gmra.mxu0 %v1456
  %v2590 = vpop.f32.mrf.mxu0
  %v2591 = vadd.f32 0.0, %v2590
  %v2592 = vpop.f32.mrf.mxu0
  %v2593 = vpop.f32.mrf.mxu0
  %v2594 = vadd.f32 0.0, %v2593
  %v2595 = vpop.f32.mrf.mxu0
  %2596 = vmatprep.mubr.bf16.mxu0 0
  %2597 = vmatmul.mubr.bf16.gmra.mxu0 %v1459
  %v2598 = vpop.f32.mrf.mxu0
  %v2599 = vadd.f32 0.0, %v2598
  %v2600 = vpop.f32.mrf.mxu0
  %v2601 = vpop.f32.mrf.mxu0
  %v2602 = vadd.f32 0.0, %v2601
  %v2603 = vpop.f32.mrf.mxu0
  %2604 = vmatprep.mubr.bf16.mxu0 0
  %2605 = vmatmul.mubr.bf16.gmra.mxu0 %v1462
  %v2606 = vpop.f32.mrf.mxu0
  %v2607 = vadd.f32 0.0, %v2606
  %v2608 = vpop.f32.mrf.mxu0
  %v2609 = vpop.f32.mrf.mxu0
  %v2610 = vadd.f32 0.0, %v2609
  %v2611 = vpop.f32.mrf.mxu0
  %2612 = vmatprep.mubr.bf16.mxu0 0
  %2613 = vmatmul.mubr.bf16.gmra.mxu0 %v1465
  %v2614 = vpop.f32.mrf.mxu0
  %v2615 = vadd.f32 0.0, %v2614
  %v2616 = vpop.f32.mrf.mxu0
  %v2617 = vpop.f32.mrf.mxu0
  %v2618 = vadd.f32 0.0, %v2617
  %v2619 = vpop.f32.mrf.mxu0
  %2620 = vmatprep.mubr.bf16.mxu0 0
  %2621 = vmatmul.mubr.bf16.gmra.mxu0 %v1468
  %v2622 = vpop.f32.mrf.mxu0
  %v2623 = vadd.f32 0.0, %v2622
  %v2624 = vpop.f32.mrf.mxu0
  %v2625 = vpop.f32.mrf.mxu0
  %v2626 = vadd.f32 0.0, %v2625
  %v2627 = vpop.f32.mrf.mxu0
  %2628 = vmatprep.mubr.bf16.mxu0 0
  %2629 = vmatmul.mubr.bf16.gmra.mxu0 %v1471
  %v2630 = vpop.f32.mrf.mxu0
  %v2631 = vadd.f32 0.0, %v2630
  %v2632 = vpop.f32.mrf.mxu0
  %v2633 = vpop.f32.mrf.mxu0
  %v2634 = vadd.f32 0.0, %v2633
  %v2635 = vpop.f32.mrf.mxu0
  %2636 = vmatprep.mubr.bf16.mxu0 0
  %2637 = vmatmul.mubr.bf16.gmra.mxu0 %v1474
  %v2638 = vpop.f32.mrf.mxu0
  %v2639 = vadd.f32 0.0, %v2638
  %v2640 = vpop.f32.mrf.mxu0
  %v2641 = vpop.f32.mrf.mxu0
  %v2642 = vadd.f32 0.0, %v2641
  %v2643 = vpop.f32.mrf.mxu0
  %2644 = vmatprep.mubr.bf16.mxu0 0
  %2645 = vmatmul.mubr.bf16.gmra.mxu0 %v1477
  %v2646 = vpop.f32.mrf.mxu0
  %v2647 = vadd.f32 0.0, %v2646
  %v2648 = vpop.f32.mrf.mxu0
  %v2649 = vpop.f32.mrf.mxu0
  %v2650 = vadd.f32 0.0, %v2649
  %v2651 = vpop.f32.mrf.mxu0
  %2652 = vmatprep.mubr.bf16.mxu0 0
  %2653 = vmatmul.mubr.bf16.gmra.mxu0 %v1480
  %v2654 = vpop.f32.mrf.mxu0
  %v2655 = vadd.f32 0.0, %v2654
  %v2656 = vpop.f32.mrf.mxu0
  %v2657 = vpop.f32.mrf.mxu0
  %v2658 = vadd.f32 0.0, %v2657
  %v2659 = vpop.f32.mrf.mxu0
  %2660 = vmatprep.mubr.bf16.mxu0 0
  %2661 = vmatmul.mubr.bf16.gmra.mxu0 %v1483
  %v2662 = vpop.f32.mrf.mxu0
  %v2663 = vadd.f32 0.0, %v2662
  %v2664 = vpop.f32.mrf.mxu0
  %v2665 = vpop.f32.mrf.mxu0
  %v2666 = vadd.f32 0.0, %v2665
  %v2667 = vpop.f32.mrf.mxu0
  %2668 = vmatprep.mubr.bf16.mxu0 0
  %2669 = vmatmul.mubr.bf16.gmra.mxu0 %v1486
  %v2670 = vpop.f32.mrf.mxu0
  %v2671 = vadd.f32 0.0, %v2670
  %v2672 = vpop.f32.mrf.mxu0
  %v2673 = vpop.f32.mrf.mxu0
  %v2674 = vadd.f32 0.0, %v2673
  %v2675 = vpop.f32.mrf.mxu0
  %2676 = vdwg.mxu0
  %s2677 = scalar_lea.vmem %s1, 20
  %v2678 = vld [vmem:[%s2677] sm:$0xf]
  %v2679 = vld [vmem:[%s2677 + $0x4] sm:$0xf]
  %v2680 = vld [vmem:[%s2677 + $0x8] sm:$0xf]
  %v2681 = vld [vmem:[%s2677 + $0xc] sm:$0xf]
  %v2682 = vld [vmem:[%s2677 + $0x10] sm:$0x3]
  %v2688 = vunpack.c.l.b16 %v2678
  %v2689 = vunpack.c.l.b16 %v2679
  %v2690 = vunpack.c.l.b16 %v2680
  %v2691 = vunpack.c.l.b16 %v2681
  %v2692 = vunpack.c.l.b16 %v2682
  %v2693 = vpack.c.b16 %v2689, %v2688
  %v2694 = vpack.c.b16 %v2691, %v2690
  %v2695 = vpack.c.b16 %v2692, %v2692
  %v2699 = vsel %vm1488, %v2695, 0
  %2701 = vmatprep.subr.bf16.mxu0 0
  %2702 = vmatpush1.bf16.msra.mxu0 0
  %2703 = vmatprep.subr.bf16.mxu0 0
  %2704 = vmatpush1.bf16.msra.mxu0 0
  %2705 = vmatprep.subr.bf16.mxu0 0
  %2706 = vmatpush1.bf16.msra.mxu0 0
  %2707 = vmatprep.subr.bf16.mxu0 0
  %2708 = vmatpush1.bf16.msra.mxu0 0
  %2709 = vmatprep.subr.bf16.mxu0 0
  %2710 = vmatpush1.bf16.msra.mxu0 0
  %2711 = vmatprep.subr.bf16.mxu0 0
  %2712 = vmatpush1.bf16.msra.mxu0 %v2699
  %2713 = vmatprep.subr.bf16.mxu0 0
  %2714 = vmatpush1.bf16.msra.mxu0 %v2694
  %2715 = vmatprep.subr.bf16.mxu0 0
  %2716 = vmatpush1.bf16.msra.mxu0 %v2693
  %2717 = vmatprep.subr.bf16.mxu0 0
  %2718 = vmatpush2.bf16.msra.mxu0 0
  %2719 = vmatprep.subr.bf16.mxu0 0
  %2720 = vmatpush2.bf16.msra.mxu0 0
  %2721 = vmatprep.subr.bf16.mxu0 0
  %2722 = vmatpush2.bf16.msra.mxu0 0
  %2723 = vmatprep.subr.bf16.mxu0 0
  %2724 = vmatpush2.bf16.msra.mxu0 0
  %2725 = vmatprep.subr.bf16.mxu0 0
  %2726 = vmatpush2.bf16.msra.mxu0 0
  %2727 = vmatprep.subr.bf16.mxu0 0
  %2728 = vmatpush2.bf16.msra.mxu0 0
  %2729 = vmatprep.subr.bf16.mxu0 0
  %2730 = vmatpush2.bf16.msra.mxu0 0
  %2731 = vmatprep.subr.bf16.mxu0 0
  %2732 = vmatpush2.bf16.msra.mxu0 0
  %2733 = vmatprep.mubr.bf16.mxu0 0
  %2734 = vmatmul.mubr.bf16.gmra.mxu0 %v1057
  %v2735 = vpop.f32.mrf.mxu0
  %v2736 = vadd.f32 0.0, %v2735
  %v2737 = vpop.f32.mrf.mxu0
  %v2738 = vpop.f32.mrf.mxu0
  %v2739 = vadd.f32 0.0, %v2738
  %v2740 = vpop.f32.mrf.mxu0
  %2741 = vmatprep.mubr.bf16.mxu0 0
  %2742 = vmatmul.mubr.bf16.gmra.mxu0 %v1060
  %v2743 = vpop.f32.mrf.mxu0
  %v2744 = vadd.f32 0.0, %v2743
  %v2745 = vpop.f32.mrf.mxu0
  %v2746 = vpop.f32.mrf.mxu0
  %v2747 = vadd.f32 0.0, %v2746
  %v2748 = vpop.f32.mrf.mxu0
  %2749 = vmatprep.mubr.bf16.mxu0 0
  %2750 = vmatmul.mubr.bf16.gmra.mxu0 %v1063
  %v2751 = vpop.f32.mrf.mxu0
  %v2752 = vadd.f32 0.0, %v2751
  %v2753 = vpop.f32.mrf.mxu0
  %v2754 = vpop.f32.mrf.mxu0
  %v2755 = vadd.f32 0.0, %v2754
  %v2756 = vpop.f32.mrf.mxu0
  %2757 = vmatprep.mubr.bf16.mxu0 0
  %2758 = vmatmul.mubr.bf16.gmra.mxu0 %v1066
  %v2759 = vpop.f32.mrf.mxu0
  %v2760 = vadd.f32 0.0, %v2759
  %v2761 = vpop.f32.mrf.mxu0
  %v2762 = vpop.f32.mrf.mxu0
  %v2763 = vadd.f32 0.0, %v2762
  %v2764 = vpop.f32.mrf.mxu0
  %2765 = vmatprep.mubr.bf16.mxu0 0
  %2766 = vmatmul.mubr.bf16.gmra.mxu0 %v1069
  %v2767 = vpop.f32.mrf.mxu0
  %v2768 = vadd.f32 0.0, %v2767
  %v2769 = vpop.f32.mrf.mxu0
  %v2770 = vpop.f32.mrf.mxu0
  %v2771 = vadd.f32 0.0, %v2770
  %v2772 = vpop.f32.mrf.mxu0
  %2773 = vmatprep.mubr.bf16.mxu0 0
  %2774 = vmatmul.mubr.bf16.gmra.mxu0 %v1072
  %v2775 = vpop.f32.mrf.mxu0
  %v2776 = vadd.f32 0.0, %v2775
  %v2777 = vpop.f32.mrf.mxu0
  %v2778 = vpop.f32.mrf.mxu0
  %v2779 = vadd.f32 0.0, %v2778
  %v2780 = vpop.f32.mrf.mxu0
  %2781 = vmatprep.mubr.bf16.mxu0 0
  %2782 = vmatmul.mubr.bf16.gmra.mxu0 %v1075
  %v2783 = vpop.f32.mrf.mxu0
  %v2784 = vadd.f32 0.0, %v2783
  %v2785 = vpop.f32.mrf.mxu0
  %v2786 = vpop.f32.mrf.mxu0
  %v2787 = vadd.f32 0.0, %v2786
  %v2788 = vpop.f32.mrf.mxu0
  %2789 = vmatprep.mubr.bf16.mxu0 0
  %2790 = vmatmul.mubr.bf16.gmra.mxu0 %v1078
  %v2791 = vpop.f32.mrf.mxu0
  %v2792 = vadd.f32 0.0, %v2791
  %v2793 = vpop.f32.mrf.mxu0
  %v2794 = vpop.f32.mrf.mxu0
  %v2795 = vadd.f32 0.0, %v2794
  %v2796 = vpop.f32.mrf.mxu0
  %2797 = vmatprep.mubr.bf16.mxu0 0
  %2798 = vmatmul.mubr.bf16.gmra.mxu0 %v1081
  %v2799 = vpop.f32.mrf.mxu0
  %v2800 = vadd.f32 0.0, %v2799
  %v2801 = vpop.f32.mrf.mxu0
  %v2802 = vpop.f32.mrf.mxu0
  %v2803 = vadd.f32 0.0, %v2802
  %v2804 = vpop.f32.mrf.mxu0
  %2805 = vmatprep.mubr.bf16.mxu0 0
  %2806 = vmatmul.mubr.bf16.gmra.mxu0 %v1084
  %v2807 = vpop.f32.mrf.mxu0
  %v2808 = vadd.f32 0.0, %v2807
  %v2809 = vpop.f32.mrf.mxu0
  %v2810 = vpop.f32.mrf.mxu0
  %v2811 = vadd.f32 0.0, %v2810
  %v2812 = vpop.f32.mrf.mxu0
  %2813 = vmatprep.mubr.bf16.mxu0 0
  %2814 = vmatmul.mubr.bf16.gmra.mxu0 %v1087
  %v2815 = vpop.f32.mrf.mxu0
  %v2816 = vadd.f32 0.0, %v2815
  %v2817 = vpop.f32.mrf.mxu0
  %v2818 = vpop.f32.mrf.mxu0
  %v2819 = vadd.f32 0.0, %v2818
  %v2820 = vpop.f32.mrf.mxu0
  %2821 = vmatprep.mubr.bf16.mxu0 0
  %2822 = vmatmul.mubr.bf16.gmra.mxu0 %v1090
  %v2823 = vpop.f32.mrf.mxu0
  %v2824 = vadd.f32 0.0, %v2823
  %v2825 = vpop.f32.mrf.mxu0
  %v2826 = vpop.f32.mrf.mxu0
  %v2827 = vadd.f32 0.0, %v2826
  %v2828 = vpop.f32.mrf.mxu0
  %2829 = vmatprep.mubr.bf16.mxu0 0
  %2830 = vmatmul.mubr.bf16.gmra.mxu0 %v1093
  %v2831 = vpop.f32.mrf.mxu0
  %v2832 = vadd.f32 0.0, %v2831
  %v2833 = vpop.f32.mrf.mxu0
  %v2834 = vpop.f32.mrf.mxu0
  %v2835 = vadd.f32 0.0, %v2834
  %v2836 = vpop.f32.mrf.mxu0
  %2837 = vmatprep.mubr.bf16.mxu0 0
  %2838 = vmatmul.mubr.bf16.gmra.mxu0 %v1096
  %v2839 = vpop.f32.mrf.mxu0
  %v2840 = vadd.f32 0.0, %v2839
  %v2841 = vpop.f32.mrf.mxu0
  %v2842 = vpop.f32.mrf.mxu0
  %v2843 = vadd.f32 0.0, %v2842
  %v2844 = vpop.f32.mrf.mxu0
  %2845 = vmatprep.mubr.bf16.mxu0 0
  %2846 = vmatmul.mubr.bf16.gmra.mxu0 %v1099
  %v2847 = vpop.f32.mrf.mxu0
  %v2848 = vadd.f32 0.0, %v2847
  %v2849 = vpop.f32.mrf.mxu0
  %v2850 = vpop.f32.mrf.mxu0
  %v2851 = vadd.f32 0.0, %v2850
  %v2852 = vpop.f32.mrf.mxu0
  %2853 = vmatprep.mubr.bf16.mxu0 0
  %2854 = vmatmul.mubr.bf16.gmra.mxu0 %v1102
  %v2855 = vpop.f32.mrf.mxu0
  %v2856 = vadd.f32 0.0, %v2855
  %v2857 = vpop.f32.mrf.mxu0
  %v2858 = vpop.f32.mrf.mxu0
  %v2859 = vadd.f32 0.0, %v2858
  %v2860 = vpop.f32.mrf.mxu0
  %2861 = vmatprep.mubr.bf16.mxu0 0
  %2862 = vmatmul.mubr.bf16.gmra.mxu0 %v1105
  %v2863 = vpop.f32.mrf.mxu0
  %v2864 = vadd.f32 0.0, %v2863
  %v2865 = vpop.f32.mrf.mxu0
  %v2866 = vpop.f32.mrf.mxu0
  %v2867 = vadd.f32 0.0, %v2866
  %v2868 = vpop.f32.mrf.mxu0
  %2869 = vmatprep.mubr.bf16.mxu0 0
  %2870 = vmatmul.mubr.bf16.gmra.mxu0 %v1108
  %v2871 = vpop.f32.mrf.mxu0
  %v2872 = vadd.f32 0.0, %v2871
  %v2873 = vpop.f32.mrf.mxu0
  %v2874 = vpop.f32.mrf.mxu0
  %v2875 = vadd.f32 0.0, %v2874
  %v2876 = vpop.f32.mrf.mxu0
  %2877 = vmatprep.mubr.bf16.mxu0 0
  %2878 = vmatmul.mubr.bf16.gmra.mxu0 %v1111
  %v2879 = vpop.f32.mrf.mxu0
  %v2880 = vadd.f32 0.0, %v2879
  %v2881 = vpop.f32.mrf.mxu0
  %v2882 = vpop.f32.mrf.mxu0
  %v2883 = vadd.f32 0.0, %v2882
  %v2884 = vpop.f32.mrf.mxu0
  %2885 = vmatprep.mubr.bf16.mxu0 0
  %2886 = vmatmul.mubr.bf16.gmra.mxu0 %v1114
  %v2887 = vpop.f32.mrf.mxu0
  %v2888 = vadd.f32 0.0, %v2887
  %v2889 = vpop.f32.mrf.mxu0
  %v2890 = vpop.f32.mrf.mxu0
  %v2891 = vadd.f32 0.0, %v2890
  %v2892 = vpop.f32.mrf.mxu0
  %2893 = vmatprep.mubr.bf16.mxu0 0
  %2894 = vmatmul.mubr.bf16.gmra.mxu0 %v1117
  %v2895 = vpop.f32.mrf.mxu0
  %v2896 = vadd.f32 0.0, %v2895
  %v2897 = vpop.f32.mrf.mxu0
  %v2898 = vpop.f32.mrf.mxu0
  %v2899 = vadd.f32 0.0, %v2898
  %v2900 = vpop.f32.mrf.mxu0
  %2901 = vmatprep.mubr.bf16.mxu0 0
  %2902 = vmatmul.mubr.bf16.gmra.mxu0 %v1120
  %v2903 = vpop.f32.mrf.mxu0
  %v2904 = vadd.f32 0.0, %v2903
  %v2905 = vpop.f32.mrf.mxu0
  %v2906 = vpop.f32.mrf.mxu0
  %v2907 = vadd.f32 0.0, %v2906
  %v2908 = vpop.f32.mrf.mxu0
  %2909 = vmatprep.mubr.bf16.mxu0 0
  %2910 = vmatmul.mubr.bf16.gmra.mxu0 %v1123
  %v2911 = vpop.f32.mrf.mxu0
  %v2912 = vadd.f32 0.0, %v2911
  %v2913 = vpop.f32.mrf.mxu0
  %v2914 = vpop.f32.mrf.mxu0
  %v2915 = vadd.f32 0.0, %v2914
  %v2916 = vpop.f32.mrf.mxu0
  %2917 = vmatprep.mubr.bf16.mxu0 0
  %2918 = vmatmul.mubr.bf16.gmra.mxu0 %v1126
  %v2919 = vpop.f32.mrf.mxu0
  %v2920 = vadd.f32 0.0, %v2919
  %v2921 = vpop.f32.mrf.mxu0
  %v2922 = vpop.f32.mrf.mxu0
  %v2923 = vadd.f32 0.0, %v2922
  %v2924 = vpop.f32.mrf.mxu0
  %2925 = vmatprep.mubr.bf16.mxu0 0
  %2926 = vmatmul.mubr.bf16.gmra.mxu0 %v1129
  %v2927 = vpop.f32.mrf.mxu0
  %v2928 = vadd.f32 0.0, %v2927
  %v2929 = vpop.f32.mrf.mxu0
  %v2930 = vpop.f32.mrf.mxu0
  %v2931 = vadd.f32 0.0, %v2930
  %v2932 = vpop.f32.mrf.mxu0
  %2933 = vmatprep.mubr.bf16.mxu0 0
  %2934 = vmatmul.mubr.bf16.gmra.mxu0 %v1132
  %v2935 = vpop.f32.mrf.mxu0
  %v2936 = vadd.f32 0.0, %v2935
  %v2937 = vpop.f32.mrf.mxu0
  %v2938 = vpop.f32.mrf.mxu0
  %v2939 = vadd.f32 0.0, %v2938
  %v2940 = vpop.f32.mrf.mxu0
  %2941 = vmatprep.mubr.bf16.mxu0 0
  %2942 = vmatmul.mubr.bf16.gmra.mxu0 %v1135
  %v2943 = vpop.f32.mrf.mxu0
  %v2944 = vadd.f32 0.0, %v2943
  %v2945 = vpop.f32.mrf.mxu0
  %v2946 = vpop.f32.mrf.mxu0
  %v2947 = vadd.f32 0.0, %v2946
  %v2948 = vpop.f32.mrf.mxu0
  %2949 = vmatprep.mubr.bf16.mxu0 0
  %2950 = vmatmul.mubr.bf16.gmra.mxu0 %v1138
  %v2951 = vpop.f32.mrf.mxu0
  %v2952 = vadd.f32 0.0, %v2951
  %v2953 = vpop.f32.mrf.mxu0
  %v2954 = vpop.f32.mrf.mxu0
  %v2955 = vadd.f32 0.0, %v2954
  %v2956 = vpop.f32.mrf.mxu0
  %2957 = vmatprep.mubr.bf16.mxu0 0
  %2958 = vmatmul.mubr.bf16.gmra.mxu0 %v1141
  %v2959 = vpop.f32.mrf.mxu0
  %v2960 = vadd.f32 0.0, %v2959
  %v2961 = vpop.f32.mrf.mxu0
  %v2962 = vpop.f32.mrf.mxu0
  %v2963 = vadd.f32 0.0, %v2962
  %v2964 = vpop.f32.mrf.mxu0
  %2965 = vmatprep.mubr.bf16.mxu0 0
  %2966 = vmatmul.mubr.bf16.gmra.mxu0 %v1144
  %v2967 = vpop.f32.mrf.mxu0
  %v2968 = vadd.f32 0.0, %v2967
  %v2969 = vpop.f32.mrf.mxu0
  %v2970 = vpop.f32.mrf.mxu0
  %v2971 = vadd.f32 0.0, %v2970
  %v2972 = vpop.f32.mrf.mxu0
  %2973 = vmatprep.mubr.bf16.mxu0 0
  %2974 = vmatmul.mubr.bf16.gmra.mxu0 %v1147
  %v2975 = vpop.f32.mrf.mxu0
  %v2976 = vadd.f32 0.0, %v2975
  %v2977 = vpop.f32.mrf.mxu0
  %v2978 = vpop.f32.mrf.mxu0
  %v2979 = vadd.f32 0.0, %v2978
  %v2980 = vpop.f32.mrf.mxu0
  %2981 = vmatprep.mubr.bf16.mxu0 0
  %2982 = vmatmul.mubr.bf16.gmra.mxu0 %v1150
  %v2983 = vpop.f32.mrf.mxu0
  %v2984 = vadd.f32 0.0, %v2983
  %v2985 = vpop.f32.mrf.mxu0
  %v2986 = vpop.f32.mrf.mxu0
  %v2987 = vadd.f32 0.0, %v2986
  %v2988 = vpop.f32.mrf.mxu0
  %2989 = vmatprep.mubr.bf16.mxu0 0
  %2990 = vmatmul.mubr.bf16.gmra.mxu0 %v1153
  %v2991 = vpop.f32.mrf.mxu0
  %v2992 = vadd.f32 0.0, %v2991
  %v2993 = vpop.f32.mrf.mxu0
  %v2994 = vpop.f32.mrf.mxu0
  %v2995 = vadd.f32 0.0, %v2994
  %v2996 = vpop.f32.mrf.mxu0
  %2997 = vmatprep.mubr.bf16.mxu0 0
  %2998 = vmatmul.mubr.bf16.gmra.mxu0 %v1156
  %v2999 = vpop.f32.mrf.mxu0
  %v3000 = vadd.f32 0.0, %v2999
  %v3001 = vpop.f32.mrf.mxu0
  %v3002 = vpop.f32.mrf.mxu0
  %v3003 = vadd.f32 0.0, %v3002
  %v3004 = vpop.f32.mrf.mxu0
  %3005 = vmatprep.mubr.bf16.mxu0 0
  %3006 = vmatmul.mubr.bf16.gmra.mxu0 %v1159
  %v3007 = vpop.f32.mrf.mxu0
  %v3008 = vadd.f32 0.0, %v3007
  %v3009 = vpop.f32.mrf.mxu0
  %v3010 = vpop.f32.mrf.mxu0
  %v3011 = vadd.f32 0.0, %v3010
  %v3012 = vpop.f32.mrf.mxu0
  %3013 = vmatprep.mubr.bf16.mxu0 0
  %3014 = vmatmul.mubr.bf16.gmra.mxu0 %v1162
  %v3015 = vpop.f32.mrf.mxu0
  %v3016 = vadd.f32 0.0, %v3015
  %v3017 = vpop.f32.mrf.mxu0
  %v3018 = vpop.f32.mrf.mxu0
  %v3019 = vadd.f32 0.0, %v3018
  %v3020 = vpop.f32.mrf.mxu0
  %3021 = vmatprep.mubr.bf16.mxu0 0
  %3022 = vmatmul.mubr.bf16.gmra.mxu0 %v1165
  %v3023 = vpop.f32.mrf.mxu0
  %v3024 = vadd.f32 0.0, %v3023
  %v3025 = vpop.f32.mrf.mxu0
  %v3026 = vpop.f32.mrf.mxu0
  %v3027 = vadd.f32 0.0, %v3026
  %v3028 = vpop.f32.mrf.mxu0
  %3029 = vmatprep.mubr.bf16.mxu0 0
  %3030 = vmatmul.mubr.bf16.gmra.mxu0 %v1168
  %v3031 = vpop.f32.mrf.mxu0
  %v3032 = vadd.f32 0.0, %v3031
  %v3033 = vpop.f32.mrf.mxu0
  %v3034 = vpop.f32.mrf.mxu0
  %v3035 = vadd.f32 0.0, %v3034
  %v3036 = vpop.f32.mrf.mxu0
  %3037 = vmatprep.mubr.bf16.mxu0 0
  %3038 = vmatmul.mubr.bf16.gmra.mxu0 %v1171
  %v3039 = vpop.f32.mrf.mxu0
  %v3040 = vadd.f32 0.0, %v3039
  %v3041 = vpop.f32.mrf.mxu0
  %v3042 = vpop.f32.mrf.mxu0
  %v3043 = vadd.f32 0.0, %v3042
  %v3044 = vpop.f32.mrf.mxu0
  %3045 = vmatprep.mubr.bf16.mxu0 0
  %3046 = vmatmul.mubr.bf16.gmra.mxu0 %v1174
  %v3047 = vpop.f32.mrf.mxu0
  %v3048 = vadd.f32 0.0, %v3047
  %v3049 = vpop.f32.mrf.mxu0
  %v3050 = vpop.f32.mrf.mxu0
  %v3051 = vadd.f32 0.0, %v3050
  %v3052 = vpop.f32.mrf.mxu0
  %3053 = vmatprep.mubr.bf16.mxu0 0
  %3054 = vmatmul.mubr.bf16.gmra.mxu0 %v1177
  %v3055 = vpop.f32.mrf.mxu0
  %v3056 = vadd.f32 0.0, %v3055
  %v3057 = vpop.f32.mrf.mxu0
  %v3058 = vpop.f32.mrf.mxu0
  %v3059 = vadd.f32 0.0, %v3058
  %v3060 = vpop.f32.mrf.mxu0
  %3061 = vmatprep.mubr.bf16.mxu0 0
  %3062 = vmatmul.mubr.bf16.gmra.mxu0 %v1180
  %v3063 = vpop.f32.mrf.mxu0
  %v3064 = vadd.f32 0.0, %v3063
  %v3065 = vpop.f32.mrf.mxu0
  %v3066 = vpop.f32.mrf.mxu0
  %v3067 = vadd.f32 0.0, %v3066
  %v3068 = vpop.f32.mrf.mxu0
  %3069 = vmatprep.mubr.bf16.mxu0 0
  %3070 = vmatmul.mubr.bf16.gmra.mxu0 %v1183
  %v3071 = vpop.f32.mrf.mxu0
  %v3072 = vadd.f32 0.0, %v3071
  %v3073 = vpop.f32.mrf.mxu0
  %v3074 = vpop.f32.mrf.mxu0
  %v3075 = vadd.f32 0.0, %v3074
  %v3076 = vpop.f32.mrf.mxu0
  %3077 = vmatprep.mubr.bf16.mxu0 0
  %3078 = vmatmul.mubr.bf16.gmra.mxu0 %v1186
  %v3079 = vpop.f32.mrf.mxu0
  %v3080 = vadd.f32 0.0, %v3079
  %v3081 = vpop.f32.mrf.mxu0
  %v3082 = vpop.f32.mrf.mxu0
  %v3083 = vadd.f32 0.0, %v3082
  %v3084 = vpop.f32.mrf.mxu0
  %3085 = vmatprep.mubr.bf16.mxu0 0
  %3086 = vmatmul.mubr.bf16.gmra.mxu0 %v1189
  %v3087 = vpop.f32.mrf.mxu0
  %v3088 = vadd.f32 0.0, %v3087
  %v3089 = vpop.f32.mrf.mxu0
  %v3090 = vpop.f32.mrf.mxu0
  %v3091 = vadd.f32 0.0, %v3090
  %v3092 = vpop.f32.mrf.mxu0
  %3093 = vmatprep.mubr.bf16.mxu0 0
  %3094 = vmatmul.mubr.bf16.gmra.mxu0 %v1192
  %v3095 = vpop.f32.mrf.mxu0
  %v3096 = vadd.f32 0.0, %v3095
  %v3097 = vpop.f32.mrf.mxu0
  %v3098 = vpop.f32.mrf.mxu0
  %v3099 = vadd.f32 0.0, %v3098
  %v3100 = vpop.f32.mrf.mxu0
  %3101 = vmatprep.mubr.bf16.mxu0 0
  %3102 = vmatmul.mubr.bf16.gmra.mxu0 %v1195
  %v3103 = vpop.f32.mrf.mxu0
  %v3104 = vadd.f32 0.0, %v3103
  %v3105 = vpop.f32.mrf.mxu0
  %v3106 = vpop.f32.mrf.mxu0
  %v3107 = vadd.f32 0.0, %v3106
  %v3108 = vpop.f32.mrf.mxu0
  %3109 = vmatprep.mubr.bf16.mxu0 0
  %3110 = vmatmul.mubr.bf16.gmra.mxu0 %v1198
  %v3111 = vpop.f32.mrf.mxu0
  %v3112 = vadd.f32 0.0, %v3111
  %v3113 = vpop.f32.mrf.mxu0
  %v3114 = vpop.f32.mrf.mxu0
  %v3115 = vadd.f32 0.0, %v3114
  %v3116 = vpop.f32.mrf.mxu0
  %3117 = vmatprep.mubr.bf16.mxu0 0
  %3118 = vmatmul.mubr.bf16.gmra.mxu0 %v1201
  %v3119 = vpop.f32.mrf.mxu0
  %v3120 = vadd.f32 0.0, %v3119
  %v3121 = vpop.f32.mrf.mxu0
  %v3122 = vpop.f32.mrf.mxu0
  %v3123 = vadd.f32 0.0, %v3122
  %v3124 = vpop.f32.mrf.mxu0
  %3125 = vmatprep.mubr.bf16.mxu0 0
  %3126 = vmatmul.mubr.bf16.gmra.mxu0 %v1204
  %v3127 = vpop.f32.mrf.mxu0
  %v3128 = vadd.f32 0.0, %v3127
  %v3129 = vpop.f32.mrf.mxu0
  %v3130 = vpop.f32.mrf.mxu0
  %v3131 = vadd.f32 0.0, %v3130
  %v3132 = vpop.f32.mrf.mxu0
  %3133 = vmatprep.mubr.bf16.mxu0 0
  %3134 = vmatmul.mubr.bf16.gmra.mxu0 %v1207
  %v3135 = vpop.f32.mrf.mxu0
  %v3136 = vadd.f32 0.0, %v3135
  %v3137 = vpop.f32.mrf.mxu0
  %v3138 = vpop.f32.mrf.mxu0
  %v3139 = vadd.f32 0.0, %v3138
  %v3140 = vpop.f32.mrf.mxu0
  %3141 = vmatprep.mubr.bf16.mxu0 0
  %3142 = vmatmul.mubr.bf16.gmra.mxu0 %v1210
  %v3143 = vpop.f32.mrf.mxu0
  %v3144 = vadd.f32 0.0, %v3143
  %v3145 = vpop.f32.mrf.mxu0
  %v3146 = vpop.f32.mrf.mxu0
  %v3147 = vadd.f32 0.0, %v3146
  %v3148 = vpop.f32.mrf.mxu0
  %3149 = vmatprep.mubr.bf16.mxu0 0
  %3150 = vmatmul.mubr.bf16.gmra.mxu0 %v1213
  %v3151 = vpop.f32.mrf.mxu0
  %v3152 = vadd.f32 0.0, %v3151
  %v3153 = vpop.f32.mrf.mxu0
  %v3154 = vpop.f32.mrf.mxu0
  %v3155 = vadd.f32 0.0, %v3154
  %v3156 = vpop.f32.mrf.mxu0
  %3157 = vmatprep.mubr.bf16.mxu0 0
  %3158 = vmatmul.mubr.bf16.gmra.mxu0 %v1216
  %v3159 = vpop.f32.mrf.mxu0
  %v3160 = vadd.f32 0.0, %v3159
  %v3161 = vpop.f32.mrf.mxu0
  %v3162 = vpop.f32.mrf.mxu0
  %v3163 = vadd.f32 0.0, %v3162
  %v3164 = vpop.f32.mrf.mxu0
  %3165 = vmatprep.mubr.bf16.mxu0 0
  %3166 = vmatmul.mubr.bf16.gmra.mxu0 %v1219
  %v3167 = vpop.f32.mrf.mxu0
  %v3168 = vadd.f32 0.0, %v3167
  %v3169 = vpop.f32.mrf.mxu0
  %v3170 = vpop.f32.mrf.mxu0
  %v3171 = vadd.f32 0.0, %v3170
  %v3172 = vpop.f32.mrf.mxu0
  %3173 = vmatprep.mubr.bf16.mxu0 0
  %3174 = vmatmul.mubr.bf16.gmra.mxu0 %v1222
  %v3175 = vpop.f32.mrf.mxu0
  %v3176 = vadd.f32 0.0, %v3175
  %v3177 = vpop.f32.mrf.mxu0
  %v3178 = vpop.f32.mrf.mxu0
  %v3179 = vadd.f32 0.0, %v3178
  %v3180 = vpop.f32.mrf.mxu0
  %3181 = vmatprep.mubr.bf16.mxu0 0
  %3182 = vmatmul.mubr.bf16.gmra.mxu0 %v1225
  %v3183 = vpop.f32.mrf.mxu0
  %v3184 = vadd.f32 0.0, %v3183
  %v3185 = vpop.f32.mrf.mxu0
  %v3186 = vpop.f32.mrf.mxu0
  %v3187 = vadd.f32 0.0, %v3186
  %v3188 = vpop.f32.mrf.mxu0
  %3189 = vmatprep.mubr.bf16.mxu0 0
  %3190 = vmatmul.mubr.bf16.gmra.mxu0 %v1228
  %v3191 = vpop.f32.mrf.mxu0
  %v3192 = vadd.f32 0.0, %v3191
  %v3193 = vpop.f32.mrf.mxu0
  %v3194 = vpop.f32.mrf.mxu0
  %v3195 = vadd.f32 0.0, %v3194
  %v3196 = vpop.f32.mrf.mxu0
  %3197 = vmatprep.mubr.bf16.mxu0 0
  %3198 = vmatmul.mubr.bf16.gmra.mxu0 %v1231
  %v3199 = vpop.f32.mrf.mxu0
  %v3200 = vadd.f32 0.0, %v3199
  %v3201 = vpop.f32.mrf.mxu0
  %v3202 = vpop.f32.mrf.mxu0
  %v3203 = vadd.f32 0.0, %v3202
  %v3204 = vpop.f32.mrf.mxu0
  %3205 = vmatprep.mubr.bf16.mxu0 0
  %3206 = vmatmul.mubr.bf16.gmra.mxu0 %v1234
  %v3207 = vpop.f32.mrf.mxu0
  %v3208 = vadd.f32 0.0, %v3207
  %v3209 = vpop.f32.mrf.mxu0
  %v3210 = vpop.f32.mrf.mxu0
  %v3211 = vadd.f32 0.0, %v3210
  %v3212 = vpop.f32.mrf.mxu0
  %3213 = vmatprep.mubr.bf16.mxu0 0
  %3214 = vmatmul.mubr.bf16.gmra.mxu0 %v1237
  %v3215 = vpop.f32.mrf.mxu0
  %v3216 = vadd.f32 0.0, %v3215
  %v3217 = vpop.f32.mrf.mxu0
  %v3218 = vpop.f32.mrf.mxu0
  %v3219 = vadd.f32 0.0, %v3218
  %v3220 = vpop.f32.mrf.mxu0
  %3221 = vmatprep.mubr.bf16.mxu0 0
  %3222 = vmatmul.mubr.bf16.gmra.mxu0 %v1240
  %v3223 = vpop.f32.mrf.mxu0
  %v3224 = vadd.f32 0.0, %v3223
  %v3225 = vpop.f32.mrf.mxu0
  %v3226 = vpop.f32.mrf.mxu0
  %v3227 = vadd.f32 0.0, %v3226
  %v3228 = vpop.f32.mrf.mxu0
  %3229 = vmatprep.mubr.bf16.mxu0 0
  %3230 = vmatmul.mubr.bf16.gmra.mxu0 %v1243
  %v3231 = vpop.f32.mrf.mxu0
  %v3232 = vadd.f32 0.0, %v3231
  %v3233 = vpop.f32.mrf.mxu0
  %v3234 = vpop.f32.mrf.mxu0
  %v3235 = vadd.f32 0.0, %v3234
  %v3236 = vpop.f32.mrf.mxu0
  %3237 = vmatprep.mubr.bf16.mxu0 0
  %3238 = vmatmul.mubr.bf16.gmra.mxu0 %v1246
  %v3239 = vpop.f32.mrf.mxu0
  %v3240 = vadd.f32 0.0, %v3239
  %v3241 = vpop.f32.mrf.mxu0
  %v3242 = vpop.f32.mrf.mxu0
  %v3243 = vadd.f32 0.0, %v3242
  %v3244 = vpop.f32.mrf.mxu0
  %3245 = vmatprep.mubr.bf16.mxu0 0
  %3246 = vmatmul.mubr.bf16.gmra.mxu0 %v1249
  %v3247 = vpop.f32.mrf.mxu0
  %v3248 = vadd.f32 0.0, %v3247
  %v3249 = vpop.f32.mrf.mxu0
  %v3250 = vpop.f32.mrf.mxu0
  %v3251 = vadd.f32 0.0, %v3250
  %v3252 = vpop.f32.mrf.mxu0
  %3253 = vmatprep.mubr.bf16.mxu0 0
  %3254 = vmatmul.mubr.bf16.gmra.mxu0 %v1252
  %v3255 = vpop.f32.mrf.mxu0
  %v3256 = vadd.f32 0.0, %v3255
  %v3257 = vpop.f32.mrf.mxu0
  %v3258 = vpop.f32.mrf.mxu0
  %v3259 = vadd.f32 0.0, %v3258
  %v3260 = vpop.f32.mrf.mxu0
  %3261 = vmatprep.mubr.bf16.mxu0 0
  %3262 = vmatmul.mubr.bf16.gmra.mxu0 %v1255
  %v3263 = vpop.f32.mrf.mxu0
  %v3264 = vadd.f32 0.0, %v3263
  %v3265 = vpop.f32.mrf.mxu0
  %v3266 = vpop.f32.mrf.mxu0
  %v3267 = vadd.f32 0.0, %v3266
  %v3268 = vpop.f32.mrf.mxu0
  %3269 = vmatprep.mubr.bf16.mxu0 0
  %3270 = vmatmul.mubr.bf16.gmra.mxu0 %v1258
  %v3271 = vpop.f32.mrf.mxu0
  %v3272 = vadd.f32 0.0, %v3271
  %v3273 = vpop.f32.mrf.mxu0
  %v3274 = vpop.f32.mrf.mxu0
  %v3275 = vadd.f32 0.0, %v3274
  %v3276 = vpop.f32.mrf.mxu0
  %3277 = vmatprep.mubr.bf16.mxu0 0
  %3278 = vmatmul.mubr.bf16.gmra.mxu0 %v1261
  %v3279 = vpop.f32.mrf.mxu0
  %v3280 = vadd.f32 0.0, %v3279
  %v3281 = vpop.f32.mrf.mxu0
  %v3282 = vpop.f32.mrf.mxu0
  %v3283 = vadd.f32 0.0, %v3282
  %v3284 = vpop.f32.mrf.mxu0
  %3285 = vmatprep.mubr.bf16.mxu0 0
  %3286 = vmatmul.mubr.bf16.gmra.mxu0 %v1264
  %v3287 = vpop.f32.mrf.mxu0
  %v3288 = vadd.f32 0.0, %v3287
  %v3289 = vpop.f32.mrf.mxu0
  %v3290 = vpop.f32.mrf.mxu0
  %v3291 = vadd.f32 0.0, %v3290
  %v3292 = vpop.f32.mrf.mxu0
  %3293 = vmatprep.mubr.bf16.mxu0 0
  %3294 = vmatmul.mubr.bf16.gmra.mxu0 %v1267
  %v3295 = vpop.f32.mrf.mxu0
  %v3296 = vadd.f32 0.0, %v3295
  %v3297 = vpop.f32.mrf.mxu0
  %v3298 = vpop.f32.mrf.mxu0
  %v3299 = vadd.f32 0.0, %v3298
  %v3300 = vpop.f32.mrf.mxu0
  %3301 = vmatprep.mubr.bf16.mxu0 0
  %3302 = vmatmul.mubr.bf16.gmra.mxu0 %v1270
  %v3303 = vpop.f32.mrf.mxu0
  %v3304 = vadd.f32 0.0, %v3303
  %v3305 = vpop.f32.mrf.mxu0
  %v3306 = vpop.f32.mrf.mxu0
  %v3307 = vadd.f32 0.0, %v3306
  %v3308 = vpop.f32.mrf.mxu0
  %3309 = vmatprep.mubr.bf16.mxu0 0
  %3310 = vmatmul.mubr.bf16.gmra.mxu0 %v1273
  %v3311 = vpop.f32.mrf.mxu0
  %v3312 = vadd.f32 0.0, %v3311
  %v3313 = vpop.f32.mrf.mxu0
  %v3314 = vpop.f32.mrf.mxu0
  %v3315 = vadd.f32 0.0, %v3314
  %v3316 = vpop.f32.mrf.mxu0
  %3317 = vmatprep.mubr.bf16.mxu0 0
  %3318 = vmatmul.mubr.bf16.gmra.mxu0 %v1276
  %v3319 = vpop.f32.mrf.mxu0
  %v3320 = vadd.f32 0.0, %v3319
  %v3321 = vpop.f32.mrf.mxu0
  %v3322 = vpop.f32.mrf.mxu0
  %v3323 = vadd.f32 0.0, %v3322
  %v3324 = vpop.f32.mrf.mxu0
  %3325 = vmatprep.mubr.bf16.mxu0 0
  %3326 = vmatmul.mubr.bf16.gmra.mxu0 %v1279
  %v3327 = vpop.f32.mrf.mxu0
  %v3328 = vadd.f32 0.0, %v3327
  %v3329 = vpop.f32.mrf.mxu0
  %v3330 = vpop.f32.mrf.mxu0
  %v3331 = vadd.f32 0.0, %v3330
  %v3332 = vpop.f32.mrf.mxu0
  %3333 = vmatprep.mubr.bf16.mxu0 0
  %3334 = vmatmul.mubr.bf16.gmra.mxu0 %v1282
  %v3335 = vpop.f32.mrf.mxu0
  %v3336 = vadd.f32 0.0, %v3335
  %v3337 = vpop.f32.mrf.mxu0
  %v3338 = vpop.f32.mrf.mxu0
  %v3339 = vadd.f32 0.0, %v3338
  %v3340 = vpop.f32.mrf.mxu0
  %3341 = vmatprep.mubr.bf16.mxu0 0
  %3342 = vmatmul.mubr.bf16.gmra.mxu0 %v1285
  %v3343 = vpop.f32.mrf.mxu0
  %v3344 = vadd.f32 0.0, %v3343
  %v3345 = vpop.f32.mrf.mxu0
  %v3346 = vpop.f32.mrf.mxu0
  %v3347 = vadd.f32 0.0, %v3346
  %v3348 = vpop.f32.mrf.mxu0
  %3349 = vmatprep.mubr.bf16.mxu0 0
  %3350 = vmatmul.mubr.bf16.gmra.mxu0 %v1288
  %v3351 = vpop.f32.mrf.mxu0
  %v3352 = vadd.f32 0.0, %v3351
  %v3353 = vpop.f32.mrf.mxu0
  %v3354 = vpop.f32.mrf.mxu0
  %v3355 = vadd.f32 0.0, %v3354
  %v3356 = vpop.f32.mrf.mxu0
  %3357 = vmatprep.mubr.bf16.mxu0 0
  %3358 = vmatmul.mubr.bf16.gmra.mxu0 %v1291
  %v3359 = vpop.f32.mrf.mxu0
  %v3360 = vadd.f32 0.0, %v3359
  %v3361 = vpop.f32.mrf.mxu0
  %v3362 = vpop.f32.mrf.mxu0
  %v3363 = vadd.f32 0.0, %v3362
  %v3364 = vpop.f32.mrf.mxu0
  %3365 = vmatprep.mubr.bf16.mxu0 0
  %3366 = vmatmul.mubr.bf16.gmra.mxu0 %v1294
  %v3367 = vpop.f32.mrf.mxu0
  %v3368 = vadd.f32 0.0, %v3367
  %v3369 = vpop.f32.mrf.mxu0
  %v3370 = vpop.f32.mrf.mxu0
  %v3371 = vadd.f32 0.0, %v3370
  %v3372 = vpop.f32.mrf.mxu0
  %3373 = vmatprep.mubr.bf16.mxu0 0
  %3374 = vmatmul.mubr.bf16.gmra.mxu0 %v1297
  %v3375 = vpop.f32.mrf.mxu0
  %v3376 = vadd.f32 0.0, %v3375
  %v3377 = vpop.f32.mrf.mxu0
  %v3378 = vpop.f32.mrf.mxu0
  %v3379 = vadd.f32 0.0, %v3378
  %v3380 = vpop.f32.mrf.mxu0
  %3381 = vmatprep.mubr.bf16.mxu0 0
  %3382 = vmatmul.mubr.bf16.gmra.mxu0 %v1300
  %v3383 = vpop.f32.mrf.mxu0
  %v3384 = vadd.f32 0.0, %v3383
  %v3385 = vpop.f32.mrf.mxu0
  %v3386 = vpop.f32.mrf.mxu0
  %v3387 = vadd.f32 0.0, %v3386
  %v3388 = vpop.f32.mrf.mxu0
  %3389 = vmatprep.mubr.bf16.mxu0 0
  %3390 = vmatmul.mubr.bf16.gmra.mxu0 %v1303
  %v3391 = vpop.f32.mrf.mxu0
  %v3392 = vadd.f32 0.0, %v3391
  %v3393 = vpop.f32.mrf.mxu0
  %v3394 = vpop.f32.mrf.mxu0
  %v3395 = vadd.f32 0.0, %v3394
  %v3396 = vpop.f32.mrf.mxu0
  %3397 = vmatprep.mubr.bf16.mxu0 0
  %3398 = vmatmul.mubr.bf16.gmra.mxu0 %v1306
  %v3399 = vpop.f32.mrf.mxu0
  %v3400 = vadd.f32 0.0, %v3399
  %v3401 = vpop.f32.mrf.mxu0
  %v3402 = vpop.f32.mrf.mxu0
  %v3403 = vadd.f32 0.0, %v3402
  %v3404 = vpop.f32.mrf.mxu0
  %3405 = vmatprep.mubr.bf16.mxu0 0
  %3406 = vmatmul.mubr.bf16.gmra.mxu0 %v1309
  %v3407 = vpop.f32.mrf.mxu0
  %v3408 = vadd.f32 0.0, %v3407
  %v3409 = vpop.f32.mrf.mxu0
  %v3410 = vpop.f32.mrf.mxu0
  %v3411 = vadd.f32 0.0, %v3410
  %v3412 = vpop.f32.mrf.mxu0
  %3413 = vmatprep.mubr.bf16.mxu0 0
  %3414 = vmatmul.mubr.bf16.gmra.mxu0 %v1312
  %v3415 = vpop.f32.mrf.mxu0
  %v3416 = vadd.f32 0.0, %v3415
  %v3417 = vpop.f32.mrf.mxu0
  %v3418 = vpop.f32.mrf.mxu0
  %v3419 = vadd.f32 0.0, %v3418
  %v3420 = vpop.f32.mrf.mxu0
  %3421 = vmatprep.mubr.bf16.mxu0 0
  %3422 = vmatmul.mubr.bf16.gmra.mxu0 %v1315
  %v3423 = vpop.f32.mrf.mxu0
  %v3424 = vadd.f32 0.0, %v3423
  %v3425 = vpop.f32.mrf.mxu0
  %v3426 = vpop.f32.mrf.mxu0
  %v3427 = vadd.f32 0.0, %v3426
  %v3428 = vpop.f32.mrf.mxu0
  %3429 = vmatprep.mubr.bf16.mxu0 0
  %3430 = vmatmul.mubr.bf16.gmra.mxu0 %v1318
  %v3431 = vpop.f32.mrf.mxu0
  %v3432 = vadd.f32 0.0, %v3431
  %v3433 = vpop.f32.mrf.mxu0
  %v3434 = vpop.f32.mrf.mxu0
  %v3435 = vadd.f32 0.0, %v3434
  %v3436 = vpop.f32.mrf.mxu0
  %3437 = vmatprep.mubr.bf16.mxu0 0
  %3438 = vmatmul.mubr.bf16.gmra.mxu0 %v1321
  %v3439 = vpop.f32.mrf.mxu0
  %v3440 = vadd.f32 0.0, %v3439
  %v3441 = vpop.f32.mrf.mxu0
  %v3442 = vpop.f32.mrf.mxu0
  %v3443 = vadd.f32 0.0, %v3442
  %v3444 = vpop.f32.mrf.mxu0
  %3445 = vmatprep.mubr.bf16.mxu0 0
  %3446 = vmatmul.mubr.bf16.gmra.mxu0 %v1324
  %v3447 = vpop.f32.mrf.mxu0
  %v3448 = vadd.f32 0.0, %v3447
  %v3449 = vpop.f32.mrf.mxu0
  %v3450 = vpop.f32.mrf.mxu0
  %v3451 = vadd.f32 0.0, %v3450
  %v3452 = vpop.f32.mrf.mxu0
  %3453 = vmatprep.mubr.bf16.mxu0 0
  %3454 = vmatmul.mubr.bf16.gmra.mxu0 %v1327
  %v3455 = vpop.f32.mrf.mxu0
  %v3456 = vadd.f32 0.0, %v3455
  %v3457 = vpop.f32.mrf.mxu0
  %v3458 = vpop.f32.mrf.mxu0
  %v3459 = vadd.f32 0.0, %v3458
  %v3460 = vpop.f32.mrf.mxu0
  %3461 = vmatprep.mubr.bf16.mxu0 0
  %3462 = vmatmul.mubr.bf16.gmra.mxu0 %v1330
  %v3463 = vpop.f32.mrf.mxu0
  %v3464 = vadd.f32 0.0, %v3463
  %v3465 = vpop.f32.mrf.mxu0
  %v3466 = vpop.f32.mrf.mxu0
  %v3467 = vadd.f32 0.0, %v3466
  %v3468 = vpop.f32.mrf.mxu0
  %3469 = vmatprep.mubr.bf16.mxu0 0
  %3470 = vmatmul.mubr.bf16.gmra.mxu0 %v1333
  %v3471 = vpop.f32.mrf.mxu0
  %v3472 = vadd.f32 0.0, %v3471
  %v3473 = vpop.f32.mrf.mxu0
  %v3474 = vpop.f32.mrf.mxu0
  %v3475 = vadd.f32 0.0, %v3474
  %v3476 = vpop.f32.mrf.mxu0
  %3477 = vmatprep.mubr.bf16.mxu0 0
  %3478 = vmatmul.mubr.bf16.gmra.mxu0 %v1336
  %v3479 = vpop.f32.mrf.mxu0
  %v3480 = vadd.f32 0.0, %v3479
  %v3481 = vpop.f32.mrf.mxu0
  %v3482 = vpop.f32.mrf.mxu0
  %v3483 = vadd.f32 0.0, %v3482
  %v3484 = vpop.f32.mrf.mxu0
  %3485 = vmatprep.mubr.bf16.mxu0 0
  %3486 = vmatmul.mubr.bf16.gmra.mxu0 %v1339
  %v3487 = vpop.f32.mrf.mxu0
  %v3488 = vadd.f32 0.0, %v3487
  %v3489 = vpop.f32.mrf.mxu0
  %v3490 = vpop.f32.mrf.mxu0
  %v3491 = vadd.f32 0.0, %v3490
  %v3492 = vpop.f32.mrf.mxu0
  %3493 = vmatprep.mubr.bf16.mxu0 0
  %3494 = vmatmul.mubr.bf16.gmra.mxu0 %v1342
  %v3495 = vpop.f32.mrf.mxu0
  %v3496 = vadd.f32 0.0, %v3495
  %v3497 = vpop.f32.mrf.mxu0
  %v3498 = vpop.f32.mrf.mxu0
  %v3499 = vadd.f32 0.0, %v3498
  %v3500 = vpop.f32.mrf.mxu0
  %3501 = vmatprep.mubr.bf16.mxu0 0
  %3502 = vmatmul.mubr.bf16.gmra.mxu0 %v1345
  %v3503 = vpop.f32.mrf.mxu0
  %v3504 = vadd.f32 0.0, %v3503
  %v3505 = vpop.f32.mrf.mxu0
  %v3506 = vpop.f32.mrf.mxu0
  %v3507 = vadd.f32 0.0, %v3506
  %v3508 = vpop.f32.mrf.mxu0
  %3509 = vmatprep.mubr.bf16.mxu0 0
  %3510 = vmatmul.mubr.bf16.gmra.mxu0 %v1348
  %v3511 = vpop.f32.mrf.mxu0
  %v3512 = vadd.f32 0.0, %v3511
  %v3513 = vpop.f32.mrf.mxu0
  %v3514 = vpop.f32.mrf.mxu0
  %v3515 = vadd.f32 0.0, %v3514
  %v3516 = vpop.f32.mrf.mxu0
  %3517 = vmatprep.mubr.bf16.mxu0 0
  %3518 = vmatmul.mubr.bf16.gmra.mxu0 %v1351
  %v3519 = vpop.f32.mrf.mxu0
  %v3520 = vadd.f32 0.0, %v3519
  %v3521 = vpop.f32.mrf.mxu0
  %v3522 = vpop.f32.mrf.mxu0
  %v3523 = vadd.f32 0.0, %v3522
  %v3524 = vpop.f32.mrf.mxu0
  %3525 = vmatprep.mubr.bf16.mxu0 0
  %3526 = vmatmul.mubr.bf16.gmra.mxu0 %v1354
  %v3527 = vpop.f32.mrf.mxu0
  %v3528 = vadd.f32 0.0, %v3527
  %v3529 = vpop.f32.mrf.mxu0
  %v3530 = vpop.f32.mrf.mxu0
  %v3531 = vadd.f32 0.0, %v3530
  %v3532 = vpop.f32.mrf.mxu0
  %3533 = vmatprep.mubr.bf16.mxu0 0
  %3534 = vmatmul.mubr.bf16.gmra.mxu0 %v1357
  %v3535 = vpop.f32.mrf.mxu0
  %v3536 = vadd.f32 0.0, %v3535
  %v3537 = vpop.f32.mrf.mxu0
  %v3538 = vpop.f32.mrf.mxu0
  %v3539 = vadd.f32 0.0, %v3538
  %v3540 = vpop.f32.mrf.mxu0
  %3541 = vmatprep.mubr.bf16.mxu0 0
  %3542 = vmatmul.mubr.bf16.gmra.mxu0 %v1360
  %v3543 = vpop.f32.mrf.mxu0
  %v3544 = vadd.f32 0.0, %v3543
  %v3545 = vpop.f32.mrf.mxu0
  %v3546 = vpop.f32.mrf.mxu0
  %v3547 = vadd.f32 0.0, %v3546
  %v3548 = vpop.f32.mrf.mxu0
  %3549 = vmatprep.mubr.bf16.mxu0 0
  %3550 = vmatmul.mubr.bf16.gmra.mxu0 %v1363
  %v3551 = vpop.f32.mrf.mxu0
  %v3552 = vadd.f32 0.0, %v3551
  %v3553 = vpop.f32.mrf.mxu0
  %v3554 = vpop.f32.mrf.mxu0
  %v3555 = vadd.f32 0.0, %v3554
  %v3556 = vpop.f32.mrf.mxu0
  %3557 = vmatprep.mubr.bf16.mxu0 0
  %3558 = vmatmul.mubr.bf16.gmra.mxu0 %v1366
  %v3559 = vpop.f32.mrf.mxu0
  %v3560 = vadd.f32 0.0, %v3559
  %v3561 = vpop.f32.mrf.mxu0
  %v3562 = vpop.f32.mrf.mxu0
  %v3563 = vadd.f32 0.0, %v3562
  %v3564 = vpop.f32.mrf.mxu0
  %3565 = vmatprep.mubr.bf16.mxu0 0
  %3566 = vmatmul.mubr.bf16.gmra.mxu0 %v1369
  %v3567 = vpop.f32.mrf.mxu0
  %v3568 = vadd.f32 0.0, %v3567
  %v3569 = vpop.f32.mrf.mxu0
  %v3570 = vpop.f32.mrf.mxu0
  %v3571 = vadd.f32 0.0, %v3570
  %v3572 = vpop.f32.mrf.mxu0
  %3573 = vmatprep.mubr.bf16.mxu0 0
  %3574 = vmatmul.mubr.bf16.gmra.mxu0 %v1372
  %v3575 = vpop.f32.mrf.mxu0
  %v3576 = vadd.f32 0.0, %v3575
  %v3577 = vpop.f32.mrf.mxu0
  %v3578 = vpop.f32.mrf.mxu0
  %v3579 = vadd.f32 0.0, %v3578
  %v3580 = vpop.f32.mrf.mxu0
  %3581 = vmatprep.mubr.bf16.mxu0 0
  %3582 = vmatmul.mubr.bf16.gmra.mxu0 %v1375
  %v3583 = vpop.f32.mrf.mxu0
  %v3584 = vadd.f32 0.0, %v3583
  %v3585 = vpop.f32.mrf.mxu0
  %v3586 = vpop.f32.mrf.mxu0
  %v3587 = vadd.f32 0.0, %v3586
  %v3588 = vpop.f32.mrf.mxu0
  %3589 = vmatprep.mubr.bf16.mxu0 0
  %3590 = vmatmul.mubr.bf16.gmra.mxu0 %v1378
  %v3591 = vpop.f32.mrf.mxu0
  %v3592 = vadd.f32 0.0, %v3591
  %v3593 = vpop.f32.mrf.mxu0
  %v3594 = vpop.f32.mrf.mxu0
  %v3595 = vadd.f32 0.0, %v3594
  %v3596 = vpop.f32.mrf.mxu0
  %3597 = vmatprep.mubr.bf16.mxu0 0
  %3598 = vmatmul.mubr.bf16.gmra.mxu0 %v1381
  %v3599 = vpop.f32.mrf.mxu0
  %v3600 = vadd.f32 0.0, %v3599
  %v3601 = vpop.f32.mrf.mxu0
  %v3602 = vpop.f32.mrf.mxu0
  %v3603 = vadd.f32 0.0, %v3602
  %v3604 = vpop.f32.mrf.mxu0
  %3605 = vmatprep.mubr.bf16.mxu0 0
  %3606 = vmatmul.mubr.bf16.gmra.mxu0 %v1384
  %v3607 = vpop.f32.mrf.mxu0
  %v3608 = vadd.f32 0.0, %v3607
  %v3609 = vpop.f32.mrf.mxu0
  %v3610 = vpop.f32.mrf.mxu0
  %v3611 = vadd.f32 0.0, %v3610
  %v3612 = vpop.f32.mrf.mxu0
  %3613 = vmatprep.mubr.bf16.mxu0 0
  %3614 = vmatmul.mubr.bf16.gmra.mxu0 %v1387
  %v3615 = vpop.f32.mrf.mxu0
  %v3616 = vadd.f32 0.0, %v3615
  %v3617 = vpop.f32.mrf.mxu0
  %v3618 = vpop.f32.mrf.mxu0
  %v3619 = vadd.f32 0.0, %v3618
  %v3620 = vpop.f32.mrf.mxu0
  %3621 = vmatprep.mubr.bf16.mxu0 0
  %3622 = vmatmul.mubr.bf16.gmra.mxu0 %v1390
  %v3623 = vpop.f32.mrf.mxu0
  %v3624 = vadd.f32 0.0, %v3623
  %v3625 = vpop.f32.mrf.mxu0
  %v3626 = vpop.f32.mrf.mxu0
  %v3627 = vadd.f32 0.0, %v3626
  %v3628 = vpop.f32.mrf.mxu0
  %3629 = vmatprep.mubr.bf16.mxu0 0
  %3630 = vmatmul.mubr.bf16.gmra.mxu0 %v1393
  %v3631 = vpop.f32.mrf.mxu0
  %v3632 = vadd.f32 0.0, %v3631
  %v3633 = vpop.f32.mrf.mxu0
  %v3634 = vpop.f32.mrf.mxu0
  %v3635 = vadd.f32 0.0, %v3634
  %v3636 = vpop.f32.mrf.mxu0
  %3637 = vmatprep.mubr.bf16.mxu0 0
  %3638 = vmatmul.mubr.bf16.gmra.mxu0 %v1396
  %v3639 = vpop.f32.mrf.mxu0
  %v3640 = vadd.f32 0.0, %v3639
  %v3641 = vpop.f32.mrf.mxu0
  %v3642 = vpop.f32.mrf.mxu0
  %v3643 = vadd.f32 0.0, %v3642
  %v3644 = vpop.f32.mrf.mxu0
  %3645 = vmatprep.mubr.bf16.mxu0 0
  %3646 = vmatmul.mubr.bf16.gmra.mxu0 %v1399
  %v3647 = vpop.f32.mrf.mxu0
  %v3648 = vadd.f32 0.0, %v3647
  %v3649 = vpop.f32.mrf.mxu0
  %v3650 = vpop.f32.mrf.mxu0
  %v3651 = vadd.f32 0.0, %v3650
  %v3652 = vpop.f32.mrf.mxu0
  %3653 = vmatprep.mubr.bf16.mxu0 0
  %3654 = vmatmul.mubr.bf16.gmra.mxu0 %v1402
  %v3655 = vpop.f32.mrf.mxu0
  %v3656 = vadd.f32 0.0, %v3655
  %v3657 = vpop.f32.mrf.mxu0
  %v3658 = vpop.f32.mrf.mxu0
  %v3659 = vadd.f32 0.0, %v3658
  %v3660 = vpop.f32.mrf.mxu0
  %3661 = vmatprep.mubr.bf16.mxu0 0
  %3662 = vmatmul.mubr.bf16.gmra.mxu0 %v1405
  %v3663 = vpop.f32.mrf.mxu0
  %v3664 = vadd.f32 0.0, %v3663
  %v3665 = vpop.f32.mrf.mxu0
  %v3666 = vpop.f32.mrf.mxu0
  %v3667 = vadd.f32 0.0, %v3666
  %v3668 = vpop.f32.mrf.mxu0
  %3669 = vmatprep.mubr.bf16.mxu0 0
  %3670 = vmatmul.mubr.bf16.gmra.mxu0 %v1408
  %v3671 = vpop.f32.mrf.mxu0
  %v3672 = vadd.f32 0.0, %v3671
  %v3673 = vpop.f32.mrf.mxu0
  %v3674 = vpop.f32.mrf.mxu0
  %v3675 = vadd.f32 0.0, %v3674
  %v3676 = vpop.f32.mrf.mxu0
  %3677 = vmatprep.mubr.bf16.mxu0 0
  %3678 = vmatmul.mubr.bf16.gmra.mxu0 %v1411
  %v3679 = vpop.f32.mrf.mxu0
  %v3680 = vadd.f32 0.0, %v3679
  %v3681 = vpop.f32.mrf.mxu0
  %v3682 = vpop.f32.mrf.mxu0
  %v3683 = vadd.f32 0.0, %v3682
  %v3684 = vpop.f32.mrf.mxu0
  %3685 = vmatprep.mubr.bf16.mxu0 0
  %3686 = vmatmul.mubr.bf16.gmra.mxu0 %v1414
  %v3687 = vpop.f32.mrf.mxu0
  %v3688 = vadd.f32 0.0, %v3687
  %v3689 = vpop.f32.mrf.mxu0
  %v3690 = vpop.f32.mrf.mxu0
  %v3691 = vadd.f32 0.0, %v3690
  %v3692 = vpop.f32.mrf.mxu0
  %3693 = vmatprep.mubr.bf16.mxu0 0
  %3694 = vmatmul.mubr.bf16.gmra.mxu0 %v1417
  %v3695 = vpop.f32.mrf.mxu0
  %v3696 = vadd.f32 0.0, %v3695
  %v3697 = vpop.f32.mrf.mxu0
  %v3698 = vpop.f32.mrf.mxu0
  %v3699 = vadd.f32 0.0, %v3698
  %v3700 = vpop.f32.mrf.mxu0
  %3701 = vmatprep.mubr.bf16.mxu0 0
  %3702 = vmatmul.mubr.bf16.gmra.mxu0 %v1420
  %v3703 = vpop.f32.mrf.mxu0
  %v3704 = vadd.f32 0.0, %v3703
  %v3705 = vpop.f32.mrf.mxu0
  %v3706 = vpop.f32.mrf.mxu0
  %v3707 = vadd.f32 0.0, %v3706
  %v3708 = vpop.f32.mrf.mxu0
  %3709 = vmatprep.mubr.bf16.mxu0 0
  %3710 = vmatmul.mubr.bf16.gmra.mxu0 %v1423
  %v3711 = vpop.f32.mrf.mxu0
  %v3712 = vadd.f32 0.0, %v3711
  %v3713 = vpop.f32.mrf.mxu0
  %v3714 = vpop.f32.mrf.mxu0
  %v3715 = vadd.f32 0.0, %v3714
  %v3716 = vpop.f32.mrf.mxu0
  %3717 = vmatprep.mubr.bf16.mxu0 0
  %3718 = vmatmul.mubr.bf16.gmra.mxu0 %v1426
  %v3719 = vpop.f32.mrf.mxu0
  %v3720 = vadd.f32 0.0, %v3719
  %v3721 = vpop.f32.mrf.mxu0
  %v3722 = vpop.f32.mrf.mxu0
  %v3723 = vadd.f32 0.0, %v3722
  %v3724 = vpop.f32.mrf.mxu0
  %3725 = vmatprep.mubr.bf16.mxu0 0
  %3726 = vmatmul.mubr.bf16.gmra.mxu0 %v1429
  %v3727 = vpop.f32.mrf.mxu0
  %v3728 = vadd.f32 0.0, %v3727
  %v3729 = vpop.f32.mrf.mxu0
  %v3730 = vpop.f32.mrf.mxu0
  %v3731 = vadd.f32 0.0, %v3730
  %v3732 = vpop.f32.mrf.mxu0
  %3733 = vmatprep.mubr.bf16.mxu0 0
  %3734 = vmatmul.mubr.bf16.gmra.mxu0 %v1432
  %v3735 = vpop.f32.mrf.mxu0
  %v3736 = vadd.f32 0.0, %v3735
  %v3737 = vpop.f32.mrf.mxu0
  %v3738 = vpop.f32.mrf.mxu0
  %v3739 = vadd.f32 0.0, %v3738
  %v3740 = vpop.f32.mrf.mxu0
  %3741 = vmatprep.mubr.bf16.mxu0 0
  %3742 = vmatmul.mubr.bf16.gmra.mxu0 %v1435
  %v3743 = vpop.f32.mrf.mxu0
  %v3744 = vadd.f32 0.0, %v3743
  %v3745 = vpop.f32.mrf.mxu0
  %v3746 = vpop.f32.mrf.mxu0
  %v3747 = vadd.f32 0.0, %v3746
  %v3748 = vpop.f32.mrf.mxu0
  %3749 = vmatprep.mubr.bf16.mxu0 0
  %3750 = vmatmul.mubr.bf16.gmra.mxu0 %v1438
  %v3751 = vpop.f32.mrf.mxu0
  %v3752 = vadd.f32 0.0, %v3751
  %v3753 = vpop.f32.mrf.mxu0
  %v3754 = vpop.f32.mrf.mxu0
  %v3755 = vadd.f32 0.0, %v3754
  %v3756 = vpop.f32.mrf.mxu0
  %3757 = vmatprep.mubr.bf16.mxu0 0
  %3758 = vmatmul.mubr.bf16.gmra.mxu0 %v1441
  %v3759 = vpop.f32.mrf.mxu0
  %v3760 = vadd.f32 0.0, %v3759
  %v3761 = vpop.f32.mrf.mxu0
  %v3762 = vpop.f32.mrf.mxu0
  %v3763 = vadd.f32 0.0, %v3762
  %v3764 = vpop.f32.mrf.mxu0
  %3765 = vmatprep.mubr.bf16.mxu0 0
  %3766 = vmatmul.mubr.bf16.gmra.mxu0 %v1444
  %v3767 = vpop.f32.mrf.mxu0
  %v3768 = vadd.f32 0.0, %v3767
  %v3769 = vpop.f32.mrf.mxu0
  %v3770 = vpop.f32.mrf.mxu0
  %v3771 = vadd.f32 0.0, %v3770
  %v3772 = vpop.f32.mrf.mxu0
  %3773 = vmatprep.mubr.bf16.mxu0 0
  %3774 = vmatmul.mubr.bf16.gmra.mxu0 %v1447
  %v3775 = vpop.f32.mrf.mxu0
  %v3776 = vadd.f32 0.0, %v3775
  %v3777 = vpop.f32.mrf.mxu0
  %v3778 = vpop.f32.mrf.mxu0
  %v3779 = vadd.f32 0.0, %v3778
  %v3780 = vpop.f32.mrf.mxu0
  %3781 = vmatprep.mubr.bf16.mxu0 0
  %3782 = vmatmul.mubr.bf16.gmra.mxu0 %v1450
  %v3783 = vpop.f32.mrf.mxu0
  %v3784 = vadd.f32 0.0, %v3783
  %v3785 = vpop.f32.mrf.mxu0
  %v3786 = vpop.f32.mrf.mxu0
  %v3787 = vadd.f32 0.0, %v3786
  %v3788 = vpop.f32.mrf.mxu0
  %3789 = vmatprep.mubr.bf16.mxu0 0
  %3790 = vmatmul.mubr.bf16.gmra.mxu0 %v1453
  %v3791 = vpop.f32.mrf.mxu0
  %v3792 = vadd.f32 0.0, %v3791
  %v3793 = vpop.f32.mrf.mxu0
  %v3794 = vpop.f32.mrf.mxu0
  %v3795 = vadd.f32 0.0, %v3794
  %v3796 = vpop.f32.mrf.mxu0
  %3797 = vmatprep.mubr.bf16.mxu0 0
  %3798 = vmatmul.mubr.bf16.gmra.mxu0 %v1456
  %v3799 = vpop.f32.mrf.mxu0
  %v3800 = vadd.f32 0.0, %v3799
  %v3801 = vpop.f32.mrf.mxu0
  %v3802 = vpop.f32.mrf.mxu0
  %v3803 = vadd.f32 0.0, %v3802
  %v3804 = vpop.f32.mrf.mxu0
  %3805 = vmatprep.mubr.bf16.mxu0 0
  %3806 = vmatmul.mubr.bf16.gmra.mxu0 %v1459
  %v3807 = vpop.f32.mrf.mxu0
  %v3808 = vadd.f32 0.0, %v3807
  %v3809 = vpop.f32.mrf.mxu0
  %v3810 = vpop.f32.mrf.mxu0
  %v3811 = vadd.f32 0.0, %v3810
  %v3812 = vpop.f32.mrf.mxu0
  %3813 = vmatprep.mubr.bf16.mxu0 0
  %3814 = vmatmul.mubr.bf16.gmra.mxu0 %v1462
  %v3815 = vpop.f32.mrf.mxu0
  %v3816 = vadd.f32 0.0, %v3815
  %v3817 = vpop.f32.mrf.mxu0
  %v3818 = vpop.f32.mrf.mxu0
  %v3819 = vadd.f32 0.0, %v3818
  %v3820 = vpop.f32.mrf.mxu0
  %3821 = vmatprep.mubr.bf16.mxu0 0
  %3822 = vmatmul.mubr.bf16.gmra.mxu0 %v1465
  %v3823 = vpop.f32.mrf.mxu0
  %v3824 = vadd.f32 0.0, %v3823
  %v3825 = vpop.f32.mrf.mxu0
  %v3826 = vpop.f32.mrf.mxu0
  %v3827 = vadd.f32 0.0, %v3826
  %v3828 = vpop.f32.mrf.mxu0
  %3829 = vmatprep.mubr.bf16.mxu0 0
  %3830 = vmatmul.mubr.bf16.gmra.mxu0 %v1468
  %v3831 = vpop.f32.mrf.mxu0
  %v3832 = vadd.f32 0.0, %v3831
  %v3833 = vpop.f32.mrf.mxu0
  %v3834 = vpop.f32.mrf.mxu0
  %v3835 = vadd.f32 0.0, %v3834
  %v3836 = vpop.f32.mrf.mxu0
  %3837 = vmatprep.mubr.bf16.mxu0 0
  %3838 = vmatmul.mubr.bf16.gmra.mxu0 %v1471
  %v3839 = vpop.f32.mrf.mxu0
  %v3840 = vadd.f32 0.0, %v3839
  %v3841 = vpop.f32.mrf.mxu0
  %v3842 = vpop.f32.mrf.mxu0
  %v3843 = vadd.f32 0.0, %v3842
  %v3844 = vpop.f32.mrf.mxu0
  %3845 = vmatprep.mubr.bf16.mxu0 0
  %3846 = vmatmul.mubr.bf16.gmra.mxu0 %v1474
  %v3847 = vpop.f32.mrf.mxu0
  %v3848 = vadd.f32 0.0, %v3847
  %v3849 = vpop.f32.mrf.mxu0
  %v3850 = vpop.f32.mrf.mxu0
  %v3851 = vadd.f32 0.0, %v3850
  %v3852 = vpop.f32.mrf.mxu0
  %3853 = vmatprep.mubr.bf16.mxu0 0
  %3854 = vmatmul.mubr.bf16.gmra.mxu0 %v1477
  %v3855 = vpop.f32.mrf.mxu0
  %v3856 = vadd.f32 0.0, %v3855
  %v3857 = vpop.f32.mrf.mxu0
  %v3858 = vpop.f32.mrf.mxu0
  %v3859 = vadd.f32 0.0, %v3858
  %v3860 = vpop.f32.mrf.mxu0
  %3861 = vmatprep.mubr.bf16.mxu0 0
  %3862 = vmatmul.mubr.bf16.gmra.mxu0 %v1480
  %v3863 = vpop.f32.mrf.mxu0
  %v3864 = vadd.f32 0.0, %v3863
  %v3865 = vpop.f32.mrf.mxu0
  %v3866 = vpop.f32.mrf.mxu0
  %v3867 = vadd.f32 0.0, %v3866
  %v3868 = vpop.f32.mrf.mxu0
  %3869 = vmatprep.mubr.bf16.mxu0 0
  %3870 = vmatmul.mubr.bf16.gmra.mxu0 %v1483
  %v3871 = vpop.f32.mrf.mxu0
  %v3872 = vadd.f32 0.0, %v3871
  %v3873 = vpop.f32.mrf.mxu0
  %v3874 = vpop.f32.mrf.mxu0
  %v3875 = vadd.f32 0.0, %v3874
  %v3876 = vpop.f32.mrf.mxu0
  %3877 = vmatprep.mubr.bf16.mxu0 0
  %3878 = vmatmul.mubr.bf16.gmra.mxu0 %v1486
  %v3879 = vpop.f32.mrf.mxu0
  %v3880 = vadd.f32 0.0, %v3879
  %v3881 = vpop.f32.mrf.mxu0
  %v3882 = vpop.f32.mrf.mxu0
  %v3883 = vadd.f32 0.0, %v3882
  %v3884 = vpop.f32.mrf.mxu0
  %3885 = vdwg.mxu0
  %v3886 = vmax.f32 %v1527, %v2736
  %v3887 = vmax.f32 %v1530, %v2739
  %v3888 = vmax.f32 %v1535, %v2744
  %v3889 = vmax.f32 %v1538, %v2747
  %v3890 = vmax.f32 %v1543, %v2752
  %v3891 = vmax.f32 %v1546, %v2755
  %v3892 = vmax.f32 %v1551, %v2760
  %v3893 = vmax.f32 %v1554, %v2763
  %v3894 = vmax.f32 %v1559, %v2768
  %v3895 = vmax.f32 %v1562, %v2771
  %v3896 = vmax.f32 %v1567, %v2776
  %v3897 = vmax.f32 %v1570, %v2779
  %v3898 = vmax.f32 %v1575, %v2784
  %v3899 = vmax.f32 %v1578, %v2787
  %v3900 = vmax.f32 %v1583, %v2792
  %v3901 = vmax.f32 %v1586, %v2795
  %v3902 = vmax.f32 %v1591, %v2800
  %v3903 = vmax.f32 %v1594, %v2803
  %v3904 = vmax.f32 %v1599, %v2808
  %v3905 = vmax.f32 %v1602, %v2811
  %v3906 = vmax.f32 %v1607, %v2816
  %v3907 = vmax.f32 %v1610, %v2819
  %v3908 = vmax.f32 %v1615, %v2824
  %v3909 = vmax.f32 %v1618, %v2827
  %v3910 = vmax.f32 %v1623, %v2832
  %v3911 = vmax.f32 %v1626, %v2835
  %v3912 = vmax.f32 %v1631, %v2840
  %v3913 = vmax.f32 %v1634, %v2843
  %v3914 = vmax.f32 %v1639, %v2848
  %v3915 = vmax.f32 %v1642, %v2851
  %v3916 = vmax.f32 %v1647, %v2856
  %v3917 = vmax.f32 %v1650, %v2859
  %v3918 = vmax.f32 %v1655, %v2864
  %v3919 = vmax.f32 %v1658, %v2867
  %v3920 = vmax.f32 %v1663, %v2872
  %v3921 = vmax.f32 %v1666, %v2875
  %v3922 = vmax.f32 %v1671, %v2880
  %v3923 = vmax.f32 %v1674, %v2883
  %v3924 = vmax.f32 %v1679, %v2888
  %v3925 = vmax.f32 %v1682, %v2891
  %v3926 = vmax.f32 %v1687, %v2896
  %v3927 = vmax.f32 %v1690, %v2899
  %v3928 = vmax.f32 %v1695, %v2904
  %v3929 = vmax.f32 %v1698, %v2907
  %v3930 = vmax.f32 %v1703, %v2912
  %v3931 = vmax.f32 %v1706, %v2915
  %v3932 = vmax.f32 %v1711, %v2920
  %v3933 = vmax.f32 %v1714, %v2923
  %v3934 = vmax.f32 %v1719, %v2928
  %v3935 = vmax.f32 %v1722, %v2931
  %v3936 = vmax.f32 %v1727, %v2936
  %v3937 = vmax.f32 %v1730, %v2939
  %v3938 = vmax.f32 %v1735, %v2944
  %v3939 = vmax.f32 %v1738, %v2947
  %v3940 = vmax.f32 %v1743, %v2952
  %v3941 = vmax.f32 %v1746, %v2955
  %v3942 = vmax.f32 %v1751, %v2960
  %v3943 = vmax.f32 %v1754, %v2963
  %v3944 = vmax.f32 %v1759, %v2968
  %v3945 = vmax.f32 %v1762, %v2971
  %v3946 = vmax.f32 %v1767, %v2976
  %v3947 = vmax.f32 %v1770, %v2979
  %v3948 = vmax.f32 %v1775, %v2984
  %v3949 = vmax.f32 %v1778, %v2987
  %v3950 = vmax.f32 %v1783, %v2992
  %v3951 = vmax.f32 %v1786, %v2995
  %v3952 = vmax.f32 %v1791, %v3000
  %v3953 = vmax.f32 %v1794, %v3003
  %v3954 = vmax.f32 %v1799, %v3008
  %v3955 = vmax.f32 %v1802, %v3011
  %v3956 = vmax.f32 %v1807, %v3016
  %v3957 = vmax.f32 %v1810, %v3019
  %v3958 = vmax.f32 %v1815, %v3024
  %v3959 = vmax.f32 %v1818, %v3027
  %v3960 = vmax.f32 %v1823, %v3032
  %v3961 = vmax.f32 %v1826, %v3035
  %v3962 = vmax.f32 %v1831, %v3040
  %v3963 = vmax.f32 %v1834, %v3043
  %v3964 = vmax.f32 %v1839, %v3048
  %v3965 = vmax.f32 %v1842, %v3051
  %v3966 = vmax.f32 %v1847, %v3056
  %v3967 = vmax.f32 %v1850, %v3059
  %v3968 = vmax.f32 %v1855, %v3064
  %v3969 = vmax.f32 %v1858, %v3067
  %v3970 = vmax.f32 %v1863, %v3072
  %v3971 = vmax.f32 %v1866, %v3075
  %v3972 = vmax.f32 %v1871, %v3080
  %v3973 = vmax.f32 %v1874, %v3083
  %v3974 = vmax.f32 %v1879, %v3088
  %v3975 = vmax.f32 %v1882, %v3091
  %v3976 = vmax.f32 %v1887, %v3096
  %v3977 = vmax.f32 %v1890, %v3099
  %v3978 = vmax.f32 %v1895, %v3104
  %v3979 = vmax.f32 %v1898, %v3107
  %v3980 = vmax.f32 %v1903, %v3112
  %v3981 = vmax.f32 %v1906, %v3115
  %v3982 = vmax.f32 %v1911, %v3120
  %v3983 = vmax.f32 %v1914, %v3123
  %v3984 = vmax.f32 %v1919, %v3128
  %v3985 = vmax.f32 %v1922, %v3131
  %v3986 = vmax.f32 %v1927, %v3136
  %v3987 = vmax.f32 %v1930, %v3139
  %v3988 = vmax.f32 %v1935, %v3144
  %v3989 = vmax.f32 %v1938, %v3147
  %v3990 = vmax.f32 %v1943, %v3152
  %v3991 = vmax.f32 %v1946, %v3155
  %v3992 = vmax.f32 %v1951, %v3160
  %v3993 = vmax.f32 %v1954, %v3163
  %v3994 = vmax.f32 %v1959, %v3168
  %v3995 = vmax.f32 %v1962, %v3171
  %v3996 = vmax.f32 %v1967, %v3176
  %v3997 = vmax.f32 %v1970, %v3179
  %v3998 = vmax.f32 %v1975, %v3184
  %v3999 = vmax.f32 %v1978, %v3187
  %v4000 = vmax.f32 %v1983, %v3192
  %v4001 = vmax.f32 %v1986, %v3195
  %v4002 = vmax.f32 %v1991, %v3200
  %v4003 = vmax.f32 %v1994, %v3203
  %v4004 = vmax.f32 %v1999, %v3208
  %v4005 = vmax.f32 %v2002, %v3211
  %v4006 = vmax.f32 %v2007, %v3216
  %v4007 = vmax.f32 %v2010, %v3219
  %v4008 = vmax.f32 %v2015, %v3224
  %v4009 = vmax.f32 %v2018, %v3227
  %v4010 = vmax.f32 %v2023, %v3232
  %v4011 = vmax.f32 %v2026, %v3235
  %v4012 = vmax.f32 %v2031, %v3240
  %v4013 = vmax.f32 %v2034, %v3243
  %v4014 = vmax.f32 %v2039, %v3248
  %v4015 = vmax.f32 %v2042, %v3251
  %v4016 = vmax.f32 %v2047, %v3256
  %v4017 = vmax.f32 %v2050, %v3259
  %v4018 = vmax.f32 %v2055, %v3264
  %v4019 = vmax.f32 %v2058, %v3267
  %v4020 = vmax.f32 %v2063, %v3272
  %v4021 = vmax.f32 %v2066, %v3275
  %v4022 = vmax.f32 %v2071, %v3280
  %v4023 = vmax.f32 %v2074, %v3283
  %v4024 = vmax.f32 %v2079, %v3288
  %v4025 = vmax.f32 %v2082, %v3291
  %v4026 = vmax.f32 %v2087, %v3296
  %v4027 = vmax.f32 %v2090, %v3299
  %v4028 = vmax.f32 %v2095, %v3304
  %v4029 = vmax.f32 %v2098, %v3307
  %v4030 = vmax.f32 %v2103, %v3312
  %v4031 = vmax.f32 %v2106, %v3315
  %v4032 = vmax.f32 %v2111, %v3320
  %v4033 = vmax.f32 %v2114, %v3323
  %v4034 = vmax.f32 %v2119, %v3328
  %v4035 = vmax.f32 %v2122, %v3331
  %v4036 = vmax.f32 %v2127, %v3336
  %v4037 = vmax.f32 %v2130, %v3339
  %v4038 = vmax.f32 %v2135, %v3344
  %v4039 = vmax.f32 %v2138, %v3347
  %v4040 = vmax.f32 %v2143, %v3352
  %v4041 = vmax.f32 %v2146, %v3355
  %v4042 = vmax.f32 %v2151, %v3360
  %v4043 = vmax.f32 %v2154, %v3363
  %v4044 = vmax.f32 %v2159, %v3368
  %v4045 = vmax.f32 %v2162, %v3371
  %v4046 = vmax.f32 %v2167, %v3376
  %v4047 = vmax.f32 %v2170, %v3379
  %v4048 = vmax.f32 %v2175, %v3384
  %v4049 = vmax.f32 %v2178, %v3387
  %v4050 = vmax.f32 %v2183, %v3392
  %v4051 = vmax.f32 %v2186, %v3395
  %v4052 = vmax.f32 %v2191, %v3400
  %v4053 = vmax.f32 %v2194, %v3403
  %v4054 = vmax.f32 %v2199, %v3408
  %v4055 = vmax.f32 %v2202, %v3411
  %v4056 = vmax.f32 %v2207, %v3416
  %v4057 = vmax.f32 %v2210, %v3419
  %v4058 = vmax.f32 %v2215, %v3424
  %v4059 = vmax.f32 %v2218, %v3427
  %v4060 = vmax.f32 %v2223, %v3432
  %v4061 = vmax.f32 %v2226, %v3435
  %v4062 = vmax.f32 %v2231, %v3440
  %v4063 = vmax.f32 %v2234, %v3443
  %v4064 = vmax.f32 %v2239, %v3448
  %v4065 = vmax.f32 %v2242, %v3451
  %v4066 = vmax.f32 %v2247, %v3456
  %v4067 = vmax.f32 %v2250, %v3459
  %v4068 = vmax.f32 %v2255, %v3464
  %v4069 = vmax.f32 %v2258, %v3467
  %v4070 = vmax.f32 %v2263, %v3472
  %v4071 = vmax.f32 %v2266, %v3475
  %v4072 = vmax.f32 %v2271, %v3480
  %v4073 = vmax.f32 %v2274, %v3483
  %v4074 = vmax.f32 %v2279, %v3488
  %v4075 = vmax.f32 %v2282, %v3491
  %v4076 = vmax.f32 %v2287, %v3496
  %v4077 = vmax.f32 %v2290, %v3499
  %v4078 = vmax.f32 %v2295, %v3504
  %v4079 = vmax.f32 %v2298, %v3507
  %v4080 = vmax.f32 %v2303, %v3512
  %v4081 = vmax.f32 %v2306, %v3515
  %v4082 = vmax.f32 %v2311, %v3520
  %v4083 = vmax.f32 %v2314, %v3523
  %v4084 = vmax.f32 %v2319, %v3528
  %v4085 = vmax.f32 %v2322, %v3531
  %v4086 = vmax.f32 %v2327, %v3536
  %v4087 = vmax.f32 %v2330, %v3539
  %v4088 = vmax.f32 %v2335, %v3544
  %v4089 = vmax.f32 %v2338, %v3547
  %v4090 = vmax.f32 %v2343, %v3552
  %v4091 = vmax.f32 %v2346, %v3555
  %v4092 = vmax.f32 %v2351, %v3560
  %v4093 = vmax.f32 %v2354, %v3563
  %v4094 = vmax.f32 %v2359, %v3568
  %v4095 = vmax.f32 %v2362, %v3571
  %v4096 = vmax.f32 %v2367, %v3576
  %v4097 = vmax.f32 %v2370, %v3579
  %v4098 = vmax.f32 %v2375, %v3584
  %v4099 = vmax.f32 %v2378, %v3587
  %v4100 = vmax.f32 %v2383, %v3592
  %v4101 = vmax.f32 %v2386, %v3595
  %v4102 = vmax.f32 %v2391, %v3600
  %v4103 = vmax.f32 %v2394, %v3603
  %v4104 = vmax.f32 %v2399, %v3608
  %v4105 = vmax.f32 %v2402, %v3611
  %v4106 = vmax.f32 %v2407, %v3616
  %v4107 = vmax.f32 %v2410, %v3619
  %v4108 = vmax.f32 %v2415, %v3624
  %v4109 = vmax.f32 %v2418, %v3627
  %v4110 = vmax.f32 %v2423, %v3632
  %v4111 = vmax.f32 %v2426, %v3635
  %v4112 = vmax.f32 %v2431, %v3640
  %v4113 = vmax.f32 %v2434, %v3643
  %v4114 = vmax.f32 %v2439, %v3648
  %v4115 = vmax.f32 %v2442, %v3651
  %v4116 = vmax.f32 %v2447, %v3656
  %v4117 = vmax.f32 %v2450, %v3659
  %v4118 = vmax.f32 %v2455, %v3664
  %v4119 = vmax.f32 %v2458, %v3667
  %v4120 = vmax.f32 %v2463, %v3672
  %v4121 = vmax.f32 %v2466, %v3675
  %v4122 = vmax.f32 %v2471, %v3680
  %v4123 = vmax.f32 %v2474, %v3683
  %v4124 = vmax.f32 %v2479, %v3688
  %v4125 = vmax.f32 %v2482, %v3691
  %v4126 = vmax.f32 %v2487, %v3696
  %v4127 = vmax.f32 %v2490, %v3699
  %v4128 = vmax.f32 %v2495, %v3704
  %v4129 = vmax.f32 %v2498, %v3707
  %v4130 = vmax.f32 %v2503, %v3712
  %v4131 = vmax.f32 %v2506, %v3715
  %v4132 = vmax.f32 %v2511, %v3720
  %v4133 = vmax.f32 %v2514, %v3723
  %v4134 = vmax.f32 %v2519, %v3728
  %v4135 = vmax.f32 %v2522, %v3731
  %v4136 = vmax.f32 %v2527, %v3736
  %v4137 = vmax.f32 %v2530, %v3739
  %v4138 = vmax.f32 %v2535, %v3744
  %v4139 = vmax.f32 %v2538, %v3747
  %v4140 = vmax.f32 %v2543, %v3752
  %v4141 = vmax.f32 %v2546, %v3755
  %v4142 = vmax.f32 %v2551, %v3760
  %v4143 = vmax.f32 %v2554, %v3763
  %v4144 = vmax.f32 %v2559, %v3768
  %v4145 = vmax.f32 %v2562, %v3771
  %v4146 = vmax.f32 %v2567, %v3776
  %v4147 = vmax.f32 %v2570, %v3779
  %v4148 = vmax.f32 %v2575, %v3784
  %v4149 = vmax.f32 %v2578, %v3787
  %v4150 = vmax.f32 %v2583, %v3792
  %v4151 = vmax.f32 %v2586, %v3795
  %v4152 = vmax.f32 %v2591, %v3800
  %v4153 = vmax.f32 %v2594, %v3803
  %v4154 = vmax.f32 %v2599, %v3808
  %v4155 = vmax.f32 %v2602, %v3811
  %v4156 = vmax.f32 %v2607, %v3816
  %v4157 = vmax.f32 %v2610, %v3819
  %v4158 = vmax.f32 %v2615, %v3824
  %v4159 = vmax.f32 %v2618, %v3827
  %v4160 = vmax.f32 %v2623, %v3832
  %v4161 = vmax.f32 %v2626, %v3835
  %v4162 = vmax.f32 %v2631, %v3840
  %v4163 = vmax.f32 %v2634, %v3843
  %v4164 = vmax.f32 %v2639, %v3848
  %v4165 = vmax.f32 %v2642, %v3851
  %v4166 = vmax.f32 %v2647, %v3856
  %v4167 = vmax.f32 %v2650, %v3859
  %v4168 = vmax.f32 %v2655, %v3864
  %v4169 = vmax.f32 %v2658, %v3867
  %v4170 = vmax.f32 %v2663, %v3872
  %v4171 = vmax.f32 %v2666, %v3875
  %v4172 = vmax.f32 %v2671, %v3880
  %v4173 = vmax.f32 %v2674, %v3883
  %s4174 = scalar_lea.vmem %s1, 40
  %v4175 = vld [vmem:[%s4174] sm:$0xf]
  %v4176 = vld [vmem:[%s4174 + $0x4] sm:$0xf]
  %v4177 = vld [vmem:[%s4174 + $0x8] sm:$0xf]
  %v4178 = vld [vmem:[%s4174 + $0xc] sm:$0xf]
  %v4179 = vld [vmem:[%s4174 + $0x10] sm:$0x3]
  %v4185 = vunpack.c.l.b16 %v4175
  %v4186 = vunpack.c.l.b16 %v4176
  %v4187 = vunpack.c.l.b16 %v4177
  %v4188 = vunpack.c.l.b16 %v4178
  %v4189 = vunpack.c.l.b16 %v4179
  %v4190 = vpack.c.b16 %v4186, %v4185
  %v4191 = vpack.c.b16 %v4188, %v4187
  %v4192 = vpack.c.b16 %v4189, %v4189
  %v4196 = vsel %vm1488, %v4192, 0
  %4198 = vmatprep.subr.bf16.mxu0 0
  %4199 = vmatpush1.bf16.msra.mxu0 0
  %4200 = vmatprep.subr.bf16.mxu0 0
  %4201 = vmatpush1.bf16.msra.mxu0 0
  %4202 = vmatprep.subr.bf16.mxu0 0
  %4203 = vmatpush1.bf16.msra.mxu0 0
  %4204 = vmatprep.subr.bf16.mxu0 0
  %4205 = vmatpush1.bf16.msra.mxu0 0
  %4206 = vmatprep.subr.bf16.mxu0 0
  %4207 = vmatpush1.bf16.msra.mxu0 0
  %4208 = vmatprep.subr.bf16.mxu0 0
  %4209 = vmatpush1.bf16.msra.mxu0 %v4196
  %4210 = vmatprep.subr.bf16.mxu0 0
  %4211 = vmatpush1.bf16.msra.mxu0 %v4191
  %4212 = vmatprep.subr.bf16.mxu0 0
  %4213 = vmatpush1.bf16.msra.mxu0 %v4190
  %4214 = vmatprep.subr.bf16.mxu0 0
  %4215 = vmatpush2.bf16.msra.mxu0 0
  %4216 = vmatprep.subr.bf16.mxu0 0
  %4217 = vmatpush2.bf16.msra.mxu0 0
  %4218 = vmatprep.subr.bf16.mxu0 0
  %4219 = vmatpush2.bf16.msra.mxu0 0
  %4220 = vmatprep.subr.bf16.mxu0 0
  %4221 = vmatpush2.bf16.msra.mxu0 0
  %4222 = vmatprep.subr.bf16.mxu0 0
  %4223 = vmatpush2.bf16.msra.mxu0 0
  %4224 = vmatprep.subr.bf16.mxu0 0
  %4225 = vmatpush2.bf16.msra.mxu0 0
  %4226 = vmatprep.subr.bf16.mxu0 0
  %4227 = vmatpush2.bf16.msra.mxu0 0
  %4228 = vmatprep.subr.bf16.mxu0 0
  %4229 = vmatpush2.bf16.msra.mxu0 0
  %4230 = vmatprep.mubr.bf16.mxu0 0
  %4231 = vmatmul.mubr.bf16.gmra.mxu0 %v1057
  %v4232 = vpop.f32.mrf.mxu0
  %v4233 = vadd.f32 0.0, %v4232
  %v4234 = vpop.f32.mrf.mxu0
  %v4235 = vpop.f32.mrf.mxu0
  %v4236 = vadd.f32 0.0, %v4235
  %v4237 = vpop.f32.mrf.mxu0
  %4238 = vmatprep.mubr.bf16.mxu0 0
  %4239 = vmatmul.mubr.bf16.gmra.mxu0 %v1060
  %v4240 = vpop.f32.mrf.mxu0
  %v4241 = vadd.f32 0.0, %v4240
  %v4242 = vpop.f32.mrf.mxu0
  %v4243 = vpop.f32.mrf.mxu0
  %v4244 = vadd.f32 0.0, %v4243
  %v4245 = vpop.f32.mrf.mxu0
  %4246 = vmatprep.mubr.bf16.mxu0 0
  %4247 = vmatmul.mubr.bf16.gmra.mxu0 %v1063
  %v4248 = vpop.f32.mrf.mxu0
  %v4249 = vadd.f32 0.0, %v4248
  %v4250 = vpop.f32.mrf.mxu0
  %v4251 = vpop.f32.mrf.mxu0
  %v4252 = vadd.f32 0.0, %v4251
  %v4253 = vpop.f32.mrf.mxu0
  %4254 = vmatprep.mubr.bf16.mxu0 0
  %4255 = vmatmul.mubr.bf16.gmra.mxu0 %v1066
  %v4256 = vpop.f32.mrf.mxu0
  %v4257 = vadd.f32 0.0, %v4256
  %v4258 = vpop.f32.mrf.mxu0
  %v4259 = vpop.f32.mrf.mxu0
  %v4260 = vadd.f32 0.0, %v4259
  %v4261 = vpop.f32.mrf.mxu0
  %4262 = vmatprep.mubr.bf16.mxu0 0
  %4263 = vmatmul.mubr.bf16.gmra.mxu0 %v1069
  %v4264 = vpop.f32.mrf.mxu0
  %v4265 = vadd.f32 0.0, %v4264
  %v4266 = vpop.f32.mrf.mxu0
  %v4267 = vpop.f32.mrf.mxu0
  %v4268 = vadd.f32 0.0, %v4267
  %v4269 = vpop.f32.mrf.mxu0
  %4270 = vmatprep.mubr.bf16.mxu0 0
  %4271 = vmatmul.mubr.bf16.gmra.mxu0 %v1072
  %v4272 = vpop.f32.mrf.mxu0
  %v4273 = vadd.f32 0.0, %v4272
  %v4274 = vpop.f32.mrf.mxu0
  %v4275 = vpop.f32.mrf.mxu0
  %v4276 = vadd.f32 0.0, %v4275
  %v4277 = vpop.f32.mrf.mxu0
  %4278 = vmatprep.mubr.bf16.mxu0 0
  %4279 = vmatmul.mubr.bf16.gmra.mxu0 %v1075
  %v4280 = vpop.f32.mrf.mxu0
  %v4281 = vadd.f32 0.0, %v4280
  %v4282 = vpop.f32.mrf.mxu0
  %v4283 = vpop.f32.mrf.mxu0
  %v4284 = vadd.f32 0.0, %v4283
  %v4285 = vpop.f32.mrf.mxu0
  %4286 = vmatprep.mubr.bf16.mxu0 0
  %4287 = vmatmul.mubr.bf16.gmra.mxu0 %v1078
  %v4288 = vpop.f32.mrf.mxu0
  %v4289 = vadd.f32 0.0, %v4288
  %v4290 = vpop.f32.mrf.mxu0
  %v4291 = vpop.f32.mrf.mxu0
  %v4292 = vadd.f32 0.0, %v4291
  %v4293 = vpop.f32.mrf.mxu0
  %4294 = vmatprep.mubr.bf16.mxu0 0
  %4295 = vmatmul.mubr.bf16.gmra.mxu0 %v1081
  %v4296 = vpop.f32.mrf.mxu0
  %v4297 = vadd.f32 0.0, %v4296
  %v4298 = vpop.f32.mrf.mxu0
  %v4299 = vpop.f32.mrf.mxu0
  %v4300 = vadd.f32 0.0, %v4299
  %v4301 = vpop.f32.mrf.mxu0
  %4302 = vmatprep.mubr.bf16.mxu0 0
  %4303 = vmatmul.mubr.bf16.gmra.mxu0 %v1084
  %v4304 = vpop.f32.mrf.mxu0
  %v4305 = vadd.f32 0.0, %v4304
  %v4306 = vpop.f32.mrf.mxu0
  %v4307 = vpop.f32.mrf.mxu0
  %v4308 = vadd.f32 0.0, %v4307
  %v4309 = vpop.f32.mrf.mxu0
  %4310 = vmatprep.mubr.bf16.mxu0 0
  %4311 = vmatmul.mubr.bf16.gmra.mxu0 %v1087
  %v4312 = vpop.f32.mrf.mxu0
  %v4313 = vadd.f32 0.0, %v4312
  %v4314 = vpop.f32.mrf.mxu0
  %v4315 = vpop.f32.mrf.mxu0
  %v4316 = vadd.f32 0.0, %v4315
  %v4317 = vpop.f32.mrf.mxu0
  %4318 = vmatprep.mubr.bf16.mxu0 0
  %4319 = vmatmul.mubr.bf16.gmra.mxu0 %v1090
  %v4320 = vpop.f32.mrf.mxu0
  %v4321 = vadd.f32 0.0, %v4320
  %v4322 = vpop.f32.mrf.mxu0
  %v4323 = vpop.f32.mrf.mxu0
  %v4324 = vadd.f32 0.0, %v4323
  %v4325 = vpop.f32.mrf.mxu0
  %4326 = vmatprep.mubr.bf16.mxu0 0
  %4327 = vmatmul.mubr.bf16.gmra.mxu0 %v1093
  %v4328 = vpop.f32.mrf.mxu0
  %v4329 = vadd.f32 0.0, %v4328
  %v4330 = vpop.f32.mrf.mxu0
  %v4331 = vpop.f32.mrf.mxu0
  %v4332 = vadd.f32 0.0, %v4331
  %v4333 = vpop.f32.mrf.mxu0
  %4334 = vmatprep.mubr.bf16.mxu0 0
  %4335 = vmatmul.mubr.bf16.gmra.mxu0 %v1096
  %v4336 = vpop.f32.mrf.mxu0
  %v4337 = vadd.f32 0.0, %v4336
  %v4338 = vpop.f32.mrf.mxu0
  %v4339 = vpop.f32.mrf.mxu0
  %v4340 = vadd.f32 0.0, %v4339
  %v4341 = vpop.f32.mrf.mxu0
  %4342 = vmatprep.mubr.bf16.mxu0 0
  %4343 = vmatmul.mubr.bf16.gmra.mxu0 %v1099
  %v4344 = vpop.f32.mrf.mxu0
  %v4345 = vadd.f32 0.0, %v4344
  %v4346 = vpop.f32.mrf.mxu0
  %v4347 = vpop.f32.mrf.mxu0
  %v4348 = vadd.f32 0.0, %v4347
  %v4349 = vpop.f32.mrf.mxu0
  %4350 = vmatprep.mubr.bf16.mxu0 0
  %4351 = vmatmul.mubr.bf16.gmra.mxu0 %v1102
  %v4352 = vpop.f32.mrf.mxu0
  %v4353 = vadd.f32 0.0, %v4352
  %v4354 = vpop.f32.mrf.mxu0
  %v4355 = vpop.f32.mrf.mxu0
  %v4356 = vadd.f32 0.0, %v4355
  %v4357 = vpop.f32.mrf.mxu0
  %4358 = vmatprep.mubr.bf16.mxu0 0
  %4359 = vmatmul.mubr.bf16.gmra.mxu0 %v1105
  %v4360 = vpop.f32.mrf.mxu0
  %v4361 = vadd.f32 0.0, %v4360
  %v4362 = vpop.f32.mrf.mxu0
  %v4363 = vpop.f32.mrf.mxu0
  %v4364 = vadd.f32 0.0, %v4363
  %v4365 = vpop.f32.mrf.mxu0
  %4366 = vmatprep.mubr.bf16.mxu0 0
  %4367 = vmatmul.mubr.bf16.gmra.mxu0 %v1108
  %v4368 = vpop.f32.mrf.mxu0
  %v4369 = vadd.f32 0.0, %v4368
  %v4370 = vpop.f32.mrf.mxu0
  %v4371 = vpop.f32.mrf.mxu0
  %v4372 = vadd.f32 0.0, %v4371
  %v4373 = vpop.f32.mrf.mxu0
  %4374 = vmatprep.mubr.bf16.mxu0 0
  %4375 = vmatmul.mubr.bf16.gmra.mxu0 %v1111
  %v4376 = vpop.f32.mrf.mxu0
  %v4377 = vadd.f32 0.0, %v4376
  %v4378 = vpop.f32.mrf.mxu0
  %v4379 = vpop.f32.mrf.mxu0
  %v4380 = vadd.f32 0.0, %v4379
  %v4381 = vpop.f32.mrf.mxu0
  %4382 = vmatprep.mubr.bf16.mxu0 0
  %4383 = vmatmul.mubr.bf16.gmra.mxu0 %v1114
  %v4384 = vpop.f32.mrf.mxu0
  %v4385 = vadd.f32 0.0, %v4384
  %v4386 = vpop.f32.mrf.mxu0
  %v4387 = vpop.f32.mrf.mxu0
  %v4388 = vadd.f32 0.0, %v4387
  %v4389 = vpop.f32.mrf.mxu0
  %4390 = vmatprep.mubr.bf16.mxu0 0
  %4391 = vmatmul.mubr.bf16.gmra.mxu0 %v1117
  %v4392 = vpop.f32.mrf.mxu0
  %v4393 = vadd.f32 0.0, %v4392
  %v4394 = vpop.f32.mrf.mxu0
  %v4395 = vpop.f32.mrf.mxu0
  %v4396 = vadd.f32 0.0, %v4395
  %v4397 = vpop.f32.mrf.mxu0
  %4398 = vmatprep.mubr.bf16.mxu0 0
  %4399 = vmatmul.mubr.bf16.gmra.mxu0 %v1120
  %v4400 = vpop.f32.mrf.mxu0
  %v4401 = vadd.f32 0.0, %v4400
  %v4402 = vpop.f32.mrf.mxu0
  %v4403 = vpop.f32.mrf.mxu0
  %v4404 = vadd.f32 0.0, %v4403
  %v4405 = vpop.f32.mrf.mxu0
  %4406 = vmatprep.mubr.bf16.mxu0 0
  %4407 = vmatmul.mubr.bf16.gmra.mxu0 %v1123
  %v4408 = vpop.f32.mrf.mxu0
  %v4409 = vadd.f32 0.0, %v4408
  %v4410 = vpop.f32.mrf.mxu0
  %v4411 = vpop.f32.mrf.mxu0
  %v4412 = vadd.f32 0.0, %v4411
  %v4413 = vpop.f32.mrf.mxu0
  %4414 = vmatprep.mubr.bf16.mxu0 0
  %4415 = vmatmul.mubr.bf16.gmra.mxu0 %v1126
  %v4416 = vpop.f32.mrf.mxu0
  %v4417 = vadd.f32 0.0, %v4416
  %v4418 = vpop.f32.mrf.mxu0
  %v4419 = vpop.f32.mrf.mxu0
  %v4420 = vadd.f32 0.0, %v4419
  %v4421 = vpop.f32.mrf.mxu0
  %4422 = vmatprep.mubr.bf16.mxu0 0
  %4423 = vmatmul.mubr.bf16.gmra.mxu0 %v1129
  %v4424 = vpop.f32.mrf.mxu0
  %v4425 = vadd.f32 0.0, %v4424
  %v4426 = vpop.f32.mrf.mxu0
  %v4427 = vpop.f32.mrf.mxu0
  %v4428 = vadd.f32 0.0, %v4427
  %v4429 = vpop.f32.mrf.mxu0
  %4430 = vmatprep.mubr.bf16.mxu0 0
  %4431 = vmatmul.mubr.bf16.gmra.mxu0 %v1132
  %v4432 = vpop.f32.mrf.mxu0
  %v4433 = vadd.f32 0.0, %v4432
  %v4434 = vpop.f32.mrf.mxu0
  %v4435 = vpop.f32.mrf.mxu0
  %v4436 = vadd.f32 0.0, %v4435
  %v4437 = vpop.f32.mrf.mxu0
  %4438 = vmatprep.mubr.bf16.mxu0 0
  %4439 = vmatmul.mubr.bf16.gmra.mxu0 %v1135
  %v4440 = vpop.f32.mrf.mxu0
  %v4441 = vadd.f32 0.0, %v4440
  %v4442 = vpop.f32.mrf.mxu0
  %v4443 = vpop.f32.mrf.mxu0
  %v4444 = vadd.f32 0.0, %v4443
  %v4445 = vpop.f32.mrf.mxu0
  %4446 = vmatprep.mubr.bf16.mxu0 0
  %4447 = vmatmul.mubr.bf16.gmra.mxu0 %v1138
  %v4448 = vpop.f32.mrf.mxu0
  %v4449 = vadd.f32 0.0, %v4448
  %v4450 = vpop.f32.mrf.mxu0
  %v4451 = vpop.f32.mrf.mxu0
  %v4452 = vadd.f32 0.0, %v4451
  %v4453 = vpop.f32.mrf.mxu0
  %4454 = vmatprep.mubr.bf16.mxu0 0
  %4455 = vmatmul.mubr.bf16.gmra.mxu0 %v1141
  %v4456 = vpop.f32.mrf.mxu0
  %v4457 = vadd.f32 0.0, %v4456
  %v4458 = vpop.f32.mrf.mxu0
  %v4459 = vpop.f32.mrf.mxu0
  %v4460 = vadd.f32 0.0, %v4459
  %v4461 = vpop.f32.mrf.mxu0
  %4462 = vmatprep.mubr.bf16.mxu0 0
  %4463 = vmatmul.mubr.bf16.gmra.mxu0 %v1144
  %v4464 = vpop.f32.mrf.mxu0
  %v4465 = vadd.f32 0.0, %v4464
  %v4466 = vpop.f32.mrf.mxu0
  %v4467 = vpop.f32.mrf.mxu0
  %v4468 = vadd.f32 0.0, %v4467
  %v4469 = vpop.f32.mrf.mxu0
  %4470 = vmatprep.mubr.bf16.mxu0 0
  %4471 = vmatmul.mubr.bf16.gmra.mxu0 %v1147
  %v4472 = vpop.f32.mrf.mxu0
  %v4473 = vadd.f32 0.0, %v4472
  %v4474 = vpop.f32.mrf.mxu0
  %v4475 = vpop.f32.mrf.mxu0
  %v4476 = vadd.f32 0.0, %v4475
  %v4477 = vpop.f32.mrf.mxu0
  %4478 = vmatprep.mubr.bf16.mxu0 0
  %4479 = vmatmul.mubr.bf16.gmra.mxu0 %v1150
  %v4480 = vpop.f32.mrf.mxu0
  %v4481 = vadd.f32 0.0, %v4480
  %v4482 = vpop.f32.mrf.mxu0
  %v4483 = vpop.f32.mrf.mxu0
  %v4484 = vadd.f32 0.0, %v4483
  %v4485 = vpop.f32.mrf.mxu0
  %4486 = vmatprep.mubr.bf16.mxu0 0
  %4487 = vmatmul.mubr.bf16.gmra.mxu0 %v1153
  %v4488 = vpop.f32.mrf.mxu0
  %v4489 = vadd.f32 0.0, %v4488
  %v4490 = vpop.f32.mrf.mxu0
  %v4491 = vpop.f32.mrf.mxu0
  %v4492 = vadd.f32 0.0, %v4491
  %v4493 = vpop.f32.mrf.mxu0
  %4494 = vmatprep.mubr.bf16.mxu0 0
  %4495 = vmatmul.mubr.bf16.gmra.mxu0 %v1156
  %v4496 = vpop.f32.mrf.mxu0
  %v4497 = vadd.f32 0.0, %v4496
  %v4498 = vpop.f32.mrf.mxu0
  %v4499 = vpop.f32.mrf.mxu0
  %v4500 = vadd.f32 0.0, %v4499
  %v4501 = vpop.f32.mrf.mxu0
  %4502 = vmatprep.mubr.bf16.mxu0 0
  %4503 = vmatmul.mubr.bf16.gmra.mxu0 %v1159
  %v4504 = vpop.f32.mrf.mxu0
  %v4505 = vadd.f32 0.0, %v4504
  %v4506 = vpop.f32.mrf.mxu0
  %v4507 = vpop.f32.mrf.mxu0
  %v4508 = vadd.f32 0.0, %v4507
  %v4509 = vpop.f32.mrf.mxu0
  %4510 = vmatprep.mubr.bf16.mxu0 0
  %4511 = vmatmul.mubr.bf16.gmra.mxu0 %v1162
  %v4512 = vpop.f32.mrf.mxu0
  %v4513 = vadd.f32 0.0, %v4512
  %v4514 = vpop.f32.mrf.mxu0
  %v4515 = vpop.f32.mrf.mxu0
  %v4516 = vadd.f32 0.0, %v4515
  %v4517 = vpop.f32.mrf.mxu0
  %4518 = vmatprep.mubr.bf16.mxu0 0
  %4519 = vmatmul.mubr.bf16.gmra.mxu0 %v1165
  %v4520 = vpop.f32.mrf.mxu0
  %v4521 = vadd.f32 0.0, %v4520
  %v4522 = vpop.f32.mrf.mxu0
  %v4523 = vpop.f32.mrf.mxu0
  %v4524 = vadd.f32 0.0, %v4523
  %v4525 = vpop.f32.mrf.mxu0
  %4526 = vmatprep.mubr.bf16.mxu0 0
  %4527 = vmatmul.mubr.bf16.gmra.mxu0 %v1168
  %v4528 = vpop.f32.mrf.mxu0
  %v4529 = vadd.f32 0.0, %v4528
  %v4530 = vpop.f32.mrf.mxu0
  %v4531 = vpop.f32.mrf.mxu0
  %v4532 = vadd.f32 0.0, %v4531
  %v4533 = vpop.f32.mrf.mxu0
  %4534 = vmatprep.mubr.bf16.mxu0 0
  %4535 = vmatmul.mubr.bf16.gmra.mxu0 %v1171
  %v4536 = vpop.f32.mrf.mxu0
  %v4537 = vadd.f32 0.0, %v4536
  %v4538 = vpop.f32.mrf.mxu0
  %v4539 = vpop.f32.mrf.mxu0
  %v4540 = vadd.f32 0.0, %v4539
  %v4541 = vpop.f32.mrf.mxu0
  %4542 = vmatprep.mubr.bf16.mxu0 0
  %4543 = vmatmul.mubr.bf16.gmra.mxu0 %v1174
  %v4544 = vpop.f32.mrf.mxu0
  %v4545 = vadd.f32 0.0, %v4544
  %v4546 = vpop.f32.mrf.mxu0
  %v4547 = vpop.f32.mrf.mxu0
  %v4548 = vadd.f32 0.0, %v4547
  %v4549 = vpop.f32.mrf.mxu0
  %4550 = vmatprep.mubr.bf16.mxu0 0
  %4551 = vmatmul.mubr.bf16.gmra.mxu0 %v1177
  %v4552 = vpop.f32.mrf.mxu0
  %v4553 = vadd.f32 0.0, %v4552
  %v4554 = vpop.f32.mrf.mxu0
  %v4555 = vpop.f32.mrf.mxu0
  %v4556 = vadd.f32 0.0, %v4555
  %v4557 = vpop.f32.mrf.mxu0
  %4558 = vmatprep.mubr.bf16.mxu0 0
  %4559 = vmatmul.mubr.bf16.gmra.mxu0 %v1180
  %v4560 = vpop.f32.mrf.mxu0
  %v4561 = vadd.f32 0.0, %v4560
  %v4562 = vpop.f32.mrf.mxu0
  %v4563 = vpop.f32.mrf.mxu0
  %v4564 = vadd.f32 0.0, %v4563
  %v4565 = vpop.f32.mrf.mxu0
  %4566 = vmatprep.mubr.bf16.mxu0 0
  %4567 = vmatmul.mubr.bf16.gmra.mxu0 %v1183
  %v4568 = vpop.f32.mrf.mxu0
  %v4569 = vadd.f32 0.0, %v4568
  %v4570 = vpop.f32.mrf.mxu0
  %v4571 = vpop.f32.mrf.mxu0
  %v4572 = vadd.f32 0.0, %v4571
  %v4573 = vpop.f32.mrf.mxu0
  %4574 = vmatprep.mubr.bf16.mxu0 0
  %4575 = vmatmul.mubr.bf16.gmra.mxu0 %v1186
  %v4576 = vpop.f32.mrf.mxu0
  %v4577 = vadd.f32 0.0, %v4576
  %v4578 = vpop.f32.mrf.mxu0
  %v4579 = vpop.f32.mrf.mxu0
  %v4580 = vadd.f32 0.0, %v4579
  %v4581 = vpop.f32.mrf.mxu0
  %4582 = vmatprep.mubr.bf16.mxu0 0
  %4583 = vmatmul.mubr.bf16.gmra.mxu0 %v1189
  %v4584 = vpop.f32.mrf.mxu0
  %v4585 = vadd.f32 0.0, %v4584
  %v4586 = vpop.f32.mrf.mxu0
  %v4587 = vpop.f32.mrf.mxu0
  %v4588 = vadd.f32 0.0, %v4587
  %v4589 = vpop.f32.mrf.mxu0
  %4590 = vmatprep.mubr.bf16.mxu0 0
  %4591 = vmatmul.mubr.bf16.gmra.mxu0 %v1192
  %v4592 = vpop.f32.mrf.mxu0
  %v4593 = vadd.f32 0.0, %v4592
  %v4594 = vpop.f32.mrf.mxu0
  %v4595 = vpop.f32.mrf.mxu0
  %v4596 = vadd.f32 0.0, %v4595
  %v4597 = vpop.f32.mrf.mxu0
  %4598 = vmatprep.mubr.bf16.mxu0 0
  %4599 = vmatmul.mubr.bf16.gmra.mxu0 %v1195
  %v4600 = vpop.f32.mrf.mxu0
  %v4601 = vadd.f32 0.0, %v4600
  %v4602 = vpop.f32.mrf.mxu0
  %v4603 = vpop.f32.mrf.mxu0
  %v4604 = vadd.f32 0.0, %v4603
  %v4605 = vpop.f32.mrf.mxu0
  %4606 = vmatprep.mubr.bf16.mxu0 0
  %4607 = vmatmul.mubr.bf16.gmra.mxu0 %v1198
  %v4608 = vpop.f32.mrf.mxu0
  %v4609 = vadd.f32 0.0, %v4608
  %v4610 = vpop.f32.mrf.mxu0
  %v4611 = vpop.f32.mrf.mxu0
  %v4612 = vadd.f32 0.0, %v4611
  %v4613 = vpop.f32.mrf.mxu0
  %4614 = vmatprep.mubr.bf16.mxu0 0
  %4615 = vmatmul.mubr.bf16.gmra.mxu0 %v1201
  %v4616 = vpop.f32.mrf.mxu0
  %v4617 = vadd.f32 0.0, %v4616
  %v4618 = vpop.f32.mrf.mxu0
  %v4619 = vpop.f32.mrf.mxu0
  %v4620 = vadd.f32 0.0, %v4619
  %v4621 = vpop.f32.mrf.mxu0
  %4622 = vmatprep.mubr.bf16.mxu0 0
  %4623 = vmatmul.mubr.bf16.gmra.mxu0 %v1204
  %v4624 = vpop.f32.mrf.mxu0
  %v4625 = vadd.f32 0.0, %v4624
  %v4626 = vpop.f32.mrf.mxu0
  %v4627 = vpop.f32.mrf.mxu0
  %v4628 = vadd.f32 0.0, %v4627
  %v4629 = vpop.f32.mrf.mxu0
  %4630 = vmatprep.mubr.bf16.mxu0 0
  %4631 = vmatmul.mubr.bf16.gmra.mxu0 %v1207
  %v4632 = vpop.f32.mrf.mxu0
  %v4633 = vadd.f32 0.0, %v4632
  %v4634 = vpop.f32.mrf.mxu0
  %v4635 = vpop.f32.mrf.mxu0
  %v4636 = vadd.f32 0.0, %v4635
  %v4637 = vpop.f32.mrf.mxu0
  %4638 = vmatprep.mubr.bf16.mxu0 0
  %4639 = vmatmul.mubr.bf16.gmra.mxu0 %v1210
  %v4640 = vpop.f32.mrf.mxu0
  %v4641 = vadd.f32 0.0, %v4640
  %v4642 = vpop.f32.mrf.mxu0
  %v4643 = vpop.f32.mrf.mxu0
  %v4644 = vadd.f32 0.0, %v4643
  %v4645 = vpop.f32.mrf.mxu0
  %4646 = vmatprep.mubr.bf16.mxu0 0
  %4647 = vmatmul.mubr.bf16.gmra.mxu0 %v1213
  %v4648 = vpop.f32.mrf.mxu0
  %v4649 = vadd.f32 0.0, %v4648
  %v4650 = vpop.f32.mrf.mxu0
  %v4651 = vpop.f32.mrf.mxu0
  %v4652 = vadd.f32 0.0, %v4651
  %v4653 = vpop.f32.mrf.mxu0
  %4654 = vmatprep.mubr.bf16.mxu0 0
  %4655 = vmatmul.mubr.bf16.gmra.mxu0 %v1216
  %v4656 = vpop.f32.mrf.mxu0
  %v4657 = vadd.f32 0.0, %v4656
  %v4658 = vpop.f32.mrf.mxu0
  %v4659 = vpop.f32.mrf.mxu0
  %v4660 = vadd.f32 0.0, %v4659
  %v4661 = vpop.f32.mrf.mxu0
  %4662 = vmatprep.mubr.bf16.mxu0 0
  %4663 = vmatmul.mubr.bf16.gmra.mxu0 %v1219
  %v4664 = vpop.f32.mrf.mxu0
  %v4665 = vadd.f32 0.0, %v4664
  %v4666 = vpop.f32.mrf.mxu0
  %v4667 = vpop.f32.mrf.mxu0
  %v4668 = vadd.f32 0.0, %v4667
  %v4669 = vpop.f32.mrf.mxu0
  %4670 = vmatprep.mubr.bf16.mxu0 0
  %4671 = vmatmul.mubr.bf16.gmra.mxu0 %v1222
  %v4672 = vpop.f32.mrf.mxu0
  %v4673 = vadd.f32 0.0, %v4672
  %v4674 = vpop.f32.mrf.mxu0
  %v4675 = vpop.f32.mrf.mxu0
  %v4676 = vadd.f32 0.0, %v4675
  %v4677 = vpop.f32.mrf.mxu0
  %4678 = vmatprep.mubr.bf16.mxu0 0
  %4679 = vmatmul.mubr.bf16.gmra.mxu0 %v1225
  %v4680 = vpop.f32.mrf.mxu0
  %v4681 = vadd.f32 0.0, %v4680
  %v4682 = vpop.f32.mrf.mxu0
  %v4683 = vpop.f32.mrf.mxu0
  %v4684 = vadd.f32 0.0, %v4683
  %v4685 = vpop.f32.mrf.mxu0
  %4686 = vmatprep.mubr.bf16.mxu0 0
  %4687 = vmatmul.mubr.bf16.gmra.mxu0 %v1228
  %v4688 = vpop.f32.mrf.mxu0
  %v4689 = vadd.f32 0.0, %v4688
  %v4690 = vpop.f32.mrf.mxu0
  %v4691 = vpop.f32.mrf.mxu0
  %v4692 = vadd.f32 0.0, %v4691
  %v4693 = vpop.f32.mrf.mxu0
  %4694 = vmatprep.mubr.bf16.mxu0 0
  %4695 = vmatmul.mubr.bf16.gmra.mxu0 %v1231
  %v4696 = vpop.f32.mrf.mxu0
  %v4697 = vadd.f32 0.0, %v4696
  %v4698 = vpop.f32.mrf.mxu0
  %v4699 = vpop.f32.mrf.mxu0
  %v4700 = vadd.f32 0.0, %v4699
  %v4701 = vpop.f32.mrf.mxu0
  %4702 = vmatprep.mubr.bf16.mxu0 0
  %4703 = vmatmul.mubr.bf16.gmra.mxu0 %v1234
  %v4704 = vpop.f32.mrf.mxu0
  %v4705 = vadd.f32 0.0, %v4704
  %v4706 = vpop.f32.mrf.mxu0
  %v4707 = vpop.f32.mrf.mxu0
  %v4708 = vadd.f32 0.0, %v4707
  %v4709 = vpop.f32.mrf.mxu0
  %4710 = vmatprep.mubr.bf16.mxu0 0
  %4711 = vmatmul.mubr.bf16.gmra.mxu0 %v1237
  %v4712 = vpop.f32.mrf.mxu0
  %v4713 = vadd.f32 0.0, %v4712
  %v4714 = vpop.f32.mrf.mxu0
  %v4715 = vpop.f32.mrf.mxu0
  %v4716 = vadd.f32 0.0, %v4715
  %v4717 = vpop.f32.mrf.mxu0
  %4718 = vmatprep.mubr.bf16.mxu0 0
  %4719 = vmatmul.mubr.bf16.gmra.mxu0 %v1240
  %v4720 = vpop.f32.mrf.mxu0
  %v4721 = vadd.f32 0.0, %v4720
  %v4722 = vpop.f32.mrf.mxu0
  %v4723 = vpop.f32.mrf.mxu0
  %v4724 = vadd.f32 0.0, %v4723
  %v4725 = vpop.f32.mrf.mxu0
  %4726 = vmatprep.mubr.bf16.mxu0 0
  %4727 = vmatmul.mubr.bf16.gmra.mxu0 %v1243
  %v4728 = vpop.f32.mrf.mxu0
  %v4729 = vadd.f32 0.0, %v4728
  %v4730 = vpop.f32.mrf.mxu0
  %v4731 = vpop.f32.mrf.mxu0
  %v4732 = vadd.f32 0.0, %v4731
  %v4733 = vpop.f32.mrf.mxu0
  %4734 = vmatprep.mubr.bf16.mxu0 0
  %4735 = vmatmul.mubr.bf16.gmra.mxu0 %v1246
  %v4736 = vpop.f32.mrf.mxu0
  %v4737 = vadd.f32 0.0, %v4736
  %v4738 = vpop.f32.mrf.mxu0
  %v4739 = vpop.f32.mrf.mxu0
  %v4740 = vadd.f32 0.0, %v4739
  %v4741 = vpop.f32.mrf.mxu0
  %4742 = vmatprep.mubr.bf16.mxu0 0
  %4743 = vmatmul.mubr.bf16.gmra.mxu0 %v1249
  %v4744 = vpop.f32.mrf.mxu0
  %v4745 = vadd.f32 0.0, %v4744
  %v4746 = vpop.f32.mrf.mxu0
  %v4747 = vpop.f32.mrf.mxu0
  %v4748 = vadd.f32 0.0, %v4747
  %v4749 = vpop.f32.mrf.mxu0
  %4750 = vmatprep.mubr.bf16.mxu0 0
  %4751 = vmatmul.mubr.bf16.gmra.mxu0 %v1252
  %v4752 = vpop.f32.mrf.mxu0
  %v4753 = vadd.f32 0.0, %v4752
  %v4754 = vpop.f32.mrf.mxu0
  %v4755 = vpop.f32.mrf.mxu0
  %v4756 = vadd.f32 0.0, %v4755
  %v4757 = vpop.f32.mrf.mxu0
  %4758 = vmatprep.mubr.bf16.mxu0 0
  %4759 = vmatmul.mubr.bf16.gmra.mxu0 %v1255
  %v4760 = vpop.f32.mrf.mxu0
  %v4761 = vadd.f32 0.0, %v4760
  %v4762 = vpop.f32.mrf.mxu0
  %v4763 = vpop.f32.mrf.mxu0
  %v4764 = vadd.f32 0.0, %v4763
  %v4765 = vpop.f32.mrf.mxu0
  %4766 = vmatprep.mubr.bf16.mxu0 0
  %4767 = vmatmul.mubr.bf16.gmra.mxu0 %v1258
  %v4768 = vpop.f32.mrf.mxu0
  %v4769 = vadd.f32 0.0, %v4768
  %v4770 = vpop.f32.mrf.mxu0
  %v4771 = vpop.f32.mrf.mxu0
  %v4772 = vadd.f32 0.0, %v4771
  %v4773 = vpop.f32.mrf.mxu0
  %4774 = vmatprep.mubr.bf16.mxu0 0
  %4775 = vmatmul.mubr.bf16.gmra.mxu0 %v1261
  %v4776 = vpop.f32.mrf.mxu0
  %v4777 = vadd.f32 0.0, %v4776
  %v4778 = vpop.f32.mrf.mxu0
  %v4779 = vpop.f32.mrf.mxu0
  %v4780 = vadd.f32 0.0, %v4779
  %v4781 = vpop.f32.mrf.mxu0
  %4782 = vmatprep.mubr.bf16.mxu0 0
  %4783 = vmatmul.mubr.bf16.gmra.mxu0 %v1264
  %v4784 = vpop.f32.mrf.mxu0
  %v4785 = vadd.f32 0.0, %v4784
  %v4786 = vpop.f32.mrf.mxu0
  %v4787 = vpop.f32.mrf.mxu0
  %v4788 = vadd.f32 0.0, %v4787
  %v4789 = vpop.f32.mrf.mxu0
  %4790 = vmatprep.mubr.bf16.mxu0 0
  %4791 = vmatmul.mubr.bf16.gmra.mxu0 %v1267
  %v4792 = vpop.f32.mrf.mxu0
  %v4793 = vadd.f32 0.0, %v4792
  %v4794 = vpop.f32.mrf.mxu0
  %v4795 = vpop.f32.mrf.mxu0
  %v4796 = vadd.f32 0.0, %v4795
  %v4797 = vpop.f32.mrf.mxu0
  %4798 = vmatprep.mubr.bf16.mxu0 0
  %4799 = vmatmul.mubr.bf16.gmra.mxu0 %v1270
  %v4800 = vpop.f32.mrf.mxu0
  %v4801 = vadd.f32 0.0, %v4800
  %v4802 = vpop.f32.mrf.mxu0
  %v4803 = vpop.f32.mrf.mxu0
  %v4804 = vadd.f32 0.0, %v4803
  %v4805 = vpop.f32.mrf.mxu0
  %4806 = vmatprep.mubr.bf16.mxu0 0
  %4807 = vmatmul.mubr.bf16.gmra.mxu0 %v1273
  %v4808 = vpop.f32.mrf.mxu0
  %v4809 = vadd.f32 0.0, %v4808
  %v4810 = vpop.f32.mrf.mxu0
  %v4811 = vpop.f32.mrf.mxu0
  %v4812 = vadd.f32 0.0, %v4811
  %v4813 = vpop.f32.mrf.mxu0
  %4814 = vmatprep.mubr.bf16.mxu0 0
  %4815 = vmatmul.mubr.bf16.gmra.mxu0 %v1276
  %v4816 = vpop.f32.mrf.mxu0
  %v4817 = vadd.f32 0.0, %v4816
  %v4818 = vpop.f32.mrf.mxu0
  %v4819 = vpop.f32.mrf.mxu0
  %v4820 = vadd.f32 0.0, %v4819
  %v4821 = vpop.f32.mrf.mxu0
  %4822 = vmatprep.mubr.bf16.mxu0 0
  %4823 = vmatmul.mubr.bf16.gmra.mxu0 %v1279
  %v4824 = vpop.f32.mrf.mxu0
  %v4825 = vadd.f32 0.0, %v4824
  %v4826 = vpop.f32.mrf.mxu0
  %v4827 = vpop.f32.mrf.mxu0
  %v4828 = vadd.f32 0.0, %v4827
  %v4829 = vpop.f32.mrf.mxu0
  %4830 = vmatprep.mubr.bf16.mxu0 0
  %4831 = vmatmul.mubr.bf16.gmra.mxu0 %v1282
  %v4832 = vpop.f32.mrf.mxu0
  %v4833 = vadd.f32 0.0, %v4832
  %v4834 = vpop.f32.mrf.mxu0
  %v4835 = vpop.f32.mrf.mxu0
  %v4836 = vadd.f32 0.0, %v4835
  %v4837 = vpop.f32.mrf.mxu0
  %4838 = vmatprep.mubr.bf16.mxu0 0
  %4839 = vmatmul.mubr.bf16.gmra.mxu0 %v1285
  %v4840 = vpop.f32.mrf.mxu0
  %v4841 = vadd.f32 0.0, %v4840
  %v4842 = vpop.f32.mrf.mxu0
  %v4843 = vpop.f32.mrf.mxu0
  %v4844 = vadd.f32 0.0, %v4843
  %v4845 = vpop.f32.mrf.mxu0
  %4846 = vmatprep.mubr.bf16.mxu0 0
  %4847 = vmatmul.mubr.bf16.gmra.mxu0 %v1288
  %v4848 = vpop.f32.mrf.mxu0
  %v4849 = vadd.f32 0.0, %v4848
  %v4850 = vpop.f32.mrf.mxu0
  %v4851 = vpop.f32.mrf.mxu0
  %v4852 = vadd.f32 0.0, %v4851
  %v4853 = vpop.f32.mrf.mxu0
  %4854 = vmatprep.mubr.bf16.mxu0 0
  %4855 = vmatmul.mubr.bf16.gmra.mxu0 %v1291
  %v4856 = vpop.f32.mrf.mxu0
  %v4857 = vadd.f32 0.0, %v4856
  %v4858 = vpop.f32.mrf.mxu0
  %v4859 = vpop.f32.mrf.mxu0
  %v4860 = vadd.f32 0.0, %v4859
  %v4861 = vpop.f32.mrf.mxu0
  %4862 = vmatprep.mubr.bf16.mxu0 0
  %4863 = vmatmul.mubr.bf16.gmra.mxu0 %v1294
  %v4864 = vpop.f32.mrf.mxu0
  %v4865 = vadd.f32 0.0, %v4864
  %v4866 = vpop.f32.mrf.mxu0
  %v4867 = vpop.f32.mrf.mxu0
  %v4868 = vadd.f32 0.0, %v4867
  %v4869 = vpop.f32.mrf.mxu0
  %4870 = vmatprep.mubr.bf16.mxu0 0
  %4871 = vmatmul.mubr.bf16.gmra.mxu0 %v1297
  %v4872 = vpop.f32.mrf.mxu0
  %v4873 = vadd.f32 0.0, %v4872
  %v4874 = vpop.f32.mrf.mxu0
  %v4875 = vpop.f32.mrf.mxu0
  %v4876 = vadd.f32 0.0, %v4875
  %v4877 = vpop.f32.mrf.mxu0
  %4878 = vmatprep.mubr.bf16.mxu0 0
  %4879 = vmatmul.mubr.bf16.gmra.mxu0 %v1300
  %v4880 = vpop.f32.mrf.mxu0
  %v4881 = vadd.f32 0.0, %v4880
  %v4882 = vpop.f32.mrf.mxu0
  %v4883 = vpop.f32.mrf.mxu0
  %v4884 = vadd.f32 0.0, %v4883
  %v4885 = vpop.f32.mrf.mxu0
  %4886 = vmatprep.mubr.bf16.mxu0 0
  %4887 = vmatmul.mubr.bf16.gmra.mxu0 %v1303
  %v4888 = vpop.f32.mrf.mxu0
  %v4889 = vadd.f32 0.0, %v4888
  %v4890 = vpop.f32.mrf.mxu0
  %v4891 = vpop.f32.mrf.mxu0
  %v4892 = vadd.f32 0.0, %v4891
  %v4893 = vpop.f32.mrf.mxu0
  %4894 = vmatprep.mubr.bf16.mxu0 0
  %4895 = vmatmul.mubr.bf16.gmra.mxu0 %v1306
  %v4896 = vpop.f32.mrf.mxu0
  %v4897 = vadd.f32 0.0, %v4896
  %v4898 = vpop.f32.mrf.mxu0
  %v4899 = vpop.f32.mrf.mxu0
  %v4900 = vadd.f32 0.0, %v4899
  %v4901 = vpop.f32.mrf.mxu0
  %4902 = vmatprep.mubr.bf16.mxu0 0
  %4903 = vmatmul.mubr.bf16.gmra.mxu0 %v1309
  %v4904 = vpop.f32.mrf.mxu0
  %v4905 = vadd.f32 0.0, %v4904
  %v4906 = vpop.f32.mrf.mxu0
  %v4907 = vpop.f32.mrf.mxu0
  %v4908 = vadd.f32 0.0, %v4907
  %v4909 = vpop.f32.mrf.mxu0
  %4910 = vmatprep.mubr.bf16.mxu0 0
  %4911 = vmatmul.mubr.bf16.gmra.mxu0 %v1312
  %v4912 = vpop.f32.mrf.mxu0
  %v4913 = vadd.f32 0.0, %v4912
  %v4914 = vpop.f32.mrf.mxu0
  %v4915 = vpop.f32.mrf.mxu0
  %v4916 = vadd.f32 0.0, %v4915
  %v4917 = vpop.f32.mrf.mxu0
  %4918 = vmatprep.mubr.bf16.mxu0 0
  %4919 = vmatmul.mubr.bf16.gmra.mxu0 %v1315
  %v4920 = vpop.f32.mrf.mxu0
  %v4921 = vadd.f32 0.0, %v4920
  %v4922 = vpop.f32.mrf.mxu0
  %v4923 = vpop.f32.mrf.mxu0
  %v4924 = vadd.f32 0.0, %v4923
  %v4925 = vpop.f32.mrf.mxu0
  %4926 = vmatprep.mubr.bf16.mxu0 0
  %4927 = vmatmul.mubr.bf16.gmra.mxu0 %v1318
  %v4928 = vpop.f32.mrf.mxu0
  %v4929 = vadd.f32 0.0, %v4928
  %v4930 = vpop.f32.mrf.mxu0
  %v4931 = vpop.f32.mrf.mxu0
  %v4932 = vadd.f32 0.0, %v4931
  %v4933 = vpop.f32.mrf.mxu0
  %4934 = vmatprep.mubr.bf16.mxu0 0
  %4935 = vmatmul.mubr.bf16.gmra.mxu0 %v1321
  %v4936 = vpop.f32.mrf.mxu0
  %v4937 = vadd.f32 0.0, %v4936
  %v4938 = vpop.f32.mrf.mxu0
  %v4939 = vpop.f32.mrf.mxu0
  %v4940 = vadd.f32 0.0, %v4939
  %v4941 = vpop.f32.mrf.mxu0
  %4942 = vmatprep.mubr.bf16.mxu0 0
  %4943 = vmatmul.mubr.bf16.gmra.mxu0 %v1324
  %v4944 = vpop.f32.mrf.mxu0
  %v4945 = vadd.f32 0.0, %v4944
  %v4946 = vpop.f32.mrf.mxu0
  %v4947 = vpop.f32.mrf.mxu0
  %v4948 = vadd.f32 0.0, %v4947
  %v4949 = vpop.f32.mrf.mxu0
  %4950 = vmatprep.mubr.bf16.mxu0 0
  %4951 = vmatmul.mubr.bf16.gmra.mxu0 %v1327
  %v4952 = vpop.f32.mrf.mxu0
  %v4953 = vadd.f32 0.0, %v4952
  %v4954 = vpop.f32.mrf.mxu0
  %v4955 = vpop.f32.mrf.mxu0
  %v4956 = vadd.f32 0.0, %v4955
  %v4957 = vpop.f32.mrf.mxu0
  %4958 = vmatprep.mubr.bf16.mxu0 0
  %4959 = vmatmul.mubr.bf16.gmra.mxu0 %v1330
  %v4960 = vpop.f32.mrf.mxu0
  %v4961 = vadd.f32 0.0, %v4960
  %v4962 = vpop.f32.mrf.mxu0
  %v4963 = vpop.f32.mrf.mxu0
  %v4964 = vadd.f32 0.0, %v4963
  %v4965 = vpop.f32.mrf.mxu0
  %4966 = vmatprep.mubr.bf16.mxu0 0
  %4967 = vmatmul.mubr.bf16.gmra.mxu0 %v1333
  %v4968 = vpop.f32.mrf.mxu0
  %v4969 = vadd.f32 0.0, %v4968
  %v4970 = vpop.f32.mrf.mxu0
  %v4971 = vpop.f32.mrf.mxu0
  %v4972 = vadd.f32 0.0, %v4971
  %v4973 = vpop.f32.mrf.mxu0
  %4974 = vmatprep.mubr.bf16.mxu0 0
  %4975 = vmatmul.mubr.bf16.gmra.mxu0 %v1336
  %v4976 = vpop.f32.mrf.mxu0
  %v4977 = vadd.f32 0.0, %v4976
  %v4978 = vpop.f32.mrf.mxu0
  %v4979 = vpop.f32.mrf.mxu0
  %v4980 = vadd.f32 0.0, %v4979
  %v4981 = vpop.f32.mrf.mxu0
  %4982 = vmatprep.mubr.bf16.mxu0 0
  %4983 = vmatmul.mubr.bf16.gmra.mxu0 %v1339
  %v4984 = vpop.f32.mrf.mxu0
  %v4985 = vadd.f32 0.0, %v4984
  %v4986 = vpop.f32.mrf.mxu0
  %v4987 = vpop.f32.mrf.mxu0
  %v4988 = vadd.f32 0.0, %v4987
  %v4989 = vpop.f32.mrf.mxu0
  %4990 = vmatprep.mubr.bf16.mxu0 0
  %4991 = vmatmul.mubr.bf16.gmra.mxu0 %v1342
  %v4992 = vpop.f32.mrf.mxu0
  %v4993 = vadd.f32 0.0, %v4992
  %v4994 = vpop.f32.mrf.mxu0
  %v4995 = vpop.f32.mrf.mxu0
  %v4996 = vadd.f32 0.0, %v4995
  %v4997 = vpop.f32.mrf.mxu0
  %4998 = vmatprep.mubr.bf16.mxu0 0
  %4999 = vmatmul.mubr.bf16.gmra.mxu0 %v1345
  %v5000 = vpop.f32.mrf.mxu0
  %v5001 = vadd.f32 0.0, %v5000
  %v5002 = vpop.f32.mrf.mxu0
  %v5003 = vpop.f32.mrf.mxu0
  %v5004 = vadd.f32 0.0, %v5003
  %v5005 = vpop.f32.mrf.mxu0
  %5006 = vmatprep.mubr.bf16.mxu0 0
  %5007 = vmatmul.mubr.bf16.gmra.mxu0 %v1348
  %v5008 = vpop.f32.mrf.mxu0
  %v5009 = vadd.f32 0.0, %v5008
  %v5010 = vpop.f32.mrf.mxu0
  %v5011 = vpop.f32.mrf.mxu0
  %v5012 = vadd.f32 0.0, %v5011
  %v5013 = vpop.f32.mrf.mxu0
  %5014 = vmatprep.mubr.bf16.mxu0 0
  %5015 = vmatmul.mubr.bf16.gmra.mxu0 %v1351
  %v5016 = vpop.f32.mrf.mxu0
  %v5017 = vadd.f32 0.0, %v5016
  %v5018 = vpop.f32.mrf.mxu0
  %v5019 = vpop.f32.mrf.mxu0
  %v5020 = vadd.f32 0.0, %v5019
  %v5021 = vpop.f32.mrf.mxu0
  %5022 = vmatprep.mubr.bf16.mxu0 0
  %5023 = vmatmul.mubr.bf16.gmra.mxu0 %v1354
  %v5024 = vpop.f32.mrf.mxu0
  %v5025 = vadd.f32 0.0, %v5024
  %v5026 = vpop.f32.mrf.mxu0
  %v5027 = vpop.f32.mrf.mxu0
  %v5028 = vadd.f32 0.0, %v5027
  %v5029 = vpop.f32.mrf.mxu0
  %5030 = vmatprep.mubr.bf16.mxu0 0
  %5031 = vmatmul.mubr.bf16.gmra.mxu0 %v1357
  %v5032 = vpop.f32.mrf.mxu0
  %v5033 = vadd.f32 0.0, %v5032
  %v5034 = vpop.f32.mrf.mxu0
  %v5035 = vpop.f32.mrf.mxu0
  %v5036 = vadd.f32 0.0, %v5035
  %v5037 = vpop.f32.mrf.mxu0
  %5038 = vmatprep.mubr.bf16.mxu0 0
  %5039 = vmatmul.mubr.bf16.gmra.mxu0 %v1360
  %v5040 = vpop.f32.mrf.mxu0
  %v5041 = vadd.f32 0.0, %v5040
  %v5042 = vpop.f32.mrf.mxu0
  %v5043 = vpop.f32.mrf.mxu0
  %v5044 = vadd.f32 0.0, %v5043
  %v5045 = vpop.f32.mrf.mxu0
  %5046 = vmatprep.mubr.bf16.mxu0 0
  %5047 = vmatmul.mubr.bf16.gmra.mxu0 %v1363
  %v5048 = vpop.f32.mrf.mxu0
  %v5049 = vadd.f32 0.0, %v5048
  %v5050 = vpop.f32.mrf.mxu0
  %v5051 = vpop.f32.mrf.mxu0
  %v5052 = vadd.f32 0.0, %v5051
  %v5053 = vpop.f32.mrf.mxu0
  %5054 = vmatprep.mubr.bf16.mxu0 0
  %5055 = vmatmul.mubr.bf16.gmra.mxu0 %v1366
  %v5056 = vpop.f32.mrf.mxu0
  %v5057 = vadd.f32 0.0, %v5056
  %v5058 = vpop.f32.mrf.mxu0
  %v5059 = vpop.f32.mrf.mxu0
  %v5060 = vadd.f32 0.0, %v5059
  %v5061 = vpop.f32.mrf.mxu0
  %5062 = vmatprep.mubr.bf16.mxu0 0
  %5063 = vmatmul.mubr.bf16.gmra.mxu0 %v1369
  %v5064 = vpop.f32.mrf.mxu0
  %v5065 = vadd.f32 0.0, %v5064
  %v5066 = vpop.f32.mrf.mxu0
  %v5067 = vpop.f32.mrf.mxu0
  %v5068 = vadd.f32 0.0, %v5067
  %v5069 = vpop.f32.mrf.mxu0
  %5070 = vmatprep.mubr.bf16.mxu0 0
  %5071 = vmatmul.mubr.bf16.gmra.mxu0 %v1372
  %v5072 = vpop.f32.mrf.mxu0
  %v5073 = vadd.f32 0.0, %v5072
  %v5074 = vpop.f32.mrf.mxu0
  %v5075 = vpop.f32.mrf.mxu0
  %v5076 = vadd.f32 0.0, %v5075
  %v5077 = vpop.f32.mrf.mxu0
  %5078 = vmatprep.mubr.bf16.mxu0 0
  %5079 = vmatmul.mubr.bf16.gmra.mxu0 %v1375
  %v5080 = vpop.f32.mrf.mxu0
  %v5081 = vadd.f32 0.0, %v5080
  %v5082 = vpop.f32.mrf.mxu0
  %v5083 = vpop.f32.mrf.mxu0
  %v5084 = vadd.f32 0.0, %v5083
  %v5085 = vpop.f32.mrf.mxu0
  %5086 = vmatprep.mubr.bf16.mxu0 0
  %5087 = vmatmul.mubr.bf16.gmra.mxu0 %v1378
  %v5088 = vpop.f32.mrf.mxu0
  %v5089 = vadd.f32 0.0, %v5088
  %v5090 = vpop.f32.mrf.mxu0
  %v5091 = vpop.f32.mrf.mxu0
  %v5092 = vadd.f32 0.0, %v5091
  %v5093 = vpop.f32.mrf.mxu0
  %5094 = vmatprep.mubr.bf16.mxu0 0
  %5095 = vmatmul.mubr.bf16.gmra.mxu0 %v1381
  %v5096 = vpop.f32.mrf.mxu0
  %v5097 = vadd.f32 0.0, %v5096
  %v5098 = vpop.f32.mrf.mxu0
  %v5099 = vpop.f32.mrf.mxu0
  %v5100 = vadd.f32 0.0, %v5099
  %v5101 = vpop.f32.mrf.mxu0
  %5102 = vmatprep.mubr.bf16.mxu0 0
  %5103 = vmatmul.mubr.bf16.gmra.mxu0 %v1384
  %v5104 = vpop.f32.mrf.mxu0
  %v5105 = vadd.f32 0.0, %v5104
  %v5106 = vpop.f32.mrf.mxu0
  %v5107 = vpop.f32.mrf.mxu0
  %v5108 = vadd.f32 0.0, %v5107
  %v5109 = vpop.f32.mrf.mxu0
  %5110 = vmatprep.mubr.bf16.mxu0 0
  %5111 = vmatmul.mubr.bf16.gmra.mxu0 %v1387
  %v5112 = vpop.f32.mrf.mxu0
  %v5113 = vadd.f32 0.0, %v5112
  %v5114 = vpop.f32.mrf.mxu0
  %v5115 = vpop.f32.mrf.mxu0
  %v5116 = vadd.f32 0.0, %v5115
  %v5117 = vpop.f32.mrf.mxu0
  %5118 = vmatprep.mubr.bf16.mxu0 0
  %5119 = vmatmul.mubr.bf16.gmra.mxu0 %v1390
  %v5120 = vpop.f32.mrf.mxu0
  %v5121 = vadd.f32 0.0, %v5120
  %v5122 = vpop.f32.mrf.mxu0
  %v5123 = vpop.f32.mrf.mxu0
  %v5124 = vadd.f32 0.0, %v5123
  %v5125 = vpop.f32.mrf.mxu0
  %5126 = vmatprep.mubr.bf16.mxu0 0
  %5127 = vmatmul.mubr.bf16.gmra.mxu0 %v1393
  %v5128 = vpop.f32.mrf.mxu0
  %v5129 = vadd.f32 0.0, %v5128
  %v5130 = vpop.f32.mrf.mxu0
  %v5131 = vpop.f32.mrf.mxu0
  %v5132 = vadd.f32 0.0, %v5131
  %v5133 = vpop.f32.mrf.mxu0
  %5134 = vmatprep.mubr.bf16.mxu0 0
  %5135 = vmatmul.mubr.bf16.gmra.mxu0 %v1396
  %v5136 = vpop.f32.mrf.mxu0
  %v5137 = vadd.f32 0.0, %v5136
  %v5138 = vpop.f32.mrf.mxu0
  %v5139 = vpop.f32.mrf.mxu0
  %v5140 = vadd.f32 0.0, %v5139
  %v5141 = vpop.f32.mrf.mxu0
  %5142 = vmatprep.mubr.bf16.mxu0 0
  %5143 = vmatmul.mubr.bf16.gmra.mxu0 %v1399
  %v5144 = vpop.f32.mrf.mxu0
  %v5145 = vadd.f32 0.0, %v5144
  %v5146 = vpop.f32.mrf.mxu0
  %v5147 = vpop.f32.mrf.mxu0
  %v5148 = vadd.f32 0.0, %v5147
  %v5149 = vpop.f32.mrf.mxu0
  %5150 = vmatprep.mubr.bf16.mxu0 0
  %5151 = vmatmul.mubr.bf16.gmra.mxu0 %v1402
  %v5152 = vpop.f32.mrf.mxu0
  %v5153 = vadd.f32 0.0, %v5152
  %v5154 = vpop.f32.mrf.mxu0
  %v5155 = vpop.f32.mrf.mxu0
  %v5156 = vadd.f32 0.0, %v5155
  %v5157 = vpop.f32.mrf.mxu0
  %5158 = vmatprep.mubr.bf16.mxu0 0
  %5159 = vmatmul.mubr.bf16.gmra.mxu0 %v1405
  %v5160 = vpop.f32.mrf.mxu0
  %v5161 = vadd.f32 0.0, %v5160
  %v5162 = vpop.f32.mrf.mxu0
  %v5163 = vpop.f32.mrf.mxu0
  %v5164 = vadd.f32 0.0, %v5163
  %v5165 = vpop.f32.mrf.mxu0
  %5166 = vmatprep.mubr.bf16.mxu0 0
  %5167 = vmatmul.mubr.bf16.gmra.mxu0 %v1408
  %v5168 = vpop.f32.mrf.mxu0
  %v5169 = vadd.f32 0.0, %v5168
  %v5170 = vpop.f32.mrf.mxu0
  %v5171 = vpop.f32.mrf.mxu0
  %v5172 = vadd.f32 0.0, %v5171
  %v5173 = vpop.f32.mrf.mxu0
  %5174 = vmatprep.mubr.bf16.mxu0 0
  %5175 = vmatmul.mubr.bf16.gmra.mxu0 %v1411
  %v5176 = vpop.f32.mrf.mxu0
  %v5177 = vadd.f32 0.0, %v5176
  %v5178 = vpop.f32.mrf.mxu0
  %v5179 = vpop.f32.mrf.mxu0
  %v5180 = vadd.f32 0.0, %v5179
  %v5181 = vpop.f32.mrf.mxu0
  %5182 = vmatprep.mubr.bf16.mxu0 0
  %5183 = vmatmul.mubr.bf16.gmra.mxu0 %v1414
  %v5184 = vpop.f32.mrf.mxu0
  %v5185 = vadd.f32 0.0, %v5184
  %v5186 = vpop.f32.mrf.mxu0
  %v5187 = vpop.f32.mrf.mxu0
  %v5188 = vadd.f32 0.0, %v5187
  %v5189 = vpop.f32.mrf.mxu0
  %5190 = vmatprep.mubr.bf16.mxu0 0
  %5191 = vmatmul.mubr.bf16.gmra.mxu0 %v1417
  %v5192 = vpop.f32.mrf.mxu0
  %v5193 = vadd.f32 0.0, %v5192
  %v5194 = vpop.f32.mrf.mxu0
  %v5195 = vpop.f32.mrf.mxu0
  %v5196 = vadd.f32 0.0, %v5195
  %v5197 = vpop.f32.mrf.mxu0
  %5198 = vmatprep.mubr.bf16.mxu0 0
  %5199 = vmatmul.mubr.bf16.gmra.mxu0 %v1420
  %v5200 = vpop.f32.mrf.mxu0
  %v5201 = vadd.f32 0.0, %v5200
  %v5202 = vpop.f32.mrf.mxu0
  %v5203 = vpop.f32.mrf.mxu0
  %v5204 = vadd.f32 0.0, %v5203
  %v5205 = vpop.f32.mrf.mxu0
  %5206 = vmatprep.mubr.bf16.mxu0 0
  %5207 = vmatmul.mubr.bf16.gmra.mxu0 %v1423
  %v5208 = vpop.f32.mrf.mxu0
  %v5209 = vadd.f32 0.0, %v5208
  %v5210 = vpop.f32.mrf.mxu0
  %v5211 = vpop.f32.mrf.mxu0
  %v5212 = vadd.f32 0.0, %v5211
  %v5213 = vpop.f32.mrf.mxu0
  %5214 = vmatprep.mubr.bf16.mxu0 0
  %5215 = vmatmul.mubr.bf16.gmra.mxu0 %v1426
  %v5216 = vpop.f32.mrf.mxu0
  %v5217 = vadd.f32 0.0, %v5216
  %v5218 = vpop.f32.mrf.mxu0
  %v5219 = vpop.f32.mrf.mxu0
  %v5220 = vadd.f32 0.0, %v5219
  %v5221 = vpop.f32.mrf.mxu0
  %5222 = vmatprep.mubr.bf16.mxu0 0
  %5223 = vmatmul.mubr.bf16.gmra.mxu0 %v1429
  %v5224 = vpop.f32.mrf.mxu0
  %v5225 = vadd.f32 0.0, %v5224
  %v5226 = vpop.f32.mrf.mxu0
  %v5227 = vpop.f32.mrf.mxu0
  %v5228 = vadd.f32 0.0, %v5227
  %v5229 = vpop.f32.mrf.mxu0
  %5230 = vmatprep.mubr.bf16.mxu0 0
  %5231 = vmatmul.mubr.bf16.gmra.mxu0 %v1432
  %v5232 = vpop.f32.mrf.mxu0
  %v5233 = vadd.f32 0.0, %v5232
  %v5234 = vpop.f32.mrf.mxu0
  %v5235 = vpop.f32.mrf.mxu0
  %v5236 = vadd.f32 0.0, %v5235
  %v5237 = vpop.f32.mrf.mxu0
  %5238 = vmatprep.mubr.bf16.mxu0 0
  %5239 = vmatmul.mubr.bf16.gmra.mxu0 %v1435
  %v5240 = vpop.f32.mrf.mxu0
  %v5241 = vadd.f32 0.0, %v5240
  %v5242 = vpop.f32.mrf.mxu0
  %v5243 = vpop.f32.mrf.mxu0
  %v5244 = vadd.f32 0.0, %v5243
  %v5245 = vpop.f32.mrf.mxu0
  %5246 = vmatprep.mubr.bf16.mxu0 0
  %5247 = vmatmul.mubr.bf16.gmra.mxu0 %v1438
  %v5248 = vpop.f32.mrf.mxu0
  %v5249 = vadd.f32 0.0, %v5248
  %v5250 = vpop.f32.mrf.mxu0
  %v5251 = vpop.f32.mrf.mxu0
  %v5252 = vadd.f32 0.0, %v5251
  %v5253 = vpop.f32.mrf.mxu0
  %5254 = vmatprep.mubr.bf16.mxu0 0
  %5255 = vmatmul.mubr.bf16.gmra.mxu0 %v1441
  %v5256 = vpop.f32.mrf.mxu0
  %v5257 = vadd.f32 0.0, %v5256
  %v5258 = vpop.f32.mrf.mxu0
  %v5259 = vpop.f32.mrf.mxu0
  %v5260 = vadd.f32 0.0, %v5259
  %v5261 = vpop.f32.mrf.mxu0
  %5262 = vmatprep.mubr.bf16.mxu0 0
  %5263 = vmatmul.mubr.bf16.gmra.mxu0 %v1444
  %v5264 = vpop.f32.mrf.mxu0
  %v5265 = vadd.f32 0.0, %v5264
  %v5266 = vpop.f32.mrf.mxu0
  %v5267 = vpop.f32.mrf.mxu0
  %v5268 = vadd.f32 0.0, %v5267
  %v5269 = vpop.f32.mrf.mxu0
  %5270 = vmatprep.mubr.bf16.mxu0 0
  %5271 = vmatmul.mubr.bf16.gmra.mxu0 %v1447
  %v5272 = vpop.f32.mrf.mxu0
  %v5273 = vadd.f32 0.0, %v5272
  %v5274 = vpop.f32.mrf.mxu0
  %v5275 = vpop.f32.mrf.mxu0
  %v5276 = vadd.f32 0.0, %v5275
  %v5277 = vpop.f32.mrf.mxu0
  %5278 = vmatprep.mubr.bf16.mxu0 0
  %5279 = vmatmul.mubr.bf16.gmra.mxu0 %v1450
  %v5280 = vpop.f32.mrf.mxu0
  %v5281 = vadd.f32 0.0, %v5280
  %v5282 = vpop.f32.mrf.mxu0
  %v5283 = vpop.f32.mrf.mxu0
  %v5284 = vadd.f32 0.0, %v5283
  %v5285 = vpop.f32.mrf.mxu0
  %5286 = vmatprep.mubr.bf16.mxu0 0
  %5287 = vmatmul.mubr.bf16.gmra.mxu0 %v1453
  %v5288 = vpop.f32.mrf.mxu0
  %v5289 = vadd.f32 0.0, %v5288
  %v5290 = vpop.f32.mrf.mxu0
  %v5291 = vpop.f32.mrf.mxu0
  %v5292 = vadd.f32 0.0, %v5291
  %v5293 = vpop.f32.mrf.mxu0
  %5294 = vmatprep.mubr.bf16.mxu0 0
  %5295 = vmatmul.mubr.bf16.gmra.mxu0 %v1456
  %v5296 = vpop.f32.mrf.mxu0
  %v5297 = vadd.f32 0.0, %v5296
  %v5298 = vpop.f32.mrf.mxu0
  %v5299 = vpop.f32.mrf.mxu0
  %v5300 = vadd.f32 0.0, %v5299
  %v5301 = vpop.f32.mrf.mxu0
  %5302 = vmatprep.mubr.bf16.mxu0 0
  %5303 = vmatmul.mubr.bf16.gmra.mxu0 %v1459
  %v5304 = vpop.f32.mrf.mxu0
  %v5305 = vadd.f32 0.0, %v5304
  %v5306 = vpop.f32.mrf.mxu0
  %v5307 = vpop.f32.mrf.mxu0
  %v5308 = vadd.f32 0.0, %v5307
  %v5309 = vpop.f32.mrf.mxu0
  %5310 = vmatprep.mubr.bf16.mxu0 0
  %5311 = vmatmul.mubr.bf16.gmra.mxu0 %v1462
  %v5312 = vpop.f32.mrf.mxu0
  %v5313 = vadd.f32 0.0, %v5312
  %v5314 = vpop.f32.mrf.mxu0
  %v5315 = vpop.f32.mrf.mxu0
  %v5316 = vadd.f32 0.0, %v5315
  %v5317 = vpop.f32.mrf.mxu0
  %5318 = vmatprep.mubr.bf16.mxu0 0
  %5319 = vmatmul.mubr.bf16.gmra.mxu0 %v1465
  %v5320 = vpop.f32.mrf.mxu0
  %v5321 = vadd.f32 0.0, %v5320
  %v5322 = vpop.f32.mrf.mxu0
  %v5323 = vpop.f32.mrf.mxu0
  %v5324 = vadd.f32 0.0, %v5323
  %v5325 = vpop.f32.mrf.mxu0
  %5326 = vmatprep.mubr.bf16.mxu0 0
  %5327 = vmatmul.mubr.bf16.gmra.mxu0 %v1468
  %v5328 = vpop.f32.mrf.mxu0
  %v5329 = vadd.f32 0.0, %v5328
  %v5330 = vpop.f32.mrf.mxu0
  %v5331 = vpop.f32.mrf.mxu0
  %v5332 = vadd.f32 0.0, %v5331
  %v5333 = vpop.f32.mrf.mxu0
  %5334 = vmatprep.mubr.bf16.mxu0 0
  %5335 = vmatmul.mubr.bf16.gmra.mxu0 %v1471
  %v5336 = vpop.f32.mrf.mxu0
  %v5337 = vadd.f32 0.0, %v5336
  %v5338 = vpop.f32.mrf.mxu0
  %v5339 = vpop.f32.mrf.mxu0
  %v5340 = vadd.f32 0.0, %v5339
  %v5341 = vpop.f32.mrf.mxu0
  %5342 = vmatprep.mubr.bf16.mxu0 0
  %5343 = vmatmul.mubr.bf16.gmra.mxu0 %v1474
  %v5344 = vpop.f32.mrf.mxu0
  %v5345 = vadd.f32 0.0, %v5344
  %v5346 = vpop.f32.mrf.mxu0
  %v5347 = vpop.f32.mrf.mxu0
  %v5348 = vadd.f32 0.0, %v5347
  %v5349 = vpop.f32.mrf.mxu0
  %5350 = vmatprep.mubr.bf16.mxu0 0
  %5351 = vmatmul.mubr.bf16.gmra.mxu0 %v1477
  %v5352 = vpop.f32.mrf.mxu0
  %v5353 = vadd.f32 0.0, %v5352
  %v5354 = vpop.f32.mrf.mxu0
  %v5355 = vpop.f32.mrf.mxu0
  %v5356 = vadd.f32 0.0, %v5355
  %v5357 = vpop.f32.mrf.mxu0
  %5358 = vmatprep.mubr.bf16.mxu0 0
  %5359 = vmatmul.mubr.bf16.gmra.mxu0 %v1480
  %v5360 = vpop.f32.mrf.mxu0
  %v5361 = vadd.f32 0.0, %v5360
  %v5362 = vpop.f32.mrf.mxu0
  %v5363 = vpop.f32.mrf.mxu0
  %v5364 = vadd.f32 0.0, %v5363
  %v5365 = vpop.f32.mrf.mxu0
  %5366 = vmatprep.mubr.bf16.mxu0 0
  %5367 = vmatmul.mubr.bf16.gmra.mxu0 %v1483
  %v5368 = vpop.f32.mrf.mxu0
  %v5369 = vadd.f32 0.0, %v5368
  %v5370 = vpop.f32.mrf.mxu0
  %v5371 = vpop.f32.mrf.mxu0
  %v5372 = vadd.f32 0.0, %v5371
  %v5373 = vpop.f32.mrf.mxu0
  %5374 = vmatprep.mubr.bf16.mxu0 0
  %5375 = vmatmul.mubr.bf16.gmra.mxu0 %v1486
  %v5376 = vpop.f32.mrf.mxu0
  %v5377 = vadd.f32 0.0, %v5376
  %v5378 = vpop.f32.mrf.mxu0
  %v5379 = vpop.f32.mrf.mxu0
  %v5380 = vadd.f32 0.0, %v5379
  %v5381 = vpop.f32.mrf.mxu0
  %5382 = vdwg.mxu0
  %v5383 = vmax.f32 %v3886, %v4233
  %v5384 = vmax.f32 %v3887, %v4236
  %v5385 = vmax.f32 %v3888, %v4241
  %v5386 = vmax.f32 %v3889, %v4244
  %v5387 = vmax.f32 %v3890, %v4249
  %v5388 = vmax.f32 %v3891, %v4252
  %v5389 = vmax.f32 %v3892, %v4257
  %v5390 = vmax.f32 %v3893, %v4260
  %v5391 = vmax.f32 %v3894, %v4265
  %v5392 = vmax.f32 %v3895, %v4268
  %v5393 = vmax.f32 %v3896, %v4273
  %v5394 = vmax.f32 %v3897, %v4276
  %v5395 = vmax.f32 %v3898, %v4281
  %v5396 = vmax.f32 %v3899, %v4284
  %v5397 = vmax.f32 %v3900, %v4289
  %v5398 = vmax.f32 %v3901, %v4292
  %v5399 = vmax.f32 %v3902, %v4297
  %v5400 = vmax.f32 %v3903, %v4300
  %v5401 = vmax.f32 %v3904, %v4305
  %v5402 = vmax.f32 %v3905, %v4308
  %v5403 = vmax.f32 %v3906, %v4313
  %v5404 = vmax.f32 %v3907, %v4316
  %v5405 = vmax.f32 %v3908, %v4321
  %v5406 = vmax.f32 %v3909, %v4324
  %v5407 = vmax.f32 %v3910, %v4329
  %v5408 = vmax.f32 %v3911, %v4332
  %v5409 = vmax.f32 %v3912, %v4337
  %v5410 = vmax.f32 %v3913, %v4340
  %v5411 = vmax.f32 %v3914, %v4345
  %v5412 = vmax.f32 %v3915, %v4348
  %v5413 = vmax.f32 %v3916, %v4353
  %v5414 = vmax.f32 %v3917, %v4356
  %v5415 = vmax.f32 %v3918, %v4361
  %v5416 = vmax.f32 %v3919, %v4364
  %v5417 = vmax.f32 %v3920, %v4369
  %v5418 = vmax.f32 %v3921, %v4372
  %v5419 = vmax.f32 %v3922, %v4377
  %v5420 = vmax.f32 %v3923, %v4380
  %v5421 = vmax.f32 %v3924, %v4385
  %v5422 = vmax.f32 %v3925, %v4388
  %v5423 = vmax.f32 %v3926, %v4393
  %v5424 = vmax.f32 %v3927, %v4396
  %v5425 = vmax.f32 %v3928, %v4401
  %v5426 = vmax.f32 %v3929, %v4404
  %v5427 = vmax.f32 %v3930, %v4409
  %v5428 = vmax.f32 %v3931, %v4412
  %v5429 = vmax.f32 %v3932, %v4417
  %v5430 = vmax.f32 %v3933, %v4420
  %v5431 = vmax.f32 %v3934, %v4425
  %v5432 = vmax.f32 %v3935, %v4428
  %v5433 = vmax.f32 %v3936, %v4433
  %v5434 = vmax.f32 %v3937, %v4436
  %v5435 = vmax.f32 %v3938, %v4441
  %v5436 = vmax.f32 %v3939, %v4444
  %v5437 = vmax.f32 %v3940, %v4449
  %v5438 = vmax.f32 %v3941, %v4452
  %v5439 = vmax.f32 %v3942, %v4457
  %v5440 = vmax.f32 %v3943, %v4460
  %v5441 = vmax.f32 %v3944, %v4465
  %v5442 = vmax.f32 %v3945, %v4468
  %v5443 = vmax.f32 %v3946, %v4473
  %v5444 = vmax.f32 %v3947, %v4476
  %v5445 = vmax.f32 %v3948, %v4481
  %v5446 = vmax.f32 %v3949, %v4484
  %v5447 = vmax.f32 %v3950, %v4489
  %v5448 = vmax.f32 %v3951, %v4492
  %v5449 = vmax.f32 %v3952, %v4497
  %v5450 = vmax.f32 %v3953, %v4500
  %v5451 = vmax.f32 %v3954, %v4505
  %v5452 = vmax.f32 %v3955, %v4508
  %v5453 = vmax.f32 %v3956, %v4513
  %v5454 = vmax.f32 %v3957, %v4516
  %v5455 = vmax.f32 %v3958, %v4521
  %v5456 = vmax.f32 %v3959, %v4524
  %v5457 = vmax.f32 %v3960, %v4529
  %v5458 = vmax.f32 %v3961, %v4532
  %v5459 = vmax.f32 %v3962, %v4537
  %v5460 = vmax.f32 %v3963, %v4540
  %v5461 = vmax.f32 %v3964, %v4545
  %v5462 = vmax.f32 %v3965, %v4548
  %v5463 = vmax.f32 %v3966, %v4553
  %v5464 = vmax.f32 %v3967, %v4556
  %v5465 = vmax.f32 %v3968, %v4561
  %v5466 = vmax.f32 %v3969, %v4564
  %v5467 = vmax.f32 %v3970, %v4569
  %v5468 = vmax.f32 %v3971, %v4572
  %v5469 = vmax.f32 %v3972, %v4577
  %v5470 = vmax.f32 %v3973, %v4580
  %v5471 = vmax.f32 %v3974, %v4585
  %v5472 = vmax.f32 %v3975, %v4588
  %v5473 = vmax.f32 %v3976, %v4593
  %v5474 = vmax.f32 %v3977, %v4596
  %v5475 = vmax.f32 %v3978, %v4601
  %v5476 = vmax.f32 %v3979, %v4604
  %v5477 = vmax.f32 %v3980, %v4609
  %v5478 = vmax.f32 %v3981, %v4612
  %v5479 = vmax.f32 %v3982, %v4617
  %v5480 = vmax.f32 %v3983, %v4620
  %v5481 = vmax.f32 %v3984, %v4625
  %v5482 = vmax.f32 %v3985, %v4628
  %v5483 = vmax.f32 %v3986, %v4633
  %v5484 = vmax.f32 %v3987, %v4636
  %v5485 = vmax.f32 %v3988, %v4641
  %v5486 = vmax.f32 %v3989, %v4644
  %v5487 = vmax.f32 %v3990, %v4649
  %v5488 = vmax.f32 %v3991, %v4652
  %v5489 = vmax.f32 %v3992, %v4657
  %v5490 = vmax.f32 %v3993, %v4660
  %v5491 = vmax.f32 %v3994, %v4665
  %v5492 = vmax.f32 %v3995, %v4668
  %v5493 = vmax.f32 %v3996, %v4673
  %v5494 = vmax.f32 %v3997, %v4676
  %v5495 = vmax.f32 %v3998, %v4681
  %v5496 = vmax.f32 %v3999, %v4684
  %v5497 = vmax.f32 %v4000, %v4689
  %v5498 = vmax.f32 %v4001, %v4692
  %v5499 = vmax.f32 %v4002, %v4697
  %v5500 = vmax.f32 %v4003, %v4700
  %v5501 = vmax.f32 %v4004, %v4705
  %v5502 = vmax.f32 %v4005, %v4708
  %v5503 = vmax.f32 %v4006, %v4713
  %v5504 = vmax.f32 %v4007, %v4716
  %v5505 = vmax.f32 %v4008, %v4721
  %v5506 = vmax.f32 %v4009, %v4724
  %v5507 = vmax.f32 %v4010, %v4729
  %v5508 = vmax.f32 %v4011, %v4732
  %v5509 = vmax.f32 %v4012, %v4737
  %v5510 = vmax.f32 %v4013, %v4740
  %v5511 = vmax.f32 %v4014, %v4745
  %v5512 = vmax.f32 %v4015, %v4748
  %v5513 = vmax.f32 %v4016, %v4753
  %v5514 = vmax.f32 %v4017, %v4756
  %v5515 = vmax.f32 %v4018, %v4761
  %v5516 = vmax.f32 %v4019, %v4764
  %v5517 = vmax.f32 %v4020, %v4769
  %v5518 = vmax.f32 %v4021, %v4772
  %v5519 = vmax.f32 %v4022, %v4777
  %v5520 = vmax.f32 %v4023, %v4780
  %v5521 = vmax.f32 %v4024, %v4785
  %v5522 = vmax.f32 %v4025, %v4788
  %v5523 = vmax.f32 %v4026, %v4793
  %v5524 = vmax.f32 %v4027, %v4796
  %v5525 = vmax.f32 %v4028, %v4801
  %v5526 = vmax.f32 %v4029, %v4804
  %v5527 = vmax.f32 %v4030, %v4809
  %v5528 = vmax.f32 %v4031, %v4812
  %v5529 = vmax.f32 %v4032, %v4817
  %v5530 = vmax.f32 %v4033, %v4820
  %v5531 = vmax.f32 %v4034, %v4825
  %v5532 = vmax.f32 %v4035, %v4828
  %v5533 = vmax.f32 %v4036, %v4833
  %v5534 = vmax.f32 %v4037, %v4836
  %v5535 = vmax.f32 %v4038, %v4841
  %v5536 = vmax.f32 %v4039, %v4844
  %v5537 = vmax.f32 %v4040, %v4849
  %v5538 = vmax.f32 %v4041, %v4852
  %v5539 = vmax.f32 %v4042, %v4857
  %v5540 = vmax.f32 %v4043, %v4860
  %v5541 = vmax.f32 %v4044, %v4865
  %v5542 = vmax.f32 %v4045, %v4868
  %v5543 = vmax.f32 %v4046, %v4873
  %v5544 = vmax.f32 %v4047, %v4876
  %v5545 = vmax.f32 %v4048, %v4881
  %v5546 = vmax.f32 %v4049, %v4884
  %v5547 = vmax.f32 %v4050, %v4889
  %v5548 = vmax.f32 %v4051, %v4892
  %v5549 = vmax.f32 %v4052, %v4897
  %v5550 = vmax.f32 %v4053, %v4900
  %v5551 = vmax.f32 %v4054, %v4905
  %v5552 = vmax.f32 %v4055, %v4908
  %v5553 = vmax.f32 %v4056, %v4913
  %v5554 = vmax.f32 %v4057, %v4916
  %v5555 = vmax.f32 %v4058, %v4921
  %v5556 = vmax.f32 %v4059, %v4924
  %v5557 = vmax.f32 %v4060, %v4929
  %v5558 = vmax.f32 %v4061, %v4932
  %v5559 = vmax.f32 %v4062, %v4937
  %v5560 = vmax.f32 %v4063, %v4940
  %v5561 = vmax.f32 %v4064, %v4945
  %v5562 = vmax.f32 %v4065, %v4948
  %v5563 = vmax.f32 %v4066, %v4953
  %v5564 = vmax.f32 %v4067, %v4956
  %v5565 = vmax.f32 %v4068, %v4961
  %v5566 = vmax.f32 %v4069, %v4964
  %v5567 = vmax.f32 %v4070, %v4969
  %v5568 = vmax.f32 %v4071, %v4972
  %v5569 = vmax.f32 %v4072, %v4977
  %v5570 = vmax.f32 %v4073, %v4980
  %v5571 = vmax.f32 %v4074, %v4985
  %v5572 = vmax.f32 %v4075, %v4988
  %v5573 = vmax.f32 %v4076, %v4993
  %v5574 = vmax.f32 %v4077, %v4996
  %v5575 = vmax.f32 %v4078, %v5001
  %v5576 = vmax.f32 %v4079, %v5004
  %v5577 = vmax.f32 %v4080, %v5009
  %v5578 = vmax.f32 %v4081, %v5012
  %v5579 = vmax.f32 %v4082, %v5017
  %v5580 = vmax.f32 %v4083, %v5020
  %v5581 = vmax.f32 %v4084, %v5025
  %v5582 = vmax.f32 %v4085, %v5028
  %v5583 = vmax.f32 %v4086, %v5033
  %v5584 = vmax.f32 %v4087, %v5036
  %v5585 = vmax.f32 %v4088, %v5041
  %v5586 = vmax.f32 %v4089, %v5044
  %v5587 = vmax.f32 %v4090, %v5049
  %v5588 = vmax.f32 %v4091, %v5052
  %v5589 = vmax.f32 %v4092, %v5057
  %v5590 = vmax.f32 %v4093, %v5060
  %v5591 = vmax.f32 %v4094, %v5065
  %v5592 = vmax.f32 %v4095, %v5068
  %v5593 = vmax.f32 %v4096, %v5073
  %v5594 = vmax.f32 %v4097, %v5076
  %v5595 = vmax.f32 %v4098, %v5081
  %v5596 = vmax.f32 %v4099, %v5084
  %v5597 = vmax.f32 %v4100, %v5089
  %v5598 = vmax.f32 %v4101, %v5092
  %v5599 = vmax.f32 %v4102, %v5097
  %v5600 = vmax.f32 %v4103, %v5100
  %v5601 = vmax.f32 %v4104, %v5105
  %v5602 = vmax.f32 %v4105, %v5108
  %v5603 = vmax.f32 %v4106, %v5113
  %v5604 = vmax.f32 %v4107, %v5116
  %v5605 = vmax.f32 %v4108, %v5121
  %v5606 = vmax.f32 %v4109, %v5124
  %v5607 = vmax.f32 %v4110, %v5129
  %v5608 = vmax.f32 %v4111, %v5132
  %v5609 = vmax.f32 %v4112, %v5137
  %v5610 = vmax.f32 %v4113, %v5140
  %v5611 = vmax.f32 %v4114, %v5145
  %v5612 = vmax.f32 %v4115, %v5148
  %v5613 = vmax.f32 %v4116, %v5153
  %v5614 = vmax.f32 %v4117, %v5156
  %v5615 = vmax.f32 %v4118, %v5161
  %v5616 = vmax.f32 %v4119, %v5164
  %v5617 = vmax.f32 %v4120, %v5169
  %v5618 = vmax.f32 %v4121, %v5172
  %v5619 = vmax.f32 %v4122, %v5177
  %v5620 = vmax.f32 %v4123, %v5180
  %v5621 = vmax.f32 %v4124, %v5185
  %v5622 = vmax.f32 %v4125, %v5188
  %v5623 = vmax.f32 %v4126, %v5193
  %v5624 = vmax.f32 %v4127, %v5196
  %v5625 = vmax.f32 %v4128, %v5201
  %v5626 = vmax.f32 %v4129, %v5204
  %v5627 = vmax.f32 %v4130, %v5209
  %v5628 = vmax.f32 %v4131, %v5212
  %v5629 = vmax.f32 %v4132, %v5217
  %v5630 = vmax.f32 %v4133, %v5220
  %v5631 = vmax.f32 %v4134, %v5225
  %v5632 = vmax.f32 %v4135, %v5228
  %v5633 = vmax.f32 %v4136, %v5233
  %v5634 = vmax.f32 %v4137, %v5236
  %v5635 = vmax.f32 %v4138, %v5241
  %v5636 = vmax.f32 %v4139, %v5244
  %v5637 = vmax.f32 %v4140, %v5249
  %v5638 = vmax.f32 %v4141, %v5252
  %v5639 = vmax.f32 %v4142, %v5257
  %v5640 = vmax.f32 %v4143, %v5260
  %v5641 = vmax.f32 %v4144, %v5265
  %v5642 = vmax.f32 %v4145, %v5268
  %v5643 = vmax.f32 %v4146, %v5273
  %v5644 = vmax.f32 %v4147, %v5276
  %v5645 = vmax.f32 %v4148, %v5281
  %v5646 = vmax.f32 %v4149, %v5284
  %v5647 = vmax.f32 %v4150, %v5289
  %v5648 = vmax.f32 %v4151, %v5292
  %v5649 = vmax.f32 %v4152, %v5297
  %v5650 = vmax.f32 %v4153, %v5300
  %v5651 = vmax.f32 %v4154, %v5305
  %v5652 = vmax.f32 %v4155, %v5308
  %v5653 = vmax.f32 %v4156, %v5313
  %v5654 = vmax.f32 %v4157, %v5316
  %v5655 = vmax.f32 %v4158, %v5321
  %v5656 = vmax.f32 %v4159, %v5324
  %v5657 = vmax.f32 %v4160, %v5329
  %v5658 = vmax.f32 %v4161, %v5332
  %v5659 = vmax.f32 %v4162, %v5337
  %v5660 = vmax.f32 %v4163, %v5340
  %v5661 = vmax.f32 %v4164, %v5345
  %v5662 = vmax.f32 %v4165, %v5348
  %v5663 = vmax.f32 %v4166, %v5353
  %v5664 = vmax.f32 %v4167, %v5356
  %v5665 = vmax.f32 %v4168, %v5361
  %v5666 = vmax.f32 %v4169, %v5364
  %v5667 = vmax.f32 %v4170, %v5369
  %v5668 = vmax.f32 %v4171, %v5372
  %v5669 = vmax.f32 %v4172, %v5377
  %v5670 = vmax.f32 %v4173, %v5380
  %s5671 = scalar_lea.vmem %s1, 60
  %v5672 = vld [vmem:[%s5671] sm:$0xf]
  %v5673 = vld [vmem:[%s5671 + $0x4] sm:$0xf]
  %v5674 = vld [vmem:[%s5671 + $0x8] sm:$0xf]
  %v5675 = vld [vmem:[%s5671 + $0xc] sm:$0xf]
  %v5676 = vld [vmem:[%s5671 + $0x10] sm:$0x3]
  %v5682 = vunpack.c.l.b16 %v5672
  %v5683 = vunpack.c.l.b16 %v5673
  %v5684 = vunpack.c.l.b16 %v5674
  %v5685 = vunpack.c.l.b16 %v5675
  %v5686 = vunpack.c.l.b16 %v5676
  %v5687 = vpack.c.b16 %v5683, %v5682
  %v5688 = vpack.c.b16 %v5685, %v5684
  %v5689 = vpack.c.b16 %v5686, %v5686
  %v5693 = vsel %vm1488, %v5689, 0
  %5695 = vmatprep.subr.bf16.mxu0 0
  %5696 = vmatpush1.bf16.msra.mxu0 0
  %5697 = vmatprep.subr.bf16.mxu0 0
  %5698 = vmatpush1.bf16.msra.mxu0 0
  %5699 = vmatprep.subr.bf16.mxu0 0
  %5700 = vmatpush1.bf16.msra.mxu0 0
  %5701 = vmatprep.subr.bf16.mxu0 0
  %5702 = vmatpush1.bf16.msra.mxu0 0
  %5703 = vmatprep.subr.bf16.mxu0 0
  %5704 = vmatpush1.bf16.msra.mxu0 0
  %5705 = vmatprep.subr.bf16.mxu0 0
  %5706 = vmatpush1.bf16.msra.mxu0 %v5693
  %5707 = vmatprep.subr.bf16.mxu0 0
  %5708 = vmatpush1.bf16.msra.mxu0 %v5688
  %5709 = vmatprep.subr.bf16.mxu0 0
  %5710 = vmatpush1.bf16.msra.mxu0 %v5687
  %5711 = vmatprep.subr.bf16.mxu0 0
  %5712 = vmatpush2.bf16.msra.mxu0 0
  %5713 = vmatprep.subr.bf16.mxu0 0
  %5714 = vmatpush2.bf16.msra.mxu0 0
  %5715 = vmatprep.subr.bf16.mxu0 0
  %5716 = vmatpush2.bf16.msra.mxu0 0
  %5717 = vmatprep.subr.bf16.mxu0 0
  %5718 = vmatpush2.bf16.msra.mxu0 0
  %5719 = vmatprep.subr.bf16.mxu0 0
  %5720 = vmatpush2.bf16.msra.mxu0 0
  %5721 = vmatprep.subr.bf16.mxu0 0
  %5722 = vmatpush2.bf16.msra.mxu0 0
  %5723 = vmatprep.subr.bf16.mxu0 0
  %5724 = vmatpush2.bf16.msra.mxu0 0
  %5725 = vmatprep.subr.bf16.mxu0 0
  %5726 = vmatpush2.bf16.msra.mxu0 0
  %5727 = vmatprep.mubr.bf16.mxu0 0
  %5728 = vmatmul.mubr.bf16.gmra.mxu0 %v1057
  %v5729 = vpop.f32.mrf.mxu0
  %v5730 = vadd.f32 0.0, %v5729
  %v5731 = vpop.f32.mrf.mxu0
  %v5732 = vpop.f32.mrf.mxu0
  %v5733 = vadd.f32 0.0, %v5732
  %v5734 = vpop.f32.mrf.mxu0
  %5735 = vmatprep.mubr.bf16.mxu0 0
  %5736 = vmatmul.mubr.bf16.gmra.mxu0 %v1060
  %v5737 = vpop.f32.mrf.mxu0
  %v5738 = vadd.f32 0.0, %v5737
  %v5739 = vpop.f32.mrf.mxu0
  %v5740 = vpop.f32.mrf.mxu0
  %v5741 = vadd.f32 0.0, %v5740
  %v5742 = vpop.f32.mrf.mxu0
  %5743 = vmatprep.mubr.bf16.mxu0 0
  %5744 = vmatmul.mubr.bf16.gmra.mxu0 %v1063
  %v5745 = vpop.f32.mrf.mxu0
  %v5746 = vadd.f32 0.0, %v5745
  %v5747 = vpop.f32.mrf.mxu0
  %v5748 = vpop.f32.mrf.mxu0
  %v5749 = vadd.f32 0.0, %v5748
  %v5750 = vpop.f32.mrf.mxu0
  %5751 = vmatprep.mubr.bf16.mxu0 0
  %5752 = vmatmul.mubr.bf16.gmra.mxu0 %v1066
  %v5753 = vpop.f32.mrf.mxu0
  %v5754 = vadd.f32 0.0, %v5753
  %v5755 = vpop.f32.mrf.mxu0
  %v5756 = vpop.f32.mrf.mxu0
  %v5757 = vadd.f32 0.0, %v5756
  %v5758 = vpop.f32.mrf.mxu0
  %5759 = vmatprep.mubr.bf16.mxu0 0
  %5760 = vmatmul.mubr.bf16.gmra.mxu0 %v1069
  %v5761 = vpop.f32.mrf.mxu0
  %v5762 = vadd.f32 0.0, %v5761
  %v5763 = vpop.f32.mrf.mxu0
  %v5764 = vpop.f32.mrf.mxu0
  %v5765 = vadd.f32 0.0, %v5764
  %v5766 = vpop.f32.mrf.mxu0
  %5767 = vmatprep.mubr.bf16.mxu0 0
  %5768 = vmatmul.mubr.bf16.gmra.mxu0 %v1072
  %v5769 = vpop.f32.mrf.mxu0
  %v5770 = vadd.f32 0.0, %v5769
  %v5771 = vpop.f32.mrf.mxu0
  %v5772 = vpop.f32.mrf.mxu0
  %v5773 = vadd.f32 0.0, %v5772
  %v5774 = vpop.f32.mrf.mxu0
  %5775 = vmatprep.mubr.bf16.mxu0 0
  %5776 = vmatmul.mubr.bf16.gmra.mxu0 %v1075
  %v5777 = vpop.f32.mrf.mxu0
  %v5778 = vadd.f32 0.0, %v5777
  %v5779 = vpop.f32.mrf.mxu0
  %v5780 = vpop.f32.mrf.mxu0
  %v5781 = vadd.f32 0.0, %v5780
  %v5782 = vpop.f32.mrf.mxu0
  %5783 = vmatprep.mubr.bf16.mxu0 0
  %5784 = vmatmul.mubr.bf16.gmra.mxu0 %v1078
  %v5785 = vpop.f32.mrf.mxu0
  %v5786 = vadd.f32 0.0, %v5785
  %v5787 = vpop.f32.mrf.mxu0
  %v5788 = vpop.f32.mrf.mxu0
  %v5789 = vadd.f32 0.0, %v5788
  %v5790 = vpop.f32.mrf.mxu0
  %5791 = vmatprep.mubr.bf16.mxu0 0
  %5792 = vmatmul.mubr.bf16.gmra.mxu0 %v1081
  %v5793 = vpop.f32.mrf.mxu0
  %v5794 = vadd.f32 0.0, %v5793
  %v5795 = vpop.f32.mrf.mxu0
  %v5796 = vpop.f32.mrf.mxu0
  %v5797 = vadd.f32 0.0, %v5796
  %v5798 = vpop.f32.mrf.mxu0
  %5799 = vmatprep.mubr.bf16.mxu0 0
  %5800 = vmatmul.mubr.bf16.gmra.mxu0 %v1084
  %v5801 = vpop.f32.mrf.mxu0
  %v5802 = vadd.f32 0.0, %v5801
  %v5803 = vpop.f32.mrf.mxu0
  %v5804 = vpop.f32.mrf.mxu0
  %v5805 = vadd.f32 0.0, %v5804
  %v5806 = vpop.f32.mrf.mxu0
  %5807 = vmatprep.mubr.bf16.mxu0 0
  %5808 = vmatmul.mubr.bf16.gmra.mxu0 %v1087
  %v5809 = vpop.f32.mrf.mxu0
  %v5810 = vadd.f32 0.0, %v5809
  %v5811 = vpop.f32.mrf.mxu0
  %v5812 = vpop.f32.mrf.mxu0
  %v5813 = vadd.f32 0.0, %v5812
  %v5814 = vpop.f32.mrf.mxu0
  %5815 = vmatprep.mubr.bf16.mxu0 0
  %5816 = vmatmul.mubr.bf16.gmra.mxu0 %v1090
  %v5817 = vpop.f32.mrf.mxu0
  %v5818 = vadd.f32 0.0, %v5817
  %v5819 = vpop.f32.mrf.mxu0
  %v5820 = vpop.f32.mrf.mxu0
  %v5821 = vadd.f32 0.0, %v5820
  %v5822 = vpop.f32.mrf.mxu0
  %5823 = vmatprep.mubr.bf16.mxu0 0
  %5824 = vmatmul.mubr.bf16.gmra.mxu0 %v1093
  %v5825 = vpop.f32.mrf.mxu0
  %v5826 = vadd.f32 0.0, %v5825
  %v5827 = vpop.f32.mrf.mxu0
  %v5828 = vpop.f32.mrf.mxu0
  %v5829 = vadd.f32 0.0, %v5828
  %v5830 = vpop.f32.mrf.mxu0
  %5831 = vmatprep.mubr.bf16.mxu0 0
  %5832 = vmatmul.mubr.bf16.gmra.mxu0 %v1096
  %v5833 = vpop.f32.mrf.mxu0
  %v5834 = vadd.f32 0.0, %v5833
  %v5835 = vpop.f32.mrf.mxu0
  %v5836 = vpop.f32.mrf.mxu0
  %v5837 = vadd.f32 0.0, %v5836
  %v5838 = vpop.f32.mrf.mxu0
  %5839 = vmatprep.mubr.bf16.mxu0 0
  %5840 = vmatmul.mubr.bf16.gmra.mxu0 %v1099
  %v5841 = vpop.f32.mrf.mxu0
  %v5842 = vadd.f32 0.0, %v5841
  %v5843 = vpop.f32.mrf.mxu0
  %v5844 = vpop.f32.mrf.mxu0
  %v5845 = vadd.f32 0.0, %v5844
  %v5846 = vpop.f32.mrf.mxu0
  %5847 = vmatprep.mubr.bf16.mxu0 0
  %5848 = vmatmul.mubr.bf16.gmra.mxu0 %v1102
  %v5849 = vpop.f32.mrf.mxu0
  %v5850 = vadd.f32 0.0, %v5849
  %v5851 = vpop.f32.mrf.mxu0
  %v5852 = vpop.f32.mrf.mxu0
  %v5853 = vadd.f32 0.0, %v5852
  %v5854 = vpop.f32.mrf.mxu0
  %5855 = vmatprep.mubr.bf16.mxu0 0
  %5856 = vmatmul.mubr.bf16.gmra.mxu0 %v1105
  %v5857 = vpop.f32.mrf.mxu0
  %v5858 = vadd.f32 0.0, %v5857
  %v5859 = vpop.f32.mrf.mxu0
  %v5860 = vpop.f32.mrf.mxu0
  %v5861 = vadd.f32 0.0, %v5860
  %v5862 = vpop.f32.mrf.mxu0
  %5863 = vmatprep.mubr.bf16.mxu0 0
  %5864 = vmatmul.mubr.bf16.gmra.mxu0 %v1108
  %v5865 = vpop.f32.mrf.mxu0
  %v5866 = vadd.f32 0.0, %v5865
  %v5867 = vpop.f32.mrf.mxu0
  %v5868 = vpop.f32.mrf.mxu0
  %v5869 = vadd.f32 0.0, %v5868
  %v5870 = vpop.f32.mrf.mxu0
  %5871 = vmatprep.mubr.bf16.mxu0 0
  %5872 = vmatmul.mubr.bf16.gmra.mxu0 %v1111
  %v5873 = vpop.f32.mrf.mxu0
  %v5874 = vadd.f32 0.0, %v5873
  %v5875 = vpop.f32.mrf.mxu0
  %v5876 = vpop.f32.mrf.mxu0
  %v5877 = vadd.f32 0.0, %v5876
  %v5878 = vpop.f32.mrf.mxu0
  %5879 = vmatprep.mubr.bf16.mxu0 0
  %5880 = vmatmul.mubr.bf16.gmra.mxu0 %v1114
  %v5881 = vpop.f32.mrf.mxu0
  %v5882 = vadd.f32 0.0, %v5881
  %v5883 = vpop.f32.mrf.mxu0
  %v5884 = vpop.f32.mrf.mxu0
  %v5885 = vadd.f32 0.0, %v5884
  %v5886 = vpop.f32.mrf.mxu0
  %5887 = vmatprep.mubr.bf16.mxu0 0
  %5888 = vmatmul.mubr.bf16.gmra.mxu0 %v1117
  %v5889 = vpop.f32.mrf.mxu0
  %v5890 = vadd.f32 0.0, %v5889
  %v5891 = vpop.f32.mrf.mxu0
  %v5892 = vpop.f32.mrf.mxu0
  %v5893 = vadd.f32 0.0, %v5892
  %v5894 = vpop.f32.mrf.mxu0
  %5895 = vmatprep.mubr.bf16.mxu0 0
  %5896 = vmatmul.mubr.bf16.gmra.mxu0 %v1120
  %v5897 = vpop.f32.mrf.mxu0
  %v5898 = vadd.f32 0.0, %v5897
  %v5899 = vpop.f32.mrf.mxu0
  %v5900 = vpop.f32.mrf.mxu0
  %v5901 = vadd.f32 0.0, %v5900
  %v5902 = vpop.f32.mrf.mxu0
  %5903 = vmatprep.mubr.bf16.mxu0 0
  %5904 = vmatmul.mubr.bf16.gmra.mxu0 %v1123
  %v5905 = vpop.f32.mrf.mxu0
  %v5906 = vadd.f32 0.0, %v5905
  %v5907 = vpop.f32.mrf.mxu0
  %v5908 = vpop.f32.mrf.mxu0
  %v5909 = vadd.f32 0.0, %v5908
  %v5910 = vpop.f32.mrf.mxu0
  %5911 = vmatprep.mubr.bf16.mxu0 0
  %5912 = vmatmul.mubr.bf16.gmra.mxu0 %v1126
  %v5913 = vpop.f32.mrf.mxu0
  %v5914 = vadd.f32 0.0, %v5913
  %v5915 = vpop.f32.mrf.mxu0
  %v5916 = vpop.f32.mrf.mxu0
  %v5917 = vadd.f32 0.0, %v5916
  %v5918 = vpop.f32.mrf.mxu0
  %5919 = vmatprep.mubr.bf16.mxu0 0
  %5920 = vmatmul.mubr.bf16.gmra.mxu0 %v1129
  %v5921 = vpop.f32.mrf.mxu0
  %v5922 = vadd.f32 0.0, %v5921
  %v5923 = vpop.f32.mrf.mxu0
  %v5924 = vpop.f32.mrf.mxu0
  %v5925 = vadd.f32 0.0, %v5924
  %v5926 = vpop.f32.mrf.mxu0
  %5927 = vmatprep.mubr.bf16.mxu0 0
  %5928 = vmatmul.mubr.bf16.gmra.mxu0 %v1132
  %v5929 = vpop.f32.mrf.mxu0
  %v5930 = vadd.f32 0.0, %v5929
  %v5931 = vpop.f32.mrf.mxu0
  %v5932 = vpop.f32.mrf.mxu0
  %v5933 = vadd.f32 0.0, %v5932
  %v5934 = vpop.f32.mrf.mxu0
  %5935 = vmatprep.mubr.bf16.mxu0 0
  %5936 = vmatmul.mubr.bf16.gmra.mxu0 %v1135
  %v5937 = vpop.f32.mrf.mxu0
  %v5938 = vadd.f32 0.0, %v5937
  %v5939 = vpop.f32.mrf.mxu0
  %v5940 = vpop.f32.mrf.mxu0
  %v5941 = vadd.f32 0.0, %v5940
  %v5942 = vpop.f32.mrf.mxu0
  %5943 = vmatprep.mubr.bf16.mxu0 0
  %5944 = vmatmul.mubr.bf16.gmra.mxu0 %v1138
  %v5945 = vpop.f32.mrf.mxu0
  %v5946 = vadd.f32 0.0, %v5945
  %v5947 = vpop.f32.mrf.mxu0
  %v5948 = vpop.f32.mrf.mxu0
  %v5949 = vadd.f32 0.0, %v5948
  %v5950 = vpop.f32.mrf.mxu0
  %5951 = vmatprep.mubr.bf16.mxu0 0
  %5952 = vmatmul.mubr.bf16.gmra.mxu0 %v1141
  %v5953 = vpop.f32.mrf.mxu0
  %v5954 = vadd.f32 0.0, %v5953
  %v5955 = vpop.f32.mrf.mxu0
  %v5956 = vpop.f32.mrf.mxu0
  %v5957 = vadd.f32 0.0, %v5956
  %v5958 = vpop.f32.mrf.mxu0
  %5959 = vmatprep.mubr.bf16.mxu0 0
  %5960 = vmatmul.mubr.bf16.gmra.mxu0 %v1144
  %v5961 = vpop.f32.mrf.mxu0
  %v5962 = vadd.f32 0.0, %v5961
  %v5963 = vpop.f32.mrf.mxu0
  %v5964 = vpop.f32.mrf.mxu0
  %v5965 = vadd.f32 0.0, %v5964
  %v5966 = vpop.f32.mrf.mxu0
  %5967 = vmatprep.mubr.bf16.mxu0 0
  %5968 = vmatmul.mubr.bf16.gmra.mxu0 %v1147
  %v5969 = vpop.f32.mrf.mxu0
  %v5970 = vadd.f32 0.0, %v5969
  %v5971 = vpop.f32.mrf.mxu0
  %v5972 = vpop.f32.mrf.mxu0
  %v5973 = vadd.f32 0.0, %v5972
  %v5974 = vpop.f32.mrf.mxu0
  %5975 = vmatprep.mubr.bf16.mxu0 0
  %5976 = vmatmul.mubr.bf16.gmra.mxu0 %v1150
  %v5977 = vpop.f32.mrf.mxu0
  %v5978 = vadd.f32 0.0, %v5977
  %v5979 = vpop.f32.mrf.mxu0
  %v5980 = vpop.f32.mrf.mxu0
  %v5981 = vadd.f32 0.0, %v5980
  %v5982 = vpop.f32.mrf.mxu0
  %5983 = vmatprep.mubr.bf16.mxu0 0
  %5984 = vmatmul.mubr.bf16.gmra.mxu0 %v1153
  %v5985 = vpop.f32.mrf.mxu0
  %v5986 = vadd.f32 0.0, %v5985
  %v5987 = vpop.f32.mrf.mxu0
  %v5988 = vpop.f32.mrf.mxu0
  %v5989 = vadd.f32 0.0, %v5988
  %v5990 = vpop.f32.mrf.mxu0
  %5991 = vmatprep.mubr.bf16.mxu0 0
  %5992 = vmatmul.mubr.bf16.gmra.mxu0 %v1156
  %v5993 = vpop.f32.mrf.mxu0
  %v5994 = vadd.f32 0.0, %v5993
  %v5995 = vpop.f32.mrf.mxu0
  %v5996 = vpop.f32.mrf.mxu0
  %v5997 = vadd.f32 0.0, %v5996
  %v5998 = vpop.f32.mrf.mxu0
  %5999 = vmatprep.mubr.bf16.mxu0 0
  %6000 = vmatmul.mubr.bf16.gmra.mxu0 %v1159
  %v6001 = vpop.f32.mrf.mxu0
  %v6002 = vadd.f32 0.0, %v6001
  %v6003 = vpop.f32.mrf.mxu0
  %v6004 = vpop.f32.mrf.mxu0
  %v6005 = vadd.f32 0.0, %v6004
  %v6006 = vpop.f32.mrf.mxu0
  %6007 = vmatprep.mubr.bf16.mxu0 0
  %6008 = vmatmul.mubr.bf16.gmra.mxu0 %v1162
  %v6009 = vpop.f32.mrf.mxu0
  %v6010 = vadd.f32 0.0, %v6009
  %v6011 = vpop.f32.mrf.mxu0
  %v6012 = vpop.f32.mrf.mxu0
  %v6013 = vadd.f32 0.0, %v6012
  %v6014 = vpop.f32.mrf.mxu0
  %6015 = vmatprep.mubr.bf16.mxu0 0
  %6016 = vmatmul.mubr.bf16.gmra.mxu0 %v1165
  %v6017 = vpop.f32.mrf.mxu0
  %v6018 = vadd.f32 0.0, %v6017
  %v6019 = vpop.f32.mrf.mxu0
  %v6020 = vpop.f32.mrf.mxu0
  %v6021 = vadd.f32 0.0, %v6020
  %v6022 = vpop.f32.mrf.mxu0
  %6023 = vmatprep.mubr.bf16.mxu0 0
  %6024 = vmatmul.mubr.bf16.gmra.mxu0 %v1168
  %v6025 = vpop.f32.mrf.mxu0
  %v6026 = vadd.f32 0.0, %v6025
  %v6027 = vpop.f32.mrf.mxu0
  %v6028 = vpop.f32.mrf.mxu0
  %v6029 = vadd.f32 0.0, %v6028
  %v6030 = vpop.f32.mrf.mxu0
  %6031 = vmatprep.mubr.bf16.mxu0 0
  %6032 = vmatmul.mubr.bf16.gmra.mxu0 %v1171
  %v6033 = vpop.f32.mrf.mxu0
  %v6034 = vadd.f32 0.0, %v6033
  %v6035 = vpop.f32.mrf.mxu0
  %v6036 = vpop.f32.mrf.mxu0
  %v6037 = vadd.f32 0.0, %v6036
  %v6038 = vpop.f32.mrf.mxu0
  %6039 = vmatprep.mubr.bf16.mxu0 0
  %6040 = vmatmul.mubr.bf16.gmra.mxu0 %v1174
  %v6041 = vpop.f32.mrf.mxu0
  %v6042 = vadd.f32 0.0, %v6041
  %v6043 = vpop.f32.mrf.mxu0
  %v6044 = vpop.f32.mrf.mxu0
  %v6045 = vadd.f32 0.0, %v6044
  %v6046 = vpop.f32.mrf.mxu0
  %6047 = vmatprep.mubr.bf16.mxu0 0
  %6048 = vmatmul.mubr.bf16.gmra.mxu0 %v1177
  %v6049 = vpop.f32.mrf.mxu0
  %v6050 = vadd.f32 0.0, %v6049
  %v6051 = vpop.f32.mrf.mxu0
  %v6052 = vpop.f32.mrf.mxu0
  %v6053 = vadd.f32 0.0, %v6052
  %v6054 = vpop.f32.mrf.mxu0
  %6055 = vmatprep.mubr.bf16.mxu0 0
  %6056 = vmatmul.mubr.bf16.gmra.mxu0 %v1180
  %v6057 = vpop.f32.mrf.mxu0
  %v6058 = vadd.f32 0.0, %v6057
  %v6059 = vpop.f32.mrf.mxu0
  %v6060 = vpop.f32.mrf.mxu0
  %v6061 = vadd.f32 0.0, %v6060
  %v6062 = vpop.f32.mrf.mxu0
  %6063 = vmatprep.mubr.bf16.mxu0 0
  %6064 = vmatmul.mubr.bf16.gmra.mxu0 %v1183
  %v6065 = vpop.f32.mrf.mxu0
  %v6066 = vadd.f32 0.0, %v6065
  %v6067 = vpop.f32.mrf.mxu0
  %v6068 = vpop.f32.mrf.mxu0
  %v6069 = vadd.f32 0.0, %v6068
  %v6070 = vpop.f32.mrf.mxu0
  %6071 = vmatprep.mubr.bf16.mxu0 0
  %6072 = vmatmul.mubr.bf16.gmra.mxu0 %v1186
  %v6073 = vpop.f32.mrf.mxu0
  %v6074 = vadd.f32 0.0, %v6073
  %v6075 = vpop.f32.mrf.mxu0
  %v6076 = vpop.f32.mrf.mxu0
  %v6077 = vadd.f32 0.0, %v6076
  %v6078 = vpop.f32.mrf.mxu0
  %6079 = vmatprep.mubr.bf16.mxu0 0
  %6080 = vmatmul.mubr.bf16.gmra.mxu0 %v1189
  %v6081 = vpop.f32.mrf.mxu0
  %v6082 = vadd.f32 0.0, %v6081
  %v6083 = vpop.f32.mrf.mxu0
  %v6084 = vpop.f32.mrf.mxu0
  %v6085 = vadd.f32 0.0, %v6084
  %v6086 = vpop.f32.mrf.mxu0
  %6087 = vmatprep.mubr.bf16.mxu0 0
  %6088 = vmatmul.mubr.bf16.gmra.mxu0 %v1192
  %v6089 = vpop.f32.mrf.mxu0
  %v6090 = vadd.f32 0.0, %v6089
  %v6091 = vpop.f32.mrf.mxu0
  %v6092 = vpop.f32.mrf.mxu0
  %v6093 = vadd.f32 0.0, %v6092
  %v6094 = vpop.f32.mrf.mxu0
  %6095 = vmatprep.mubr.bf16.mxu0 0
  %6096 = vmatmul.mubr.bf16.gmra.mxu0 %v1195
  %v6097 = vpop.f32.mrf.mxu0
  %v6098 = vadd.f32 0.0, %v6097
  %v6099 = vpop.f32.mrf.mxu0
  %v6100 = vpop.f32.mrf.mxu0
  %v6101 = vadd.f32 0.0, %v6100
  %v6102 = vpop.f32.mrf.mxu0
  %6103 = vmatprep.mubr.bf16.mxu0 0
  %6104 = vmatmul.mubr.bf16.gmra.mxu0 %v1198
  %v6105 = vpop.f32.mrf.mxu0
  %v6106 = vadd.f32 0.0, %v6105
  %v6107 = vpop.f32.mrf.mxu0
  %v6108 = vpop.f32.mrf.mxu0
  %v6109 = vadd.f32 0.0, %v6108
  %v6110 = vpop.f32.mrf.mxu0
  %6111 = vmatprep.mubr.bf16.mxu0 0
  %6112 = vmatmul.mubr.bf16.gmra.mxu0 %v1201
  %v6113 = vpop.f32.mrf.mxu0
  %v6114 = vadd.f32 0.0, %v6113
  %v6115 = vpop.f32.mrf.mxu0
  %v6116 = vpop.f32.mrf.mxu0
  %v6117 = vadd.f32 0.0, %v6116
  %v6118 = vpop.f32.mrf.mxu0
  %6119 = vmatprep.mubr.bf16.mxu0 0
  %6120 = vmatmul.mubr.bf16.gmra.mxu0 %v1204
  %v6121 = vpop.f32.mrf.mxu0
  %v6122 = vadd.f32 0.0, %v6121
  %v6123 = vpop.f32.mrf.mxu0
  %v6124 = vpop.f32.mrf.mxu0
  %v6125 = vadd.f32 0.0, %v6124
  %v6126 = vpop.f32.mrf.mxu0
  %6127 = vmatprep.mubr.bf16.mxu0 0
  %6128 = vmatmul.mubr.bf16.gmra.mxu0 %v1207
  %v6129 = vpop.f32.mrf.mxu0
  %v6130 = vadd.f32 0.0, %v6129
  %v6131 = vpop.f32.mrf.mxu0
  %v6132 = vpop.f32.mrf.mxu0
  %v6133 = vadd.f32 0.0, %v6132
  %v6134 = vpop.f32.mrf.mxu0
  %6135 = vmatprep.mubr.bf16.mxu0 0
  %6136 = vmatmul.mubr.bf16.gmra.mxu0 %v1210
  %v6137 = vpop.f32.mrf.mxu0
  %v6138 = vadd.f32 0.0, %v6137
  %v6139 = vpop.f32.mrf.mxu0
  %v6140 = vpop.f32.mrf.mxu0
  %v6141 = vadd.f32 0.0, %v6140
  %v6142 = vpop.f32.mrf.mxu0
  %6143 = vmatprep.mubr.bf16.mxu0 0
  %6144 = vmatmul.mubr.bf16.gmra.mxu0 %v1213
  %v6145 = vpop.f32.mrf.mxu0
  %v6146 = vadd.f32 0.0, %v6145
  %v6147 = vpop.f32.mrf.mxu0
  %v6148 = vpop.f32.mrf.mxu0
  %v6149 = vadd.f32 0.0, %v6148
  %v6150 = vpop.f32.mrf.mxu0
  %6151 = vmatprep.mubr.bf16.mxu0 0
  %6152 = vmatmul.mubr.bf16.gmra.mxu0 %v1216
  %v6153 = vpop.f32.mrf.mxu0
  %v6154 = vadd.f32 0.0, %v6153
  %v6155 = vpop.f32.mrf.mxu0
  %v6156 = vpop.f32.mrf.mxu0
  %v6157 = vadd.f32 0.0, %v6156
  %v6158 = vpop.f32.mrf.mxu0
  %6159 = vmatprep.mubr.bf16.mxu0 0
  %6160 = vmatmul.mubr.bf16.gmra.mxu0 %v1219
  %v6161 = vpop.f32.mrf.mxu0
  %v6162 = vadd.f32 0.0, %v6161
  %v6163 = vpop.f32.mrf.mxu0
  %v6164 = vpop.f32.mrf.mxu0
  %v6165 = vadd.f32 0.0, %v6164
  %v6166 = vpop.f32.mrf.mxu0
  %6167 = vmatprep.mubr.bf16.mxu0 0
  %6168 = vmatmul.mubr.bf16.gmra.mxu0 %v1222
  %v6169 = vpop.f32.mrf.mxu0
  %v6170 = vadd.f32 0.0, %v6169
  %v6171 = vpop.f32.mrf.mxu0
  %v6172 = vpop.f32.mrf.mxu0
  %v6173 = vadd.f32 0.0, %v6172
  %v6174 = vpop.f32.mrf.mxu0
  %6175 = vmatprep.mubr.bf16.mxu0 0
  %6176 = vmatmul.mubr.bf16.gmra.mxu0 %v1225
  %v6177 = vpop.f32.mrf.mxu0
  %v6178 = vadd.f32 0.0, %v6177
  %v6179 = vpop.f32.mrf.mxu0
  %v6180 = vpop.f32.mrf.mxu0
  %v6181 = vadd.f32 0.0, %v6180
  %v6182 = vpop.f32.mrf.mxu0
  %6183 = vmatprep.mubr.bf16.mxu0 0
  %6184 = vmatmul.mubr.bf16.gmra.mxu0 %v1228
  %v6185 = vpop.f32.mrf.mxu0
  %v6186 = vadd.f32 0.0, %v6185
  %v6187 = vpop.f32.mrf.mxu0
  %v6188 = vpop.f32.mrf.mxu0
  %v6189 = vadd.f32 0.0, %v6188
  %v6190 = vpop.f32.mrf.mxu0
  %6191 = vmatprep.mubr.bf16.mxu0 0
  %6192 = vmatmul.mubr.bf16.gmra.mxu0 %v1231
  %v6193 = vpop.f32.mrf.mxu0
  %v6194 = vadd.f32 0.0, %v6193
  %v6195 = vpop.f32.mrf.mxu0
  %v6196 = vpop.f32.mrf.mxu0
  %v6197 = vadd.f32 0.0, %v6196
  %v6198 = vpop.f32.mrf.mxu0
  %6199 = vmatprep.mubr.bf16.mxu0 0
  %6200 = vmatmul.mubr.bf16.gmra.mxu0 %v1234
  %v6201 = vpop.f32.mrf.mxu0
  %v6202 = vadd.f32 0.0, %v6201
  %v6203 = vpop.f32.mrf.mxu0
  %v6204 = vpop.f32.mrf.mxu0
  %v6205 = vadd.f32 0.0, %v6204
  %v6206 = vpop.f32.mrf.mxu0
  %6207 = vmatprep.mubr.bf16.mxu0 0
  %6208 = vmatmul.mubr.bf16.gmra.mxu0 %v1237
  %v6209 = vpop.f32.mrf.mxu0
  %v6210 = vadd.f32 0.0, %v6209
  %v6211 = vpop.f32.mrf.mxu0
  %v6212 = vpop.f32.mrf.mxu0
  %v6213 = vadd.f32 0.0, %v6212
  %v6214 = vpop.f32.mrf.mxu0
  %6215 = vmatprep.mubr.bf16.mxu0 0
  %6216 = vmatmul.mubr.bf16.gmra.mxu0 %v1240
  %v6217 = vpop.f32.mrf.mxu0
  %v6218 = vadd.f32 0.0, %v6217
  %v6219 = vpop.f32.mrf.mxu0
  %v6220 = vpop.f32.mrf.mxu0
  %v6221 = vadd.f32 0.0, %v6220
  %v6222 = vpop.f32.mrf.mxu0
  %6223 = vmatprep.mubr.bf16.mxu0 0
  %6224 = vmatmul.mubr.bf16.gmra.mxu0 %v1243
  %v6225 = vpop.f32.mrf.mxu0
  %v6226 = vadd.f32 0.0, %v6225
  %v6227 = vpop.f32.mrf.mxu0
  %v6228 = vpop.f32.mrf.mxu0
  %v6229 = vadd.f32 0.0, %v6228
  %v6230 = vpop.f32.mrf.mxu0
  %6231 = vmatprep.mubr.bf16.mxu0 0
  %6232 = vmatmul.mubr.bf16.gmra.mxu0 %v1246
  %v6233 = vpop.f32.mrf.mxu0
  %v6234 = vadd.f32 0.0, %v6233
  %v6235 = vpop.f32.mrf.mxu0
  %v6236 = vpop.f32.mrf.mxu0
  %v6237 = vadd.f32 0.0, %v6236
  %v6238 = vpop.f32.mrf.mxu0
  %6239 = vmatprep.mubr.bf16.mxu0 0
  %6240 = vmatmul.mubr.bf16.gmra.mxu0 %v1249
  %v6241 = vpop.f32.mrf.mxu0
  %v6242 = vadd.f32 0.0, %v6241
  %v6243 = vpop.f32.mrf.mxu0
  %v6244 = vpop.f32.mrf.mxu0
  %v6245 = vadd.f32 0.0, %v6244
  %v6246 = vpop.f32.mrf.mxu0
  %6247 = vmatprep.mubr.bf16.mxu0 0
  %6248 = vmatmul.mubr.bf16.gmra.mxu0 %v1252
  %v6249 = vpop.f32.mrf.mxu0
  %v6250 = vadd.f32 0.0, %v6249
  %v6251 = vpop.f32.mrf.mxu0
  %v6252 = vpop.f32.mrf.mxu0
  %v6253 = vadd.f32 0.0, %v6252
  %v6254 = vpop.f32.mrf.mxu0
  %6255 = vmatprep.mubr.bf16.mxu0 0
  %6256 = vmatmul.mubr.bf16.gmra.mxu0 %v1255
  %v6257 = vpop.f32.mrf.mxu0
  %v6258 = vadd.f32 0.0, %v6257
  %v6259 = vpop.f32.mrf.mxu0
  %v6260 = vpop.f32.mrf.mxu0
  %v6261 = vadd.f32 0.0, %v6260
  %v6262 = vpop.f32.mrf.mxu0
  %6263 = vmatprep.mubr.bf16.mxu0 0
  %6264 = vmatmul.mubr.bf16.gmra.mxu0 %v1258
  %v6265 = vpop.f32.mrf.mxu0
  %v6266 = vadd.f32 0.0, %v6265
  %v6267 = vpop.f32.mrf.mxu0
  %v6268 = vpop.f32.mrf.mxu0
  %v6269 = vadd.f32 0.0, %v6268
  %v6270 = vpop.f32.mrf.mxu0
  %6271 = vmatprep.mubr.bf16.mxu0 0
  %6272 = vmatmul.mubr.bf16.gmra.mxu0 %v1261
  %v6273 = vpop.f32.mrf.mxu0
  %v6274 = vadd.f32 0.0, %v6273
  %v6275 = vpop.f32.mrf.mxu0
  %v6276 = vpop.f32.mrf.mxu0
  %v6277 = vadd.f32 0.0, %v6276
  %v6278 = vpop.f32.mrf.mxu0
  %6279 = vmatprep.mubr.bf16.mxu0 0
  %6280 = vmatmul.mubr.bf16.gmra.mxu0 %v1264
  %v6281 = vpop.f32.mrf.mxu0
  %v6282 = vadd.f32 0.0, %v6281
  %v6283 = vpop.f32.mrf.mxu0
  %v6284 = vpop.f32.mrf.mxu0
  %v6285 = vadd.f32 0.0, %v6284
  %v6286 = vpop.f32.mrf.mxu0
  %6287 = vmatprep.mubr.bf16.mxu0 0
  %6288 = vmatmul.mubr.bf16.gmra.mxu0 %v1267
  %v6289 = vpop.f32.mrf.mxu0
  %v6290 = vadd.f32 0.0, %v6289
  %v6291 = vpop.f32.mrf.mxu0
  %v6292 = vpop.f32.mrf.mxu0
  %v6293 = vadd.f32 0.0, %v6292
  %v6294 = vpop.f32.mrf.mxu0
  %6295 = vmatprep.mubr.bf16.mxu0 0
  %6296 = vmatmul.mubr.bf16.gmra.mxu0 %v1270
  %v6297 = vpop.f32.mrf.mxu0
  %v6298 = vadd.f32 0.0, %v6297
  %v6299 = vpop.f32.mrf.mxu0
  %v6300 = vpop.f32.mrf.mxu0
  %v6301 = vadd.f32 0.0, %v6300
  %v6302 = vpop.f32.mrf.mxu0
  %6303 = vmatprep.mubr.bf16.mxu0 0
  %6304 = vmatmul.mubr.bf16.gmra.mxu0 %v1273
  %v6305 = vpop.f32.mrf.mxu0
  %v6306 = vadd.f32 0.0, %v6305
  %v6307 = vpop.f32.mrf.mxu0
  %v6308 = vpop.f32.mrf.mxu0
  %v6309 = vadd.f32 0.0, %v6308
  %v6310 = vpop.f32.mrf.mxu0
  %6311 = vmatprep.mubr.bf16.mxu0 0
  %6312 = vmatmul.mubr.bf16.gmra.mxu0 %v1276
  %v6313 = vpop.f32.mrf.mxu0
  %v6314 = vadd.f32 0.0, %v6313
  %v6315 = vpop.f32.mrf.mxu0
  %v6316 = vpop.f32.mrf.mxu0
  %v6317 = vadd.f32 0.0, %v6316
  %v6318 = vpop.f32.mrf.mxu0
  %6319 = vmatprep.mubr.bf16.mxu0 0
  %6320 = vmatmul.mubr.bf16.gmra.mxu0 %v1279
  %v6321 = vpop.f32.mrf.mxu0
  %v6322 = vadd.f32 0.0, %v6321
  %v6323 = vpop.f32.mrf.mxu0
  %v6324 = vpop.f32.mrf.mxu0
  %v6325 = vadd.f32 0.0, %v6324
  %v6326 = vpop.f32.mrf.mxu0
  %6327 = vmatprep.mubr.bf16.mxu0 0
  %6328 = vmatmul.mubr.bf16.gmra.mxu0 %v1282
  %v6329 = vpop.f32.mrf.mxu0
  %v6330 = vadd.f32 0.0, %v6329
  %v6331 = vpop.f32.mrf.mxu0
  %v6332 = vpop.f32.mrf.mxu0
  %v6333 = vadd.f32 0.0, %v6332
  %v6334 = vpop.f32.mrf.mxu0
  %6335 = vmatprep.mubr.bf16.mxu0 0
  %6336 = vmatmul.mubr.bf16.gmra.mxu0 %v1285
  %v6337 = vpop.f32.mrf.mxu0
  %v6338 = vadd.f32 0.0, %v6337
  %v6339 = vpop.f32.mrf.mxu0
  %v6340 = vpop.f32.mrf.mxu0
  %v6341 = vadd.f32 0.0, %v6340
  %v6342 = vpop.f32.mrf.mxu0
  %6343 = vmatprep.mubr.bf16.mxu0 0
  %6344 = vmatmul.mubr.bf16.gmra.mxu0 %v1288
  %v6345 = vpop.f32.mrf.mxu0
  %v6346 = vadd.f32 0.0, %v6345
  %v6347 = vpop.f32.mrf.mxu0
  %v6348 = vpop.f32.mrf.mxu0
  %v6349 = vadd.f32 0.0, %v6348
  %v6350 = vpop.f32.mrf.mxu0
  %6351 = vmatprep.mubr.bf16.mxu0 0
  %6352 = vmatmul.mubr.bf16.gmra.mxu0 %v1291
  %v6353 = vpop.f32.mrf.mxu0
  %v6354 = vadd.f32 0.0, %v6353
  %v6355 = vpop.f32.mrf.mxu0
  %v6356 = vpop.f32.mrf.mxu0
  %v6357 = vadd.f32 0.0, %v6356
  %v6358 = vpop.f32.mrf.mxu0
  %6359 = vmatprep.mubr.bf16.mxu0 0
  %6360 = vmatmul.mubr.bf16.gmra.mxu0 %v1294
  %v6361 = vpop.f32.mrf.mxu0
  %v6362 = vadd.f32 0.0, %v6361
  %v6363 = vpop.f32.mrf.mxu0
  %v6364 = vpop.f32.mrf.mxu0
  %v6365 = vadd.f32 0.0, %v6364
  %v6366 = vpop.f32.mrf.mxu0
  %6367 = vmatprep.mubr.bf16.mxu0 0
  %6368 = vmatmul.mubr.bf16.gmra.mxu0 %v1297
  %v6369 = vpop.f32.mrf.mxu0
  %v6370 = vadd.f32 0.0, %v6369
  %v6371 = vpop.f32.mrf.mxu0
  %v6372 = vpop.f32.mrf.mxu0
  %v6373 = vadd.f32 0.0, %v6372
  %v6374 = vpop.f32.mrf.mxu0
  %6375 = vmatprep.mubr.bf16.mxu0 0
  %6376 = vmatmul.mubr.bf16.gmra.mxu0 %v1300
  %v6377 = vpop.f32.mrf.mxu0
  %v6378 = vadd.f32 0.0, %v6377
  %v6379 = vpop.f32.mrf.mxu0
  %v6380 = vpop.f32.mrf.mxu0
  %v6381 = vadd.f32 0.0, %v6380
  %v6382 = vpop.f32.mrf.mxu0
  %6383 = vmatprep.mubr.bf16.mxu0 0
  %6384 = vmatmul.mubr.bf16.gmra.mxu0 %v1303
  %v6385 = vpop.f32.mrf.mxu0
  %v6386 = vadd.f32 0.0, %v6385
  %v6387 = vpop.f32.mrf.mxu0
  %v6388 = vpop.f32.mrf.mxu0
  %v6389 = vadd.f32 0.0, %v6388
  %v6390 = vpop.f32.mrf.mxu0
  %6391 = vmatprep.mubr.bf16.mxu0 0
  %6392 = vmatmul.mubr.bf16.gmra.mxu0 %v1306
  %v6393 = vpop.f32.mrf.mxu0
  %v6394 = vadd.f32 0.0, %v6393
  %v6395 = vpop.f32.mrf.mxu0
  %v6396 = vpop.f32.mrf.mxu0
  %v6397 = vadd.f32 0.0, %v6396
  %v6398 = vpop.f32.mrf.mxu0
  %6399 = vmatprep.mubr.bf16.mxu0 0
  %6400 = vmatmul.mubr.bf16.gmra.mxu0 %v1309
  %v6401 = vpop.f32.mrf.mxu0
  %v6402 = vadd.f32 0.0, %v6401
  %v6403 = vpop.f32.mrf.mxu0
  %v6404 = vpop.f32.mrf.mxu0
  %v6405 = vadd.f32 0.0, %v6404
  %v6406 = vpop.f32.mrf.mxu0
  %6407 = vmatprep.mubr.bf16.mxu0 0
  %6408 = vmatmul.mubr.bf16.gmra.mxu0 %v1312
  %v6409 = vpop.f32.mrf.mxu0
  %v6410 = vadd.f32 0.0, %v6409
  %v6411 = vpop.f32.mrf.mxu0
  %v6412 = vpop.f32.mrf.mxu0
  %v6413 = vadd.f32 0.0, %v6412
  %v6414 = vpop.f32.mrf.mxu0
  %6415 = vmatprep.mubr.bf16.mxu0 0
  %6416 = vmatmul.mubr.bf16.gmra.mxu0 %v1315
  %v6417 = vpop.f32.mrf.mxu0
  %v6418 = vadd.f32 0.0, %v6417
  %v6419 = vpop.f32.mrf.mxu0
  %v6420 = vpop.f32.mrf.mxu0
  %v6421 = vadd.f32 0.0, %v6420
  %v6422 = vpop.f32.mrf.mxu0
  %6423 = vmatprep.mubr.bf16.mxu0 0
  %6424 = vmatmul.mubr.bf16.gmra.mxu0 %v1318
  %v6425 = vpop.f32.mrf.mxu0
  %v6426 = vadd.f32 0.0, %v6425
  %v6427 = vpop.f32.mrf.mxu0
  %v6428 = vpop.f32.mrf.mxu0
  %v6429 = vadd.f32 0.0, %v6428
  %v6430 = vpop.f32.mrf.mxu0
  %6431 = vmatprep.mubr.bf16.mxu0 0
  %6432 = vmatmul.mubr.bf16.gmra.mxu0 %v1321
  %v6433 = vpop.f32.mrf.mxu0
  %v6434 = vadd.f32 0.0, %v6433
  %v6435 = vpop.f32.mrf.mxu0
  %v6436 = vpop.f32.mrf.mxu0
  %v6437 = vadd.f32 0.0, %v6436
  %v6438 = vpop.f32.mrf.mxu0
  %6439 = vmatprep.mubr.bf16.mxu0 0
  %6440 = vmatmul.mubr.bf16.gmra.mxu0 %v1324
  %v6441 = vpop.f32.mrf.mxu0
  %v6442 = vadd.f32 0.0, %v6441
  %v6443 = vpop.f32.mrf.mxu0
  %v6444 = vpop.f32.mrf.mxu0
  %v6445 = vadd.f32 0.0, %v6444
  %v6446 = vpop.f32.mrf.mxu0
  %6447 = vmatprep.mubr.bf16.mxu0 0
  %6448 = vmatmul.mubr.bf16.gmra.mxu0 %v1327
  %v6449 = vpop.f32.mrf.mxu0
  %v6450 = vadd.f32 0.0, %v6449
  %v6451 = vpop.f32.mrf.mxu0
  %v6452 = vpop.f32.mrf.mxu0
  %v6453 = vadd.f32 0.0, %v6452
  %v6454 = vpop.f32.mrf.mxu0
  %6455 = vmatprep.mubr.bf16.mxu0 0
  %6456 = vmatmul.mubr.bf16.gmra.mxu0 %v1330
  %v6457 = vpop.f32.mrf.mxu0
  %v6458 = vadd.f32 0.0, %v6457
  %v6459 = vpop.f32.mrf.mxu0
  %v6460 = vpop.f32.mrf.mxu0
  %v6461 = vadd.f32 0.0, %v6460
  %v6462 = vpop.f32.mrf.mxu0
  %6463 = vmatprep.mubr.bf16.mxu0 0
  %6464 = vmatmul.mubr.bf16.gmra.mxu0 %v1333
  %v6465 = vpop.f32.mrf.mxu0
  %v6466 = vadd.f32 0.0, %v6465
  %v6467 = vpop.f32.mrf.mxu0
  %v6468 = vpop.f32.mrf.mxu0
  %v6469 = vadd.f32 0.0, %v6468
  %v6470 = vpop.f32.mrf.mxu0
  %6471 = vmatprep.mubr.bf16.mxu0 0
  %6472 = vmatmul.mubr.bf16.gmra.mxu0 %v1336
  %v6473 = vpop.f32.mrf.mxu0
  %v6474 = vadd.f32 0.0, %v6473
  %v6475 = vpop.f32.mrf.mxu0
  %v6476 = vpop.f32.mrf.mxu0
  %v6477 = vadd.f32 0.0, %v6476
  %v6478 = vpop.f32.mrf.mxu0
  %6479 = vmatprep.mubr.bf16.mxu0 0
  %6480 = vmatmul.mubr.bf16.gmra.mxu0 %v1339
  %v6481 = vpop.f32.mrf.mxu0
  %v6482 = vadd.f32 0.0, %v6481
  %v6483 = vpop.f32.mrf.mxu0
  %v6484 = vpop.f32.mrf.mxu0
  %v6485 = vadd.f32 0.0, %v6484
  %v6486 = vpop.f32.mrf.mxu0
  %6487 = vmatprep.mubr.bf16.mxu0 0
  %6488 = vmatmul.mubr.bf16.gmra.mxu0 %v1342
  %v6489 = vpop.f32.mrf.mxu0
  %v6490 = vadd.f32 0.0, %v6489
  %v6491 = vpop.f32.mrf.mxu0
  %v6492 = vpop.f32.mrf.mxu0
  %v6493 = vadd.f32 0.0, %v6492
  %v6494 = vpop.f32.mrf.mxu0
  %6495 = vmatprep.mubr.bf16.mxu0 0
  %6496 = vmatmul.mubr.bf16.gmra.mxu0 %v1345
  %v6497 = vpop.f32.mrf.mxu0
  %v6498 = vadd.f32 0.0, %v6497
  %v6499 = vpop.f32.mrf.mxu0
  %v6500 = vpop.f32.mrf.mxu0
  %v6501 = vadd.f32 0.0, %v6500
  %v6502 = vpop.f32.mrf.mxu0
  %6503 = vmatprep.mubr.bf16.mxu0 0
  %6504 = vmatmul.mubr.bf16.gmra.mxu0 %v1348
  %v6505 = vpop.f32.mrf.mxu0
  %v6506 = vadd.f32 0.0, %v6505
  %v6507 = vpop.f32.mrf.mxu0
  %v6508 = vpop.f32.mrf.mxu0
  %v6509 = vadd.f32 0.0, %v6508
  %v6510 = vpop.f32.mrf.mxu0
  %6511 = vmatprep.mubr.bf16.mxu0 0
  %6512 = vmatmul.mubr.bf16.gmra.mxu0 %v1351
  %v6513 = vpop.f32.mrf.mxu0
  %v6514 = vadd.f32 0.0, %v6513
  %v6515 = vpop.f32.mrf.mxu0
  %v6516 = vpop.f32.mrf.mxu0
  %v6517 = vadd.f32 0.0, %v6516
  %v6518 = vpop.f32.mrf.mxu0
  %6519 = vmatprep.mubr.bf16.mxu0 0
  %6520 = vmatmul.mubr.bf16.gmra.mxu0 %v1354
  %v6521 = vpop.f32.mrf.mxu0
  %v6522 = vadd.f32 0.0, %v6521
  %v6523 = vpop.f32.mrf.mxu0
  %v6524 = vpop.f32.mrf.mxu0
  %v6525 = vadd.f32 0.0, %v6524
  %v6526 = vpop.f32.mrf.mxu0
  %6527 = vmatprep.mubr.bf16.mxu0 0
  %6528 = vmatmul.mubr.bf16.gmra.mxu0 %v1357
  %v6529 = vpop.f32.mrf.mxu0
  %v6530 = vadd.f32 0.0, %v6529
  %v6531 = vpop.f32.mrf.mxu0
  %v6532 = vpop.f32.mrf.mxu0
  %v6533 = vadd.f32 0.0, %v6532
  %v6534 = vpop.f32.mrf.mxu0
  %6535 = vmatprep.mubr.bf16.mxu0 0
  %6536 = vmatmul.mubr.bf16.gmra.mxu0 %v1360
  %v6537 = vpop.f32.mrf.mxu0
  %v6538 = vadd.f32 0.0, %v6537
  %v6539 = vpop.f32.mrf.mxu0
  %v6540 = vpop.f32.mrf.mxu0
  %v6541 = vadd.f32 0.0, %v6540
  %v6542 = vpop.f32.mrf.mxu0
  %6543 = vmatprep.mubr.bf16.mxu0 0
  %6544 = vmatmul.mubr.bf16.gmra.mxu0 %v1363
  %v6545 = vpop.f32.mrf.mxu0
  %v6546 = vadd.f32 0.0, %v6545
  %v6547 = vpop.f32.mrf.mxu0
  %v6548 = vpop.f32.mrf.mxu0
  %v6549 = vadd.f32 0.0, %v6548
  %v6550 = vpop.f32.mrf.mxu0
  %6551 = vmatprep.mubr.bf16.mxu0 0
  %6552 = vmatmul.mubr.bf16.gmra.mxu0 %v1366
  %v6553 = vpop.f32.mrf.mxu0
  %v6554 = vadd.f32 0.0, %v6553
  %v6555 = vpop.f32.mrf.mxu0
  %v6556 = vpop.f32.mrf.mxu0
  %v6557 = vadd.f32 0.0, %v6556
  %v6558 = vpop.f32.mrf.mxu0
  %6559 = vmatprep.mubr.bf16.mxu0 0
  %6560 = vmatmul.mubr.bf16.gmra.mxu0 %v1369
  %v6561 = vpop.f32.mrf.mxu0
  %v6562 = vadd.f32 0.0, %v6561
  %v6563 = vpop.f32.mrf.mxu0
  %v6564 = vpop.f32.mrf.mxu0
  %v6565 = vadd.f32 0.0, %v6564
  %v6566 = vpop.f32.mrf.mxu0
  %6567 = vmatprep.mubr.bf16.mxu0 0
  %6568 = vmatmul.mubr.bf16.gmra.mxu0 %v1372
  %v6569 = vpop.f32.mrf.mxu0
  %v6570 = vadd.f32 0.0, %v6569
  %v6571 = vpop.f32.mrf.mxu0
  %v6572 = vpop.f32.mrf.mxu0
  %v6573 = vadd.f32 0.0, %v6572
  %v6574 = vpop.f32.mrf.mxu0
  %6575 = vmatprep.mubr.bf16.mxu0 0
  %6576 = vmatmul.mubr.bf16.gmra.mxu0 %v1375
  %v6577 = vpop.f32.mrf.mxu0
  %v6578 = vadd.f32 0.0, %v6577
  %v6579 = vpop.f32.mrf.mxu0
  %v6580 = vpop.f32.mrf.mxu0
  %v6581 = vadd.f32 0.0, %v6580
  %v6582 = vpop.f32.mrf.mxu0
  %6583 = vmatprep.mubr.bf16.mxu0 0
  %6584 = vmatmul.mubr.bf16.gmra.mxu0 %v1378
  %v6585 = vpop.f32.mrf.mxu0
  %v6586 = vadd.f32 0.0, %v6585
  %v6587 = vpop.f32.mrf.mxu0
  %v6588 = vpop.f32.mrf.mxu0
  %v6589 = vadd.f32 0.0, %v6588
  %v6590 = vpop.f32.mrf.mxu0
  %6591 = vmatprep.mubr.bf16.mxu0 0
  %6592 = vmatmul.mubr.bf16.gmra.mxu0 %v1381
  %v6593 = vpop.f32.mrf.mxu0
  %v6594 = vadd.f32 0.0, %v6593
  %v6595 = vpop.f32.mrf.mxu0
  %v6596 = vpop.f32.mrf.mxu0
  %v6597 = vadd.f32 0.0, %v6596
  %v6598 = vpop.f32.mrf.mxu0
  %6599 = vmatprep.mubr.bf16.mxu0 0
  %6600 = vmatmul.mubr.bf16.gmra.mxu0 %v1384
  %v6601 = vpop.f32.mrf.mxu0
  %v6602 = vadd.f32 0.0, %v6601
  %v6603 = vpop.f32.mrf.mxu0
  %v6604 = vpop.f32.mrf.mxu0
  %v6605 = vadd.f32 0.0, %v6604
  %v6606 = vpop.f32.mrf.mxu0
  %6607 = vmatprep.mubr.bf16.mxu0 0
  %6608 = vmatmul.mubr.bf16.gmra.mxu0 %v1387
  %v6609 = vpop.f32.mrf.mxu0
  %v6610 = vadd.f32 0.0, %v6609
  %v6611 = vpop.f32.mrf.mxu0
  %v6612 = vpop.f32.mrf.mxu0
  %v6613 = vadd.f32 0.0, %v6612
  %v6614 = vpop.f32.mrf.mxu0
  %6615 = vmatprep.mubr.bf16.mxu0 0
  %6616 = vmatmul.mubr.bf16.gmra.mxu0 %v1390
  %v6617 = vpop.f32.mrf.mxu0
  %v6618 = vadd.f32 0.0, %v6617
  %v6619 = vpop.f32.mrf.mxu0
  %v6620 = vpop.f32.mrf.mxu0
  %v6621 = vadd.f32 0.0, %v6620
  %v6622 = vpop.f32.mrf.mxu0
  %6623 = vmatprep.mubr.bf16.mxu0 0
  %6624 = vmatmul.mubr.bf16.gmra.mxu0 %v1393
  %v6625 = vpop.f32.mrf.mxu0
  %v6626 = vadd.f32 0.0, %v6625
  %v6627 = vpop.f32.mrf.mxu0
  %v6628 = vpop.f32.mrf.mxu0
  %v6629 = vadd.f32 0.0, %v6628
  %v6630 = vpop.f32.mrf.mxu0
  %6631 = vmatprep.mubr.bf16.mxu0 0
  %6632 = vmatmul.mubr.bf16.gmra.mxu0 %v1396
  %v6633 = vpop.f32.mrf.mxu0
  %v6634 = vadd.f32 0.0, %v6633
  %v6635 = vpop.f32.mrf.mxu0
  %v6636 = vpop.f32.mrf.mxu0
  %v6637 = vadd.f32 0.0, %v6636
  %v6638 = vpop.f32.mrf.mxu0
  %6639 = vmatprep.mubr.bf16.mxu0 0
  %6640 = vmatmul.mubr.bf16.gmra.mxu0 %v1399
  %v6641 = vpop.f32.mrf.mxu0
  %v6642 = vadd.f32 0.0, %v6641
  %v6643 = vpop.f32.mrf.mxu0
  %v6644 = vpop.f32.mrf.mxu0
  %v6645 = vadd.f32 0.0, %v6644
  %v6646 = vpop.f32.mrf.mxu0
  %6647 = vmatprep.mubr.bf16.mxu0 0
  %6648 = vmatmul.mubr.bf16.gmra.mxu0 %v1402
  %v6649 = vpop.f32.mrf.mxu0
  %v6650 = vadd.f32 0.0, %v6649
  %v6651 = vpop.f32.mrf.mxu0
  %v6652 = vpop.f32.mrf.mxu0
  %v6653 = vadd.f32 0.0, %v6652
  %v6654 = vpop.f32.mrf.mxu0
  %6655 = vmatprep.mubr.bf16.mxu0 0
  %6656 = vmatmul.mubr.bf16.gmra.mxu0 %v1405
  %v6657 = vpop.f32.mrf.mxu0
  %v6658 = vadd.f32 0.0, %v6657
  %v6659 = vpop.f32.mrf.mxu0
  %v6660 = vpop.f32.mrf.mxu0
  %v6661 = vadd.f32 0.0, %v6660
  %v6662 = vpop.f32.mrf.mxu0
  %6663 = vmatprep.mubr.bf16.mxu0 0
  %6664 = vmatmul.mubr.bf16.gmra.mxu0 %v1408
  %v6665 = vpop.f32.mrf.mxu0
  %v6666 = vadd.f32 0.0, %v6665
  %v6667 = vpop.f32.mrf.mxu0
  %v6668 = vpop.f32.mrf.mxu0
  %v6669 = vadd.f32 0.0, %v6668
  %v6670 = vpop.f32.mrf.mxu0
  %6671 = vmatprep.mubr.bf16.mxu0 0
  %6672 = vmatmul.mubr.bf16.gmra.mxu0 %v1411
  %v6673 = vpop.f32.mrf.mxu0
  %v6674 = vadd.f32 0.0, %v6673
  %v6675 = vpop.f32.mrf.mxu0
  %v6676 = vpop.f32.mrf.mxu0
  %v6677 = vadd.f32 0.0, %v6676
  %v6678 = vpop.f32.mrf.mxu0
  %6679 = vmatprep.mubr.bf16.mxu0 0
  %6680 = vmatmul.mubr.bf16.gmra.mxu0 %v1414
  %v6681 = vpop.f32.mrf.mxu0
  %v6682 = vadd.f32 0.0, %v6681
  %v6683 = vpop.f32.mrf.mxu0
  %v6684 = vpop.f32.mrf.mxu0
  %v6685 = vadd.f32 0.0, %v6684
  %v6686 = vpop.f32.mrf.mxu0
  %6687 = vmatprep.mubr.bf16.mxu0 0
  %6688 = vmatmul.mubr.bf16.gmra.mxu0 %v1417
  %v6689 = vpop.f32.mrf.mxu0
  %v6690 = vadd.f32 0.0, %v6689
  %v6691 = vpop.f32.mrf.mxu0
  %v6692 = vpop.f32.mrf.mxu0
  %v6693 = vadd.f32 0.0, %v6692
  %v6694 = vpop.f32.mrf.mxu0
  %6695 = vmatprep.mubr.bf16.mxu0 0
  %6696 = vmatmul.mubr.bf16.gmra.mxu0 %v1420
  %v6697 = vpop.f32.mrf.mxu0
  %v6698 = vadd.f32 0.0, %v6697
  %v6699 = vpop.f32.mrf.mxu0
  %v6700 = vpop.f32.mrf.mxu0
  %v6701 = vadd.f32 0.0, %v6700
  %v6702 = vpop.f32.mrf.mxu0
  %6703 = vmatprep.mubr.bf16.mxu0 0
  %6704 = vmatmul.mubr.bf16.gmra.mxu0 %v1423
  %v6705 = vpop.f32.mrf.mxu0
  %v6706 = vadd.f32 0.0, %v6705
  %v6707 = vpop.f32.mrf.mxu0
  %v6708 = vpop.f32.mrf.mxu0
  %v6709 = vadd.f32 0.0, %v6708
  %v6710 = vpop.f32.mrf.mxu0
  %6711 = vmatprep.mubr.bf16.mxu0 0
  %6712 = vmatmul.mubr.bf16.gmra.mxu0 %v1426
  %v6713 = vpop.f32.mrf.mxu0
  %v6714 = vadd.f32 0.0, %v6713
  %v6715 = vpop.f32.mrf.mxu0
  %v6716 = vpop.f32.mrf.mxu0
  %v6717 = vadd.f32 0.0, %v6716
  %v6718 = vpop.f32.mrf.mxu0
  %6719 = vmatprep.mubr.bf16.mxu0 0
  %6720 = vmatmul.mubr.bf16.gmra.mxu0 %v1429
  %v6721 = vpop.f32.mrf.mxu0
  %v6722 = vadd.f32 0.0, %v6721
  %v6723 = vpop.f32.mrf.mxu0
  %v6724 = vpop.f32.mrf.mxu0
  %v6725 = vadd.f32 0.0, %v6724
  %v6726 = vpop.f32.mrf.mxu0
  %6727 = vmatprep.mubr.bf16.mxu0 0
  %6728 = vmatmul.mubr.bf16.gmra.mxu0 %v1432
  %v6729 = vpop.f32.mrf.mxu0
  %v6730 = vadd.f32 0.0, %v6729
  %v6731 = vpop.f32.mrf.mxu0
  %v6732 = vpop.f32.mrf.mxu0
  %v6733 = vadd.f32 0.0, %v6732
  %v6734 = vpop.f32.mrf.mxu0
  %6735 = vmatprep.mubr.bf16.mxu0 0
  %6736 = vmatmul.mubr.bf16.gmra.mxu0 %v1435
  %v6737 = vpop.f32.mrf.mxu0
  %v6738 = vadd.f32 0.0, %v6737
  %v6739 = vpop.f32.mrf.mxu0
  %v6740 = vpop.f32.mrf.mxu0
  %v6741 = vadd.f32 0.0, %v6740
  %v6742 = vpop.f32.mrf.mxu0
  %6743 = vmatprep.mubr.bf16.mxu0 0
  %6744 = vmatmul.mubr.bf16.gmra.mxu0 %v1438
  %v6745 = vpop.f32.mrf.mxu0
  %v6746 = vadd.f32 0.0, %v6745
  %v6747 = vpop.f32.mrf.mxu0
  %v6748 = vpop.f32.mrf.mxu0
  %v6749 = vadd.f32 0.0, %v6748
  %v6750 = vpop.f32.mrf.mxu0
  %6751 = vmatprep.mubr.bf16.mxu0 0
  %6752 = vmatmul.mubr.bf16.gmra.mxu0 %v1441
  %v6753 = vpop.f32.mrf.mxu0
  %v6754 = vadd.f32 0.0, %v6753
  %v6755 = vpop.f32.mrf.mxu0
  %v6756 = vpop.f32.mrf.mxu0
  %v6757 = vadd.f32 0.0, %v6756
  %v6758 = vpop.f32.mrf.mxu0
  %6759 = vmatprep.mubr.bf16.mxu0 0
  %6760 = vmatmul.mubr.bf16.gmra.mxu0 %v1444
  %v6761 = vpop.f32.mrf.mxu0
  %v6762 = vadd.f32 0.0, %v6761
  %v6763 = vpop.f32.mrf.mxu0
  %v6764 = vpop.f32.mrf.mxu0
  %v6765 = vadd.f32 0.0, %v6764
  %v6766 = vpop.f32.mrf.mxu0
  %6767 = vmatprep.mubr.bf16.mxu0 0
  %6768 = vmatmul.mubr.bf16.gmra.mxu0 %v1447
  %v6769 = vpop.f32.mrf.mxu0
  %v6770 = vadd.f32 0.0, %v6769
  %v6771 = vpop.f32.mrf.mxu0
  %v6772 = vpop.f32.mrf.mxu0
  %v6773 = vadd.f32 0.0, %v6772
  %v6774 = vpop.f32.mrf.mxu0
  %6775 = vmatprep.mubr.bf16.mxu0 0
  %6776 = vmatmul.mubr.bf16.gmra.mxu0 %v1450
  %v6777 = vpop.f32.mrf.mxu0
  %v6778 = vadd.f32 0.0, %v6777
  %v6779 = vpop.f32.mrf.mxu0
  %v6780 = vpop.f32.mrf.mxu0
  %v6781 = vadd.f32 0.0, %v6780
  %v6782 = vpop.f32.mrf.mxu0
  %6783 = vmatprep.mubr.bf16.mxu0 0
  %6784 = vmatmul.mubr.bf16.gmra.mxu0 %v1453
  %v6785 = vpop.f32.mrf.mxu0
  %v6786 = vadd.f32 0.0, %v6785
  %v6787 = vpop.f32.mrf.mxu0
  %v6788 = vpop.f32.mrf.mxu0
  %v6789 = vadd.f32 0.0, %v6788
  %v6790 = vpop.f32.mrf.mxu0
  %6791 = vmatprep.mubr.bf16.mxu0 0
  %6792 = vmatmul.mubr.bf16.gmra.mxu0 %v1456
  %v6793 = vpop.f32.mrf.mxu0
  %v6794 = vadd.f32 0.0, %v6793
  %v6795 = vpop.f32.mrf.mxu0
  %v6796 = vpop.f32.mrf.mxu0
  %v6797 = vadd.f32 0.0, %v6796
  %v6798 = vpop.f32.mrf.mxu0
  %6799 = vmatprep.mubr.bf16.mxu0 0
  %6800 = vmatmul.mubr.bf16.gmra.mxu0 %v1459
  %v6801 = vpop.f32.mrf.mxu0
  %v6802 = vadd.f32 0.0, %v6801
  %v6803 = vpop.f32.mrf.mxu0
  %v6804 = vpop.f32.mrf.mxu0
  %v6805 = vadd.f32 0.0, %v6804
  %v6806 = vpop.f32.mrf.mxu0
  %6807 = vmatprep.mubr.bf16.mxu0 0
  %6808 = vmatmul.mubr.bf16.gmra.mxu0 %v1462
  %v6809 = vpop.f32.mrf.mxu0
  %v6810 = vadd.f32 0.0, %v6809
  %v6811 = vpop.f32.mrf.mxu0
  %v6812 = vpop.f32.mrf.mxu0
  %v6813 = vadd.f32 0.0, %v6812
  %v6814 = vpop.f32.mrf.mxu0
  %6815 = vmatprep.mubr.bf16.mxu0 0
  %6816 = vmatmul.mubr.bf16.gmra.mxu0 %v1465
  %v6817 = vpop.f32.mrf.mxu0
  %v6818 = vadd.f32 0.0, %v6817
  %v6819 = vpop.f32.mrf.mxu0
  %v6820 = vpop.f32.mrf.mxu0
  %v6821 = vadd.f32 0.0, %v6820
  %v6822 = vpop.f32.mrf.mxu0
  %6823 = vmatprep.mubr.bf16.mxu0 0
  %6824 = vmatmul.mubr.bf16.gmra.mxu0 %v1468
  %v6825 = vpop.f32.mrf.mxu0
  %v6826 = vadd.f32 0.0, %v6825
  %v6827 = vpop.f32.mrf.mxu0
  %v6828 = vpop.f32.mrf.mxu0
  %v6829 = vadd.f32 0.0, %v6828
  %v6830 = vpop.f32.mrf.mxu0
  %6831 = vmatprep.mubr.bf16.mxu0 0
  %6832 = vmatmul.mubr.bf16.gmra.mxu0 %v1471
  %v6833 = vpop.f32.mrf.mxu0
  %v6834 = vadd.f32 0.0, %v6833
  %v6835 = vpop.f32.mrf.mxu0
  %v6836 = vpop.f32.mrf.mxu0
  %v6837 = vadd.f32 0.0, %v6836
  %v6838 = vpop.f32.mrf.mxu0
  %6839 = vmatprep.mubr.bf16.mxu0 0
  %6840 = vmatmul.mubr.bf16.gmra.mxu0 %v1474
  %v6841 = vpop.f32.mrf.mxu0
  %v6842 = vadd.f32 0.0, %v6841
  %v6843 = vpop.f32.mrf.mxu0
  %v6844 = vpop.f32.mrf.mxu0
  %v6845 = vadd.f32 0.0, %v6844
  %v6846 = vpop.f32.mrf.mxu0
  %6847 = vmatprep.mubr.bf16.mxu0 0
  %6848 = vmatmul.mubr.bf16.gmra.mxu0 %v1477
  %v6849 = vpop.f32.mrf.mxu0
  %v6850 = vadd.f32 0.0, %v6849
  %v6851 = vpop.f32.mrf.mxu0
  %v6852 = vpop.f32.mrf.mxu0
  %v6853 = vadd.f32 0.0, %v6852
  %v6854 = vpop.f32.mrf.mxu0
  %6855 = vmatprep.mubr.bf16.mxu0 0
  %6856 = vmatmul.mubr.bf16.gmra.mxu0 %v1480
  %v6857 = vpop.f32.mrf.mxu0
  %v6858 = vadd.f32 0.0, %v6857
  %v6859 = vpop.f32.mrf.mxu0
  %v6860 = vpop.f32.mrf.mxu0
  %v6861 = vadd.f32 0.0, %v6860
  %v6862 = vpop.f32.mrf.mxu0
  %6863 = vmatprep.mubr.bf16.mxu0 0
  %6864 = vmatmul.mubr.bf16.gmra.mxu0 %v1483
  %v6865 = vpop.f32.mrf.mxu0
  %v6866 = vadd.f32 0.0, %v6865
  %v6867 = vpop.f32.mrf.mxu0
  %v6868 = vpop.f32.mrf.mxu0
  %v6869 = vadd.f32 0.0, %v6868
  %v6870 = vpop.f32.mrf.mxu0
  %6871 = vmatprep.mubr.bf16.mxu0 0
  %6872 = vmatmul.mubr.bf16.gmra.mxu0 %v1486
  %v6873 = vpop.f32.mrf.mxu0
  %v6874 = vadd.f32 0.0, %v6873
  %v6875 = vpop.f32.mrf.mxu0
  %v6876 = vpop.f32.mrf.mxu0
  %v6877 = vadd.f32 0.0, %v6876
  %v6878 = vpop.f32.mrf.mxu0
  %6879 = vdwg.mxu0
  %v6880 = vmax.f32 %v5383, %v5730
  %v6881 = vmax.f32 %v5384, %v5733
  %v6882 = vmax.f32 %v5385, %v5738
  %v6883 = vmax.f32 %v5386, %v5741
  %v6884 = vmax.f32 %v5387, %v5746
  %v6885 = vmax.f32 %v5388, %v5749
  %v6886 = vmax.f32 %v5389, %v5754
  %v6887 = vmax.f32 %v5390, %v5757
  %v6888 = vmax.f32 %v5391, %v5762
  %v6889 = vmax.f32 %v5392, %v5765
  %v6890 = vmax.f32 %v5393, %v5770
  %v6891 = vmax.f32 %v5394, %v5773
  %v6892 = vmax.f32 %v5395, %v5778
  %v6893 = vmax.f32 %v5396, %v5781
  %v6894 = vmax.f32 %v5397, %v5786
  %v6895 = vmax.f32 %v5398, %v5789
  %v6896 = vmax.f32 %v5399, %v5794
  %v6897 = vmax.f32 %v5400, %v5797
  %v6898 = vmax.f32 %v5401, %v5802
  %v6899 = vmax.f32 %v5402, %v5805
  %v6900 = vmax.f32 %v5403, %v5810
  %v6901 = vmax.f32 %v5404, %v5813
  %v6902 = vmax.f32 %v5405, %v5818
  %v6903 = vmax.f32 %v5406, %v5821
  %v6904 = vmax.f32 %v5407, %v5826
  %v6905 = vmax.f32 %v5408, %v5829
  %v6906 = vmax.f32 %v5409, %v5834
  %v6907 = vmax.f32 %v5410, %v5837
  %v6908 = vmax.f32 %v5411, %v5842
  %v6909 = vmax.f32 %v5412, %v5845
  %v6910 = vmax.f32 %v5413, %v5850
  %v6911 = vmax.f32 %v5414, %v5853
  %v6912 = vmax.f32 %v5415, %v5858
  %v6913 = vmax.f32 %v5416, %v5861
  %v6914 = vmax.f32 %v5417, %v5866
  %v6915 = vmax.f32 %v5418, %v5869
  %v6916 = vmax.f32 %v5419, %v5874
  %v6917 = vmax.f32 %v5420, %v5877
  %v6918 = vmax.f32 %v5421, %v5882
  %v6919 = vmax.f32 %v5422, %v5885
  %v6920 = vmax.f32 %v5423, %v5890
  %v6921 = vmax.f32 %v5424, %v5893
  %v6922 = vmax.f32 %v5425, %v5898
  %v6923 = vmax.f32 %v5426, %v5901
  %v6924 = vmax.f32 %v5427, %v5906
  %v6925 = vmax.f32 %v5428, %v5909
  %v6926 = vmax.f32 %v5429, %v5914
  %v6927 = vmax.f32 %v5430, %v5917
  %v6928 = vmax.f32 %v5431, %v5922
  %v6929 = vmax.f32 %v5432, %v5925
  %v6930 = vmax.f32 %v5433, %v5930
  %v6931 = vmax.f32 %v5434, %v5933
  %v6932 = vmax.f32 %v5435, %v5938
  %v6933 = vmax.f32 %v5436, %v5941
  %v6934 = vmax.f32 %v5437, %v5946
  %v6935 = vmax.f32 %v5438, %v5949
  %v6936 = vmax.f32 %v5439, %v5954
  %v6937 = vmax.f32 %v5440, %v5957
  %v6938 = vmax.f32 %v5441, %v5962
  %v6939 = vmax.f32 %v5442, %v5965
  %v6940 = vmax.f32 %v5443, %v5970
  %v6941 = vmax.f32 %v5444, %v5973
  %v6942 = vmax.f32 %v5445, %v5978
  %v6943 = vmax.f32 %v5446, %v5981
  %v6944 = vmax.f32 %v5447, %v5986
  %v6945 = vmax.f32 %v5448, %v5989
  %v6946 = vmax.f32 %v5449, %v5994
  %v6947 = vmax.f32 %v5450, %v5997
  %v6948 = vmax.f32 %v5451, %v6002
  %v6949 = vmax.f32 %v5452, %v6005
  %v6950 = vmax.f32 %v5453, %v6010
  %v6951 = vmax.f32 %v5454, %v6013
  %v6952 = vmax.f32 %v5455, %v6018
  %v6953 = vmax.f32 %v5456, %v6021
  %v6954 = vmax.f32 %v5457, %v6026
  %v6955 = vmax.f32 %v5458, %v6029
  %v6956 = vmax.f32 %v5459, %v6034
  %v6957 = vmax.f32 %v5460, %v6037
  %v6958 = vmax.f32 %v5461, %v6042
  %v6959 = vmax.f32 %v5462, %v6045
  %v6960 = vmax.f32 %v5463, %v6050
  %v6961 = vmax.f32 %v5464, %v6053
  %v6962 = vmax.f32 %v5465, %v6058
  %v6963 = vmax.f32 %v5466, %v6061
  %v6964 = vmax.f32 %v5467, %v6066
  %v6965 = vmax.f32 %v5468, %v6069
  %v6966 = vmax.f32 %v5469, %v6074
  %v6967 = vmax.f32 %v5470, %v6077
  %v6968 = vmax.f32 %v5471, %v6082
  %v6969 = vmax.f32 %v5472, %v6085
  %v6970 = vmax.f32 %v5473, %v6090
  %v6971 = vmax.f32 %v5474, %v6093
  %v6972 = vmax.f32 %v5475, %v6098
  %v6973 = vmax.f32 %v5476, %v6101
  %v6974 = vmax.f32 %v5477, %v6106
  %v6975 = vmax.f32 %v5478, %v6109
  %v6976 = vmax.f32 %v5479, %v6114
  %v6977 = vmax.f32 %v5480, %v6117
  %v6978 = vmax.f32 %v5481, %v6122
  %v6979 = vmax.f32 %v5482, %v6125
  %v6980 = vmax.f32 %v5483, %v6130
  %v6981 = vmax.f32 %v5484, %v6133
  %v6982 = vmax.f32 %v5485, %v6138
  %v6983 = vmax.f32 %v5486, %v6141
  %v6984 = vmax.f32 %v5487, %v6146
  %v6985 = vmax.f32 %v5488, %v6149
  %v6986 = vmax.f32 %v5489, %v6154
  %v6987 = vmax.f32 %v5490, %v6157
  %v6988 = vmax.f32 %v5491, %v6162
  %v6989 = vmax.f32 %v5492, %v6165
  %v6990 = vmax.f32 %v5493, %v6170
  %v6991 = vmax.f32 %v5494, %v6173
  %v6992 = vmax.f32 %v5495, %v6178
  %v6993 = vmax.f32 %v5496, %v6181
  %v6994 = vmax.f32 %v5497, %v6186
  %v6995 = vmax.f32 %v5498, %v6189
  %v6996 = vmax.f32 %v5499, %v6194
  %v6997 = vmax.f32 %v5500, %v6197
  %v6998 = vmax.f32 %v5501, %v6202
  %v6999 = vmax.f32 %v5502, %v6205
  %v7000 = vmax.f32 %v5503, %v6210
  %v7001 = vmax.f32 %v5504, %v6213
  %v7002 = vmax.f32 %v5505, %v6218
  %v7003 = vmax.f32 %v5506, %v6221
  %v7004 = vmax.f32 %v5507, %v6226
  %v7005 = vmax.f32 %v5508, %v6229
  %v7006 = vmax.f32 %v5509, %v6234
  %v7007 = vmax.f32 %v5510, %v6237
  %v7008 = vmax.f32 %v5511, %v6242
  %v7009 = vmax.f32 %v5512, %v6245
  %v7010 = vmax.f32 %v5513, %v6250
  %v7011 = vmax.f32 %v5514, %v6253
  %v7012 = vmax.f32 %v5515, %v6258
  %v7013 = vmax.f32 %v5516, %v6261
  %v7014 = vmax.f32 %v5517, %v6266
  %v7015 = vmax.f32 %v5518, %v6269
  %v7016 = vmax.f32 %v5519, %v6274
  %v7017 = vmax.f32 %v5520, %v6277
  %v7018 = vmax.f32 %v5521, %v6282
  %v7019 = vmax.f32 %v5522, %v6285
  %v7020 = vmax.f32 %v5523, %v6290
  %v7021 = vmax.f32 %v5524, %v6293
  %v7022 = vmax.f32 %v5525, %v6298
  %v7023 = vmax.f32 %v5526, %v6301
  %v7024 = vmax.f32 %v5527, %v6306
  %v7025 = vmax.f32 %v5528, %v6309
  %v7026 = vmax.f32 %v5529, %v6314
  %v7027 = vmax.f32 %v5530, %v6317
  %v7028 = vmax.f32 %v5531, %v6322
  %v7029 = vmax.f32 %v5532, %v6325
  %v7030 = vmax.f32 %v5533, %v6330
  %v7031 = vmax.f32 %v5534, %v6333
  %v7032 = vmax.f32 %v5535, %v6338
  %v7033 = vmax.f32 %v5536, %v6341
  %v7034 = vmax.f32 %v5537, %v6346
  %v7035 = vmax.f32 %v5538, %v6349
  %v7036 = vmax.f32 %v5539, %v6354
  %v7037 = vmax.f32 %v5540, %v6357
  %v7038 = vmax.f32 %v5541, %v6362
  %v7039 = vmax.f32 %v5542, %v6365
  %v7040 = vmax.f32 %v5543, %v6370
  %v7041 = vmax.f32 %v5544, %v6373
  %v7042 = vmax.f32 %v5545, %v6378
  %v7043 = vmax.f32 %v5546, %v6381
  %v7044 = vmax.f32 %v5547, %v6386
  %v7045 = vmax.f32 %v5548, %v6389
  %v7046 = vmax.f32 %v5549, %v6394
  %v7047 = vmax.f32 %v5550, %v6397
  %v7048 = vmax.f32 %v5551, %v6402
  %v7049 = vmax.f32 %v5552, %v6405
  %v7050 = vmax.f32 %v5553, %v6410
  %v7051 = vmax.f32 %v5554, %v6413
  %v7052 = vmax.f32 %v5555, %v6418
  %v7053 = vmax.f32 %v5556, %v6421
  %v7054 = vmax.f32 %v5557, %v6426
  %v7055 = vmax.f32 %v5558, %v6429
  %v7056 = vmax.f32 %v5559, %v6434
  %v7057 = vmax.f32 %v5560, %v6437
  %v7058 = vmax.f32 %v5561, %v6442
  %v7059 = vmax.f32 %v5562, %v6445
  %v7060 = vmax.f32 %v5563, %v6450
  %v7061 = vmax.f32 %v5564, %v6453
  %v7062 = vmax.f32 %v5565, %v6458
  %v7063 = vmax.f32 %v5566, %v6461
  %v7064 = vmax.f32 %v5567, %v6466
  %v7065 = vmax.f32 %v5568, %v6469
  %v7066 = vmax.f32 %v5569, %v6474
  %v7067 = vmax.f32 %v5570, %v6477
  %v7068 = vmax.f32 %v5571, %v6482
  %v7069 = vmax.f32 %v5572, %v6485
  %v7070 = vmax.f32 %v5573, %v6490
  %v7071 = vmax.f32 %v5574, %v6493
  %v7072 = vmax.f32 %v5575, %v6498
  %v7073 = vmax.f32 %v5576, %v6501
  %v7074 = vmax.f32 %v5577, %v6506
  %v7075 = vmax.f32 %v5578, %v6509
  %v7076 = vmax.f32 %v5579, %v6514
  %v7077 = vmax.f32 %v5580, %v6517
  %v7078 = vmax.f32 %v5581, %v6522
  %v7079 = vmax.f32 %v5582, %v6525
  %v7080 = vmax.f32 %v5583, %v6530
  %v7081 = vmax.f32 %v5584, %v6533
  %v7082 = vmax.f32 %v5585, %v6538
  %v7083 = vmax.f32 %v5586, %v6541
  %v7084 = vmax.f32 %v5587, %v6546
  %v7085 = vmax.f32 %v5588, %v6549
  %v7086 = vmax.f32 %v5589, %v6554
  %v7087 = vmax.f32 %v5590, %v6557
  %v7088 = vmax.f32 %v5591, %v6562
  %v7089 = vmax.f32 %v5592, %v6565
  %v7090 = vmax.f32 %v5593, %v6570
  %v7091 = vmax.f32 %v5594, %v6573
  %v7092 = vmax.f32 %v5595, %v6578
  %v7093 = vmax.f32 %v5596, %v6581
  %v7094 = vmax.f32 %v5597, %v6586
  %v7095 = vmax.f32 %v5598, %v6589
  %v7096 = vmax.f32 %v5599, %v6594
  %v7097 = vmax.f32 %v5600, %v6597
  %v7098 = vmax.f32 %v5601, %v6602
  %v7099 = vmax.f32 %v5602, %v6605
  %v7100 = vmax.f32 %v5603, %v6610
  %v7101 = vmax.f32 %v5604, %v6613
  %v7102 = vmax.f32 %v5605, %v6618
  %v7103 = vmax.f32 %v5606, %v6621
  %v7104 = vmax.f32 %v5607, %v6626
  %v7105 = vmax.f32 %v5608, %v6629
  %v7106 = vmax.f32 %v5609, %v6634
  %v7107 = vmax.f32 %v5610, %v6637
  %v7108 = vmax.f32 %v5611, %v6642
  %v7109 = vmax.f32 %v5612, %v6645
  %v7110 = vmax.f32 %v5613, %v6650
  %v7111 = vmax.f32 %v5614, %v6653
  %v7112 = vmax.f32 %v5615, %v6658
  %v7113 = vmax.f32 %v5616, %v6661
  %v7114 = vmax.f32 %v5617, %v6666
  %v7115 = vmax.f32 %v5618, %v6669
  %v7116 = vmax.f32 %v5619, %v6674
  %v7117 = vmax.f32 %v5620, %v6677
  %v7118 = vmax.f32 %v5621, %v6682
  %v7119 = vmax.f32 %v5622, %v6685
  %v7120 = vmax.f32 %v5623, %v6690
  %v7121 = vmax.f32 %v5624, %v6693
  %v7122 = vmax.f32 %v5625, %v6698
  %v7123 = vmax.f32 %v5626, %v6701
  %v7124 = vmax.f32 %v5627, %v6706
  %v7125 = vmax.f32 %v5628, %v6709
  %v7126 = vmax.f32 %v5629, %v6714
  %v7127 = vmax.f32 %v5630, %v6717
  %v7128 = vmax.f32 %v5631, %v6722
  %v7129 = vmax.f32 %v5632, %v6725
  %v7130 = vmax.f32 %v5633, %v6730
  %v7131 = vmax.f32 %v5634, %v6733
  %v7132 = vmax.f32 %v5635, %v6738
  %v7133 = vmax.f32 %v5636, %v6741
  %v7134 = vmax.f32 %v5637, %v6746
  %v7135 = vmax.f32 %v5638, %v6749
  %v7136 = vmax.f32 %v5639, %v6754
  %v7137 = vmax.f32 %v5640, %v6757
  %v7138 = vmax.f32 %v5641, %v6762
  %v7139 = vmax.f32 %v5642, %v6765
  %v7140 = vmax.f32 %v5643, %v6770
  %v7141 = vmax.f32 %v5644, %v6773
  %v7142 = vmax.f32 %v5645, %v6778
  %v7143 = vmax.f32 %v5646, %v6781
  %v7144 = vmax.f32 %v5647, %v6786
  %v7145 = vmax.f32 %v5648, %v6789
  %v7146 = vmax.f32 %v5649, %v6794
  %v7147 = vmax.f32 %v5650, %v6797
  %v7148 = vmax.f32 %v5651, %v6802
  %v7149 = vmax.f32 %v5652, %v6805
  %v7150 = vmax.f32 %v5653, %v6810
  %v7151 = vmax.f32 %v5654, %v6813
  %v7152 = vmax.f32 %v5655, %v6818
  %v7153 = vmax.f32 %v5656, %v6821
  %v7154 = vmax.f32 %v5657, %v6826
  %v7155 = vmax.f32 %v5658, %v6829
  %v7156 = vmax.f32 %v5659, %v6834
  %v7157 = vmax.f32 %v5660, %v6837
  %v7158 = vmax.f32 %v5661, %v6842
  %v7159 = vmax.f32 %v5662, %v6845
  %v7160 = vmax.f32 %v5663, %v6850
  %v7161 = vmax.f32 %v5664, %v6853
  %v7162 = vmax.f32 %v5665, %v6858
  %v7163 = vmax.f32 %v5666, %v6861
  %v7164 = vmax.f32 %v5667, %v6866
  %v7165 = vmax.f32 %v5668, %v6869
  %v7166 = vmax.f32 %v5669, %v6874
  %v7167 = vmax.f32 %v5670, %v6877
  %v7168 = vld [vmem:[%s2] sm:$0x1]
  %v7170 = vlaneseq
  %v7171 = vshrl.u32 %v7170, 7
  %v7172 = vsub.s32 0, %v7171
  %v7173 = vrot.slane %v7168, %v7172
  %v7175 = vadd.f32 %v6880, %v7173
  %v7176 = vadd.f32 %v6881, %v7173
  %v7177 = vadd.f32 %v6882, %v7173
  %v7178 = vadd.f32 %v6883, %v7173
  %v7179 = vadd.f32 %v6884, %v7173
  %v7180 = vadd.f32 %v6885, %v7173
  %v7181 = vadd.f32 %v6886, %v7173
  %v7182 = vadd.f32 %v6887, %v7173
  %v7183 = vadd.f32 %v6888, %v7173
  %v7184 = vadd.f32 %v6889, %v7173
  %v7185 = vadd.f32 %v6890, %v7173
  %v7186 = vadd.f32 %v6891, %v7173
  %v7187 = vadd.f32 %v6892, %v7173
  %v7188 = vadd.f32 %v6893, %v7173
  %v7189 = vadd.f32 %v6894, %v7173
  %v7190 = vadd.f32 %v6895, %v7173
  %v7191 = vadd.f32 %v6896, %v7173
  %v7192 = vadd.f32 %v6897, %v7173
  %v7193 = vadd.f32 %v6898, %v7173
  %v7194 = vadd.f32 %v6899, %v7173
  %v7195 = vadd.f32 %v6900, %v7173
  %v7196 = vadd.f32 %v6901, %v7173
  %v7197 = vadd.f32 %v6902, %v7173
  %v7198 = vadd.f32 %v6903, %v7173
  %v7199 = vadd.f32 %v6904, %v7173
  %v7200 = vadd.f32 %v6905, %v7173
  %v7201 = vadd.f32 %v6906, %v7173
  %v7202 = vadd.f32 %v6907, %v7173
  %v7203 = vadd.f32 %v6908, %v7173
  %v7204 = vadd.f32 %v6909, %v7173
  %v7205 = vadd.f32 %v6910, %v7173
  %v7206 = vadd.f32 %v6911, %v7173
  %v7207 = vadd.f32 %v6912, %v7173
  %v7208 = vadd.f32 %v6913, %v7173
  %v7209 = vadd.f32 %v6914, %v7173
  %v7210 = vadd.f32 %v6915, %v7173
  %v7211 = vadd.f32 %v6916, %v7173
  %v7212 = vadd.f32 %v6917, %v7173
  %v7213 = vadd.f32 %v6918, %v7173
  %v7214 = vadd.f32 %v6919, %v7173
  %v7215 = vadd.f32 %v6920, %v7173
  %v7216 = vadd.f32 %v6921, %v7173
  %v7217 = vadd.f32 %v6922, %v7173
  %v7218 = vadd.f32 %v6923, %v7173
  %v7219 = vadd.f32 %v6924, %v7173
  %v7220 = vadd.f32 %v6925, %v7173
  %v7221 = vadd.f32 %v6926, %v7173
  %v7222 = vadd.f32 %v6927, %v7173
  %v7223 = vadd.f32 %v6928, %v7173
  %v7224 = vadd.f32 %v6929, %v7173
  %v7225 = vadd.f32 %v6930, %v7173
  %v7226 = vadd.f32 %v6931, %v7173
  %v7227 = vadd.f32 %v6932, %v7173
  %v7228 = vadd.f32 %v6933, %v7173
  %v7229 = vadd.f32 %v6934, %v7173
  %v7230 = vadd.f32 %v6935, %v7173
  %v7231 = vadd.f32 %v6936, %v7173
  %v7232 = vadd.f32 %v6937, %v7173
  %v7233 = vadd.f32 %v6938, %v7173
  %v7234 = vadd.f32 %v6939, %v7173
  %v7235 = vadd.f32 %v6940, %v7173
  %v7236 = vadd.f32 %v6941, %v7173
  %v7237 = vadd.f32 %v6942, %v7173
  %v7238 = vadd.f32 %v6943, %v7173
  %v7239 = vadd.f32 %v6944, %v7173
  %v7240 = vadd.f32 %v6945, %v7173
  %v7241 = vadd.f32 %v6946, %v7173
  %v7242 = vadd.f32 %v6947, %v7173
  %v7243 = vadd.f32 %v6948, %v7173
  %v7244 = vadd.f32 %v6949, %v7173
  %v7245 = vadd.f32 %v6950, %v7173
  %v7246 = vadd.f32 %v6951, %v7173
  %v7247 = vadd.f32 %v6952, %v7173
  %v7248 = vadd.f32 %v6953, %v7173
  %v7249 = vadd.f32 %v6954, %v7173
  %v7250 = vadd.f32 %v6955, %v7173
  %v7251 = vadd.f32 %v6956, %v7173
  %v7252 = vadd.f32 %v6957, %v7173
  %v7253 = vadd.f32 %v6958, %v7173
  %v7254 = vadd.f32 %v6959, %v7173
  %v7255 = vadd.f32 %v6960, %v7173
  %v7256 = vadd.f32 %v6961, %v7173
  %v7257 = vadd.f32 %v6962, %v7173
  %v7258 = vadd.f32 %v6963, %v7173
  %v7259 = vadd.f32 %v6964, %v7173
  %v7260 = vadd.f32 %v6965, %v7173
  %v7261 = vadd.f32 %v6966, %v7173
  %v7262 = vadd.f32 %v6967, %v7173
  %v7263 = vadd.f32 %v6968, %v7173
  %v7264 = vadd.f32 %v6969, %v7173
  %v7265 = vadd.f32 %v6970, %v7173
  %v7266 = vadd.f32 %v6971, %v7173
  %v7267 = vadd.f32 %v6972, %v7173
  %v7268 = vadd.f32 %v6973, %v7173
  %v7269 = vadd.f32 %v6974, %v7173
  %v7270 = vadd.f32 %v6975, %v7173
  %v7271 = vadd.f32 %v6976, %v7173
  %v7272 = vadd.f32 %v6977, %v7173
  %v7273 = vadd.f32 %v6978, %v7173
  %v7274 = vadd.f32 %v6979, %v7173
  %v7275 = vadd.f32 %v6980, %v7173
  %v7276 = vadd.f32 %v6981, %v7173
  %v7277 = vadd.f32 %v6982, %v7173
  %v7278 = vadd.f32 %v6983, %v7173
  %v7279 = vadd.f32 %v6984, %v7173
  %v7280 = vadd.f32 %v6985, %v7173
  %v7281 = vadd.f32 %v6986, %v7173
  %v7282 = vadd.f32 %v6987, %v7173
  %v7283 = vadd.f32 %v6988, %v7173
  %v7284 = vadd.f32 %v6989, %v7173
  %v7285 = vadd.f32 %v6990, %v7173
  %v7286 = vadd.f32 %v6991, %v7173
  %v7287 = vadd.f32 %v6992, %v7173
  %v7288 = vadd.f32 %v6993, %v7173
  %v7289 = vadd.f32 %v6994, %v7173
  %v7290 = vadd.f32 %v6995, %v7173
  %v7291 = vadd.f32 %v6996, %v7173
  %v7292 = vadd.f32 %v6997, %v7173
  %v7293 = vadd.f32 %v6998, %v7173
  %v7294 = vadd.f32 %v6999, %v7173
  %v7295 = vadd.f32 %v7000, %v7173
  %v7296 = vadd.f32 %v7001, %v7173
  %v7297 = vadd.f32 %v7002, %v7173
  %v7298 = vadd.f32 %v7003, %v7173
  %v7299 = vadd.f32 %v7004, %v7173
  %v7300 = vadd.f32 %v7005, %v7173
  %v7301 = vadd.f32 %v7006, %v7173
  %v7302 = vadd.f32 %v7007, %v7173
  %v7303 = vadd.f32 %v7008, %v7173
  %v7304 = vadd.f32 %v7009, %v7173
  %v7305 = vadd.f32 %v7010, %v7173
  %v7306 = vadd.f32 %v7011, %v7173
  %v7307 = vadd.f32 %v7012, %v7173
  %v7308 = vadd.f32 %v7013, %v7173
  %v7309 = vadd.f32 %v7014, %v7173
  %v7310 = vadd.f32 %v7015, %v7173
  %v7311 = vadd.f32 %v7016, %v7173
  %v7312 = vadd.f32 %v7017, %v7173
  %v7313 = vadd.f32 %v7018, %v7173
  %v7314 = vadd.f32 %v7019, %v7173
  %v7315 = vadd.f32 %v7020, %v7173
  %v7316 = vadd.f32 %v7021, %v7173
  %v7317 = vadd.f32 %v7022, %v7173
  %v7318 = vadd.f32 %v7023, %v7173
  %v7319 = vadd.f32 %v7024, %v7173
  %v7320 = vadd.f32 %v7025, %v7173
  %v7321 = vadd.f32 %v7026, %v7173
  %v7322 = vadd.f32 %v7027, %v7173
  %v7323 = vadd.f32 %v7028, %v7173
  %v7324 = vadd.f32 %v7029, %v7173
  %v7325 = vadd.f32 %v7030, %v7173
  %v7326 = vadd.f32 %v7031, %v7173
  %v7327 = vadd.f32 %v7032, %v7173
  %v7328 = vadd.f32 %v7033, %v7173
  %v7329 = vadd.f32 %v7034, %v7173
  %v7330 = vadd.f32 %v7035, %v7173
  %v7331 = vadd.f32 %v7036, %v7173
  %v7332 = vadd.f32 %v7037, %v7173
  %v7333 = vadd.f32 %v7038, %v7173
  %v7334 = vadd.f32 %v7039, %v7173
  %v7335 = vadd.f32 %v7040, %v7173
  %v7336 = vadd.f32 %v7041, %v7173
  %v7337 = vadd.f32 %v7042, %v7173
  %v7338 = vadd.f32 %v7043, %v7173
  %v7339 = vadd.f32 %v7044, %v7173
  %v7340 = vadd.f32 %v7045, %v7173
  %v7341 = vadd.f32 %v7046, %v7173
  %v7342 = vadd.f32 %v7047, %v7173
  %v7343 = vadd.f32 %v7048, %v7173
  %v7344 = vadd.f32 %v7049, %v7173
  %v7345 = vadd.f32 %v7050, %v7173
  %v7346 = vadd.f32 %v7051, %v7173
  %v7347 = vadd.f32 %v7052, %v7173
  %v7348 = vadd.f32 %v7053, %v7173
  %v7349 = vadd.f32 %v7054, %v7173
  %v7350 = vadd.f32 %v7055, %v7173
  %v7351 = vadd.f32 %v7056, %v7173
  %v7352 = vadd.f32 %v7057, %v7173
  %v7353 = vadd.f32 %v7058, %v7173
  %v7354 = vadd.f32 %v7059, %v7173
  %v7355 = vadd.f32 %v7060, %v7173
  %v7356 = vadd.f32 %v7061, %v7173
  %v7357 = vadd.f32 %v7062, %v7173
  %v7358 = vadd.f32 %v7063, %v7173
  %v7359 = vadd.f32 %v7064, %v7173
  %v7360 = vadd.f32 %v7065, %v7173
  %v7361 = vadd.f32 %v7066, %v7173
  %v7362 = vadd.f32 %v7067, %v7173
  %v7363 = vadd.f32 %v7068, %v7173
  %v7364 = vadd.f32 %v7069, %v7173
  %v7365 = vadd.f32 %v7070, %v7173
  %v7366 = vadd.f32 %v7071, %v7173
  %v7367 = vadd.f32 %v7072, %v7173
  %v7368 = vadd.f32 %v7073, %v7173
  %v7369 = vadd.f32 %v7074, %v7173
  %v7370 = vadd.f32 %v7075, %v7173
  %v7371 = vadd.f32 %v7076, %v7173
  %v7372 = vadd.f32 %v7077, %v7173
  %v7373 = vadd.f32 %v7078, %v7173
  %v7374 = vadd.f32 %v7079, %v7173
  %v7375 = vadd.f32 %v7080, %v7173
  %v7376 = vadd.f32 %v7081, %v7173
  %v7377 = vadd.f32 %v7082, %v7173
  %v7378 = vadd.f32 %v7083, %v7173
  %v7379 = vadd.f32 %v7084, %v7173
  %v7380 = vadd.f32 %v7085, %v7173
  %v7381 = vadd.f32 %v7086, %v7173
  %v7382 = vadd.f32 %v7087, %v7173
  %v7383 = vadd.f32 %v7088, %v7173
  %v7384 = vadd.f32 %v7089, %v7173
  %v7385 = vadd.f32 %v7090, %v7173
  %v7386 = vadd.f32 %v7091, %v7173
  %v7387 = vadd.f32 %v7092, %v7173
  %v7388 = vadd.f32 %v7093, %v7173
  %v7389 = vadd.f32 %v7094, %v7173
  %v7390 = vadd.f32 %v7095, %v7173
  %v7391 = vadd.f32 %v7096, %v7173
  %v7392 = vadd.f32 %v7097, %v7173
  %v7393 = vadd.f32 %v7098, %v7173
  %v7394 = vadd.f32 %v7099, %v7173
  %v7395 = vadd.f32 %v7100, %v7173
  %v7396 = vadd.f32 %v7101, %v7173
  %v7397 = vadd.f32 %v7102, %v7173
  %v7398 = vadd.f32 %v7103, %v7173
  %v7399 = vadd.f32 %v7104, %v7173
  %v7400 = vadd.f32 %v7105, %v7173
  %v7401 = vadd.f32 %v7106, %v7173
  %v7402 = vadd.f32 %v7107, %v7173
  %v7403 = vadd.f32 %v7108, %v7173
  %v7404 = vadd.f32 %v7109, %v7173
  %v7405 = vadd.f32 %v7110, %v7173
  %v7406 = vadd.f32 %v7111, %v7173
  %v7407 = vadd.f32 %v7112, %v7173
  %v7408 = vadd.f32 %v7113, %v7173
  %v7409 = vadd.f32 %v7114, %v7173
  %v7410 = vadd.f32 %v7115, %v7173
  %v7411 = vadd.f32 %v7116, %v7173
  %v7412 = vadd.f32 %v7117, %v7173
  %v7413 = vadd.f32 %v7118, %v7173
  %v7414 = vadd.f32 %v7119, %v7173
  %v7415 = vadd.f32 %v7120, %v7173
  %v7416 = vadd.f32 %v7121, %v7173
  %v7417 = vadd.f32 %v7122, %v7173
  %v7418 = vadd.f32 %v7123, %v7173
  %v7419 = vadd.f32 %v7124, %v7173
  %v7420 = vadd.f32 %v7125, %v7173
  %v7421 = vadd.f32 %v7126, %v7173
  %v7422 = vadd.f32 %v7127, %v7173
  %v7423 = vadd.f32 %v7128, %v7173
  %v7424 = vadd.f32 %v7129, %v7173
  %v7425 = vadd.f32 %v7130, %v7173
  %v7426 = vadd.f32 %v7131, %v7173
  %v7427 = vadd.f32 %v7132, %v7173
  %v7428 = vadd.f32 %v7133, %v7173
  %v7429 = vadd.f32 %v7134, %v7173
  %v7430 = vadd.f32 %v7135, %v7173
  %v7431 = vadd.f32 %v7136, %v7173
  %v7432 = vadd.f32 %v7137, %v7173
  %v7433 = vadd.f32 %v7138, %v7173
  %v7434 = vadd.f32 %v7139, %v7173
  %v7435 = vadd.f32 %v7140, %v7173
  %v7436 = vadd.f32 %v7141, %v7173
  %v7437 = vadd.f32 %v7142, %v7173
  %v7438 = vadd.f32 %v7143, %v7173
  %v7439 = vadd.f32 %v7144, %v7173
  %v7440 = vadd.f32 %v7145, %v7173
  %v7441 = vadd.f32 %v7146, %v7173
  %v7442 = vadd.f32 %v7147, %v7173
  %v7443 = vadd.f32 %v7148, %v7173
  %v7444 = vadd.f32 %v7149, %v7173
  %v7445 = vadd.f32 %v7150, %v7173
  %v7446 = vadd.f32 %v7151, %v7173
  %v7447 = vadd.f32 %v7152, %v7173
  %v7448 = vadd.f32 %v7153, %v7173
  %v7449 = vadd.f32 %v7154, %v7173
  %v7450 = vadd.f32 %v7155, %v7173
  %v7451 = vadd.f32 %v7156, %v7173
  %v7452 = vadd.f32 %v7157, %v7173
  %v7453 = vadd.f32 %v7158, %v7173
  %v7454 = vadd.f32 %v7159, %v7173
  %v7455 = vadd.f32 %v7160, %v7173
  %v7456 = vadd.f32 %v7161, %v7173
  %v7457 = vadd.f32 %v7162, %v7173
  %v7458 = vadd.f32 %v7163, %v7173
  %v7459 = vadd.f32 %v7164, %v7173
  %v7460 = vadd.f32 %v7165, %v7173
  %v7461 = vadd.f32 %v7166, %v7173
  %v7462 = vadd.f32 %v7167, %v7173
  %v7463 = vmax.f32 %v7175, 0.0
  %v7464 = vmax.f32 %v7176, 0.0
  %v7465 = vmax.f32 %v7177, 0.0
  %v7466 = vmax.f32 %v7178, 0.0
  %v7467 = vmax.f32 %v7179, 0.0
  %v7468 = vmax.f32 %v7180, 0.0
  %v7469 = vmax.f32 %v7181, 0.0
  %v7470 = vmax.f32 %v7182, 0.0
  %v7471 = vmax.f32 %v7183, 0.0
  %v7472 = vmax.f32 %v7184, 0.0
  %v7473 = vmax.f32 %v7185, 0.0
  %v7474 = vmax.f32 %v7186, 0.0
  %v7475 = vmax.f32 %v7187, 0.0
  %v7476 = vmax.f32 %v7188, 0.0
  %v7477 = vmax.f32 %v7189, 0.0
  %v7478 = vmax.f32 %v7190, 0.0
  %v7479 = vmax.f32 %v7191, 0.0
  %v7480 = vmax.f32 %v7192, 0.0
  %v7481 = vmax.f32 %v7193, 0.0
  %v7482 = vmax.f32 %v7194, 0.0
  %v7483 = vmax.f32 %v7195, 0.0
  %v7484 = vmax.f32 %v7196, 0.0
  %v7485 = vmax.f32 %v7197, 0.0
  %v7486 = vmax.f32 %v7198, 0.0
  %v7487 = vmax.f32 %v7199, 0.0
  %v7488 = vmax.f32 %v7200, 0.0
  %v7489 = vmax.f32 %v7201, 0.0
  %v7490 = vmax.f32 %v7202, 0.0
  %v7491 = vmax.f32 %v7203, 0.0
  %v7492 = vmax.f32 %v7204, 0.0
  %v7493 = vmax.f32 %v7205, 0.0
  %v7494 = vmax.f32 %v7206, 0.0
  %v7495 = vmax.f32 %v7207, 0.0
  %v7496 = vmax.f32 %v7208, 0.0
  %v7497 = vmax.f32 %v7209, 0.0
  %v7498 = vmax.f32 %v7210, 0.0
  %v7499 = vmax.f32 %v7211, 0.0
  %v7500 = vmax.f32 %v7212, 0.0
  %v7501 = vmax.f32 %v7213, 0.0
  %v7502 = vmax.f32 %v7214, 0.0
  %v7503 = vmax.f32 %v7215, 0.0
  %v7504 = vmax.f32 %v7216, 0.0
  %v7505 = vmax.f32 %v7217, 0.0
  %v7506 = vmax.f32 %v7218, 0.0
  %v7507 = vmax.f32 %v7219, 0.0
  %v7508 = vmax.f32 %v7220, 0.0
  %v7509 = vmax.f32 %v7221, 0.0
  %v7510 = vmax.f32 %v7222, 0.0
  %v7511 = vmax.f32 %v7223, 0.0
  %v7512 = vmax.f32 %v7224, 0.0
  %v7513 = vmax.f32 %v7225, 0.0
  %v7514 = vmax.f32 %v7226, 0.0
  %v7515 = vmax.f32 %v7227, 0.0
  %v7516 = vmax.f32 %v7228, 0.0
  %v7517 = vmax.f32 %v7229, 0.0
  %v7518 = vmax.f32 %v7230, 0.0
  %v7519 = vmax.f32 %v7231, 0.0
  %v7520 = vmax.f32 %v7232, 0.0
  %v7521 = vmax.f32 %v7233, 0.0
  %v7522 = vmax.f32 %v7234, 0.0
  %v7523 = vmax.f32 %v7235, 0.0
  %v7524 = vmax.f32 %v7236, 0.0
  %v7525 = vmax.f32 %v7237, 0.0
  %v7526 = vmax.f32 %v7238, 0.0
  %v7527 = vmax.f32 %v7239, 0.0
  %v7528 = vmax.f32 %v7240, 0.0
  %v7529 = vmax.f32 %v7241, 0.0
  %v7530 = vmax.f32 %v7242, 0.0
  %v7531 = vmax.f32 %v7243, 0.0
  %v7532 = vmax.f32 %v7244, 0.0
  %v7533 = vmax.f32 %v7245, 0.0
  %v7534 = vmax.f32 %v7246, 0.0
  %v7535 = vmax.f32 %v7247, 0.0
  %v7536 = vmax.f32 %v7248, 0.0
  %v7537 = vmax.f32 %v7249, 0.0
  %v7538 = vmax.f32 %v7250, 0.0
  %v7539 = vmax.f32 %v7251, 0.0
  %v7540 = vmax.f32 %v7252, 0.0
  %v7541 = vmax.f32 %v7253, 0.0
  %v7542 = vmax.f32 %v7254, 0.0
  %v7543 = vmax.f32 %v7255, 0.0
  %v7544 = vmax.f32 %v7256, 0.0
  %v7545 = vmax.f32 %v7257, 0.0
  %v7546 = vmax.f32 %v7258, 0.0
  %v7547 = vmax.f32 %v7259, 0.0
  %v7548 = vmax.f32 %v7260, 0.0
  %v7549 = vmax.f32 %v7261, 0.0
  %v7550 = vmax.f32 %v7262, 0.0
  %v7551 = vmax.f32 %v7263, 0.0
  %v7552 = vmax.f32 %v7264, 0.0
  %v7553 = vmax.f32 %v7265, 0.0
  %v7554 = vmax.f32 %v7266, 0.0
  %v7555 = vmax.f32 %v7267, 0.0
  %v7556 = vmax.f32 %v7268, 0.0
  %v7557 = vmax.f32 %v7269, 0.0
  %v7558 = vmax.f32 %v7270, 0.0
  %v7559 = vmax.f32 %v7271, 0.0
  %v7560 = vmax.f32 %v7272, 0.0
  %v7561 = vmax.f32 %v7273, 0.0
  %v7562 = vmax.f32 %v7274, 0.0
  %v7563 = vmax.f32 %v7275, 0.0
  %v7564 = vmax.f32 %v7276, 0.0
  %v7565 = vmax.f32 %v7277, 0.0
  %v7566 = vmax.f32 %v7278, 0.0
  %v7567 = vmax.f32 %v7279, 0.0
  %v7568 = vmax.f32 %v7280, 0.0
  %v7569 = vmax.f32 %v7281, 0.0
  %v7570 = vmax.f32 %v7282, 0.0
  %v7571 = vmax.f32 %v7283, 0.0
  %v7572 = vmax.f32 %v7284, 0.0
  %v7573 = vmax.f32 %v7285, 0.0
  %v7574 = vmax.f32 %v7286, 0.0
  %v7575 = vmax.f32 %v7287, 0.0
  %v7576 = vmax.f32 %v7288, 0.0
  %v7577 = vmax.f32 %v7289, 0.0
  %v7578 = vmax.f32 %v7290, 0.0
  %v7579 = vmax.f32 %v7291, 0.0
  %v7580 = vmax.f32 %v7292, 0.0
  %v7581 = vmax.f32 %v7293, 0.0
  %v7582 = vmax.f32 %v7294, 0.0
  %v7583 = vmax.f32 %v7295, 0.0
  %v7584 = vmax.f32 %v7296, 0.0
  %v7585 = vmax.f32 %v7297, 0.0
  %v7586 = vmax.f32 %v7298, 0.0
  %v7587 = vmax.f32 %v7299, 0.0
  %v7588 = vmax.f32 %v7300, 0.0
  %v7589 = vmax.f32 %v7301, 0.0
  %v7590 = vmax.f32 %v7302, 0.0
  %v7591 = vmax.f32 %v7303, 0.0
  %v7592 = vmax.f32 %v7304, 0.0
  %v7593 = vmax.f32 %v7305, 0.0
  %v7594 = vmax.f32 %v7306, 0.0
  %v7595 = vmax.f32 %v7307, 0.0
  %v7596 = vmax.f32 %v7308, 0.0
  %v7597 = vmax.f32 %v7309, 0.0
  %v7598 = vmax.f32 %v7310, 0.0
  %v7599 = vmax.f32 %v7311, 0.0
  %v7600 = vmax.f32 %v7312, 0.0
  %v7601 = vmax.f32 %v7313, 0.0
  %v7602 = vmax.f32 %v7314, 0.0
  %v7603 = vmax.f32 %v7315, 0.0
  %v7604 = vmax.f32 %v7316, 0.0
  %v7605 = vmax.f32 %v7317, 0.0
  %v7606 = vmax.f32 %v7318, 0.0
  %v7607 = vmax.f32 %v7319, 0.0
  %v7608 = vmax.f32 %v7320, 0.0
  %v7609 = vmax.f32 %v7321, 0.0
  %v7610 = vmax.f32 %v7322, 0.0
  %v7611 = vmax.f32 %v7323, 0.0
  %v7612 = vmax.f32 %v7324, 0.0
  %v7613 = vmax.f32 %v7325, 0.0
  %v7614 = vmax.f32 %v7326, 0.0
  %v7615 = vmax.f32 %v7327, 0.0
  %v7616 = vmax.f32 %v7328, 0.0
  %v7617 = vmax.f32 %v7329, 0.0
  %v7618 = vmax.f32 %v7330, 0.0
  %v7619 = vmax.f32 %v7331, 0.0
  %v7620 = vmax.f32 %v7332, 0.0
  %v7621 = vmax.f32 %v7333, 0.0
  %v7622 = vmax.f32 %v7334, 0.0
  %v7623 = vmax.f32 %v7335, 0.0
  %v7624 = vmax.f32 %v7336, 0.0
  %v7625 = vmax.f32 %v7337, 0.0
  %v7626 = vmax.f32 %v7338, 0.0
  %v7627 = vmax.f32 %v7339, 0.0
  %v7628 = vmax.f32 %v7340, 0.0
  %v7629 = vmax.f32 %v7341, 0.0
  %v7630 = vmax.f32 %v7342, 0.0
  %v7631 = vmax.f32 %v7343, 0.0
  %v7632 = vmax.f32 %v7344, 0.0
  %v7633 = vmax.f32 %v7345, 0.0
  %v7634 = vmax.f32 %v7346, 0.0
  %v7635 = vmax.f32 %v7347, 0.0
  %v7636 = vmax.f32 %v7348, 0.0
  %v7637 = vmax.f32 %v7349, 0.0
  %v7638 = vmax.f32 %v7350, 0.0
  %v7639 = vmax.f32 %v7351, 0.0
  %v7640 = vmax.f32 %v7352, 0.0
  %v7641 = vmax.f32 %v7353, 0.0
  %v7642 = vmax.f32 %v7354, 0.0
  %v7643 = vmax.f32 %v7355, 0.0
  %v7644 = vmax.f32 %v7356, 0.0
  %v7645 = vmax.f32 %v7357, 0.0
  %v7646 = vmax.f32 %v7358, 0.0
  %v7647 = vmax.f32 %v7359, 0.0
  %v7648 = vmax.f32 %v7360, 0.0
  %v7649 = vmax.f32 %v7361, 0.0
  %v7650 = vmax.f32 %v7362, 0.0
  %v7651 = vmax.f32 %v7363, 0.0
  %v7652 = vmax.f32 %v7364, 0.0
  %v7653 = vmax.f32 %v7365, 0.0
  %v7654 = vmax.f32 %v7366, 0.0
  %v7655 = vmax.f32 %v7367, 0.0
  %v7656 = vmax.f32 %v7368, 0.0
  %v7657 = vmax.f32 %v7369, 0.0
  %v7658 = vmax.f32 %v7370, 0.0
  %v7659 = vmax.f32 %v7371, 0.0
  %v7660 = vmax.f32 %v7372, 0.0
  %v7661 = vmax.f32 %v7373, 0.0
  %v7662 = vmax.f32 %v7374, 0.0
  %v7663 = vmax.f32 %v7375, 0.0
  %v7664 = vmax.f32 %v7376, 0.0
  %v7665 = vmax.f32 %v7377, 0.0
  %v7666 = vmax.f32 %v7378, 0.0
  %v7667 = vmax.f32 %v7379, 0.0
  %v7668 = vmax.f32 %v7380, 0.0
  %v7669 = vmax.f32 %v7381, 0.0
  %v7670 = vmax.f32 %v7382, 0.0
  %v7671 = vmax.f32 %v7383, 0.0
  %v7672 = vmax.f32 %v7384, 0.0
  %v7673 = vmax.f32 %v7385, 0.0
  %v7674 = vmax.f32 %v7386, 0.0
  %v7675 = vmax.f32 %v7387, 0.0
  %v7676 = vmax.f32 %v7388, 0.0
  %v7677 = vmax.f32 %v7389, 0.0
  %v7678 = vmax.f32 %v7390, 0.0
  %v7679 = vmax.f32 %v7391, 0.0
  %v7680 = vmax.f32 %v7392, 0.0
  %v7681 = vmax.f32 %v7393, 0.0
  %v7682 = vmax.f32 %v7394, 0.0
  %v7683 = vmax.f32 %v7395, 0.0
  %v7684 = vmax.f32 %v7396, 0.0
  %v7685 = vmax.f32 %v7397, 0.0
  %v7686 = vmax.f32 %v7398, 0.0
  %v7687 = vmax.f32 %v7399, 0.0
  %v7688 = vmax.f32 %v7400, 0.0
  %v7689 = vmax.f32 %v7401, 0.0
  %v7690 = vmax.f32 %v7402, 0.0
  %v7691 = vmax.f32 %v7403, 0.0
  %v7692 = vmax.f32 %v7404, 0.0
  %v7693 = vmax.f32 %v7405, 0.0
  %v7694 = vmax.f32 %v7406, 0.0
  %v7695 = vmax.f32 %v7407, 0.0
  %v7696 = vmax.f32 %v7408, 0.0
  %v7697 = vmax.f32 %v7409, 0.0
  %v7698 = vmax.f32 %v7410, 0.0
  %v7699 = vmax.f32 %v7411, 0.0
  %v7700 = vmax.f32 %v7412, 0.0
  %v7701 = vmax.f32 %v7413, 0.0
  %v7702 = vmax.f32 %v7414, 0.0
  %v7703 = vmax.f32 %v7415, 0.0
  %v7704 = vmax.f32 %v7416, 0.0
  %v7705 = vmax.f32 %v7417, 0.0
  %v7706 = vmax.f32 %v7418, 0.0
  %v7707 = vmax.f32 %v7419, 0.0
  %v7708 = vmax.f32 %v7420, 0.0
  %v7709 = vmax.f32 %v7421, 0.0
  %v7710 = vmax.f32 %v7422, 0.0
  %v7711 = vmax.f32 %v7423, 0.0
  %v7712 = vmax.f32 %v7424, 0.0
  %v7713 = vmax.f32 %v7425, 0.0
  %v7714 = vmax.f32 %v7426, 0.0
  %v7715 = vmax.f32 %v7427, 0.0
  %v7716 = vmax.f32 %v7428, 0.0
  %v7717 = vmax.f32 %v7429, 0.0
  %v7718 = vmax.f32 %v7430, 0.0
  %v7719 = vmax.f32 %v7431, 0.0
  %v7720 = vmax.f32 %v7432, 0.0
  %v7721 = vmax.f32 %v7433, 0.0
  %v7722 = vmax.f32 %v7434, 0.0
  %v7723 = vmax.f32 %v7435, 0.0
  %v7724 = vmax.f32 %v7436, 0.0
  %v7725 = vmax.f32 %v7437, 0.0
  %v7726 = vmax.f32 %v7438, 0.0
  %v7727 = vmax.f32 %v7439, 0.0
  %v7728 = vmax.f32 %v7440, 0.0
  %v7729 = vmax.f32 %v7441, 0.0
  %v7730 = vmax.f32 %v7442, 0.0
  %v7731 = vmax.f32 %v7443, 0.0
  %v7732 = vmax.f32 %v7444, 0.0
  %v7733 = vmax.f32 %v7445, 0.0
  %v7734 = vmax.f32 %v7446, 0.0
  %v7735 = vmax.f32 %v7447, 0.0
  %v7736 = vmax.f32 %v7448, 0.0
  %v7737 = vmax.f32 %v7449, 0.0
  %v7738 = vmax.f32 %v7450, 0.0
  %v7739 = vmax.f32 %v7451, 0.0
  %v7740 = vmax.f32 %v7452, 0.0
  %v7741 = vmax.f32 %v7453, 0.0
  %v7742 = vmax.f32 %v7454, 0.0
  %v7743 = vmax.f32 %v7455, 0.0
  %v7744 = vmax.f32 %v7456, 0.0
  %v7745 = vmax.f32 %v7457, 0.0
  %v7746 = vmax.f32 %v7458, 0.0
  %v7747 = vmax.f32 %v7459, 0.0
  %v7748 = vmax.f32 %v7460, 0.0
  %v7749 = vmax.f32 %v7461, 0.0
  %v7750 = vmax.f32 %v7462, 0.0
  %v7751 = vpack.c.bf16 %v7464, %v7463
  %v7752 = vpack.c.bf16 %v7466, %v7465
  %v7753 = vpack.c.bf16 %v7468, %v7467
  %v7754 = vpack.c.bf16 %v7470, %v7469
  %v7755 = vpack.c.bf16 %v7472, %v7471
  %v7756 = vpack.c.bf16 %v7474, %v7473
  %v7757 = vpack.c.bf16 %v7476, %v7475
  %v7758 = vpack.c.bf16 %v7478, %v7477
  %v7759 = vpack.c.bf16 %v7480, %v7479
  %v7760 = vpack.c.bf16 %v7482, %v7481
  %v7761 = vpack.c.bf16 %v7484, %v7483
  %v7762 = vpack.c.bf16 %v7486, %v7485
  %v7763 = vpack.c.bf16 %v7488, %v7487
  %v7764 = vpack.c.bf16 %v7490, %v7489
  %v7765 = vpack.c.bf16 %v7492, %v7491
  %v7766 = vpack.c.bf16 %v7494, %v7493
  %v7767 = vpack.c.bf16 %v7496, %v7495
  %v7768 = vpack.c.bf16 %v7498, %v7497
  %v7769 = vpack.c.bf16 %v7500, %v7499
  %v7770 = vpack.c.bf16 %v7502, %v7501
  %v7771 = vpack.c.bf16 %v7504, %v7503
  %v7772 = vpack.c.bf16 %v7506, %v7505
  %v7773 = vpack.c.bf16 %v7508, %v7507
  %v7774 = vpack.c.bf16 %v7510, %v7509
  %v7775 = vpack.c.bf16 %v7512, %v7511
  %v7776 = vpack.c.bf16 %v7514, %v7513
  %v7777 = vpack.c.bf16 %v7516, %v7515
  %v7778 = vpack.c.bf16 %v7518, %v7517
  %v7779 = vpack.c.bf16 %v7520, %v7519
  %v7780 = vpack.c.bf16 %v7522, %v7521
  %v7781 = vpack.c.bf16 %v7524, %v7523
  %v7782 = vpack.c.bf16 %v7526, %v7525
  %v7783 = vpack.c.bf16 %v7528, %v7527
  %v7784 = vpack.c.bf16 %v7530, %v7529
  %v7785 = vpack.c.bf16 %v7532, %v7531
  %v7786 = vpack.c.bf16 %v7534, %v7533
  %v7787 = vpack.c.bf16 %v7536, %v7535
  %v7788 = vpack.c.bf16 %v7538, %v7537
  %v7789 = vpack.c.bf16 %v7540, %v7539
  %v7790 = vpack.c.bf16 %v7542, %v7541
  %v7791 = vpack.c.bf16 %v7544, %v7543
  %v7792 = vpack.c.bf16 %v7546, %v7545
  %v7793 = vpack.c.bf16 %v7548, %v7547
  %v7794 = vpack.c.bf16 %v7550, %v7549
  %v7795 = vpack.c.bf16 %v7552, %v7551
  %v7796 = vpack.c.bf16 %v7554, %v7553
  %v7797 = vpack.c.bf16 %v7556, %v7555
  %v7798 = vpack.c.bf16 %v7558, %v7557
  %v7799 = vpack.c.bf16 %v7560, %v7559
  %v7800 = vpack.c.bf16 %v7562, %v7561
  %v7801 = vpack.c.bf16 %v7564, %v7563
  %v7802 = vpack.c.bf16 %v7566, %v7565
  %v7803 = vpack.c.bf16 %v7568, %v7567
  %v7804 = vpack.c.bf16 %v7570, %v7569
  %v7805 = vpack.c.bf16 %v7572, %v7571
  %v7806 = vpack.c.bf16 %v7574, %v7573
  %v7807 = vpack.c.bf16 %v7576, %v7575
  %v7808 = vpack.c.bf16 %v7578, %v7577
  %v7809 = vpack.c.bf16 %v7580, %v7579
  %v7810 = vpack.c.bf16 %v7582, %v7581
  %v7811 = vpack.c.bf16 %v7584, %v7583
  %v7812 = vpack.c.bf16 %v7586, %v7585
  %v7813 = vpack.c.bf16 %v7588, %v7587
  %v7814 = vpack.c.bf16 %v7590, %v7589
  %v7815 = vpack.c.bf16 %v7592, %v7591
  %v7816 = vpack.c.bf16 %v7594, %v7593
  %v7817 = vpack.c.bf16 %v7596, %v7595
  %v7818 = vpack.c.bf16 %v7598, %v7597
  %v7819 = vpack.c.bf16 %v7600, %v7599
  %v7820 = vpack.c.bf16 %v7602, %v7601
  %v7821 = vpack.c.bf16 %v7604, %v7603
  %v7822 = vpack.c.bf16 %v7606, %v7605
  %v7823 = vpack.c.bf16 %v7608, %v7607
  %v7824 = vpack.c.bf16 %v7610, %v7609
  %v7825 = vpack.c.bf16 %v7612, %v7611
  %v7826 = vpack.c.bf16 %v7614, %v7613
  %v7827 = vpack.c.bf16 %v7616, %v7615
  %v7828 = vpack.c.bf16 %v7618, %v7617
  %v7829 = vpack.c.bf16 %v7620, %v7619
  %v7830 = vpack.c.bf16 %v7622, %v7621
  %v7831 = vpack.c.bf16 %v7624, %v7623
  %v7832 = vpack.c.bf16 %v7626, %v7625
  %v7833 = vpack.c.bf16 %v7628, %v7627
  %v7834 = vpack.c.bf16 %v7630, %v7629
  %v7835 = vpack.c.bf16 %v7632, %v7631
  %v7836 = vpack.c.bf16 %v7634, %v7633
  %v7837 = vpack.c.bf16 %v7636, %v7635
  %v7838 = vpack.c.bf16 %v7638, %v7637
  %v7839 = vpack.c.bf16 %v7640, %v7639
  %v7840 = vpack.c.bf16 %v7642, %v7641
  %v7841 = vpack.c.bf16 %v7644, %v7643
  %v7842 = vpack.c.bf16 %v7646, %v7645
  %v7843 = vpack.c.bf16 %v7648, %v7647
  %v7844 = vpack.c.bf16 %v7650, %v7649
  %v7845 = vpack.c.bf16 %v7652, %v7651
  %v7846 = vpack.c.bf16 %v7654, %v7653
  %v7847 = vpack.c.bf16 %v7656, %v7655
  %v7848 = vpack.c.bf16 %v7658, %v7657
  %v7849 = vpack.c.bf16 %v7660, %v7659
  %v7850 = vpack.c.bf16 %v7662, %v7661
  %v7851 = vpack.c.bf16 %v7664, %v7663
  %v7852 = vpack.c.bf16 %v7666, %v7665
  %v7853 = vpack.c.bf16 %v7668, %v7667
  %v7854 = vpack.c.bf16 %v7670, %v7669
  %v7855 = vpack.c.bf16 %v7672, %v7671
  %v7856 = vpack.c.bf16 %v7674, %v7673
  %v7857 = vpack.c.bf16 %v7676, %v7675
  %v7858 = vpack.c.bf16 %v7678, %v7677
  %v7859 = vpack.c.bf16 %v7680, %v7679
  %v7860 = vpack.c.bf16 %v7682, %v7681
  %v7861 = vpack.c.bf16 %v7684, %v7683
  %v7862 = vpack.c.bf16 %v7686, %v7685
  %v7863 = vpack.c.bf16 %v7688, %v7687
  %v7864 = vpack.c.bf16 %v7690, %v7689
  %v7865 = vpack.c.bf16 %v7692, %v7691
  %v7866 = vpack.c.bf16 %v7694, %v7693
  %v7867 = vpack.c.bf16 %v7696, %v7695
  %v7868 = vpack.c.bf16 %v7698, %v7697
  %v7869 = vpack.c.bf16 %v7700, %v7699
  %v7870 = vpack.c.bf16 %v7702, %v7701
  %v7871 = vpack.c.bf16 %v7704, %v7703
  %v7872 = vpack.c.bf16 %v7706, %v7705
  %v7873 = vpack.c.bf16 %v7708, %v7707
  %v7874 = vpack.c.bf16 %v7710, %v7709
  %v7875 = vpack.c.bf16 %v7712, %v7711
  %v7876 = vpack.c.bf16 %v7714, %v7713
  %v7877 = vpack.c.bf16 %v7716, %v7715
  %v7878 = vpack.c.bf16 %v7718, %v7717
  %v7879 = vpack.c.bf16 %v7720, %v7719
  %v7880 = vpack.c.bf16 %v7722, %v7721
  %v7881 = vpack.c.bf16 %v7724, %v7723
  %v7882 = vpack.c.bf16 %v7726, %v7725
  %v7883 = vpack.c.bf16 %v7728, %v7727
  %v7884 = vpack.c.bf16 %v7730, %v7729
  %v7885 = vpack.c.bf16 %v7732, %v7731
  %v7886 = vpack.c.bf16 %v7734, %v7733
  %v7887 = vpack.c.bf16 %v7736, %v7735
  %v7888 = vpack.c.bf16 %v7738, %v7737
  %v7889 = vpack.c.bf16 %v7740, %v7739
  %v7890 = vpack.c.bf16 %v7742, %v7741
  %v7891 = vpack.c.bf16 %v7744, %v7743
  %v7892 = vpack.c.bf16 %v7746, %v7745
  %v7893 = vpack.c.bf16 %v7748, %v7747
  %v7894 = vpack.c.bf16 %v7750, %v7749
  %7911 = vrot.lane.b32.xlu0 %v7787, 10
  %v7912 = vpop.permute.xlu0 %7911
  %7913 = vrot.lane.b32.xlu0 %v7788, 10
  %v7914 = vpop.permute.xlu0 %7913
  %7915 = vrot.lane.b32.xlu0 %v7789, 10
  %v7916 = vpop.permute.xlu0 %7915
  %7917 = vrot.lane.b32.xlu0 %v7790, 10
  %v7918 = vpop.permute.xlu0 %7917
  %7919 = vrot.lane.b32.xlu0 %v7793, 10
  %v7920 = vpop.permute.xlu0 %7919
  %7921 = vrot.lane.b32.xlu0 %v7794, 10
  %v7922 = vpop.permute.xlu0 %7921
  %7923 = vrot.lane.b32.xlu0 %v7795, 10
  %v7924 = vpop.permute.xlu0 %7923
  %7925 = vrot.lane.b32.xlu0 %v7796, 10
  %v7926 = vpop.permute.xlu0 %7925
  %7927 = vrot.lane.b32.xlu0 %v7799, 10
  %v7928 = vpop.permute.xlu0 %7927
  %7929 = vrot.lane.b32.xlu0 %v7800, 10
  %v7930 = vpop.permute.xlu0 %7929
  %7931 = vrot.lane.b32.xlu0 %v7801, 10
  %v7932 = vpop.permute.xlu0 %7931
  %7933 = vrot.lane.b32.xlu0 %v7802, 10
  %v7934 = vpop.permute.xlu0 %7933
  %7935 = vrot.lane.b32.xlu0 %v7805, 10
  %v7936 = vpop.permute.xlu0 %7935
  %7937 = vrot.lane.b32.xlu0 %v7806, 10
  %v7938 = vpop.permute.xlu0 %7937
  %7939 = vrot.lane.b32.xlu0 %v7807, 10
  %v7940 = vpop.permute.xlu0 %7939
  %7941 = vrot.lane.b32.xlu0 %v7808, 10
  %v7942 = vpop.permute.xlu0 %7941
  %7959 = vrot.lane.b32.xlu0 %v7752, 20
  %v7960 = vpop.permute.xlu0 %7959
  %7961 = vrot.lane.b32.xlu0 %v7753, 20
  %v7962 = vpop.permute.xlu0 %7961
  %7963 = vrot.lane.b32.xlu0 %v7754, 20
  %v7964 = vpop.permute.xlu0 %7963
  %7965 = vrot.lane.b32.xlu0 %v7755, 20
  %v7966 = vpop.permute.xlu0 %7965
  %7967 = vrot.lane.b32.xlu0 %v7758, 20
  %v7968 = vpop.permute.xlu0 %7967
  %7969 = vrot.lane.b32.xlu0 %v7759, 20
  %v7970 = vpop.permute.xlu0 %7969
  %7971 = vrot.lane.b32.xlu0 %v7760, 20
  %v7972 = vpop.permute.xlu0 %7971
  %7973 = vrot.lane.b32.xlu0 %v7761, 20
  %v7974 = vpop.permute.xlu0 %7973
  %7975 = vrot.lane.b32.xlu0 %v7764, 20
  %v7976 = vpop.permute.xlu0 %7975
  %7977 = vrot.lane.b32.xlu0 %v7765, 20
  %v7978 = vpop.permute.xlu0 %7977
  %7979 = vrot.lane.b32.xlu0 %v7766, 20
  %v7980 = vpop.permute.xlu0 %7979
  %7981 = vrot.lane.b32.xlu0 %v7767, 20
  %v7982 = vpop.permute.xlu0 %7981
  %7983 = vrot.lane.b32.xlu0 %v7770, 20
  %v7984 = vpop.permute.xlu0 %7983
  %7985 = vrot.lane.b32.xlu0 %v7771, 20
  %v7986 = vpop.permute.xlu0 %7985
  %7987 = vrot.lane.b32.xlu0 %v7772, 20
  %v7988 = vpop.permute.xlu0 %7987
  %7989 = vrot.lane.b32.xlu0 %v7773, 20
  %v7990 = vpop.permute.xlu0 %7989
  %7995 = vrot.lane.b32.xlu0 %v7788, 30
  %v7996 = vpop.permute.xlu0 %7995
  %7997 = vrot.lane.b32.xlu0 %v7789, 30
  %v7998 = vpop.permute.xlu0 %7997
  %7999 = vrot.lane.b32.xlu0 %v7790, 30
  %v8000 = vpop.permute.xlu0 %7999
  %8001 = vrot.lane.b32.xlu0 %v7791, 30
  %v8002 = vpop.permute.xlu0 %8001
  %8003 = vrot.lane.b32.xlu0 %v7794, 30
  %v8004 = vpop.permute.xlu0 %8003
  %8005 = vrot.lane.b32.xlu0 %v7795, 30
  %v8006 = vpop.permute.xlu0 %8005
  %8007 = vrot.lane.b32.xlu0 %v7796, 30
  %v8008 = vpop.permute.xlu0 %8007
  %8009 = vrot.lane.b32.xlu0 %v7797, 30
  %v8010 = vpop.permute.xlu0 %8009
  %8011 = vrot.lane.b32.xlu0 %v7800, 30
  %v8012 = vpop.permute.xlu0 %8011
  %8013 = vrot.lane.b32.xlu0 %v7801, 30
  %v8014 = vpop.permute.xlu0 %8013
  %8015 = vrot.lane.b32.xlu0 %v7802, 30
  %v8016 = vpop.permute.xlu0 %8015
  %8017 = vrot.lane.b32.xlu0 %v7803, 30
  %v8018 = vpop.permute.xlu0 %8017
  %8019 = vrot.lane.b32.xlu0 %v7806, 30
  %v8020 = vpop.permute.xlu0 %8019
  %8021 = vrot.lane.b32.xlu0 %v7807, 30
  %v8022 = vpop.permute.xlu0 %8021
  %8023 = vrot.lane.b32.xlu0 %v7808, 30
  %v8024 = vpop.permute.xlu0 %8023
  %8025 = vrot.lane.b32.xlu0 %v7809, 30
  %v8026 = vpop.permute.xlu0 %8025
  %8031 = vrot.lane.b32.xlu0 %v7753, 40
  %v8032 = vpop.permute.xlu0 %8031
  %8033 = vrot.lane.b32.xlu0 %v7754, 40
  %v8034 = vpop.permute.xlu0 %8033
  %8035 = vrot.lane.b32.xlu0 %v7755, 40
  %v8036 = vpop.permute.xlu0 %8035
  %8037 = vrot.lane.b32.xlu0 %v7756, 40
  %v8038 = vpop.permute.xlu0 %8037
  %8039 = vrot.lane.b32.xlu0 %v7759, 40
  %v8040 = vpop.permute.xlu0 %8039
  %8041 = vrot.lane.b32.xlu0 %v7760, 40
  %v8042 = vpop.permute.xlu0 %8041
  %8043 = vrot.lane.b32.xlu0 %v7761, 40
  %v8044 = vpop.permute.xlu0 %8043
  %8045 = vrot.lane.b32.xlu0 %v7762, 40
  %v8046 = vpop.permute.xlu0 %8045
  %8047 = vrot.lane.b32.xlu0 %v7765, 40
  %v8048 = vpop.permute.xlu0 %8047
  %8049 = vrot.lane.b32.xlu0 %v7766, 40
  %v8050 = vpop.permute.xlu0 %8049
  %8051 = vrot.lane.b32.xlu0 %v7767, 40
  %v8052 = vpop.permute.xlu0 %8051
  %8053 = vrot.lane.b32.xlu0 %v7768, 40
  %v8054 = vpop.permute.xlu0 %8053
  %8055 = vrot.lane.b32.xlu0 %v7771, 40
  %v8056 = vpop.permute.xlu0 %8055
  %8057 = vrot.lane.b32.xlu0 %v7772, 40
  %v8058 = vpop.permute.xlu0 %8057
  %8059 = vrot.lane.b32.xlu0 %v7773, 40
  %v8060 = vpop.permute.xlu0 %8059
  %8061 = vrot.lane.b32.xlu0 %v7774, 40
  %v8062 = vpop.permute.xlu0 %8061
  %8067 = vrot.lane.b32.xlu0 %v7789, 50
  %v8068 = vpop.permute.xlu0 %8067
  %8069 = vrot.lane.b32.xlu0 %v7790, 50
  %v8070 = vpop.permute.xlu0 %8069
  %8071 = vrot.lane.b32.xlu0 %v7791, 50
  %v8072 = vpop.permute.xlu0 %8071
  %8073 = vrot.lane.b32.xlu0 %v7792, 50
  %v8074 = vpop.permute.xlu0 %8073
  %8075 = vrot.lane.b32.xlu0 %v7795, 50
  %v8076 = vpop.permute.xlu0 %8075
  %8077 = vrot.lane.b32.xlu0 %v7796, 50
  %v8078 = vpop.permute.xlu0 %8077
  %8079 = vrot.lane.b32.xlu0 %v7797, 50
  %v8080 = vpop.permute.xlu0 %8079
  %8081 = vrot.lane.b32.xlu0 %v7798, 50
  %v8082 = vpop.permute.xlu0 %8081
  %8083 = vrot.lane.b32.xlu0 %v7801, 50
  %v8084 = vpop.permute.xlu0 %8083
  %8085 = vrot.lane.b32.xlu0 %v7802, 50
  %v8086 = vpop.permute.xlu0 %8085
  %8087 = vrot.lane.b32.xlu0 %v7803, 50
  %v8088 = vpop.permute.xlu0 %8087
  %8089 = vrot.lane.b32.xlu0 %v7804, 50
  %v8090 = vpop.permute.xlu0 %8089
  %8091 = vrot.lane.b32.xlu0 %v7807, 50
  %v8092 = vpop.permute.xlu0 %8091
  %8093 = vrot.lane.b32.xlu0 %v7808, 50
  %v8094 = vpop.permute.xlu0 %8093
  %8095 = vrot.lane.b32.xlu0 %v7809, 50
  %v8096 = vpop.permute.xlu0 %8095
  %8097 = vrot.lane.b32.xlu0 %v7810, 50
  %v8098 = vpop.permute.xlu0 %8097
  %8115 = vrot.lane.b32.xlu0 %v7823, 60
  %v8116 = vpop.permute.xlu0 %8115
  %8117 = vrot.lane.b32.xlu0 %v7824, 60
  %v8118 = vpop.permute.xlu0 %8117
  %8119 = vrot.lane.b32.xlu0 %v7825, 60
  %v8120 = vpop.permute.xlu0 %8119
  %8121 = vrot.lane.b32.xlu0 %v7826, 60
  %v8122 = vpop.permute.xlu0 %8121
  %8123 = vrot.lane.b32.xlu0 %v7829, 60
  %v8124 = vpop.permute.xlu0 %8123
  %8125 = vrot.lane.b32.xlu0 %v7830, 60
  %v8126 = vpop.permute.xlu0 %8125
  %8127 = vrot.lane.b32.xlu0 %v7831, 60
  %v8128 = vpop.permute.xlu0 %8127
  %8129 = vrot.lane.b32.xlu0 %v7832, 60
  %v8130 = vpop.permute.xlu0 %8129
  %8131 = vrot.lane.b32.xlu0 %v7835, 60
  %v8132 = vpop.permute.xlu0 %8131
  %8133 = vrot.lane.b32.xlu0 %v7836, 60
  %v8134 = vpop.permute.xlu0 %8133
  %8135 = vrot.lane.b32.xlu0 %v7837, 60
  %v8136 = vpop.permute.xlu0 %8135
  %8137 = vrot.lane.b32.xlu0 %v7838, 60
  %v8138 = vpop.permute.xlu0 %8137
  %8139 = vrot.lane.b32.xlu0 %v7841, 60
  %v8140 = vpop.permute.xlu0 %8139
  %8141 = vrot.lane.b32.xlu0 %v7842, 60
  %v8142 = vpop.permute.xlu0 %8141
  %8143 = vrot.lane.b32.xlu0 %v7843, 60
  %v8144 = vpop.permute.xlu0 %8143
  %8145 = vrot.lane.b32.xlu0 %v7844, 60
  %v8146 = vpop.permute.xlu0 %8145
  %8163 = vrot.lane.b32.xlu0 %v7859, 70
  %v8164 = vpop.permute.xlu0 %8163
  %8165 = vrot.lane.b32.xlu0 %v7860, 70
  %v8166 = vpop.permute.xlu0 %8165
  %8167 = vrot.lane.b32.xlu0 %v7861, 70
  %v8168 = vpop.permute.xlu0 %8167
  %8169 = vrot.lane.b32.xlu0 %v7862, 70
  %v8170 = vpop.permute.xlu0 %8169
  %8171 = vrot.lane.b32.xlu0 %v7865, 70
  %v8172 = vpop.permute.xlu0 %8171
  %8173 = vrot.lane.b32.xlu0 %v7866, 70
  %v8174 = vpop.permute.xlu0 %8173
  %8175 = vrot.lane.b32.xlu0 %v7867, 70
  %v8176 = vpop.permute.xlu0 %8175
  %8177 = vrot.lane.b32.xlu0 %v7868, 70
  %v8178 = vpop.permute.xlu0 %8177
  %8179 = vrot.lane.b32.xlu0 %v7871, 70
  %v8180 = vpop.permute.xlu0 %8179
  %8181 = vrot.lane.b32.xlu0 %v7872, 70
  %v8182 = vpop.permute.xlu0 %8181
  %8183 = vrot.lane.b32.xlu0 %v7873, 70
  %v8184 = vpop.permute.xlu0 %8183
  %8185 = vrot.lane.b32.xlu0 %v7874, 70
  %v8186 = vpop.permute.xlu0 %8185
  %8187 = vrot.lane.b32.xlu0 %v7877, 70
  %v8188 = vpop.permute.xlu0 %8187
  %8189 = vrot.lane.b32.xlu0 %v7878, 70
  %v8190 = vpop.permute.xlu0 %8189
  %8191 = vrot.lane.b32.xlu0 %v7879, 70
  %v8192 = vpop.permute.xlu0 %8191
  %8193 = vrot.lane.b32.xlu0 %v7880, 70
  %v8194 = vpop.permute.xlu0 %8193
  %8199 = vrot.lane.b32.xlu0 %v7824, 80
  %v8200 = vpop.permute.xlu0 %8199
  %8201 = vrot.lane.b32.xlu0 %v7825, 80
  %v8202 = vpop.permute.xlu0 %8201
  %8203 = vrot.lane.b32.xlu0 %v7826, 80
  %v8204 = vpop.permute.xlu0 %8203
  %8205 = vrot.lane.b32.xlu0 %v7827, 80
  %v8206 = vpop.permute.xlu0 %8205
  %8207 = vrot.lane.b32.xlu0 %v7830, 80
  %v8208 = vpop.permute.xlu0 %8207
  %8209 = vrot.lane.b32.xlu0 %v7831, 80
  %v8210 = vpop.permute.xlu0 %8209
  %8211 = vrot.lane.b32.xlu0 %v7832, 80
  %v8212 = vpop.permute.xlu0 %8211
  %8213 = vrot.lane.b32.xlu0 %v7833, 80
  %v8214 = vpop.permute.xlu0 %8213
  %8215 = vrot.lane.b32.xlu0 %v7836, 80
  %v8216 = vpop.permute.xlu0 %8215
  %8217 = vrot.lane.b32.xlu0 %v7837, 80
  %v8218 = vpop.permute.xlu0 %8217
  %8219 = vrot.lane.b32.xlu0 %v7838, 80
  %v8220 = vpop.permute.xlu0 %8219
  %8221 = vrot.lane.b32.xlu0 %v7839, 80
  %v8222 = vpop.permute.xlu0 %8221
  %8223 = vrot.lane.b32.xlu0 %v7842, 80
  %v8224 = vpop.permute.xlu0 %8223
  %8225 = vrot.lane.b32.xlu0 %v7843, 80
  %v8226 = vpop.permute.xlu0 %8225
  %8227 = vrot.lane.b32.xlu0 %v7844, 80
  %v8228 = vpop.permute.xlu0 %8227
  %8229 = vrot.lane.b32.xlu0 %v7845, 80
  %v8230 = vpop.permute.xlu0 %8229
  %8235 = vrot.lane.b32.xlu0 %v7860, 90
  %v8236 = vpop.permute.xlu0 %8235
  %8237 = vrot.lane.b32.xlu0 %v7861, 90
  %v8238 = vpop.permute.xlu0 %8237
  %8239 = vrot.lane.b32.xlu0 %v7862, 90
  %v8240 = vpop.permute.xlu0 %8239
  %8241 = vrot.lane.b32.xlu0 %v7863, 90
  %v8242 = vpop.permute.xlu0 %8241
  %8243 = vrot.lane.b32.xlu0 %v7866, 90
  %v8244 = vpop.permute.xlu0 %8243
  %8245 = vrot.lane.b32.xlu0 %v7867, 90
  %v8246 = vpop.permute.xlu0 %8245
  %8247 = vrot.lane.b32.xlu0 %v7868, 90
  %v8248 = vpop.permute.xlu0 %8247
  %8249 = vrot.lane.b32.xlu0 %v7869, 90
  %v8250 = vpop.permute.xlu0 %8249
  %8251 = vrot.lane.b32.xlu0 %v7872, 90
  %v8252 = vpop.permute.xlu0 %8251
  %8253 = vrot.lane.b32.xlu0 %v7873, 90
  %v8254 = vpop.permute.xlu0 %8253
  %8255 = vrot.lane.b32.xlu0 %v7874, 90
  %v8256 = vpop.permute.xlu0 %8255
  %8257 = vrot.lane.b32.xlu0 %v7875, 90
  %v8258 = vpop.permute.xlu0 %8257
  %8259 = vrot.lane.b32.xlu0 %v7878, 90
  %v8260 = vpop.permute.xlu0 %8259
  %8261 = vrot.lane.b32.xlu0 %v7879, 90
  %v8262 = vpop.permute.xlu0 %8261
  %8263 = vrot.lane.b32.xlu0 %v7880, 90
  %v8264 = vpop.permute.xlu0 %8263
  %8265 = vrot.lane.b32.xlu0 %v7881, 90
  %v8266 = vpop.permute.xlu0 %8265
  %8271 = vrot.lane.b32.xlu0 %v7825, 100
  %v8272 = vpop.permute.xlu0 %8271
  %8273 = vrot.lane.b32.xlu0 %v7826, 100
  %v8274 = vpop.permute.xlu0 %8273
  %8275 = vrot.lane.b32.xlu0 %v7827, 100
  %v8276 = vpop.permute.xlu0 %8275
  %8277 = vrot.lane.b32.xlu0 %v7828, 100
  %v8278 = vpop.permute.xlu0 %8277
  %8279 = vrot.lane.b32.xlu0 %v7831, 100
  %v8280 = vpop.permute.xlu0 %8279
  %8281 = vrot.lane.b32.xlu0 %v7832, 100
  %v8282 = vpop.permute.xlu0 %8281
  %8283 = vrot.lane.b32.xlu0 %v7833, 100
  %v8284 = vpop.permute.xlu0 %8283
  %8285 = vrot.lane.b32.xlu0 %v7834, 100
  %v8286 = vpop.permute.xlu0 %8285
  %8287 = vrot.lane.b32.xlu0 %v7837, 100
  %v8288 = vpop.permute.xlu0 %8287
  %8289 = vrot.lane.b32.xlu0 %v7838, 100
  %v8290 = vpop.permute.xlu0 %8289
  %8291 = vrot.lane.b32.xlu0 %v7839, 100
  %v8292 = vpop.permute.xlu0 %8291
  %8293 = vrot.lane.b32.xlu0 %v7840, 100
  %v8294 = vpop.permute.xlu0 %8293
  %8295 = vrot.lane.b32.xlu0 %v7843, 100
  %v8296 = vpop.permute.xlu0 %8295
  %8297 = vrot.lane.b32.xlu0 %v7844, 100
  %v8298 = vpop.permute.xlu0 %8297
  %8299 = vrot.lane.b32.xlu0 %v7845, 100
  %v8300 = vpop.permute.xlu0 %8299
  %8301 = vrot.lane.b32.xlu0 %v7846, 100
  %v8302 = vpop.permute.xlu0 %8301
  %8307 = vrot.lane.b32.xlu0 %v7861, 110
  %v8308 = vpop.permute.xlu0 %8307
  %8309 = vrot.lane.b32.xlu0 %v7862, 110
  %v8310 = vpop.permute.xlu0 %8309
  %8311 = vrot.lane.b32.xlu0 %v7863, 110
  %v8312 = vpop.permute.xlu0 %8311
  %8313 = vrot.lane.b32.xlu0 %v7864, 110
  %v8314 = vpop.permute.xlu0 %8313
  %8315 = vrot.lane.b32.xlu0 %v7867, 110
  %v8316 = vpop.permute.xlu0 %8315
  %8317 = vrot.lane.b32.xlu0 %v7868, 110
  %v8318 = vpop.permute.xlu0 %8317
  %8319 = vrot.lane.b32.xlu0 %v7869, 110
  %v8320 = vpop.permute.xlu0 %8319
  %8321 = vrot.lane.b32.xlu0 %v7870, 110
  %v8322 = vpop.permute.xlu0 %8321
  %8323 = vrot.lane.b32.xlu0 %v7873, 110
  %v8324 = vpop.permute.xlu0 %8323
  %8325 = vrot.lane.b32.xlu0 %v7874, 110
  %v8326 = vpop.permute.xlu0 %8325
  %8327 = vrot.lane.b32.xlu0 %v7875, 110
  %v8328 = vpop.permute.xlu0 %8327
  %8329 = vrot.lane.b32.xlu0 %v7876, 110
  %v8330 = vpop.permute.xlu0 %8329
  %8331 = vrot.lane.b32.xlu0 %v7879, 110
  %v8332 = vpop.permute.xlu0 %8331
  %8333 = vrot.lane.b32.xlu0 %v7880, 110
  %v8334 = vpop.permute.xlu0 %8333
  %8335 = vrot.lane.b32.xlu0 %v7881, 110
  %v8336 = vpop.permute.xlu0 %8335
  %8337 = vrot.lane.b32.xlu0 %v7882, 110
  %v8338 = vpop.permute.xlu0 %8337
  %8346 = vrot.lane.b32.xlu0 %v7757, 120
  %v8347 = vpop.permute.xlu0 %8346
  %8348 = vrot.lane.b32.xlu0 %v7758, 120
  %v8349 = vpop.permute.xlu0 %8348
  %8350 = vrot.lane.b32.xlu0 %v7759, 120
  %v8351 = vpop.permute.xlu0 %8350
  %8352 = vrot.lane.b32.xlu0 %v7760, 120
  %v8353 = vpop.permute.xlu0 %8352
  %8354 = vrot.lane.b32.xlu0 %v7763, 120
  %v8355 = vpop.permute.xlu0 %8354
  %8356 = vrot.lane.b32.xlu0 %v7764, 120
  %v8357 = vpop.permute.xlu0 %8356
  %8358 = vrot.lane.b32.xlu0 %v7765, 120
  %v8359 = vpop.permute.xlu0 %8358
  %8360 = vrot.lane.b32.xlu0 %v7766, 120
  %v8361 = vpop.permute.xlu0 %8360
  %8362 = vrot.lane.b32.xlu0 %v7769, 120
  %v8363 = vpop.permute.xlu0 %8362
  %8364 = vrot.lane.b32.xlu0 %v7770, 120
  %v8365 = vpop.permute.xlu0 %8364
  %8366 = vrot.lane.b32.xlu0 %v7771, 120
  %v8367 = vpop.permute.xlu0 %8366
  %8368 = vrot.lane.b32.xlu0 %v7772, 120
  %v8369 = vpop.permute.xlu0 %8368
  %8370 = vrot.lane.b32.xlu0 %v7775, 120
  %v8371 = vpop.permute.xlu0 %8370
  %8372 = vrot.lane.b32.xlu0 %v7776, 120
  %v8373 = vpop.permute.xlu0 %8372
  %8374 = vrot.lane.b32.xlu0 %v7777, 120
  %v8375 = vpop.permute.xlu0 %8374
  %8376 = vrot.lane.b32.xlu0 %v7778, 120
  %v8377 = vpop.permute.xlu0 %8376
  %8382 = vrot.lane.b32.xlu0 %v7793, 2
  %v8383 = vpop.permute.xlu0 %8382
  %8384 = vrot.lane.b32.xlu0 %v7794, 2
  %v8385 = vpop.permute.xlu0 %8384
  %8386 = vrot.lane.b32.xlu0 %v7795, 2
  %v8387 = vpop.permute.xlu0 %8386
  %8388 = vrot.lane.b32.xlu0 %v7796, 2
  %v8389 = vpop.permute.xlu0 %8388
  %8390 = vrot.lane.b32.xlu0 %v7799, 2
  %v8391 = vpop.permute.xlu0 %8390
  %8392 = vrot.lane.b32.xlu0 %v7800, 2
  %v8393 = vpop.permute.xlu0 %8392
  %8394 = vrot.lane.b32.xlu0 %v7801, 2
  %v8395 = vpop.permute.xlu0 %8394
  %8396 = vrot.lane.b32.xlu0 %v7802, 2
  %v8397 = vpop.permute.xlu0 %8396
  %8398 = vrot.lane.b32.xlu0 %v7805, 2
  %v8399 = vpop.permute.xlu0 %8398
  %8400 = vrot.lane.b32.xlu0 %v7806, 2
  %v8401 = vpop.permute.xlu0 %8400
  %8402 = vrot.lane.b32.xlu0 %v7807, 2
  %v8403 = vpop.permute.xlu0 %8402
  %8404 = vrot.lane.b32.xlu0 %v7808, 2
  %v8405 = vpop.permute.xlu0 %8404
  %8406 = vrot.lane.b32.xlu0 %v7811, 2
  %v8407 = vpop.permute.xlu0 %8406
  %8408 = vrot.lane.b32.xlu0 %v7812, 2
  %v8409 = vpop.permute.xlu0 %8408
  %8410 = vrot.lane.b32.xlu0 %v7813, 2
  %v8411 = vpop.permute.xlu0 %8410
  %8412 = vrot.lane.b32.xlu0 %v7814, 2
  %v8413 = vpop.permute.xlu0 %8412
  %8415 = vrot.lane.b32.xlu0 %v7758, 12
  %v8416 = vpop.permute.xlu0 %8415
  %8417 = vrot.lane.b32.xlu0 %v7759, 12
  %v8418 = vpop.permute.xlu0 %8417
  %8419 = vrot.lane.b32.xlu0 %v7760, 12
  %v8420 = vpop.permute.xlu0 %8419
  %8421 = vrot.lane.b32.xlu0 %v7761, 12
  %v8422 = vpop.permute.xlu0 %8421
  %8423 = vrot.lane.b32.xlu0 %v7764, 12
  %v8424 = vpop.permute.xlu0 %8423
  %8425 = vrot.lane.b32.xlu0 %v7765, 12
  %v8426 = vpop.permute.xlu0 %8425
  %8427 = vrot.lane.b32.xlu0 %v7766, 12
  %v8428 = vpop.permute.xlu0 %8427
  %8429 = vrot.lane.b32.xlu0 %v7767, 12
  %v8430 = vpop.permute.xlu0 %8429
  %8431 = vrot.lane.b32.xlu0 %v7770, 12
  %v8432 = vpop.permute.xlu0 %8431
  %8433 = vrot.lane.b32.xlu0 %v7771, 12
  %v8434 = vpop.permute.xlu0 %8433
  %8435 = vrot.lane.b32.xlu0 %v7772, 12
  %v8436 = vpop.permute.xlu0 %8435
  %8437 = vrot.lane.b32.xlu0 %v7773, 12
  %v8438 = vpop.permute.xlu0 %8437
  %8439 = vrot.lane.b32.xlu0 %v7776, 12
  %v8440 = vpop.permute.xlu0 %8439
  %8441 = vrot.lane.b32.xlu0 %v7777, 12
  %v8442 = vpop.permute.xlu0 %8441
  %8443 = vrot.lane.b32.xlu0 %v7778, 12
  %v8444 = vpop.permute.xlu0 %8443
  %8445 = vrot.lane.b32.xlu0 %v7779, 12
  %v8446 = vpop.permute.xlu0 %8445
  %8448 = vrot.lane.b32.xlu0 %v7794, 22
  %v8449 = vpop.permute.xlu0 %8448
  %8450 = vrot.lane.b32.xlu0 %v7795, 22
  %v8451 = vpop.permute.xlu0 %8450
  %8452 = vrot.lane.b32.xlu0 %v7796, 22
  %v8453 = vpop.permute.xlu0 %8452
  %8454 = vrot.lane.b32.xlu0 %v7797, 22
  %v8455 = vpop.permute.xlu0 %8454
  %8456 = vrot.lane.b32.xlu0 %v7800, 22
  %v8457 = vpop.permute.xlu0 %8456
  %8458 = vrot.lane.b32.xlu0 %v7801, 22
  %v8459 = vpop.permute.xlu0 %8458
  %8460 = vrot.lane.b32.xlu0 %v7802, 22
  %v8461 = vpop.permute.xlu0 %8460
  %8462 = vrot.lane.b32.xlu0 %v7803, 22
  %v8463 = vpop.permute.xlu0 %8462
  %8464 = vrot.lane.b32.xlu0 %v7806, 22
  %v8465 = vpop.permute.xlu0 %8464
  %8466 = vrot.lane.b32.xlu0 %v7807, 22
  %v8467 = vpop.permute.xlu0 %8466
  %8468 = vrot.lane.b32.xlu0 %v7808, 22
  %v8469 = vpop.permute.xlu0 %8468
  %8470 = vrot.lane.b32.xlu0 %v7809, 22
  %v8471 = vpop.permute.xlu0 %8470
  %8472 = vrot.lane.b32.xlu0 %v7812, 22
  %v8473 = vpop.permute.xlu0 %8472
  %8474 = vrot.lane.b32.xlu0 %v7813, 22
  %v8475 = vpop.permute.xlu0 %8474
  %8476 = vrot.lane.b32.xlu0 %v7814, 22
  %v8477 = vpop.permute.xlu0 %8476
  %8478 = vrot.lane.b32.xlu0 %v7815, 22
  %v8479 = vpop.permute.xlu0 %8478
  %vm8480 = vcmask 80896
  %v8483 = vsel %vm8480, %v7751, %v7912
  %v8486 = vsel %vm8480, %v7752, %v7914
  %v8489 = vsel %vm8480, %v7753, %v7916
  %v8492 = vsel %vm8480, %v7754, %v7918
  %v8495 = vsel %vm8480, %v7757, %v7920
  %v8498 = vsel %vm8480, %v7758, %v7922
  %v8501 = vsel %vm8480, %v7759, %v7924
  %v8504 = vsel %vm8480, %v7760, %v7926
  %v8507 = vsel %vm8480, %v7763, %v7928
  %v8510 = vsel %vm8480, %v7764, %v7930
  %v8513 = vsel %vm8480, %v7765, %v7932
  %v8516 = vsel %vm8480, %v7766, %v7934
  %v8519 = vsel %vm8480, %v7769, %v7936
  %v8522 = vsel %vm8480, %v7770, %v7938
  %v8525 = vsel %vm8480, %v7771, %v7940
  %v8528 = vsel %vm8480, %v7772, %v7942
  %vm8529 = vcmask 162816
  %v8531 = vsel %vm8529, %v8483, %v7960
  %v8533 = vsel %vm8529, %v8486, %v7962
  %v8535 = vsel %vm8529, %v8489, %v7964
  %v8537 = vsel %vm8529, %v8492, %v7966
  %v8539 = vsel %vm8529, %v8495, %v7968
  %v8541 = vsel %vm8529, %v8498, %v7970
  %v8543 = vsel %vm8529, %v8501, %v7972
  %v8545 = vsel %vm8529, %v8504, %v7974
  %v8547 = vsel %vm8529, %v8507, %v7976
  %v8549 = vsel %vm8529, %v8510, %v7978
  %v8551 = vsel %vm8529, %v8513, %v7980
  %v8553 = vsel %vm8529, %v8516, %v7982
  %v8555 = vsel %vm8529, %v8519, %v7984
  %v8557 = vsel %vm8529, %v8522, %v7986
  %v8559 = vsel %vm8529, %v8525, %v7988
  %v8561 = vsel %vm8529, %v8528, %v7990
  %vm8562 = vcmask 244736
  %v8564 = vsel %vm8562, %v8531, %v7996
  %v8566 = vsel %vm8562, %v8533, %v7998
  %v8568 = vsel %vm8562, %v8535, %v8000
  %v8570 = vsel %vm8562, %v8537, %v8002
  %v8572 = vsel %vm8562, %v8539, %v8004
  %v8574 = vsel %vm8562, %v8541, %v8006
  %v8576 = vsel %vm8562, %v8543, %v8008
  %v8578 = vsel %vm8562, %v8545, %v8010
  %v8580 = vsel %vm8562, %v8547, %v8012
  %v8582 = vsel %vm8562, %v8549, %v8014
  %v8584 = vsel %vm8562, %v8551, %v8016
  %v8586 = vsel %vm8562, %v8553, %v8018
  %v8588 = vsel %vm8562, %v8555, %v8020
  %v8590 = vsel %vm8562, %v8557, %v8022
  %v8592 = vsel %vm8562, %v8559, %v8024
  %v8594 = vsel %vm8562, %v8561, %v8026
  %vm8595 = vcmask 326656
  %v8597 = vsel %vm8595, %v8564, %v8032
  %v8599 = vsel %vm8595, %v8566, %v8034
  %v8601 = vsel %vm8595, %v8568, %v8036
  %v8603 = vsel %vm8595, %v8570, %v8038
  %v8605 = vsel %vm8595, %v8572, %v8040
  %v8607 = vsel %vm8595, %v8574, %v8042
  %v8609 = vsel %vm8595, %v8576, %v8044
  %v8611 = vsel %vm8595, %v8578, %v8046
  %v8613 = vsel %vm8595, %v8580, %v8048
  %v8615 = vsel %vm8595, %v8582, %v8050
  %v8617 = vsel %vm8595, %v8584, %v8052
  %v8619 = vsel %vm8595, %v8586, %v8054
  %v8621 = vsel %vm8595, %v8588, %v8056
  %v8623 = vsel %vm8595, %v8590, %v8058
  %v8625 = vsel %vm8595, %v8592, %v8060
  %v8627 = vsel %vm8595, %v8594, %v8062
  %vm8628 = vcmask 408576
  %v8630 = vsel %vm8628, %v8597, %v8068
  %v8632 = vsel %vm8628, %v8599, %v8070
  %v8634 = vsel %vm8628, %v8601, %v8072
  %v8636 = vsel %vm8628, %v8603, %v8074
  %v8638 = vsel %vm8628, %v8605, %v8076
  %v8640 = vsel %vm8628, %v8607, %v8078
  %v8642 = vsel %vm8628, %v8609, %v8080
  %v8644 = vsel %vm8628, %v8611, %v8082
  %v8646 = vsel %vm8628, %v8613, %v8084
  %v8648 = vsel %vm8628, %v8615, %v8086
  %v8650 = vsel %vm8628, %v8617, %v8088
  %v8652 = vsel %vm8628, %v8619, %v8090
  %v8654 = vsel %vm8628, %v8621, %v8092
  %v8656 = vsel %vm8628, %v8623, %v8094
  %v8658 = vsel %vm8628, %v8625, %v8096
  %v8660 = vsel %vm8628, %v8627, %v8098
  %vm8661 = vcmask 490496
  %v8663 = vsel %vm8661, %v8630, %v8116
  %v8665 = vsel %vm8661, %v8632, %v8118
  %v8667 = vsel %vm8661, %v8634, %v8120
  %v8669 = vsel %vm8661, %v8636, %v8122
  %v8671 = vsel %vm8661, %v8638, %v8124
  %v8673 = vsel %vm8661, %v8640, %v8126
  %v8675 = vsel %vm8661, %v8642, %v8128
  %v8677 = vsel %vm8661, %v8644, %v8130
  %v8679 = vsel %vm8661, %v8646, %v8132
  %v8681 = vsel %vm8661, %v8648, %v8134
  %v8683 = vsel %vm8661, %v8650, %v8136
  %v8685 = vsel %vm8661, %v8652, %v8138
  %v8687 = vsel %vm8661, %v8654, %v8140
  %v8689 = vsel %vm8661, %v8656, %v8142
  %v8691 = vsel %vm8661, %v8658, %v8144
  %v8693 = vsel %vm8661, %v8660, %v8146
  %vm8694 = vcmask 572416
  %v8696 = vsel %vm8694, %v8663, %v8164
  %v8698 = vsel %vm8694, %v8665, %v8166
  %v8700 = vsel %vm8694, %v8667, %v8168
  %v8702 = vsel %vm8694, %v8669, %v8170
  %v8704 = vsel %vm8694, %v8671, %v8172
  %v8706 = vsel %vm8694, %v8673, %v8174
  %v8708 = vsel %vm8694, %v8675, %v8176
  %v8710 = vsel %vm8694, %v8677, %v8178
  %v8712 = vsel %vm8694, %v8679, %v8180
  %v8714 = vsel %vm8694, %v8681, %v8182
  %v8716 = vsel %vm8694, %v8683, %v8184
  %v8718 = vsel %vm8694, %v8685, %v8186
  %v8720 = vsel %vm8694, %v8687, %v8188
  %v8722 = vsel %vm8694, %v8689, %v8190
  %v8724 = vsel %vm8694, %v8691, %v8192
  %v8726 = vsel %vm8694, %v8693, %v8194
  %vm8727 = vcmask 654336
  %v8729 = vsel %vm8727, %v8696, %v8200
  %v8731 = vsel %vm8727, %v8698, %v8202
  %v8733 = vsel %vm8727, %v8700, %v8204
  %v8735 = vsel %vm8727, %v8702, %v8206
  %v8737 = vsel %vm8727, %v8704, %v8208
  %v8739 = vsel %vm8727, %v8706, %v8210
  %v8741 = vsel %vm8727, %v8708, %v8212
  %v8743 = vsel %vm8727, %v8710, %v8214
  %v8745 = vsel %vm8727, %v8712, %v8216
  %v8747 = vsel %vm8727, %v8714, %v8218
  %v8749 = vsel %vm8727, %v8716, %v8220
  %v8751 = vsel %vm8727, %v8718, %v8222
  %v8753 = vsel %vm8727, %v8720, %v8224
  %v8755 = vsel %vm8727, %v8722, %v8226
  %v8757 = vsel %vm8727, %v8724, %v8228
  %v8759 = vsel %vm8727, %v8726, %v8230
  %vm8760 = vcmask 736256
  %v8762 = vsel %vm8760, %v8729, %v8236
  %v8764 = vsel %vm8760, %v8731, %v8238
  %v8766 = vsel %vm8760, %v8733, %v8240
  %v8768 = vsel %vm8760, %v8735, %v8242
  %v8770 = vsel %vm8760, %v8737, %v8244
  %v8772 = vsel %vm8760, %v8739, %v8246
  %v8774 = vsel %vm8760, %v8741, %v8248
  %v8776 = vsel %vm8760, %v8743, %v8250
  %v8778 = vsel %vm8760, %v8745, %v8252
  %v8780 = vsel %vm8760, %v8747, %v8254
  %v8782 = vsel %vm8760, %v8749, %v8256
  %v8784 = vsel %vm8760, %v8751, %v8258
  %v8786 = vsel %vm8760, %v8753, %v8260
  %v8788 = vsel %vm8760, %v8755, %v8262
  %v8790 = vsel %vm8760, %v8757, %v8264
  %v8792 = vsel %vm8760, %v8759, %v8266
  %vm8793 = vcmask 818176
  %v8795 = vsel %vm8793, %v8762, %v8272
  %v8797 = vsel %vm8793, %v8764, %v8274
  %v8799 = vsel %vm8793, %v8766, %v8276
  %v8801 = vsel %vm8793, %v8768, %v8278
  %v8803 = vsel %vm8793, %v8770, %v8280
  %v8805 = vsel %vm8793, %v8772, %v8282
  %v8807 = vsel %vm8793, %v8774, %v8284
  %v8809 = vsel %vm8793, %v8776, %v8286
  %v8811 = vsel %vm8793, %v8778, %v8288
  %v8813 = vsel %vm8793, %v8780, %v8290
  %v8815 = vsel %vm8793, %v8782, %v8292
  %v8817 = vsel %vm8793, %v8784, %v8294
  %v8819 = vsel %vm8793, %v8786, %v8296
  %v8821 = vsel %vm8793, %v8788, %v8298
  %v8823 = vsel %vm8793, %v8790, %v8300
  %v8825 = vsel %vm8793, %v8792, %v8302
  %vm8826 = vcmask 900096
  %v8828 = vsel %vm8826, %v8795, %v8308
  %v8830 = vsel %vm8826, %v8797, %v8310
  %v8832 = vsel %vm8826, %v8799, %v8312
  %v8834 = vsel %vm8826, %v8801, %v8314
  %v8836 = vsel %vm8826, %v8803, %v8316
  %v8838 = vsel %vm8826, %v8805, %v8318
  %v8840 = vsel %vm8826, %v8807, %v8320
  %v8842 = vsel %vm8826, %v8809, %v8322
  %v8844 = vsel %vm8826, %v8811, %v8324
  %v8846 = vsel %vm8826, %v8813, %v8326
  %v8848 = vsel %vm8826, %v8815, %v8328
  %v8850 = vsel %vm8826, %v8817, %v8330
  %v8852 = vsel %vm8826, %v8819, %v8332
  %v8854 = vsel %vm8826, %v8821, %v8334
  %v8856 = vsel %vm8826, %v8823, %v8336
  %v8858 = vsel %vm8826, %v8825, %v8338
  %vm8859 = vcmask 982016
  %v8861 = vsel %vm8859, %v8828, %v8347
  %v8864 = vsel %vm8859, %v8830, %v8349
  %v8867 = vsel %vm8859, %v8832, %v8351
  %v8870 = vsel %vm8859, %v8834, %v8353
  %v8873 = vsel %vm8859, %v8836, %v8355
  %v8876 = vsel %vm8859, %v8838, %v8357
  %v8879 = vsel %vm8859, %v8840, %v8359
  %v8882 = vsel %vm8859, %v8842, %v8361
  %v8885 = vsel %vm8859, %v8844, %v8363
  %v8888 = vsel %vm8859, %v8846, %v8365
  %v8891 = vsel %vm8859, %v8848, %v8367
  %v8894 = vsel %vm8859, %v8850, %v8369
  %v8897 = vsel %vm8859, %v8852, %v8371
  %v8900 = vsel %vm8859, %v8854, %v8373
  %v8903 = vsel %vm8859, %v8856, %v8375
  %v8906 = vsel %vm8859, %v8858, %v8377
  %vm8908 = vcmask 15360
  %v8910 = vsel %vm8908, %v8347, %v8383
  %v8912 = vsel %vm8908, %v8349, %v8385
  %v8914 = vsel %vm8908, %v8351, %v8387
  %v8916 = vsel %vm8908, %v8353, %v8389
  %v8918 = vsel %vm8908, %v8355, %v8391
  %v8920 = vsel %vm8908, %v8357, %v8393
  %v8922 = vsel %vm8908, %v8359, %v8395
  %v8924 = vsel %vm8908, %v8361, %v8397
  %v8926 = vsel %vm8908, %v8363, %v8399
  %v8928 = vsel %vm8908, %v8365, %v8401
  %v8930 = vsel %vm8908, %v8367, %v8403
  %v8932 = vsel %vm8908, %v8369, %v8405
  %v8934 = vsel %vm8908, %v8371, %v8407
  %v8936 = vsel %vm8908, %v8373, %v8409
  %v8938 = vsel %vm8908, %v8375, %v8411
  %v8940 = vsel %vm8908, %v8377, %v8413
  %vm8941 = vcmask 97280
  %v8943 = vsel %vm8941, %v8910, %v8416
  %v8945 = vsel %vm8941, %v8912, %v8418
  %v8947 = vsel %vm8941, %v8914, %v8420
  %v8949 = vsel %vm8941, %v8916, %v8422
  %v8951 = vsel %vm8941, %v8918, %v8424
  %v8953 = vsel %vm8941, %v8920, %v8426
  %v8955 = vsel %vm8941, %v8922, %v8428
  %v8957 = vsel %vm8941, %v8924, %v8430
  %v8959 = vsel %vm8941, %v8926, %v8432
  %v8961 = vsel %vm8941, %v8928, %v8434
  %v8963 = vsel %vm8941, %v8930, %v8436
  %v8965 = vsel %vm8941, %v8932, %v8438
  %v8967 = vsel %vm8941, %v8934, %v8440
  %v8969 = vsel %vm8941, %v8936, %v8442
  %v8971 = vsel %vm8941, %v8938, %v8444
  %v8973 = vsel %vm8941, %v8940, %v8446
  %vm8974 = vcmask 179200
  %v8976 = vsel %vm8974, %v8943, %v8449
  %v8978 = vsel %vm8974, %v8945, %v8451
  %v8980 = vsel %vm8974, %v8947, %v8453
  %v8982 = vsel %vm8974, %v8949, %v8455
  %v8984 = vsel %vm8974, %v8951, %v8457
  %v8986 = vsel %vm8974, %v8953, %v8459
  %v8988 = vsel %vm8974, %v8955, %v8461
  %v8990 = vsel %vm8974, %v8957, %v8463
  %v8992 = vsel %vm8974, %v8959, %v8465
  %v8994 = vsel %vm8974, %v8961, %v8467
  %v8996 = vsel %vm8974, %v8963, %v8469
  %v8998 = vsel %vm8974, %v8965, %v8471
  %v9000 = vsel %vm8974, %v8967, %v8473
  %v9002 = vsel %vm8974, %v8969, %v8475
  %v9004 = vsel %vm8974, %v8971, %v8477
  %v9006 = vsel %vm8974, %v8973, %v8479
  %9008 = vrot.lane.b32.xlu0 %v7797, 10
  %v9009 = vpop.permute.xlu0 %9008
  %9010 = vrot.lane.b32.xlu0 %v7798, 10
  %v9011 = vpop.permute.xlu0 %9010
  %9012 = vrot.lane.b32.xlu0 %v7803, 10
  %v9013 = vpop.permute.xlu0 %9012
  %9014 = vrot.lane.b32.xlu0 %v7804, 10
  %v9015 = vpop.permute.xlu0 %9014
  %9016 = vrot.lane.b32.xlu0 %v7809, 10
  %v9017 = vpop.permute.xlu0 %9016
  %9018 = vrot.lane.b32.xlu0 %v7810, 10
  %v9019 = vpop.permute.xlu0 %9018
  %9020 = vrot.lane.b32.xlu0 %v7813, 10
  %v9021 = vpop.permute.xlu0 %9020
  %9022 = vrot.lane.b32.xlu0 %v7814, 10
  %v9023 = vpop.permute.xlu0 %9022
  %9024 = vrot.lane.b32.xlu0 %v7815, 10
  %v9025 = vpop.permute.xlu0 %9024
  %9026 = vrot.lane.b32.xlu0 %v7816, 10
  %v9027 = vpop.permute.xlu0 %9026
  %9032 = vrot.lane.b32.xlu0 %v7829, 20
  %v9033 = vpop.permute.xlu0 %9032
  %9034 = vrot.lane.b32.xlu0 %v7830, 20
  %v9035 = vpop.permute.xlu0 %9034
  %9036 = vrot.lane.b32.xlu0 %v7831, 20
  %v9037 = vpop.permute.xlu0 %9036
  %9038 = vrot.lane.b32.xlu0 %v7832, 20
  %v9039 = vpop.permute.xlu0 %9038
  %9040 = vrot.lane.b32.xlu0 %v7835, 20
  %v9041 = vpop.permute.xlu0 %9040
  %9042 = vrot.lane.b32.xlu0 %v7836, 20
  %v9043 = vpop.permute.xlu0 %9042
  %9044 = vrot.lane.b32.xlu0 %v7837, 20
  %v9045 = vpop.permute.xlu0 %9044
  %9046 = vrot.lane.b32.xlu0 %v7838, 20
  %v9047 = vpop.permute.xlu0 %9046
  %9048 = vrot.lane.b32.xlu0 %v7841, 20
  %v9049 = vpop.permute.xlu0 %9048
  %9050 = vrot.lane.b32.xlu0 %v7842, 20
  %v9051 = vpop.permute.xlu0 %9050
  %9052 = vrot.lane.b32.xlu0 %v7843, 20
  %v9053 = vpop.permute.xlu0 %9052
  %9054 = vrot.lane.b32.xlu0 %v7844, 20
  %v9055 = vpop.permute.xlu0 %9054
  %9056 = vrot.lane.b32.xlu0 %v7847, 20
  %v9057 = vpop.permute.xlu0 %9056
  %9058 = vrot.lane.b32.xlu0 %v7848, 20
  %v9059 = vpop.permute.xlu0 %9058
  %9060 = vrot.lane.b32.xlu0 %v7849, 20
  %v9061 = vpop.permute.xlu0 %9060
  %9062 = vrot.lane.b32.xlu0 %v7850, 20
  %v9063 = vpop.permute.xlu0 %9062
  %9068 = vrot.lane.b32.xlu0 %v7865, 30
  %v9069 = vpop.permute.xlu0 %9068
  %9070 = vrot.lane.b32.xlu0 %v7866, 30
  %v9071 = vpop.permute.xlu0 %9070
  %9072 = vrot.lane.b32.xlu0 %v7867, 30
  %v9073 = vpop.permute.xlu0 %9072
  %9074 = vrot.lane.b32.xlu0 %v7868, 30
  %v9075 = vpop.permute.xlu0 %9074
  %9076 = vrot.lane.b32.xlu0 %v7871, 30
  %v9077 = vpop.permute.xlu0 %9076
  %9078 = vrot.lane.b32.xlu0 %v7872, 30
  %v9079 = vpop.permute.xlu0 %9078
  %9080 = vrot.lane.b32.xlu0 %v7873, 30
  %v9081 = vpop.permute.xlu0 %9080
  %9082 = vrot.lane.b32.xlu0 %v7874, 30
  %v9083 = vpop.permute.xlu0 %9082
  %9084 = vrot.lane.b32.xlu0 %v7877, 30
  %v9085 = vpop.permute.xlu0 %9084
  %9086 = vrot.lane.b32.xlu0 %v7878, 30
  %v9087 = vpop.permute.xlu0 %9086
  %9088 = vrot.lane.b32.xlu0 %v7879, 30
  %v9089 = vpop.permute.xlu0 %9088
  %9090 = vrot.lane.b32.xlu0 %v7880, 30
  %v9091 = vpop.permute.xlu0 %9090
  %9092 = vrot.lane.b32.xlu0 %v7883, 30
  %v9093 = vpop.permute.xlu0 %9092
  %9094 = vrot.lane.b32.xlu0 %v7884, 30
  %v9095 = vpop.permute.xlu0 %9094
  %9096 = vrot.lane.b32.xlu0 %v7885, 30
  %v9097 = vpop.permute.xlu0 %9096
  %9098 = vrot.lane.b32.xlu0 %v7886, 30
  %v9099 = vpop.permute.xlu0 %9098
  %9101 = vrot.lane.b32.xlu0 %v7830, 40
  %v9102 = vpop.permute.xlu0 %9101
  %9103 = vrot.lane.b32.xlu0 %v7831, 40
  %v9104 = vpop.permute.xlu0 %9103
  %9105 = vrot.lane.b32.xlu0 %v7832, 40
  %v9106 = vpop.permute.xlu0 %9105
  %9107 = vrot.lane.b32.xlu0 %v7833, 40
  %v9108 = vpop.permute.xlu0 %9107
  %9109 = vrot.lane.b32.xlu0 %v7836, 40
  %v9110 = vpop.permute.xlu0 %9109
  %9111 = vrot.lane.b32.xlu0 %v7837, 40
  %v9112 = vpop.permute.xlu0 %9111
  %9113 = vrot.lane.b32.xlu0 %v7838, 40
  %v9114 = vpop.permute.xlu0 %9113
  %9115 = vrot.lane.b32.xlu0 %v7839, 40
  %v9116 = vpop.permute.xlu0 %9115
  %9117 = vrot.lane.b32.xlu0 %v7842, 40
  %v9118 = vpop.permute.xlu0 %9117
  %9119 = vrot.lane.b32.xlu0 %v7843, 40
  %v9120 = vpop.permute.xlu0 %9119
  %9121 = vrot.lane.b32.xlu0 %v7844, 40
  %v9122 = vpop.permute.xlu0 %9121
  %9123 = vrot.lane.b32.xlu0 %v7845, 40
  %v9124 = vpop.permute.xlu0 %9123
  %9125 = vrot.lane.b32.xlu0 %v7848, 40
  %v9126 = vpop.permute.xlu0 %9125
  %9127 = vrot.lane.b32.xlu0 %v7849, 40
  %v9128 = vpop.permute.xlu0 %9127
  %9129 = vrot.lane.b32.xlu0 %v7850, 40
  %v9130 = vpop.permute.xlu0 %9129
  %9131 = vrot.lane.b32.xlu0 %v7851, 40
  %v9132 = vpop.permute.xlu0 %9131
  %9134 = vrot.lane.b32.xlu0 %v7866, 50
  %v9135 = vpop.permute.xlu0 %9134
  %9136 = vrot.lane.b32.xlu0 %v7867, 50
  %v9137 = vpop.permute.xlu0 %9136
  %9138 = vrot.lane.b32.xlu0 %v7868, 50
  %v9139 = vpop.permute.xlu0 %9138
  %9140 = vrot.lane.b32.xlu0 %v7869, 50
  %v9141 = vpop.permute.xlu0 %9140
  %9142 = vrot.lane.b32.xlu0 %v7872, 50
  %v9143 = vpop.permute.xlu0 %9142
  %9144 = vrot.lane.b32.xlu0 %v7873, 50
  %v9145 = vpop.permute.xlu0 %9144
  %9146 = vrot.lane.b32.xlu0 %v7874, 50
  %v9147 = vpop.permute.xlu0 %9146
  %9148 = vrot.lane.b32.xlu0 %v7875, 50
  %v9149 = vpop.permute.xlu0 %9148
  %9150 = vrot.lane.b32.xlu0 %v7878, 50
  %v9151 = vpop.permute.xlu0 %9150
  %9152 = vrot.lane.b32.xlu0 %v7879, 50
  %v9153 = vpop.permute.xlu0 %9152
  %9154 = vrot.lane.b32.xlu0 %v7880, 50
  %v9155 = vpop.permute.xlu0 %9154
  %9156 = vrot.lane.b32.xlu0 %v7881, 50
  %v9157 = vpop.permute.xlu0 %9156
  %9158 = vrot.lane.b32.xlu0 %v7884, 50
  %v9159 = vpop.permute.xlu0 %9158
  %9160 = vrot.lane.b32.xlu0 %v7885, 50
  %v9161 = vpop.permute.xlu0 %9160
  %9162 = vrot.lane.b32.xlu0 %v7886, 50
  %v9163 = vpop.permute.xlu0 %9162
  %9164 = vrot.lane.b32.xlu0 %v7887, 50
  %v9165 = vpop.permute.xlu0 %9164
  %9167 = vrot.lane.b32.xlu0 %v7833, 60
  %v9168 = vpop.permute.xlu0 %9167
  %9169 = vrot.lane.b32.xlu0 %v7834, 60
  %v9170 = vpop.permute.xlu0 %9169
  %9171 = vrot.lane.b32.xlu0 %v7839, 60
  %v9172 = vpop.permute.xlu0 %9171
  %9173 = vrot.lane.b32.xlu0 %v7840, 60
  %v9174 = vpop.permute.xlu0 %9173
  %9175 = vrot.lane.b32.xlu0 %v7845, 60
  %v9176 = vpop.permute.xlu0 %9175
  %9177 = vrot.lane.b32.xlu0 %v7846, 60
  %v9178 = vpop.permute.xlu0 %9177
  %9179 = vrot.lane.b32.xlu0 %v7849, 60
  %v9180 = vpop.permute.xlu0 %9179
  %9181 = vrot.lane.b32.xlu0 %v7850, 60
  %v9182 = vpop.permute.xlu0 %9181
  %9183 = vrot.lane.b32.xlu0 %v7851, 60
  %v9184 = vpop.permute.xlu0 %9183
  %9185 = vrot.lane.b32.xlu0 %v7852, 60
  %v9186 = vpop.permute.xlu0 %9185
  %9188 = vrot.lane.b32.xlu0 %v7869, 70
  %v9189 = vpop.permute.xlu0 %9188
  %9190 = vrot.lane.b32.xlu0 %v7870, 70
  %v9191 = vpop.permute.xlu0 %9190
  %9192 = vrot.lane.b32.xlu0 %v7875, 70
  %v9193 = vpop.permute.xlu0 %9192
  %9194 = vrot.lane.b32.xlu0 %v7876, 70
  %v9195 = vpop.permute.xlu0 %9194
  %9196 = vrot.lane.b32.xlu0 %v7881, 70
  %v9197 = vpop.permute.xlu0 %9196
  %9198 = vrot.lane.b32.xlu0 %v7882, 70
  %v9199 = vpop.permute.xlu0 %9198
  %9200 = vrot.lane.b32.xlu0 %v7885, 70
  %v9201 = vpop.permute.xlu0 %9200
  %9202 = vrot.lane.b32.xlu0 %v7886, 70
  %v9203 = vpop.permute.xlu0 %9202
  %9204 = vrot.lane.b32.xlu0 %v7887, 70
  %v9205 = vpop.permute.xlu0 %9204
  %9206 = vrot.lane.b32.xlu0 %v7888, 70
  %v9207 = vpop.permute.xlu0 %9206
  %9212 = vrot.lane.b32.xlu0 %v7763, 80
  %v9213 = vpop.permute.xlu0 %9212
  %9214 = vrot.lane.b32.xlu0 %v7764, 80
  %v9215 = vpop.permute.xlu0 %9214
  %9216 = vrot.lane.b32.xlu0 %v7765, 80
  %v9217 = vpop.permute.xlu0 %9216
  %9218 = vrot.lane.b32.xlu0 %v7766, 80
  %v9219 = vpop.permute.xlu0 %9218
  %9220 = vrot.lane.b32.xlu0 %v7769, 80
  %v9221 = vpop.permute.xlu0 %9220
  %9222 = vrot.lane.b32.xlu0 %v7770, 80
  %v9223 = vpop.permute.xlu0 %9222
  %9224 = vrot.lane.b32.xlu0 %v7771, 80
  %v9225 = vpop.permute.xlu0 %9224
  %9226 = vrot.lane.b32.xlu0 %v7772, 80
  %v9227 = vpop.permute.xlu0 %9226
  %9228 = vrot.lane.b32.xlu0 %v7775, 80
  %v9229 = vpop.permute.xlu0 %9228
  %9230 = vrot.lane.b32.xlu0 %v7776, 80
  %v9231 = vpop.permute.xlu0 %9230
  %9232 = vrot.lane.b32.xlu0 %v7777, 80
  %v9233 = vpop.permute.xlu0 %9232
  %9234 = vrot.lane.b32.xlu0 %v7778, 80
  %v9235 = vpop.permute.xlu0 %9234
  %9236 = vrot.lane.b32.xlu0 %v7781, 80
  %v9237 = vpop.permute.xlu0 %9236
  %9238 = vrot.lane.b32.xlu0 %v7782, 80
  %v9239 = vpop.permute.xlu0 %9238
  %9240 = vrot.lane.b32.xlu0 %v7783, 80
  %v9241 = vpop.permute.xlu0 %9240
  %9242 = vrot.lane.b32.xlu0 %v7784, 80
  %v9243 = vpop.permute.xlu0 %9242
  %9248 = vrot.lane.b32.xlu0 %v7799, 90
  %v9249 = vpop.permute.xlu0 %9248
  %9250 = vrot.lane.b32.xlu0 %v7800, 90
  %v9251 = vpop.permute.xlu0 %9250
  %9252 = vrot.lane.b32.xlu0 %v7801, 90
  %v9253 = vpop.permute.xlu0 %9252
  %9254 = vrot.lane.b32.xlu0 %v7802, 90
  %v9255 = vpop.permute.xlu0 %9254
  %9256 = vrot.lane.b32.xlu0 %v7805, 90
  %v9257 = vpop.permute.xlu0 %9256
  %9258 = vrot.lane.b32.xlu0 %v7806, 90
  %v9259 = vpop.permute.xlu0 %9258
  %9260 = vrot.lane.b32.xlu0 %v7807, 90
  %v9261 = vpop.permute.xlu0 %9260
  %9262 = vrot.lane.b32.xlu0 %v7808, 90
  %v9263 = vpop.permute.xlu0 %9262
  %9264 = vrot.lane.b32.xlu0 %v7811, 90
  %v9265 = vpop.permute.xlu0 %9264
  %9266 = vrot.lane.b32.xlu0 %v7812, 90
  %v9267 = vpop.permute.xlu0 %9266
  %9268 = vrot.lane.b32.xlu0 %v7813, 90
  %v9269 = vpop.permute.xlu0 %9268
  %9270 = vrot.lane.b32.xlu0 %v7814, 90
  %v9271 = vpop.permute.xlu0 %9270
  %9272 = vrot.lane.b32.xlu0 %v7817, 90
  %v9273 = vpop.permute.xlu0 %9272
  %9274 = vrot.lane.b32.xlu0 %v7818, 90
  %v9275 = vpop.permute.xlu0 %9274
  %9276 = vrot.lane.b32.xlu0 %v7819, 90
  %v9277 = vpop.permute.xlu0 %9276
  %9278 = vrot.lane.b32.xlu0 %v7820, 90
  %v9279 = vpop.permute.xlu0 %9278
  %9281 = vrot.lane.b32.xlu0 %v7764, 100
  %v9282 = vpop.permute.xlu0 %9281
  %9283 = vrot.lane.b32.xlu0 %v7765, 100
  %v9284 = vpop.permute.xlu0 %9283
  %9285 = vrot.lane.b32.xlu0 %v7766, 100
  %v9286 = vpop.permute.xlu0 %9285
  %9287 = vrot.lane.b32.xlu0 %v7767, 100
  %v9288 = vpop.permute.xlu0 %9287
  %9289 = vrot.lane.b32.xlu0 %v7770, 100
  %v9290 = vpop.permute.xlu0 %9289
  %9291 = vrot.lane.b32.xlu0 %v7771, 100
  %v9292 = vpop.permute.xlu0 %9291
  %9293 = vrot.lane.b32.xlu0 %v7772, 100
  %v9294 = vpop.permute.xlu0 %9293
  %9295 = vrot.lane.b32.xlu0 %v7773, 100
  %v9296 = vpop.permute.xlu0 %9295
  %9297 = vrot.lane.b32.xlu0 %v7776, 100
  %v9298 = vpop.permute.xlu0 %9297
  %9299 = vrot.lane.b32.xlu0 %v7777, 100
  %v9300 = vpop.permute.xlu0 %9299
  %9301 = vrot.lane.b32.xlu0 %v7778, 100
  %v9302 = vpop.permute.xlu0 %9301
  %9303 = vrot.lane.b32.xlu0 %v7779, 100
  %v9304 = vpop.permute.xlu0 %9303
  %9305 = vrot.lane.b32.xlu0 %v7782, 100
  %v9306 = vpop.permute.xlu0 %9305
  %9307 = vrot.lane.b32.xlu0 %v7783, 100
  %v9308 = vpop.permute.xlu0 %9307
  %9309 = vrot.lane.b32.xlu0 %v7784, 100
  %v9310 = vpop.permute.xlu0 %9309
  %9311 = vrot.lane.b32.xlu0 %v7785, 100
  %v9312 = vpop.permute.xlu0 %9311
  %9314 = vrot.lane.b32.xlu0 %v7800, 110
  %v9315 = vpop.permute.xlu0 %9314
  %9316 = vrot.lane.b32.xlu0 %v7801, 110
  %v9317 = vpop.permute.xlu0 %9316
  %9318 = vrot.lane.b32.xlu0 %v7802, 110
  %v9319 = vpop.permute.xlu0 %9318
  %9320 = vrot.lane.b32.xlu0 %v7803, 110
  %v9321 = vpop.permute.xlu0 %9320
  %9322 = vrot.lane.b32.xlu0 %v7806, 110
  %v9323 = vpop.permute.xlu0 %9322
  %9324 = vrot.lane.b32.xlu0 %v7807, 110
  %v9325 = vpop.permute.xlu0 %9324
  %9326 = vrot.lane.b32.xlu0 %v7808, 110
  %v9327 = vpop.permute.xlu0 %9326
  %9328 = vrot.lane.b32.xlu0 %v7809, 110
  %v9329 = vpop.permute.xlu0 %9328
  %9330 = vrot.lane.b32.xlu0 %v7812, 110
  %v9331 = vpop.permute.xlu0 %9330
  %9332 = vrot.lane.b32.xlu0 %v7813, 110
  %v9333 = vpop.permute.xlu0 %9332
  %9334 = vrot.lane.b32.xlu0 %v7814, 110
  %v9335 = vpop.permute.xlu0 %9334
  %9336 = vrot.lane.b32.xlu0 %v7815, 110
  %v9337 = vpop.permute.xlu0 %9336
  %9338 = vrot.lane.b32.xlu0 %v7818, 110
  %v9339 = vpop.permute.xlu0 %9338
  %9340 = vrot.lane.b32.xlu0 %v7819, 110
  %v9341 = vpop.permute.xlu0 %9340
  %9342 = vrot.lane.b32.xlu0 %v7820, 110
  %v9343 = vpop.permute.xlu0 %9342
  %9344 = vrot.lane.b32.xlu0 %v7821, 110
  %v9345 = vpop.permute.xlu0 %9344
  %9348 = vrot.lane.b32.xlu0 %v7767, 120
  %v9349 = vpop.permute.xlu0 %9348
  %9350 = vrot.lane.b32.xlu0 %v7768, 120
  %v9351 = vpop.permute.xlu0 %9350
  %9352 = vrot.lane.b32.xlu0 %v7773, 120
  %v9353 = vpop.permute.xlu0 %9352
  %9354 = vrot.lane.b32.xlu0 %v7774, 120
  %v9355 = vpop.permute.xlu0 %9354
  %9356 = vrot.lane.b32.xlu0 %v7779, 120
  %v9357 = vpop.permute.xlu0 %9356
  %9358 = vrot.lane.b32.xlu0 %v7780, 120
  %v9359 = vpop.permute.xlu0 %9358
  %9360 = vrot.lane.b32.xlu0 %v7783, 120
  %v9361 = vpop.permute.xlu0 %9360
  %9362 = vrot.lane.b32.xlu0 %v7784, 120
  %v9363 = vpop.permute.xlu0 %9362
  %9364 = vrot.lane.b32.xlu0 %v7785, 120
  %v9365 = vpop.permute.xlu0 %9364
  %9366 = vrot.lane.b32.xlu0 %v7786, 120
  %v9367 = vpop.permute.xlu0 %9366
  %9369 = vrot.lane.b32.xlu0 %v7803, 2
  %v9370 = vpop.permute.xlu0 %9369
  %9371 = vrot.lane.b32.xlu0 %v7804, 2
  %v9372 = vpop.permute.xlu0 %9371
  %9373 = vrot.lane.b32.xlu0 %v7809, 2
  %v9374 = vpop.permute.xlu0 %9373
  %9375 = vrot.lane.b32.xlu0 %v7810, 2
  %v9376 = vpop.permute.xlu0 %9375
  %9377 = vrot.lane.b32.xlu0 %v7815, 2
  %v9378 = vpop.permute.xlu0 %9377
  %9379 = vrot.lane.b32.xlu0 %v7816, 2
  %v9380 = vpop.permute.xlu0 %9379
  %9381 = vrot.lane.b32.xlu0 %v7819, 2
  %v9382 = vpop.permute.xlu0 %9381
  %9383 = vrot.lane.b32.xlu0 %v7820, 2
  %v9384 = vpop.permute.xlu0 %9383
  %9385 = vrot.lane.b32.xlu0 %v7821, 2
  %v9386 = vpop.permute.xlu0 %9385
  %9387 = vrot.lane.b32.xlu0 %v7822, 2
  %v9388 = vpop.permute.xlu0 %9387
  %9393 = vrot.lane.b32.xlu0 %v7835, 12
  %v9394 = vpop.permute.xlu0 %9393
  %9395 = vrot.lane.b32.xlu0 %v7836, 12
  %v9396 = vpop.permute.xlu0 %9395
  %9397 = vrot.lane.b32.xlu0 %v7837, 12
  %v9398 = vpop.permute.xlu0 %9397
  %9399 = vrot.lane.b32.xlu0 %v7838, 12
  %v9400 = vpop.permute.xlu0 %9399
  %9401 = vrot.lane.b32.xlu0 %v7841, 12
  %v9402 = vpop.permute.xlu0 %9401
  %9403 = vrot.lane.b32.xlu0 %v7842, 12
  %v9404 = vpop.permute.xlu0 %9403
  %9405 = vrot.lane.b32.xlu0 %v7843, 12
  %v9406 = vpop.permute.xlu0 %9405
  %9407 = vrot.lane.b32.xlu0 %v7844, 12
  %v9408 = vpop.permute.xlu0 %9407
  %9409 = vrot.lane.b32.xlu0 %v7847, 12
  %v9410 = vpop.permute.xlu0 %9409
  %9411 = vrot.lane.b32.xlu0 %v7848, 12
  %v9412 = vpop.permute.xlu0 %9411
  %9413 = vrot.lane.b32.xlu0 %v7849, 12
  %v9414 = vpop.permute.xlu0 %9413
  %9415 = vrot.lane.b32.xlu0 %v7850, 12
  %v9416 = vpop.permute.xlu0 %9415
  %9417 = vrot.lane.b32.xlu0 %v7853, 12
  %v9418 = vpop.permute.xlu0 %9417
  %9419 = vrot.lane.b32.xlu0 %v7854, 12
  %v9420 = vpop.permute.xlu0 %9419
  %9421 = vrot.lane.b32.xlu0 %v7855, 12
  %v9422 = vpop.permute.xlu0 %9421
  %9423 = vrot.lane.b32.xlu0 %v7856, 12
  %v9424 = vpop.permute.xlu0 %9423
  %9429 = vrot.lane.b32.xlu0 %v7871, 22
  %v9430 = vpop.permute.xlu0 %9429
  %9431 = vrot.lane.b32.xlu0 %v7872, 22
  %v9432 = vpop.permute.xlu0 %9431
  %9433 = vrot.lane.b32.xlu0 %v7873, 22
  %v9434 = vpop.permute.xlu0 %9433
  %9435 = vrot.lane.b32.xlu0 %v7874, 22
  %v9436 = vpop.permute.xlu0 %9435
  %9437 = vrot.lane.b32.xlu0 %v7877, 22
  %v9438 = vpop.permute.xlu0 %9437
  %9439 = vrot.lane.b32.xlu0 %v7878, 22
  %v9440 = vpop.permute.xlu0 %9439
  %9441 = vrot.lane.b32.xlu0 %v7879, 22
  %v9442 = vpop.permute.xlu0 %9441
  %9443 = vrot.lane.b32.xlu0 %v7880, 22
  %v9444 = vpop.permute.xlu0 %9443
  %9445 = vrot.lane.b32.xlu0 %v7883, 22
  %v9446 = vpop.permute.xlu0 %9445
  %9447 = vrot.lane.b32.xlu0 %v7884, 22
  %v9448 = vpop.permute.xlu0 %9447
  %9449 = vrot.lane.b32.xlu0 %v7885, 22
  %v9450 = vpop.permute.xlu0 %9449
  %9451 = vrot.lane.b32.xlu0 %v7886, 22
  %v9452 = vpop.permute.xlu0 %9451
  %9453 = vrot.lane.b32.xlu0 %v7889, 22
  %v9454 = vpop.permute.xlu0 %9453
  %9455 = vrot.lane.b32.xlu0 %v7890, 22
  %v9456 = vpop.permute.xlu0 %9455
  %9457 = vrot.lane.b32.xlu0 %v7891, 22
  %v9458 = vpop.permute.xlu0 %9457
  %9459 = vrot.lane.b32.xlu0 %v7892, 22
  %v9460 = vpop.permute.xlu0 %9459
  %v9463 = vsel %vm8480, %v7761, %v9009
  %v9466 = vsel %vm8480, %v7762, %v9011
  %v9469 = vsel %vm8480, %v7767, %v9013
  %v9472 = vsel %vm8480, %v7768, %v9015
  %v9475 = vsel %vm8480, %v7773, %v9017
  %v9478 = vsel %vm8480, %v7774, %v9019
  %v9481 = vsel %vm8480, %v7777, %v9021
  %v9484 = vsel %vm8480, %v7778, %v9023
  %v9487 = vsel %vm8480, %v7779, %v9025
  %v9490 = vsel %vm8480, %v7780, %v9027
  %v9492 = vsel %vm8529, %v8501, %v9033
  %v9494 = vsel %vm8529, %v8504, %v9035
  %v9496 = vsel %vm8529, %v9463, %v9037
  %v9498 = vsel %vm8529, %v9466, %v9039
  %v9500 = vsel %vm8529, %v8513, %v9041
  %v9502 = vsel %vm8529, %v8516, %v9043
  %v9504 = vsel %vm8529, %v9469, %v9045
  %v9506 = vsel %vm8529, %v9472, %v9047
  %v9508 = vsel %vm8529, %v8525, %v9049
  %v9510 = vsel %vm8529, %v8528, %v9051
  %v9512 = vsel %vm8529, %v9475, %v9053
  %v9514 = vsel %vm8529, %v9478, %v9055
  %v9516 = vsel %vm8529, %v9481, %v9057
  %v9518 = vsel %vm8529, %v9484, %v9059
  %v9520 = vsel %vm8529, %v9487, %v9061
  %v9522 = vsel %vm8529, %v9490, %v9063
  %v9524 = vsel %vm8562, %v9492, %v9069
  %v9526 = vsel %vm8562, %v9494, %v9071
  %v9528 = vsel %vm8562, %v9496, %v9073
  %v9530 = vsel %vm8562, %v9498, %v9075
  %v9532 = vsel %vm8562, %v9500, %v9077
  %v9534 = vsel %vm8562, %v9502, %v9079
  %v9536 = vsel %vm8562, %v9504, %v9081
  %v9538 = vsel %vm8562, %v9506, %v9083
  %v9540 = vsel %vm8562, %v9508, %v9085
  %v9542 = vsel %vm8562, %v9510, %v9087
  %v9544 = vsel %vm8562, %v9512, %v9089
  %v9546 = vsel %vm8562, %v9514, %v9091
  %v9548 = vsel %vm8562, %v9516, %v9093
  %v9550 = vsel %vm8562, %v9518, %v9095
  %v9552 = vsel %vm8562, %v9520, %v9097
  %v9554 = vsel %vm8562, %v9522, %v9099
  %v9556 = vsel %vm8595, %v9524, %v9102
  %v9558 = vsel %vm8595, %v9526, %v9104
  %v9560 = vsel %vm8595, %v9528, %v9106
  %v9562 = vsel %vm8595, %v9530, %v9108
  %v9564 = vsel %vm8595, %v9532, %v9110
  %v9566 = vsel %vm8595, %v9534, %v9112
  %v9568 = vsel %vm8595, %v9536, %v9114
  %v9570 = vsel %vm8595, %v9538, %v9116
  %v9572 = vsel %vm8595, %v9540, %v9118
  %v9574 = vsel %vm8595, %v9542, %v9120
  %v9576 = vsel %vm8595, %v9544, %v9122
  %v9578 = vsel %vm8595, %v9546, %v9124
  %v9580 = vsel %vm8595, %v9548, %v9126
  %v9582 = vsel %vm8595, %v9550, %v9128
  %v9584 = vsel %vm8595, %v9552, %v9130
  %v9586 = vsel %vm8595, %v9554, %v9132
  %v9588 = vsel %vm8628, %v9556, %v9135
  %v9590 = vsel %vm8628, %v9558, %v9137
  %v9592 = vsel %vm8628, %v9560, %v9139
  %v9594 = vsel %vm8628, %v9562, %v9141
  %v9596 = vsel %vm8628, %v9564, %v9143
  %v9598 = vsel %vm8628, %v9566, %v9145
  %v9600 = vsel %vm8628, %v9568, %v9147
  %v9602 = vsel %vm8628, %v9570, %v9149
  %v9604 = vsel %vm8628, %v9572, %v9151
  %v9606 = vsel %vm8628, %v9574, %v9153
  %v9608 = vsel %vm8628, %v9576, %v9155
  %v9610 = vsel %vm8628, %v9578, %v9157
  %v9612 = vsel %vm8628, %v9580, %v9159
  %v9614 = vsel %vm8628, %v9582, %v9161
  %v9616 = vsel %vm8628, %v9584, %v9163
  %v9618 = vsel %vm8628, %v9586, %v9165
  %v9619 = vsel %vm8661, %v9588, %v8128
  %v9620 = vsel %vm8661, %v9590, %v8130
  %v9622 = vsel %vm8661, %v9592, %v9168
  %v9624 = vsel %vm8661, %v9594, %v9170
  %v9625 = vsel %vm8661, %v9596, %v8136
  %v9626 = vsel %vm8661, %v9598, %v8138
  %v9628 = vsel %vm8661, %v9600, %v9172
  %v9630 = vsel %vm8661, %v9602, %v9174
  %v9631 = vsel %vm8661, %v9604, %v8144
  %v9632 = vsel %vm8661, %v9606, %v8146
  %v9634 = vsel %vm8661, %v9608, %v9176
  %v9636 = vsel %vm8661, %v9610, %v9178
  %v9638 = vsel %vm8661, %v9612, %v9180
  %v9640 = vsel %vm8661, %v9614, %v9182
  %v9642 = vsel %vm8661, %v9616, %v9184
  %v9644 = vsel %vm8661, %v9618, %v9186
  %v9645 = vsel %vm8694, %v9619, %v8176
  %v9646 = vsel %vm8694, %v9620, %v8178
  %v9648 = vsel %vm8694, %v9622, %v9189
  %v9650 = vsel %vm8694, %v9624, %v9191
  %v9651 = vsel %vm8694, %v9625, %v8184
  %v9652 = vsel %vm8694, %v9626, %v8186
  %v9654 = vsel %vm8694, %v9628, %v9193
  %v9656 = vsel %vm8694, %v9630, %v9195
  %v9657 = vsel %vm8694, %v9631, %v8192
  %v9658 = vsel %vm8694, %v9632, %v8194
  %v9660 = vsel %vm8694, %v9634, %v9197
  %v9662 = vsel %vm8694, %v9636, %v9199
  %v9664 = vsel %vm8694, %v9638, %v9201
  %v9666 = vsel %vm8694, %v9640, %v9203
  %v9668 = vsel %vm8694, %v9642, %v9205
  %v9670 = vsel %vm8694, %v9644, %v9207
  %v9672 = vsel %vm8727, %v9645, %v9213
  %v9674 = vsel %vm8727, %v9646, %v9215
  %v9676 = vsel %vm8727, %v9648, %v9217
  %v9678 = vsel %vm8727, %v9650, %v9219
  %v9680 = vsel %vm8727, %v9651, %v9221
  %v9682 = vsel %vm8727, %v9652, %v9223
  %v9684 = vsel %vm8727, %v9654, %v9225
  %v9686 = vsel %vm8727, %v9656, %v9227
  %v9688 = vsel %vm8727, %v9657, %v9229
  %v9690 = vsel %vm8727, %v9658, %v9231
  %v9692 = vsel %vm8727, %v9660, %v9233
  %v9694 = vsel %vm8727, %v9662, %v9235
  %v9696 = vsel %vm8727, %v9664, %v9237
  %v9698 = vsel %vm8727, %v9666, %v9239
  %v9700 = vsel %vm8727, %v9668, %v9241
  %v9702 = vsel %vm8727, %v9670, %v9243
  %v9704 = vsel %vm8760, %v9672, %v9249
  %v9706 = vsel %vm8760, %v9674, %v9251
  %v9708 = vsel %vm8760, %v9676, %v9253
  %v9710 = vsel %vm8760, %v9678, %v9255
  %v9712 = vsel %vm8760, %v9680, %v9257
  %v9714 = vsel %vm8760, %v9682, %v9259
  %v9716 = vsel %vm8760, %v9684, %v9261
  %v9718 = vsel %vm8760, %v9686, %v9263
  %v9720 = vsel %vm8760, %v9688, %v9265
  %v9722 = vsel %vm8760, %v9690, %v9267
  %v9724 = vsel %vm8760, %v9692, %v9269
  %v9726 = vsel %vm8760, %v9694, %v9271
  %v9728 = vsel %vm8760, %v9696, %v9273
  %v9730 = vsel %vm8760, %v9698, %v9275
  %v9732 = vsel %vm8760, %v9700, %v9277
  %v9734 = vsel %vm8760, %v9702, %v9279
  %v9736 = vsel %vm8793, %v9704, %v9282
  %v9738 = vsel %vm8793, %v9706, %v9284
  %v9740 = vsel %vm8793, %v9708, %v9286
  %v9742 = vsel %vm8793, %v9710, %v9288
  %v9744 = vsel %vm8793, %v9712, %v9290
  %v9746 = vsel %vm8793, %v9714, %v9292
  %v9748 = vsel %vm8793, %v9716, %v9294
  %v9750 = vsel %vm8793, %v9718, %v9296
  %v9752 = vsel %vm8793, %v9720, %v9298
  %v9754 = vsel %vm8793, %v9722, %v9300
  %v9756 = vsel %vm8793, %v9724, %v9302
  %v9758 = vsel %vm8793, %v9726, %v9304
  %v9760 = vsel %vm8793, %v9728, %v9306
  %v9762 = vsel %vm8793, %v9730, %v9308
  %v9764 = vsel %vm8793, %v9732, %v9310
  %v9766 = vsel %vm8793, %v9734, %v9312
  %v9768 = vsel %vm8826, %v9736, %v9315
  %v9770 = vsel %vm8826, %v9738, %v9317
  %v9772 = vsel %vm8826, %v9740, %v9319
  %v9774 = vsel %vm8826, %v9742, %v9321
  %v9776 = vsel %vm8826, %v9744, %v9323
  %v9778 = vsel %vm8826, %v9746, %v9325
  %v9780 = vsel %vm8826, %v9748, %v9327
  %v9782 = vsel %vm8826, %v9750, %v9329
  %v9784 = vsel %vm8826, %v9752, %v9331
  %v9786 = vsel %vm8826, %v9754, %v9333
  %v9788 = vsel %vm8826, %v9756, %v9335
  %v9790 = vsel %vm8826, %v9758, %v9337
  %v9792 = vsel %vm8826, %v9760, %v9339
  %v9794 = vsel %vm8826, %v9762, %v9341
  %v9796 = vsel %vm8826, %v9764, %v9343
  %v9798 = vsel %vm8826, %v9766, %v9345
  %v9799 = vsel %vm8859, %v9768, %v8359
  %v9800 = vsel %vm8859, %v9770, %v8361
  %v9802 = vsel %vm8859, %v9772, %v9349
  %v9804 = vsel %vm8859, %v9774, %v9351
  %v9805 = vsel %vm8859, %v9776, %v8367
  %v9806 = vsel %vm8859, %v9778, %v8369
  %v9808 = vsel %vm8859, %v9780, %v9353
  %v9810 = vsel %vm8859, %v9782, %v9355
  %v9811 = vsel %vm8859, %v9784, %v8375
  %v9812 = vsel %vm8859, %v9786, %v8377
  %v9814 = vsel %vm8859, %v9788, %v9357
  %v9816 = vsel %vm8859, %v9790, %v9359
  %v9818 = vsel %vm8859, %v9792, %v9361
  %v9820 = vsel %vm8859, %v9794, %v9363
  %v9822 = vsel %vm8859, %v9796, %v9365
  %v9824 = vsel %vm8859, %v9798, %v9367
  %v9826 = vsel %vm8908, %v9349, %v9370
  %v9828 = vsel %vm8908, %v9351, %v9372
  %v9830 = vsel %vm8908, %v9353, %v9374
  %v9832 = vsel %vm8908, %v9355, %v9376
  %v9834 = vsel %vm8908, %v9357, %v9378
  %v9836 = vsel %vm8908, %v9359, %v9380
  %v9838 = vsel %vm8908, %v9361, %v9382
  %v9840 = vsel %vm8908, %v9363, %v9384
  %v9842 = vsel %vm8908, %v9365, %v9386
  %v9844 = vsel %vm8908, %v9367, %v9388
  %v9846 = vsel %vm8941, %v8922, %v9394
  %v9848 = vsel %vm8941, %v8924, %v9396
  %v9850 = vsel %vm8941, %v9826, %v9398
  %v9852 = vsel %vm8941, %v9828, %v9400
  %v9854 = vsel %vm8941, %v8930, %v9402
  %v9856 = vsel %vm8941, %v8932, %v9404
  %v9858 = vsel %vm8941, %v9830, %v9406
  %v9860 = vsel %vm8941, %v9832, %v9408
  %v9862 = vsel %vm8941, %v8938, %v9410
  %v9864 = vsel %vm8941, %v8940, %v9412
  %v9866 = vsel %vm8941, %v9834, %v9414
  %v9868 = vsel %vm8941, %v9836, %v9416
  %v9870 = vsel %vm8941, %v9838, %v9418
  %v9872 = vsel %vm8941, %v9840, %v9420
  %v9874 = vsel %vm8941, %v9842, %v9422
  %v9876 = vsel %vm8941, %v9844, %v9424
  %v9878 = vsel %vm8974, %v9846, %v9430
  %v9880 = vsel %vm8974, %v9848, %v9432
  %v9882 = vsel %vm8974, %v9850, %v9434
  %v9884 = vsel %vm8974, %v9852, %v9436
  %v9886 = vsel %vm8974, %v9854, %v9438
  %v9888 = vsel %vm8974, %v9856, %v9440
  %v9890 = vsel %vm8974, %v9858, %v9442
  %v9892 = vsel %vm8974, %v9860, %v9444
  %v9894 = vsel %vm8974, %v9862, %v9446
  %v9896 = vsel %vm8974, %v9864, %v9448
  %v9898 = vsel %vm8974, %v9866, %v9450
  %v9900 = vsel %vm8974, %v9868, %v9452
  %v9902 = vsel %vm8974, %v9870, %v9454
  %v9904 = vsel %vm8974, %v9872, %v9456
  %v9906 = vsel %vm8974, %v9874, %v9458
  %v9908 = vsel %vm8974, %v9876, %v9460
  %9910 = vrot.lane.b32.xlu0 %v7872, 10
  %v9911 = vpop.permute.xlu0 %9910
  %9912 = vrot.lane.b32.xlu0 %v7873, 10
  %v9913 = vpop.permute.xlu0 %9912
  %9914 = vrot.lane.b32.xlu0 %v7874, 10
  %v9915 = vpop.permute.xlu0 %9914
  %9916 = vrot.lane.b32.xlu0 %v7875, 10
  %v9917 = vpop.permute.xlu0 %9916
  %9918 = vrot.lane.b32.xlu0 %v7878, 10
  %v9919 = vpop.permute.xlu0 %9918
  %9920 = vrot.lane.b32.xlu0 %v7879, 10
  %v9921 = vpop.permute.xlu0 %9920
  %9922 = vrot.lane.b32.xlu0 %v7880, 10
  %v9923 = vpop.permute.xlu0 %9922
  %9924 = vrot.lane.b32.xlu0 %v7881, 10
  %v9925 = vpop.permute.xlu0 %9924
  %9926 = vrot.lane.b32.xlu0 %v7884, 10
  %v9927 = vpop.permute.xlu0 %9926
  %9928 = vrot.lane.b32.xlu0 %v7885, 10
  %v9929 = vpop.permute.xlu0 %9928
  %9930 = vrot.lane.b32.xlu0 %v7886, 10
  %v9931 = vpop.permute.xlu0 %9930
  %9932 = vrot.lane.b32.xlu0 %v7887, 10
  %v9933 = vpop.permute.xlu0 %9932
  %9934 = vrot.lane.b32.xlu0 %v7890, 10
  %v9935 = vpop.permute.xlu0 %9934
  %9936 = vrot.lane.b32.xlu0 %v7891, 10
  %v9937 = vpop.permute.xlu0 %9936
  %9938 = vrot.lane.b32.xlu0 %v7892, 10
  %v9939 = vpop.permute.xlu0 %9938
  %9940 = vrot.lane.b32.xlu0 %v7893, 10
  %v9941 = vpop.permute.xlu0 %9940
  %9944 = vrot.lane.b32.xlu0 %v7839, 20
  %v9945 = vpop.permute.xlu0 %9944
  %9946 = vrot.lane.b32.xlu0 %v7840, 20
  %v9947 = vpop.permute.xlu0 %9946
  %9948 = vrot.lane.b32.xlu0 %v7845, 20
  %v9949 = vpop.permute.xlu0 %9948
  %9950 = vrot.lane.b32.xlu0 %v7846, 20
  %v9951 = vpop.permute.xlu0 %9950
  %9952 = vrot.lane.b32.xlu0 %v7851, 20
  %v9953 = vpop.permute.xlu0 %9952
  %9954 = vrot.lane.b32.xlu0 %v7852, 20
  %v9955 = vpop.permute.xlu0 %9954
  %9956 = vrot.lane.b32.xlu0 %v7855, 20
  %v9957 = vpop.permute.xlu0 %9956
  %9958 = vrot.lane.b32.xlu0 %v7856, 20
  %v9959 = vpop.permute.xlu0 %9958
  %9960 = vrot.lane.b32.xlu0 %v7857, 20
  %v9961 = vpop.permute.xlu0 %9960
  %9962 = vrot.lane.b32.xlu0 %v7858, 20
  %v9963 = vpop.permute.xlu0 %9962
  %9965 = vrot.lane.b32.xlu0 %v7875, 30
  %v9966 = vpop.permute.xlu0 %9965
  %9967 = vrot.lane.b32.xlu0 %v7876, 30
  %v9968 = vpop.permute.xlu0 %9967
  %9969 = vrot.lane.b32.xlu0 %v7881, 30
  %v9970 = vpop.permute.xlu0 %9969
  %9971 = vrot.lane.b32.xlu0 %v7882, 30
  %v9972 = vpop.permute.xlu0 %9971
  %9973 = vrot.lane.b32.xlu0 %v7887, 30
  %v9974 = vpop.permute.xlu0 %9973
  %9975 = vrot.lane.b32.xlu0 %v7888, 30
  %v9976 = vpop.permute.xlu0 %9975
  %9977 = vrot.lane.b32.xlu0 %v7891, 30
  %v9978 = vpop.permute.xlu0 %9977
  %9979 = vrot.lane.b32.xlu0 %v7892, 30
  %v9980 = vpop.permute.xlu0 %9979
  %9981 = vrot.lane.b32.xlu0 %v7893, 30
  %v9982 = vpop.permute.xlu0 %9981
  %9983 = vrot.lane.b32.xlu0 %v7894, 30
  %v9984 = vpop.permute.xlu0 %9983
  %v9987 = vsel %vm8480, %v7836, %v9911
  %v9990 = vsel %vm8480, %v7837, %v9913
  %v9993 = vsel %vm8480, %v7838, %v9915
  %v9996 = vsel %vm8480, %v7839, %v9917
  %v9999 = vsel %vm8480, %v7842, %v9919
  %v10002 = vsel %vm8480, %v7843, %v9921
  %v10005 = vsel %vm8480, %v7844, %v9923
  %v10008 = vsel %vm8480, %v7845, %v9925
  %v10011 = vsel %vm8480, %v7848, %v9927
  %v10014 = vsel %vm8480, %v7849, %v9929
  %v10017 = vsel %vm8480, %v7850, %v9931
  %v10020 = vsel %vm8480, %v7851, %v9933
  %v10023 = vsel %vm8480, %v7854, %v9935
  %v10026 = vsel %vm8480, %v7855, %v9937
  %v10029 = vsel %vm8480, %v7856, %v9939
  %v10032 = vsel %vm8480, %v7857, %v9941
  %v10033 = vsel %vm8529, %v9987, %v9045
  %v10034 = vsel %vm8529, %v9990, %v9047
  %v10036 = vsel %vm8529, %v9993, %v9945
  %v10038 = vsel %vm8529, %v9996, %v9947
  %v10039 = vsel %vm8529, %v9999, %v9053
  %v10040 = vsel %vm8529, %v10002, %v9055
  %v10042 = vsel %vm8529, %v10005, %v9949
  %v10044 = vsel %vm8529, %v10008, %v9951
  %v10045 = vsel %vm8529, %v10011, %v9061
  %v10046 = vsel %vm8529, %v10014, %v9063
  %v10048 = vsel %vm8529, %v10017, %v9953
  %v10050 = vsel %vm8529, %v10020, %v9955
  %v10052 = vsel %vm8529, %v10023, %v9957
  %v10054 = vsel %vm8529, %v10026, %v9959
  %v10056 = vsel %vm8529, %v10029, %v9961
  %v10058 = vsel %vm8529, %v10032, %v9963
  %v10059 = vsel %vm8562, %v10033, %v9081
  %v10060 = vsel %vm8562, %v10034, %v9083
  %v10062 = vsel %vm8562, %v10036, %v9966
  %v10064 = vsel %vm8562, %v10038, %v9968
  %v10065 = vsel %vm8562, %v10039, %v9089
  %v10066 = vsel %vm8562, %v10040, %v9091
  %v10068 = vsel %vm8562, %v10042, %v9970
  %v10070 = vsel %vm8562, %v10044, %v9972
  %v10071 = vsel %vm8562, %v10045, %v9097
  %v10072 = vsel %vm8562, %v10046, %v9099
  %v10074 = vsel %vm8562, %v10048, %v9974
  %v10076 = vsel %vm8562, %v10050, %v9976
  %v10078 = vsel %vm8562, %v10052, %v9978
  %v10080 = vsel %vm8562, %v10054, %v9980
  %v10082 = vsel %vm8562, %v10056, %v9982
  %v10084 = vsel %vm8562, %v10058, %v9984
  %10117 = vrot.lane.b32.xlu0 %v9799, 32
  %v10118 = vpop.permute.xlu0 %10117
  %10119 = vrot.lane.b32.xlu0 %v9878, 32
  %v10120 = vpop.permute.xlu0 %10119
  %10121 = vrot.lane.b32.xlu0 %v9800, 32
  %v10122 = vpop.permute.xlu0 %10121
  %10123 = vrot.lane.b32.xlu0 %v9880, 32
  %v10124 = vpop.permute.xlu0 %10123
  %10125 = vrot.lane.b32.xlu0 %v9802, 32
  %v10126 = vpop.permute.xlu0 %10125
  %10127 = vrot.lane.b32.xlu0 %v9882, 32
  %v10128 = vpop.permute.xlu0 %10127
  %10129 = vrot.lane.b32.xlu0 %v9804, 32
  %v10130 = vpop.permute.xlu0 %10129
  %10131 = vrot.lane.b32.xlu0 %v9884, 32
  %v10132 = vpop.permute.xlu0 %10131
  %10133 = vrot.lane.b32.xlu0 %v9805, 32
  %v10134 = vpop.permute.xlu0 %10133
  %10135 = vrot.lane.b32.xlu0 %v9886, 32
  %v10136 = vpop.permute.xlu0 %10135
  %10137 = vrot.lane.b32.xlu0 %v9806, 32
  %v10138 = vpop.permute.xlu0 %10137
  %10139 = vrot.lane.b32.xlu0 %v9888, 32
  %v10140 = vpop.permute.xlu0 %10139
  %10141 = vrot.lane.b32.xlu0 %v9808, 32
  %v10142 = vpop.permute.xlu0 %10141
  %10143 = vrot.lane.b32.xlu0 %v9890, 32
  %v10144 = vpop.permute.xlu0 %10143
  %10145 = vrot.lane.b32.xlu0 %v9810, 32
  %v10146 = vpop.permute.xlu0 %10145
  %10147 = vrot.lane.b32.xlu0 %v9892, 32
  %v10148 = vpop.permute.xlu0 %10147
  %10149 = vrot.lane.b32.xlu0 %v9811, 32
  %v10150 = vpop.permute.xlu0 %10149
  %10151 = vrot.lane.b32.xlu0 %v9894, 32
  %v10152 = vpop.permute.xlu0 %10151
  %10153 = vrot.lane.b32.xlu0 %v9812, 32
  %v10154 = vpop.permute.xlu0 %10153
  %10155 = vrot.lane.b32.xlu0 %v9896, 32
  %v10156 = vpop.permute.xlu0 %10155
  %10157 = vrot.lane.b32.xlu0 %v9814, 32
  %v10158 = vpop.permute.xlu0 %10157
  %10159 = vrot.lane.b32.xlu0 %v9898, 32
  %v10160 = vpop.permute.xlu0 %10159
  %10161 = vrot.lane.b32.xlu0 %v9816, 32
  %v10162 = vpop.permute.xlu0 %10161
  %10163 = vrot.lane.b32.xlu0 %v9900, 32
  %v10164 = vpop.permute.xlu0 %10163
  %10165 = vrot.lane.b32.xlu0 %v9818, 32
  %v10166 = vpop.permute.xlu0 %10165
  %10167 = vrot.lane.b32.xlu0 %v9902, 32
  %v10168 = vpop.permute.xlu0 %10167
  %10169 = vrot.lane.b32.xlu0 %v9820, 32
  %v10170 = vpop.permute.xlu0 %10169
  %10171 = vrot.lane.b32.xlu0 %v9904, 32
  %v10172 = vpop.permute.xlu0 %10171
  %10173 = vrot.lane.b32.xlu0 %v9822, 32
  %v10174 = vpop.permute.xlu0 %10173
  %10175 = vrot.lane.b32.xlu0 %v9906, 32
  %v10176 = vpop.permute.xlu0 %10175
  %10177 = vrot.lane.b32.xlu0 %v9824, 32
  %v10178 = vpop.permute.xlu0 %10177
  %10179 = vrot.lane.b32.xlu0 %v9908, 32
  %v10180 = vpop.permute.xlu0 %10179
  %vm10181 = vcmask 261120
  %v10182 = vsel %vm10181, %v10118, %v10120
  %v10183 = vsel %vm10181, %v10122, %v10124
  %v10184 = vsel %vm10181, %v10126, %v10128
  %v10185 = vsel %vm10181, %v10130, %v10132
  %v10186 = vsel %vm10181, %v10134, %v10136
  %v10187 = vsel %vm10181, %v10138, %v10140
  %v10188 = vsel %vm10181, %v10142, %v10144
  %v10189 = vsel %vm10181, %v10146, %v10148
  %v10190 = vsel %vm10181, %v10150, %v10152
  %v10191 = vsel %vm10181, %v10154, %v10156
  %v10192 = vsel %vm10181, %v10158, %v10160
  %v10193 = vsel %vm10181, %v10162, %v10164
  %v10194 = vsel %vm10181, %v10166, %v10168
  %v10195 = vsel %vm10181, %v10170, %v10172
  %v10196 = vsel %vm10181, %v10174, %v10176
  %v10197 = vsel %vm10181, %v10178, %v10180
  %10214 = vrot.lane.b32.xlu0 %v10059, 64
  %v10215 = vpop.permute.xlu0 %10214
  %10216 = vrot.lane.b32.xlu0 %v10060, 64
  %v10217 = vpop.permute.xlu0 %10216
  %10218 = vrot.lane.b32.xlu0 %v10062, 64
  %v10219 = vpop.permute.xlu0 %10218
  %10220 = vrot.lane.b32.xlu0 %v10064, 64
  %v10221 = vpop.permute.xlu0 %10220
  %10222 = vrot.lane.b32.xlu0 %v10065, 64
  %v10223 = vpop.permute.xlu0 %10222
  %10224 = vrot.lane.b32.xlu0 %v10066, 64
  %v10225 = vpop.permute.xlu0 %10224
  %10226 = vrot.lane.b32.xlu0 %v10068, 64
  %v10227 = vpop.permute.xlu0 %10226
  %10228 = vrot.lane.b32.xlu0 %v10070, 64
  %v10229 = vpop.permute.xlu0 %10228
  %10230 = vrot.lane.b32.xlu0 %v10071, 64
  %v10231 = vpop.permute.xlu0 %10230
  %10232 = vrot.lane.b32.xlu0 %v10072, 64
  %v10233 = vpop.permute.xlu0 %10232
  %10234 = vrot.lane.b32.xlu0 %v10074, 64
  %v10235 = vpop.permute.xlu0 %10234
  %10236 = vrot.lane.b32.xlu0 %v10076, 64
  %v10237 = vpop.permute.xlu0 %10236
  %10238 = vrot.lane.b32.xlu0 %v10078, 64
  %v10239 = vpop.permute.xlu0 %10238
  %10240 = vrot.lane.b32.xlu0 %v10080, 64
  %v10241 = vpop.permute.xlu0 %10240
  %10242 = vrot.lane.b32.xlu0 %v10082, 64
  %v10243 = vpop.permute.xlu0 %10242
  %10244 = vrot.lane.b32.xlu0 %v10084, 64
  %v10245 = vpop.permute.xlu0 %10244
  %vm10246 = vcmask 261120
  %v10248 = vsel %vm10246, %v8976, %v10118
  %v10251 = vsel %vm10246, %v8978, %v10122
  %v10254 = vsel %vm10246, %v8980, %v10126
  %v10257 = vsel %vm10246, %v8982, %v10130
  %v10260 = vsel %vm10246, %v8984, %v10134
  %v10263 = vsel %vm10246, %v8986, %v10138
  %v10266 = vsel %vm10246, %v8988, %v10142
  %v10269 = vsel %vm10246, %v8990, %v10146
  %v10272 = vsel %vm10246, %v8992, %v10150
  %v10275 = vsel %vm10246, %v8994, %v10154
  %v10278 = vsel %vm10246, %v8996, %v10158
  %v10281 = vsel %vm10246, %v8998, %v10162
  %v10284 = vsel %vm10246, %v9000, %v10166
  %v10287 = vsel %vm10246, %v9002, %v10170
  %v10290 = vsel %vm10246, %v9004, %v10174
  %v10293 = vsel %vm10246, %v9006, %v10178
  %vm10295 = vcmask 523264
  %v10298 = vsel %vm10295, %v10182, %v10215
  %v10301 = vsel %vm10295, %v10183, %v10217
  %v10304 = vsel %vm10295, %v10184, %v10219
  %v10307 = vsel %vm10295, %v10185, %v10221
  %v10310 = vsel %vm10295, %v10186, %v10223
  %v10313 = vsel %vm10295, %v10187, %v10225
  %v10316 = vsel %vm10295, %v10188, %v10227
  %v10319 = vsel %vm10295, %v10189, %v10229
  %v10322 = vsel %vm10295, %v10190, %v10231
  %v10325 = vsel %vm10295, %v10191, %v10233
  %v10328 = vsel %vm10295, %v10192, %v10235
  %v10331 = vsel %vm10295, %v10193, %v10237
  %v10334 = vsel %vm10295, %v10194, %v10239
  %v10337 = vsel %vm10295, %v10195, %v10241
  %v10340 = vsel %vm10295, %v10196, %v10243
  %v10343 = vsel %vm10295, %v10197, %v10245
  %v10344 = vld [vmem:[%s3] sm:$0xf]
  %v10345 = vld [vmem:[%s3 + $0x4] sm:$0xf]
  %v10346 = vld [vmem:[%s3 + $0x8] sm:$0xf]
  %v10347 = vld [vmem:[%s3 + $0xc] sm:$0xf]
  %v10348 = vld [vmem:[%s3 + $0x10] sm:$0xf]
  %v10349 = vld [vmem:[%s3 + $0x14] sm:$0xf]
  %v10350 = vld [vmem:[%s3 + $0x18] sm:$0xf]
  %v10351 = vld [vmem:[%s3 + $0x1c] sm:$0xf]
  %v10352 = vld [vmem:[%s3 + $0x20] sm:$0xf]
  %v10353 = vld [vmem:[%s3 + $0x24] sm:$0xf]
  %v10354 = vld [vmem:[%s3 + $0x28] sm:$0xf]
  %v10355 = vld [vmem:[%s3 + $0x2c] sm:$0xf]
  %v10356 = vld [vmem:[%s3 + $0x30] sm:$0xf]
  %v10357 = vld [vmem:[%s3 + $0x34] sm:$0xf]
  %v10358 = vld [vmem:[%s3 + $0x38] sm:$0xf]
  %v10359 = vld [vmem:[%s3 + $0x3c] sm:$0xf]
  %v10360 = vld [vmem:[%s3 + $0x40] sm:$0xf]
  %v10361 = vld [vmem:[%s3 + $0x44] sm:$0xf]
  %v10362 = vld [vmem:[%s3 + $0x48] sm:$0xf]
  %v10363 = vld [vmem:[%s3 + $0x4c] sm:$0xf]
  %v10364 = vld [vmem:[%s3 + $0x50] sm:$0xf]
  %v10365 = vld [vmem:[%s3 + $0x54] sm:$0xf]
  %v10366 = vld [vmem:[%s3 + $0x58] sm:$0xf]
  %v10367 = vld [vmem:[%s3 + $0x5c] sm:$0xf]
  %v10368 = vld [vmem:[%s3 + $0x60] sm:$0xf]
  %v10369 = vld [vmem:[%s3 + $0x64] sm:$0xf]
  %v10370 = vld [vmem:[%s3 + $0x68] sm:$0xf]
  %v10371 = vld [vmem:[%s3 + $0x6c] sm:$0xf]
  %v10372 = vld [vmem:[%s3 + $0x70] sm:$0xf]
  %v10373 = vld [vmem:[%s3 + $0x74] sm:$0xf]
  %v10374 = vld [vmem:[%s3 + $0x78] sm:$0xf]
  %v10375 = vld [vmem:[%s3 + $0x7c] sm:$0xf]
  %v10376 = vld [vmem:[%s3 + $0x80] sm:$0xf]
  %v10377 = vld [vmem:[%s3 + $0x84] sm:$0xf]
  %v10378 = vld [vmem:[%s3 + $0x88] sm:$0xf]
  %v10379 = vld [vmem:[%s3 + $0x8c] sm:$0xf]
  %v10380 = vld [vmem:[%s3 + $0x90] sm:$0xf]
  %v10381 = vld [vmem:[%s3 + $0x94] sm:$0xf]
  %v10382 = vld [vmem:[%s3 + $0x98] sm:$0xf]
  %v10383 = vld [vmem:[%s3 + $0x9c] sm:$0xf]
  %v10384 = vld [vmem:[%s3 + $0xa0] sm:$0xf]
  %v10385 = vld [vmem:[%s3 + $0xa4] sm:$0xf]
  %v10386 = vld [vmem:[%s3 + $0xa8] sm:$0xf]
  %v10387 = vld [vmem:[%s3 + $0xac] sm:$0xf]
  %v10388 = vld [vmem:[%s3 + $0xb0] sm:$0xf]
  %v10434 = vunpack.c.l.b16 %v10344
  %v10435 = vunpack.c.l.b16 %v10345
  %v10436 = vunpack.c.l.b16 %v10346
  %v10437 = vunpack.c.l.b16 %v10347
  %v10438 = vunpack.c.l.b16 %v10348
  %v10439 = vunpack.c.l.b16 %v10349
  %v10440 = vunpack.c.l.b16 %v10350
  %v10441 = vunpack.c.l.b16 %v10351
  %v10442 = vunpack.c.l.b16 %v10352
  %v10443 = vunpack.c.l.b16 %v10353
  %v10444 = vunpack.c.l.b16 %v10354
  %v10445 = vunpack.c.l.b16 %v10355
  %v10446 = vunpack.c.l.b16 %v10356
  %v10447 = vunpack.c.l.b16 %v10357
  %v10448 = vunpack.c.l.b16 %v10358
  %v10449 = vunpack.c.l.b16 %v10359
  %v10450 = vunpack.c.l.b16 %v10360
  %v10451 = vunpack.c.l.b16 %v10361
  %v10452 = vunpack.c.l.b16 %v10362
  %v10453 = vunpack.c.l.b16 %v10363
  %v10454 = vunpack.c.l.b16 %v10364
  %v10455 = vunpack.c.l.b16 %v10365
  %v10456 = vunpack.c.l.b16 %v10366
  %v10457 = vunpack.c.l.b16 %v10367
  %v10458 = vunpack.c.l.b16 %v10368
  %v10459 = vunpack.c.l.b16 %v10369
  %v10460 = vunpack.c.l.b16 %v10370
  %v10461 = vunpack.c.l.b16 %v10371
  %v10462 = vunpack.c.l.b16 %v10372
  %v10463 = vunpack.c.l.b16 %v10373
  %v10464 = vunpack.c.l.b16 %v10374
  %v10465 = vunpack.c.l.b16 %v10375
  %v10466 = vunpack.c.l.b16 %v10376
  %v10467 = vunpack.c.l.b16 %v10377
  %v10468 = vunpack.c.l.b16 %v10378
  %v10469 = vunpack.c.l.b16 %v10379
  %v10470 = vunpack.c.l.b16 %v10380
  %v10471 = vunpack.c.l.b16 %v10381
  %v10472 = vunpack.c.l.b16 %v10382
  %v10473 = vunpack.c.l.b16 %v10383
  %v10474 = vunpack.c.l.b16 %v10384
  %v10475 = vunpack.c.l.b16 %v10385
  %v10476 = vunpack.c.l.b16 %v10386
  %v10477 = vunpack.c.l.b16 %v10387
  %v10478 = vunpack.c.l.b16 %v10388
  %v10479 = vpack.c.b16 %v10435, %v10434
  %v10480 = vpack.c.b16 %v10437, %v10436
  %v10481 = vpack.c.b16 %v10439, %v10438
  %v10482 = vpack.c.b16 %v10441, %v10440
  %v10483 = vpack.c.b16 %v10443, %v10442
  %v10484 = vpack.c.b16 %v10445, %v10444
  %v10485 = vpack.c.b16 %v10447, %v10446
  %v10486 = vpack.c.b16 %v10449, %v10448
  %v10487 = vpack.c.b16 %v10451, %v10450
  %v10488 = vpack.c.b16 %v10453, %v10452
  %v10489 = vpack.c.b16 %v10455, %v10454
  %v10490 = vpack.c.b16 %v10457, %v10456
  %v10491 = vpack.c.b16 %v10459, %v10458
  %v10492 = vpack.c.b16 %v10461, %v10460
  %v10493 = vpack.c.b16 %v10463, %v10462
  %v10494 = vpack.c.b16 %v10465, %v10464
  %v10495 = vpack.c.b16 %v10467, %v10466
  %v10496 = vpack.c.b16 %v10469, %v10468
  %v10497 = vpack.c.b16 %v10471, %v10470
  %v10498 = vpack.c.b16 %v10473, %v10472
  %v10499 = vpack.c.b16 %v10475, %v10474
  %v10500 = vpack.c.b16 %v10477, %v10476
  %v10501 = vpack.c.b16 %v10478, %v10478
  %vm10524 = vcmask 850944
  %v10525 = vsel %vm10524, %v10298, 0
  %v10527 = vsel %vm10524, %v10301, 0
  %v10529 = vsel %vm10524, %v10304, 0
  %v10531 = vsel %vm10524, %v10307, 0
  %v10533 = vsel %vm10524, %v10310, 0
  %v10535 = vsel %vm10524, %v10313, 0
  %v10537 = vsel %vm10524, %v10316, 0
  %v10539 = vsel %vm10524, %v10319, 0
  %v10541 = vsel %vm10524, %v10322, 0
  %v10543 = vsel %vm10524, %v10325, 0
  %v10545 = vsel %vm10524, %v10328, 0
  %v10547 = vsel %vm10524, %v10331, 0
  %v10549 = vsel %vm10524, %v10334, 0
  %v10551 = vsel %vm10524, %v10337, 0
  %v10553 = vsel %vm10524, %v10340, 0
  %v10555 = vsel %vm10524, %v10343, 0
  %vm10557 = vcmask 1043456
  %v10559 = vsel %vm10557, %v10501, 0
  %10561 = vmatprep.subr.bf16.mxu0 0
  %10562 = vmatpush1.bf16.msra.mxu0 %v10486
  %10563 = vmatprep.subr.bf16.mxu0 0
  %10564 = vmatpush1.bf16.msra.mxu0 %v10485
  %10565 = vmatprep.subr.bf16.mxu0 0
  %10566 = vmatpush1.bf16.msra.mxu0 %v10484
  %10567 = vmatprep.subr.bf16.mxu0 0
  %10568 = vmatpush1.bf16.msra.mxu0 %v10483
  %10569 = vmatprep.subr.bf16.mxu0 0
  %10570 = vmatpush1.bf16.msra.mxu0 %v10482
  %10571 = vmatprep.subr.bf16.mxu0 0
  %10572 = vmatpush1.bf16.msra.mxu0 %v10481
  %10573 = vmatprep.subr.bf16.mxu0 0
  %10574 = vmatpush1.bf16.msra.mxu0 %v10480
  %10575 = vmatprep.subr.bf16.mxu0 0
  %10576 = vmatpush1.bf16.msra.mxu0 %v10479
  %10577 = vmatprep.subr.bf16.mxu0 0
  %10578 = vmatpush2.bf16.msra.mxu0 %v10494
  %10579 = vmatprep.subr.bf16.mxu0 0
  %10580 = vmatpush2.bf16.msra.mxu0 %v10493
  %10581 = vmatprep.subr.bf16.mxu0 0
  %10582 = vmatpush2.bf16.msra.mxu0 %v10492
  %10583 = vmatprep.subr.bf16.mxu0 0
  %10584 = vmatpush2.bf16.msra.mxu0 %v10491
  %10585 = vmatprep.subr.bf16.mxu0 0
  %10586 = vmatpush2.bf16.msra.mxu0 %v10490
  %10587 = vmatprep.subr.bf16.mxu0 0
  %10588 = vmatpush2.bf16.msra.mxu0 %v10489
  %10589 = vmatprep.subr.bf16.mxu0 0
  %10590 = vmatpush2.bf16.msra.mxu0 %v10488
  %10591 = vmatprep.subr.bf16.mxu0 0
  %10592 = vmatpush2.bf16.msra.mxu0 %v10487
  %10593 = vmatprep.mubr.bf16.mxu0 %v10248
  %10594 = vmatmul.mubr.bf16.gmra.mxu0 %v8861
  %v10595 = vpop.f32.mrf.mxu0
  %v10596 = vadd.f32 0.0, %v10595
  %v10597 = vpop.f32.mrf.mxu0
  %v10598 = vpop.f32.mrf.mxu0
  %v10599 = vadd.f32 0.0, %v10598
  %v10600 = vpop.f32.mrf.mxu0
  %10601 = vmatprep.mubr.bf16.mxu0 %v10251
  %10602 = vmatmul.mubr.bf16.gmra.mxu0 %v8864
  %v10603 = vpop.f32.mrf.mxu0
  %v10604 = vadd.f32 0.0, %v10603
  %v10605 = vpop.f32.mrf.mxu0
  %v10606 = vpop.f32.mrf.mxu0
  %v10607 = vadd.f32 0.0, %v10606
  %v10608 = vpop.f32.mrf.mxu0
  %10609 = vmatprep.mubr.bf16.mxu0 %v10254
  %10610 = vmatmul.mubr.bf16.gmra.mxu0 %v8867
  %v10611 = vpop.f32.mrf.mxu0
  %v10612 = vadd.f32 0.0, %v10611
  %v10613 = vpop.f32.mrf.mxu0
  %v10614 = vpop.f32.mrf.mxu0
  %v10615 = vadd.f32 0.0, %v10614
  %v10616 = vpop.f32.mrf.mxu0
  %10617 = vmatprep.mubr.bf16.mxu0 %v10257
  %10618 = vmatmul.mubr.bf16.gmra.mxu0 %v8870
  %v10619 = vpop.f32.mrf.mxu0
  %v10620 = vadd.f32 0.0, %v10619
  %v10621 = vpop.f32.mrf.mxu0
  %v10622 = vpop.f32.mrf.mxu0
  %v10623 = vadd.f32 0.0, %v10622
  %v10624 = vpop.f32.mrf.mxu0
  %10625 = vmatprep.mubr.bf16.mxu0 %v10260
  %10626 = vmatmul.mubr.bf16.gmra.mxu0 %v8873
  %v10627 = vpop.f32.mrf.mxu0
  %v10628 = vadd.f32 0.0, %v10627
  %v10629 = vpop.f32.mrf.mxu0
  %v10630 = vpop.f32.mrf.mxu0
  %v10631 = vadd.f32 0.0, %v10630
  %v10632 = vpop.f32.mrf.mxu0
  %10633 = vmatprep.mubr.bf16.mxu0 %v10263
  %10634 = vmatmul.mubr.bf16.gmra.mxu0 %v8876
  %v10635 = vpop.f32.mrf.mxu0
  %v10636 = vadd.f32 0.0, %v10635
  %v10637 = vpop.f32.mrf.mxu0
  %v10638 = vpop.f32.mrf.mxu0
  %v10639 = vadd.f32 0.0, %v10638
  %v10640 = vpop.f32.mrf.mxu0
  %10641 = vmatprep.mubr.bf16.mxu0 %v10266
  %10642 = vmatmul.mubr.bf16.gmra.mxu0 %v8879
  %v10643 = vpop.f32.mrf.mxu0
  %v10644 = vadd.f32 0.0, %v10643
  %v10645 = vpop.f32.mrf.mxu0
  %v10646 = vpop.f32.mrf.mxu0
  %v10647 = vadd.f32 0.0, %v10646
  %v10648 = vpop.f32.mrf.mxu0
  %10649 = vmatprep.mubr.bf16.mxu0 %v10269
  %10650 = vmatmul.mubr.bf16.gmra.mxu0 %v8882
  %v10651 = vpop.f32.mrf.mxu0
  %v10652 = vadd.f32 0.0, %v10651
  %v10653 = vpop.f32.mrf.mxu0
  %v10654 = vpop.f32.mrf.mxu0
  %v10655 = vadd.f32 0.0, %v10654
  %v10656 = vpop.f32.mrf.mxu0
  %10657 = vmatprep.mubr.bf16.mxu0 %v10272
  %10658 = vmatmul.mubr.bf16.gmra.mxu0 %v8885
  %v10659 = vpop.f32.mrf.mxu0
  %v10660 = vadd.f32 0.0, %v10659
  %v10661 = vpop.f32.mrf.mxu0
  %v10662 = vpop.f32.mrf.mxu0
  %v10663 = vadd.f32 0.0, %v10662
  %v10664 = vpop.f32.mrf.mxu0
  %10665 = vmatprep.mubr.bf16.mxu0 %v10275
  %10666 = vmatmul.mubr.bf16.gmra.mxu0 %v8888
  %v10667 = vpop.f32.mrf.mxu0
  %v10668 = vadd.f32 0.0, %v10667
  %v10669 = vpop.f32.mrf.mxu0
  %v10670 = vpop.f32.mrf.mxu0
  %v10671 = vadd.f32 0.0, %v10670
  %v10672 = vpop.f32.mrf.mxu0
  %10673 = vmatprep.mubr.bf16.mxu0 %v10278
  %10674 = vmatmul.mubr.bf16.gmra.mxu0 %v8891
  %v10675 = vpop.f32.mrf.mxu0
  %v10676 = vadd.f32 0.0, %v10675
  %v10677 = vpop.f32.mrf.mxu0
  %v10678 = vpop.f32.mrf.mxu0
  %v10679 = vadd.f32 0.0, %v10678
  %v10680 = vpop.f32.mrf.mxu0
  %10681 = vmatprep.mubr.bf16.mxu0 %v10281
  %10682 = vmatmul.mubr.bf16.gmra.mxu0 %v8894
  %v10683 = vpop.f32.mrf.mxu0
  %v10684 = vadd.f32 0.0, %v10683
  %v10685 = vpop.f32.mrf.mxu0
  %v10686 = vpop.f32.mrf.mxu0
  %v10687 = vadd.f32 0.0, %v10686
  %v10688 = vpop.f32.mrf.mxu0
  %10689 = vmatprep.mubr.bf16.mxu0 %v10284
  %10690 = vmatmul.mubr.bf16.gmra.mxu0 %v8897
  %v10691 = vpop.f32.mrf.mxu0
  %v10692 = vadd.f32 0.0, %v10691
  %v10693 = vpop.f32.mrf.mxu0
  %v10694 = vpop.f32.mrf.mxu0
  %v10695 = vadd.f32 0.0, %v10694
  %v10696 = vpop.f32.mrf.mxu0
  %10697 = vmatprep.mubr.bf16.mxu0 %v10287
  %10698 = vmatmul.mubr.bf16.gmra.mxu0 %v8900
  %v10699 = vpop.f32.mrf.mxu0
  %v10700 = vadd.f32 0.0, %v10699
  %v10701 = vpop.f32.mrf.mxu0
  %v10702 = vpop.f32.mrf.mxu0
  %v10703 = vadd.f32 0.0, %v10702
  %v10704 = vpop.f32.mrf.mxu0
  %10705 = vmatprep.mubr.bf16.mxu0 %v10290
  %10706 = vmatmul.mubr.bf16.gmra.mxu0 %v8903
  %v10707 = vpop.f32.mrf.mxu0
  %v10708 = vadd.f32 0.0, %v10707
  %v10709 = vpop.f32.mrf.mxu0
  %v10710 = vpop.f32.mrf.mxu0
  %v10711 = vadd.f32 0.0, %v10710
  %v10712 = vpop.f32.mrf.mxu0
  %10713 = vmatprep.mubr.bf16.mxu0 %v10293
  %10714 = vmatmul.mubr.bf16.gmra.mxu0 %v8906
  %v10715 = vpop.f32.mrf.mxu0
  %v10716 = vadd.f32 0.0, %v10715
  %v10717 = vpop.f32.mrf.mxu0
  %v10718 = vpop.f32.mrf.mxu0
  %v10719 = vadd.f32 0.0, %v10718
  %v10720 = vpop.f32.mrf.mxu0
  %10721 = vdwg.mxu0
  %10722 = vmatprep.subr.bf16.mxu0 0
  %10723 = vmatpush1.bf16.msra.mxu0 0
  %10724 = vmatprep.subr.bf16.mxu0 0
  %10725 = vmatpush1.bf16.msra.mxu0 %v10559
  %10726 = vmatprep.subr.bf16.mxu0 0
  %10727 = vmatpush1.bf16.msra.mxu0 %v10500
  %10728 = vmatprep.subr.bf16.mxu0 0
  %10729 = vmatpush1.bf16.msra.mxu0 %v10499
  %10730 = vmatprep.subr.bf16.mxu0 0
  %10731 = vmatpush1.bf16.msra.mxu0 %v10498
  %10732 = vmatprep.subr.bf16.mxu0 0
  %10733 = vmatpush1.bf16.msra.mxu0 %v10497
  %10734 = vmatprep.subr.bf16.mxu0 0
  %10735 = vmatpush1.bf16.msra.mxu0 %v10496
  %10736 = vmatprep.subr.bf16.mxu0 0
  %10737 = vmatpush1.bf16.msra.mxu0 %v10495
  %10738 = vmatprep.subr.bf16.mxu0 0
  %10739 = vmatpush2.bf16.msra.mxu0 0
  %10740 = vmatprep.subr.bf16.mxu0 0
  %10741 = vmatpush2.bf16.msra.mxu0 0
  %10742 = vmatprep.subr.bf16.mxu0 0
  %10743 = vmatpush2.bf16.msra.mxu0 0
  %10744 = vmatprep.subr.bf16.mxu0 0
  %10745 = vmatpush2.bf16.msra.mxu0 0
  %10746 = vmatprep.subr.bf16.mxu0 0
  %10747 = vmatpush2.bf16.msra.mxu0 0
  %10748 = vmatprep.subr.bf16.mxu0 0
  %10749 = vmatpush2.bf16.msra.mxu0 0
  %10750 = vmatprep.subr.bf16.mxu0 0
  %10751 = vmatpush2.bf16.msra.mxu0 0
  %10752 = vmatprep.subr.bf16.mxu0 0
  %10753 = vmatpush2.bf16.msra.mxu0 0
  %10754 = vmatprep.mubr.bf16.mxu0 0
  %10755 = vmatmul.mubr.bf16.gmra.mxu0 %v10525
  %v10756 = vpop.f32.mrf.mxu0
  %v10757 = vadd.f32 %v10596, %v10756
  %v10758 = vpop.f32.mrf.mxu0
  %v10759 = vpop.f32.mrf.mxu0
  %v10760 = vadd.f32 %v10599, %v10759
  %v10761 = vpop.f32.mrf.mxu0
  %10762 = vmatprep.mubr.bf16.mxu0 0
  %10763 = vmatmul.mubr.bf16.gmra.mxu0 %v10527
  %v10764 = vpop.f32.mrf.mxu0
  %v10765 = vadd.f32 %v10604, %v10764
  %v10766 = vpop.f32.mrf.mxu0
  %v10767 = vpop.f32.mrf.mxu0
  %v10768 = vadd.f32 %v10607, %v10767
  %v10769 = vpop.f32.mrf.mxu0
  %10770 = vmatprep.mubr.bf16.mxu0 0
  %10771 = vmatmul.mubr.bf16.gmra.mxu0 %v10529
  %v10772 = vpop.f32.mrf.mxu0
  %v10773 = vadd.f32 %v10612, %v10772
  %v10774 = vpop.f32.mrf.mxu0
  %v10775 = vpop.f32.mrf.mxu0
  %v10776 = vadd.f32 %v10615, %v10775
  %v10777 = vpop.f32.mrf.mxu0
  %10778 = vmatprep.mubr.bf16.mxu0 0
  %10779 = vmatmul.mubr.bf16.gmra.mxu0 %v10531
  %v10780 = vpop.f32.mrf.mxu0
  %v10781 = vadd.f32 %v10620, %v10780
  %v10782 = vpop.f32.mrf.mxu0
  %v10783 = vpop.f32.mrf.mxu0
  %v10784 = vadd.f32 %v10623, %v10783
  %v10785 = vpop.f32.mrf.mxu0
  %10786 = vmatprep.mubr.bf16.mxu0 0
  %10787 = vmatmul.mubr.bf16.gmra.mxu0 %v10533
  %v10788 = vpop.f32.mrf.mxu0
  %v10789 = vadd.f32 %v10628, %v10788
  %v10790 = vpop.f32.mrf.mxu0
  %v10791 = vpop.f32.mrf.mxu0
  %v10792 = vadd.f32 %v10631, %v10791
  %v10793 = vpop.f32.mrf.mxu0
  %10794 = vmatprep.mubr.bf16.mxu0 0
  %10795 = vmatmul.mubr.bf16.gmra.mxu0 %v10535
  %v10796 = vpop.f32.mrf.mxu0
  %v10797 = vadd.f32 %v10636, %v10796
  %v10798 = vpop.f32.mrf.mxu0
  %v10799 = vpop.f32.mrf.mxu0
  %v10800 = vadd.f32 %v10639, %v10799
  %v10801 = vpop.f32.mrf.mxu0
  %10802 = vmatprep.mubr.bf16.mxu0 0
  %10803 = vmatmul.mubr.bf16.gmra.mxu0 %v10537
  %v10804 = vpop.f32.mrf.mxu0
  %v10805 = vadd.f32 %v10644, %v10804
  %v10806 = vpop.f32.mrf.mxu0
  %v10807 = vpop.f32.mrf.mxu0
  %v10808 = vadd.f32 %v10647, %v10807
  %v10809 = vpop.f32.mrf.mxu0
  %10810 = vmatprep.mubr.bf16.mxu0 0
  %10811 = vmatmul.mubr.bf16.gmra.mxu0 %v10539
  %v10812 = vpop.f32.mrf.mxu0
  %v10813 = vadd.f32 %v10652, %v10812
  %v10814 = vpop.f32.mrf.mxu0
  %v10815 = vpop.f32.mrf.mxu0
  %v10816 = vadd.f32 %v10655, %v10815
  %v10817 = vpop.f32.mrf.mxu0
  %10818 = vmatprep.mubr.bf16.mxu0 0
  %10819 = vmatmul.mubr.bf16.gmra.mxu0 %v10541
  %v10820 = vpop.f32.mrf.mxu0
  %v10821 = vadd.f32 %v10660, %v10820
  %v10822 = vpop.f32.mrf.mxu0
  %v10823 = vpop.f32.mrf.mxu0
  %v10824 = vadd.f32 %v10663, %v10823
  %v10825 = vpop.f32.mrf.mxu0
  %10826 = vmatprep.mubr.bf16.mxu0 0
  %10827 = vmatmul.mubr.bf16.gmra.mxu0 %v10543
  %v10828 = vpop.f32.mrf.mxu0
  %v10829 = vadd.f32 %v10668, %v10828
  %v10830 = vpop.f32.mrf.mxu0
  %v10831 = vpop.f32.mrf.mxu0
  %v10832 = vadd.f32 %v10671, %v10831
  %v10833 = vpop.f32.mrf.mxu0
  %10834 = vmatprep.mubr.bf16.mxu0 0
  %10835 = vmatmul.mubr.bf16.gmra.mxu0 %v10545
  %v10836 = vpop.f32.mrf.mxu0
  %v10837 = vadd.f32 %v10676, %v10836
  %v10838 = vpop.f32.mrf.mxu0
  %v10839 = vpop.f32.mrf.mxu0
  %v10840 = vadd.f32 %v10679, %v10839
  %v10841 = vpop.f32.mrf.mxu0
  %10842 = vmatprep.mubr.bf16.mxu0 0
  %10843 = vmatmul.mubr.bf16.gmra.mxu0 %v10547
  %v10844 = vpop.f32.mrf.mxu0
  %v10845 = vadd.f32 %v10684, %v10844
  %v10846 = vpop.f32.mrf.mxu0
  %v10847 = vpop.f32.mrf.mxu0
  %v10848 = vadd.f32 %v10687, %v10847
  %v10849 = vpop.f32.mrf.mxu0
  %10850 = vmatprep.mubr.bf16.mxu0 0
  %10851 = vmatmul.mubr.bf16.gmra.mxu0 %v10549
  %v10852 = vpop.f32.mrf.mxu0
  %v10853 = vadd.f32 %v10692, %v10852
  %v10854 = vpop.f32.mrf.mxu0
  %v10855 = vpop.f32.mrf.mxu0
  %v10856 = vadd.f32 %v10695, %v10855
  %v10857 = vpop.f32.mrf.mxu0
  %10858 = vmatprep.mubr.bf16.mxu0 0
  %10859 = vmatmul.mubr.bf16.gmra.mxu0 %v10551
  %v10860 = vpop.f32.mrf.mxu0
  %v10861 = vadd.f32 %v10700, %v10860
  %v10862 = vpop.f32.mrf.mxu0
  %v10863 = vpop.f32.mrf.mxu0
  %v10864 = vadd.f32 %v10703, %v10863
  %v10865 = vpop.f32.mrf.mxu0
  %10866 = vmatprep.mubr.bf16.mxu0 0
  %10867 = vmatmul.mubr.bf16.gmra.mxu0 %v10553
  %v10868 = vpop.f32.mrf.mxu0
  %v10869 = vadd.f32 %v10708, %v10868
  %v10870 = vpop.f32.mrf.mxu0
  %v10871 = vpop.f32.mrf.mxu0
  %v10872 = vadd.f32 %v10711, %v10871
  %v10873 = vpop.f32.mrf.mxu0
  %10874 = vmatprep.mubr.bf16.mxu0 0
  %10875 = vmatmul.mubr.bf16.gmra.mxu0 %v10555
  %v10876 = vpop.f32.mrf.mxu0
  %v10877 = vadd.f32 %v10716, %v10876
  %v10878 = vpop.f32.mrf.mxu0
  %v10879 = vpop.f32.mrf.mxu0
  %v10880 = vadd.f32 %v10719, %v10879
  %v10881 = vpop.f32.mrf.mxu0
  %10882 = vdwg.mxu0
  %s10883 = scalar_lea.vmem %s3, 180
  %v10884 = vld [vmem:[%s10883] sm:$0xf]
  %v10885 = vld [vmem:[%s10883 + $0x4] sm:$0xf]
  %v10886 = vld [vmem:[%s10883 + $0x8] sm:$0xf]
  %v10887 = vld [vmem:[%s10883 + $0xc] sm:$0xf]
  %v10888 = vld [vmem:[%s10883 + $0x10] sm:$0xf]
  %v10889 = vld [vmem:[%s10883 + $0x14] sm:$0xf]
  %v10890 = vld [vmem:[%s10883 + $0x18] sm:$0xf]
  %v10891 = vld [vmem:[%s10883 + $0x1c] sm:$0xf]
  %v10892 = vld [vmem:[%s10883 + $0x20] sm:$0xf]
  %v10893 = vld [vmem:[%s10883 + $0x24] sm:$0xf]
  %v10894 = vld [vmem:[%s10883 + $0x28] sm:$0xf]
  %v10895 = vld [vmem:[%s10883 + $0x2c] sm:$0xf]
  %v10896 = vld [vmem:[%s10883 + $0x30] sm:$0xf]
  %v10897 = vld [vmem:[%s10883 + $0x34] sm:$0xf]
  %v10898 = vld [vmem:[%s10883 + $0x38] sm:$0xf]
  %v10899 = vld [vmem:[%s10883 + $0x3c] sm:$0xf]
  %v10900 = vld [vmem:[%s10883 + $0x40] sm:$0xf]
  %v10901 = vld [vmem:[%s10883 + $0x44] sm:$0xf]
  %v10902 = vld [vmem:[%s10883 + $0x48] sm:$0xf]
  %v10903 = vld [vmem:[%s10883 + $0x4c] sm:$0xf]
  %v10904 = vld [vmem:[%s10883 + $0x50] sm:$0xf]
  %v10905 = vld [vmem:[%s10883 + $0x54] sm:$0xf]
  %v10906 = vld [vmem:[%s10883 + $0x58] sm:$0xf]
  %v10907 = vld [vmem:[%s10883 + $0x5c] sm:$0xf]
  %v10908 = vld [vmem:[%s10883 + $0x60] sm:$0xf]
  %v10909 = vld [vmem:[%s10883 + $0x64] sm:$0xf]
  %v10910 = vld [vmem:[%s10883 + $0x68] sm:$0xf]
  %v10911 = vld [vmem:[%s10883 + $0x6c] sm:$0xf]
  %v10912 = vld [vmem:[%s10883 + $0x70] sm:$0xf]
  %v10913 = vld [vmem:[%s10883 + $0x74] sm:$0xf]
  %v10914 = vld [vmem:[%s10883 + $0x78] sm:$0xf]
  %v10915 = vld [vmem:[%s10883 + $0x7c] sm:$0xf]
  %v10916 = vld [vmem:[%s10883 + $0x80] sm:$0xf]
  %v10917 = vld [vmem:[%s10883 + $0x84] sm:$0xf]
  %v10918 = vld [vmem:[%s10883 + $0x88] sm:$0xf]
  %v10919 = vld [vmem:[%s10883 + $0x8c] sm:$0xf]
  %v10920 = vld [vmem:[%s10883 + $0x90] sm:$0xf]
  %v10921 = vld [vmem:[%s10883 + $0x94] sm:$0xf]
  %v10922 = vld [vmem:[%s10883 + $0x98] sm:$0xf]
  %v10923 = vld [vmem:[%s10883 + $0x9c] sm:$0xf]
  %v10924 = vld [vmem:[%s10883 + $0xa0] sm:$0xf]
  %v10925 = vld [vmem:[%s10883 + $0xa4] sm:$0xf]
  %v10926 = vld [vmem:[%s10883 + $0xa8] sm:$0xf]
  %v10927 = vld [vmem:[%s10883 + $0xac] sm:$0xf]
  %v10928 = vld [vmem:[%s10883 + $0xb0] sm:$0xf]
  %v10974 = vunpack.c.l.b16 %v10884
  %v10975 = vunpack.c.l.b16 %v10885
  %v10976 = vunpack.c.l.b16 %v10886
  %v10977 = vunpack.c.l.b16 %v10887
  %v10978 = vunpack.c.l.b16 %v10888
  %v10979 = vunpack.c.l.b16 %v10889
  %v10980 = vunpack.c.l.b16 %v10890
  %v10981 = vunpack.c.l.b16 %v10891
  %v10982 = vunpack.c.l.b16 %v10892
  %v10983 = vunpack.c.l.b16 %v10893
  %v10984 = vunpack.c.l.b16 %v10894
  %v10985 = vunpack.c.l.b16 %v10895
  %v10986 = vunpack.c.l.b16 %v10896
  %v10987 = vunpack.c.l.b16 %v10897
  %v10988 = vunpack.c.l.b16 %v10898
  %v10989 = vunpack.c.l.b16 %v10899
  %v10990 = vunpack.c.l.b16 %v10900
  %v10991 = vunpack.c.l.b16 %v10901
  %v10992 = vunpack.c.l.b16 %v10902
  %v10993 = vunpack.c.l.b16 %v10903
  %v10994 = vunpack.c.l.b16 %v10904
  %v10995 = vunpack.c.l.b16 %v10905
  %v10996 = vunpack.c.l.b16 %v10906
  %v10997 = vunpack.c.l.b16 %v10907
  %v10998 = vunpack.c.l.b16 %v10908
  %v10999 = vunpack.c.l.b16 %v10909
  %v11000 = vunpack.c.l.b16 %v10910
  %v11001 = vunpack.c.l.b16 %v10911
  %v11002 = vunpack.c.l.b16 %v10912
  %v11003 = vunpack.c.l.b16 %v10913
  %v11004 = vunpack.c.l.b16 %v10914
  %v11005 = vunpack.c.l.b16 %v10915
  %v11006 = vunpack.c.l.b16 %v10916
  %v11007 = vunpack.c.l.b16 %v10917
  %v11008 = vunpack.c.l.b16 %v10918
  %v11009 = vunpack.c.l.b16 %v10919
  %v11010 = vunpack.c.l.b16 %v10920
  %v11011 = vunpack.c.l.b16 %v10921
  %v11012 = vunpack.c.l.b16 %v10922
  %v11013 = vunpack.c.l.b16 %v10923
  %v11014 = vunpack.c.l.b16 %v10924
  %v11015 = vunpack.c.l.b16 %v10925
  %v11016 = vunpack.c.l.b16 %v10926
  %v11017 = vunpack.c.l.b16 %v10927
  %v11018 = vunpack.c.l.b16 %v10928
  %v11019 = vpack.c.b16 %v10975, %v10974
  %v11020 = vpack.c.b16 %v10977, %v10976
  %v11021 = vpack.c.b16 %v10979, %v10978
  %v11022 = vpack.c.b16 %v10981, %v10980
  %v11023 = vpack.c.b16 %v10983, %v10982
  %v11024 = vpack.c.b16 %v10985, %v10984
  %v11025 = vpack.c.b16 %v10987, %v10986
  %v11026 = vpack.c.b16 %v10989, %v10988
  %v11027 = vpack.c.b16 %v10991, %v10990
  %v11028 = vpack.c.b16 %v10993, %v10992
  %v11029 = vpack.c.b16 %v10995, %v10994
  %v11030 = vpack.c.b16 %v10997, %v10996
  %v11031 = vpack.c.b16 %v10999, %v10998
  %v11032 = vpack.c.b16 %v11001, %v11000
  %v11033 = vpack.c.b16 %v11003, %v11002
  %v11034 = vpack.c.b16 %v11005, %v11004
  %v11035 = vpack.c.b16 %v11007, %v11006
  %v11036 = vpack.c.b16 %v11009, %v11008
  %v11037 = vpack.c.b16 %v11011, %v11010
  %v11038 = vpack.c.b16 %v11013, %v11012
  %v11039 = vpack.c.b16 %v11015, %v11014
  %v11040 = vpack.c.b16 %v11017, %v11016
  %v11041 = vpack.c.b16 %v11018, %v11018
  %v11065 = vsel %vm10557, %v11041, 0
  %11067 = vmatprep.subr.bf16.mxu0 0
  %11068 = vmatpush1.bf16.msra.mxu0 %v11026
  %11069 = vmatprep.subr.bf16.mxu0 0
  %11070 = vmatpush1.bf16.msra.mxu0 %v11025
  %11071 = vmatprep.subr.bf16.mxu0 0
  %11072 = vmatpush1.bf16.msra.mxu0 %v11024
  %11073 = vmatprep.subr.bf16.mxu0 0
  %11074 = vmatpush1.bf16.msra.mxu0 %v11023
  %11075 = vmatprep.subr.bf16.mxu0 0
  %11076 = vmatpush1.bf16.msra.mxu0 %v11022
  %11077 = vmatprep.subr.bf16.mxu0 0
  %11078 = vmatpush1.bf16.msra.mxu0 %v11021
  %11079 = vmatprep.subr.bf16.mxu0 0
  %11080 = vmatpush1.bf16.msra.mxu0 %v11020
  %11081 = vmatprep.subr.bf16.mxu0 0
  %11082 = vmatpush1.bf16.msra.mxu0 %v11019
  %11083 = vmatprep.subr.bf16.mxu0 0
  %11084 = vmatpush2.bf16.msra.mxu0 %v11034
  %11085 = vmatprep.subr.bf16.mxu0 0
  %11086 = vmatpush2.bf16.msra.mxu0 %v11033
  %11087 = vmatprep.subr.bf16.mxu0 0
  %11088 = vmatpush2.bf16.msra.mxu0 %v11032
  %11089 = vmatprep.subr.bf16.mxu0 0
  %11090 = vmatpush2.bf16.msra.mxu0 %v11031
  %11091 = vmatprep.subr.bf16.mxu0 0
  %11092 = vmatpush2.bf16.msra.mxu0 %v11030
  %11093 = vmatprep.subr.bf16.mxu0 0
  %11094 = vmatpush2.bf16.msra.mxu0 %v11029
  %11095 = vmatprep.subr.bf16.mxu0 0
  %11096 = vmatpush2.bf16.msra.mxu0 %v11028
  %11097 = vmatprep.subr.bf16.mxu0 0
  %11098 = vmatpush2.bf16.msra.mxu0 %v11027
  %11099 = vmatprep.mubr.bf16.mxu0 %v10248
  %11100 = vmatmul.mubr.bf16.gmra.mxu0 %v8861
  %v11101 = vpop.f32.mrf.mxu0
  %v11102 = vadd.f32 0.0, %v11101
  %v11103 = vpop.f32.mrf.mxu0
  %v11104 = vpop.f32.mrf.mxu0
  %v11105 = vadd.f32 0.0, %v11104
  %v11106 = vpop.f32.mrf.mxu0
  %11107 = vmatprep.mubr.bf16.mxu0 %v10251
  %11108 = vmatmul.mubr.bf16.gmra.mxu0 %v8864
  %v11109 = vpop.f32.mrf.mxu0
  %v11110 = vadd.f32 0.0, %v11109
  %v11111 = vpop.f32.mrf.mxu0
  %v11112 = vpop.f32.mrf.mxu0
  %v11113 = vadd.f32 0.0, %v11112
  %v11114 = vpop.f32.mrf.mxu0
  %11115 = vmatprep.mubr.bf16.mxu0 %v10254
  %11116 = vmatmul.mubr.bf16.gmra.mxu0 %v8867
  %v11117 = vpop.f32.mrf.mxu0
  %v11118 = vadd.f32 0.0, %v11117
  %v11119 = vpop.f32.mrf.mxu0
  %v11120 = vpop.f32.mrf.mxu0
  %v11121 = vadd.f32 0.0, %v11120
  %v11122 = vpop.f32.mrf.mxu0
  %11123 = vmatprep.mubr.bf16.mxu0 %v10257
  %11124 = vmatmul.mubr.bf16.gmra.mxu0 %v8870
  %v11125 = vpop.f32.mrf.mxu0
  %v11126 = vadd.f32 0.0, %v11125
  %v11127 = vpop.f32.mrf.mxu0
  %v11128 = vpop.f32.mrf.mxu0
  %v11129 = vadd.f32 0.0, %v11128
  %v11130 = vpop.f32.mrf.mxu0
  %11131 = vmatprep.mubr.bf16.mxu0 %v10260
  %11132 = vmatmul.mubr.bf16.gmra.mxu0 %v8873
  %v11133 = vpop.f32.mrf.mxu0
  %v11134 = vadd.f32 0.0, %v11133
  %v11135 = vpop.f32.mrf.mxu0
  %v11136 = vpop.f32.mrf.mxu0
  %v11137 = vadd.f32 0.0, %v11136
  %v11138 = vpop.f32.mrf.mxu0
  %11139 = vmatprep.mubr.bf16.mxu0 %v10263
  %11140 = vmatmul.mubr.bf16.gmra.mxu0 %v8876
  %v11141 = vpop.f32.mrf.mxu0
  %v11142 = vadd.f32 0.0, %v11141
  %v11143 = vpop.f32.mrf.mxu0
  %v11144 = vpop.f32.mrf.mxu0
  %v11145 = vadd.f32 0.0, %v11144
  %v11146 = vpop.f32.mrf.mxu0
  %11147 = vmatprep.mubr.bf16.mxu0 %v10266
  %11148 = vmatmul.mubr.bf16.gmra.mxu0 %v8879
  %v11149 = vpop.f32.mrf.mxu0
  %v11150 = vadd.f32 0.0, %v11149
  %v11151 = vpop.f32.mrf.mxu0
  %v11152 = vpop.f32.mrf.mxu0
  %v11153 = vadd.f32 0.0, %v11152
  %v11154 = vpop.f32.mrf.mxu0
  %11155 = vmatprep.mubr.bf16.mxu0 %v10269
  %11156 = vmatmul.mubr.bf16.gmra.mxu0 %v8882
  %v11157 = vpop.f32.mrf.mxu0
  %v11158 = vadd.f32 0.0, %v11157
  %v11159 = vpop.f32.mrf.mxu0
  %v11160 = vpop.f32.mrf.mxu0
  %v11161 = vadd.f32 0.0, %v11160
  %v11162 = vpop.f32.mrf.mxu0
  %11163 = vmatprep.mubr.bf16.mxu0 %v10272
  %11164 = vmatmul.mubr.bf16.gmra.mxu0 %v8885
  %v11165 = vpop.f32.mrf.mxu0
  %v11166 = vadd.f32 0.0, %v11165
  %v11167 = vpop.f32.mrf.mxu0
  %v11168 = vpop.f32.mrf.mxu0
  %v11169 = vadd.f32 0.0, %v11168
  %v11170 = vpop.f32.mrf.mxu0
  %11171 = vmatprep.mubr.bf16.mxu0 %v10275
  %11172 = vmatmul.mubr.bf16.gmra.mxu0 %v8888
  %v11173 = vpop.f32.mrf.mxu0
  %v11174 = vadd.f32 0.0, %v11173
  %v11175 = vpop.f32.mrf.mxu0
  %v11176 = vpop.f32.mrf.mxu0
  %v11177 = vadd.f32 0.0, %v11176
  %v11178 = vpop.f32.mrf.mxu0
  %11179 = vmatprep.mubr.bf16.mxu0 %v10278
  %11180 = vmatmul.mubr.bf16.gmra.mxu0 %v8891
  %v11181 = vpop.f32.mrf.mxu0
  %v11182 = vadd.f32 0.0, %v11181
  %v11183 = vpop.f32.mrf.mxu0
  %v11184 = vpop.f32.mrf.mxu0
  %v11185 = vadd.f32 0.0, %v11184
  %v11186 = vpop.f32.mrf.mxu0
  %11187 = vmatprep.mubr.bf16.mxu0 %v10281
  %11188 = vmatmul.mubr.bf16.gmra.mxu0 %v8894
  %v11189 = vpop.f32.mrf.mxu0
  %v11190 = vadd.f32 0.0, %v11189
  %v11191 = vpop.f32.mrf.mxu0
  %v11192 = vpop.f32.mrf.mxu0
  %v11193 = vadd.f32 0.0, %v11192
  %v11194 = vpop.f32.mrf.mxu0
  %11195 = vmatprep.mubr.bf16.mxu0 %v10284
  %11196 = vmatmul.mubr.bf16.gmra.mxu0 %v8897
  %v11197 = vpop.f32.mrf.mxu0
  %v11198 = vadd.f32 0.0, %v11197
  %v11199 = vpop.f32.mrf.mxu0
  %v11200 = vpop.f32.mrf.mxu0
  %v11201 = vadd.f32 0.0, %v11200
  %v11202 = vpop.f32.mrf.mxu0
  %11203 = vmatprep.mubr.bf16.mxu0 %v10287
  %11204 = vmatmul.mubr.bf16.gmra.mxu0 %v8900
  %v11205 = vpop.f32.mrf.mxu0
  %v11206 = vadd.f32 0.0, %v11205
  %v11207 = vpop.f32.mrf.mxu0
  %v11208 = vpop.f32.mrf.mxu0
  %v11209 = vadd.f32 0.0, %v11208
  %v11210 = vpop.f32.mrf.mxu0
  %11211 = vmatprep.mubr.bf16.mxu0 %v10290
  %11212 = vmatmul.mubr.bf16.gmra.mxu0 %v8903
  %v11213 = vpop.f32.mrf.mxu0
  %v11214 = vadd.f32 0.0, %v11213
  %v11215 = vpop.f32.mrf.mxu0
  %v11216 = vpop.f32.mrf.mxu0
  %v11217 = vadd.f32 0.0, %v11216
  %v11218 = vpop.f32.mrf.mxu0
  %11219 = vmatprep.mubr.bf16.mxu0 %v10293
  %11220 = vmatmul.mubr.bf16.gmra.mxu0 %v8906
  %v11221 = vpop.f32.mrf.mxu0
  %v11222 = vadd.f32 0.0, %v11221
  %v11223 = vpop.f32.mrf.mxu0
  %v11224 = vpop.f32.mrf.mxu0
  %v11225 = vadd.f32 0.0, %v11224
  %v11226 = vpop.f32.mrf.mxu0
  %11227 = vdwg.mxu0
  %11228 = vmatprep.subr.bf16.mxu0 0
  %11229 = vmatpush1.bf16.msra.mxu0 0
  %11230 = vmatprep.subr.bf16.mxu0 0
  %11231 = vmatpush1.bf16.msra.mxu0 %v11065
  %11232 = vmatprep.subr.bf16.mxu0 0
  %11233 = vmatpush1.bf16.msra.mxu0 %v11040
  %11234 = vmatprep.subr.bf16.mxu0 0
  %11235 = vmatpush1.bf16.msra.mxu0 %v11039
  %11236 = vmatprep.subr.bf16.mxu0 0
  %11237 = vmatpush1.bf16.msra.mxu0 %v11038
  %11238 = vmatprep.subr.bf16.mxu0 0
  %11239 = vmatpush1.bf16.msra.mxu0 %v11037
  %11240 = vmatprep.subr.bf16.mxu0 0
  %11241 = vmatpush1.bf16.msra.mxu0 %v11036
  %11242 = vmatprep.subr.bf16.mxu0 0
  %11243 = vmatpush1.bf16.msra.mxu0 %v11035
  %11244 = vmatprep.subr.bf16.mxu0 0
  %11245 = vmatpush2.bf16.msra.mxu0 0
  %11246 = vmatprep.subr.bf16.mxu0 0
  %11247 = vmatpush2.bf16.msra.mxu0 0
  %11248 = vmatprep.subr.bf16.mxu0 0
  %11249 = vmatpush2.bf16.msra.mxu0 0
  %11250 = vmatprep.subr.bf16.mxu0 0
  %11251 = vmatpush2.bf16.msra.mxu0 0
  %11252 = vmatprep.subr.bf16.mxu0 0
  %11253 = vmatpush2.bf16.msra.mxu0 0
  %11254 = vmatprep.subr.bf16.mxu0 0
  %11255 = vmatpush2.bf16.msra.mxu0 0
  %11256 = vmatprep.subr.bf16.mxu0 0
  %11257 = vmatpush2.bf16.msra.mxu0 0
  %11258 = vmatprep.subr.bf16.mxu0 0
  %11259 = vmatpush2.bf16.msra.mxu0 0
  %11260 = vmatprep.mubr.bf16.mxu0 0
  %11261 = vmatmul.mubr.bf16.gmra.mxu0 %v10525
  %v11262 = vpop.f32.mrf.mxu0
  %v11263 = vadd.f32 %v11102, %v11262
  %v11264 = vpop.f32.mrf.mxu0
  %v11265 = vpop.f32.mrf.mxu0
  %v11266 = vadd.f32 %v11105, %v11265
  %v11267 = vpop.f32.mrf.mxu0
  %11268 = vmatprep.mubr.bf16.mxu0 0
  %11269 = vmatmul.mubr.bf16.gmra.mxu0 %v10527
  %v11270 = vpop.f32.mrf.mxu0
  %v11271 = vadd.f32 %v11110, %v11270
  %v11272 = vpop.f32.mrf.mxu0
  %v11273 = vpop.f32.mrf.mxu0
  %v11274 = vadd.f32 %v11113, %v11273
  %v11275 = vpop.f32.mrf.mxu0
  %11276 = vmatprep.mubr.bf16.mxu0 0
  %11277 = vmatmul.mubr.bf16.gmra.mxu0 %v10529
  %v11278 = vpop.f32.mrf.mxu0
  %v11279 = vadd.f32 %v11118, %v11278
  %v11280 = vpop.f32.mrf.mxu0
  %v11281 = vpop.f32.mrf.mxu0
  %v11282 = vadd.f32 %v11121, %v11281
  %v11283 = vpop.f32.mrf.mxu0
  %11284 = vmatprep.mubr.bf16.mxu0 0
  %11285 = vmatmul.mubr.bf16.gmra.mxu0 %v10531
  %v11286 = vpop.f32.mrf.mxu0
  %v11287 = vadd.f32 %v11126, %v11286
  %v11288 = vpop.f32.mrf.mxu0
  %v11289 = vpop.f32.mrf.mxu0
  %v11290 = vadd.f32 %v11129, %v11289
  %v11291 = vpop.f32.mrf.mxu0
  %11292 = vmatprep.mubr.bf16.mxu0 0
  %11293 = vmatmul.mubr.bf16.gmra.mxu0 %v10533
  %v11294 = vpop.f32.mrf.mxu0
  %v11295 = vadd.f32 %v11134, %v11294
  %v11296 = vpop.f32.mrf.mxu0
  %v11297 = vpop.f32.mrf.mxu0
  %v11298 = vadd.f32 %v11137, %v11297
  %v11299 = vpop.f32.mrf.mxu0
  %11300 = vmatprep.mubr.bf16.mxu0 0
  %11301 = vmatmul.mubr.bf16.gmra.mxu0 %v10535
  %v11302 = vpop.f32.mrf.mxu0
  %v11303 = vadd.f32 %v11142, %v11302
  %v11304 = vpop.f32.mrf.mxu0
  %v11305 = vpop.f32.mrf.mxu0
  %v11306 = vadd.f32 %v11145, %v11305
  %v11307 = vpop.f32.mrf.mxu0
  %11308 = vmatprep.mubr.bf16.mxu0 0
  %11309 = vmatmul.mubr.bf16.gmra.mxu0 %v10537
  %v11310 = vpop.f32.mrf.mxu0
  %v11311 = vadd.f32 %v11150, %v11310
  %v11312 = vpop.f32.mrf.mxu0
  %v11313 = vpop.f32.mrf.mxu0
  %v11314 = vadd.f32 %v11153, %v11313
  %v11315 = vpop.f32.mrf.mxu0
  %11316 = vmatprep.mubr.bf16.mxu0 0
  %11317 = vmatmul.mubr.bf16.gmra.mxu0 %v10539
  %v11318 = vpop.f32.mrf.mxu0
  %v11319 = vadd.f32 %v11158, %v11318
  %v11320 = vpop.f32.mrf.mxu0
  %v11321 = vpop.f32.mrf.mxu0
  %v11322 = vadd.f32 %v11161, %v11321
  %v11323 = vpop.f32.mrf.mxu0
  %11324 = vmatprep.mubr.bf16.mxu0 0
  %11325 = vmatmul.mubr.bf16.gmra.mxu0 %v10541
  %v11326 = vpop.f32.mrf.mxu0
  %v11327 = vadd.f32 %v11166, %v11326
  %v11328 = vpop.f32.mrf.mxu0
  %v11329 = vpop.f32.mrf.mxu0
  %v11330 = vadd.f32 %v11169, %v11329
  %v11331 = vpop.f32.mrf.mxu0
  %11332 = vmatprep.mubr.bf16.mxu0 0
  %11333 = vmatmul.mubr.bf16.gmra.mxu0 %v10543
  %v11334 = vpop.f32.mrf.mxu0
  %v11335 = vadd.f32 %v11174, %v11334
  %v11336 = vpop.f32.mrf.mxu0
  %v11337 = vpop.f32.mrf.mxu0
  %v11338 = vadd.f32 %v11177, %v11337
  %v11339 = vpop.f32.mrf.mxu0
  %11340 = vmatprep.mubr.bf16.mxu0 0
  %11341 = vmatmul.mubr.bf16.gmra.mxu0 %v10545
  %v11342 = vpop.f32.mrf.mxu0
  %v11343 = vadd.f32 %v11182, %v11342
  %v11344 = vpop.f32.mrf.mxu0
  %v11345 = vpop.f32.mrf.mxu0
  %v11346 = vadd.f32 %v11185, %v11345
  %v11347 = vpop.f32.mrf.mxu0
  %11348 = vmatprep.mubr.bf16.mxu0 0
  %11349 = vmatmul.mubr.bf16.gmra.mxu0 %v10547
  %v11350 = vpop.f32.mrf.mxu0
  %v11351 = vadd.f32 %v11190, %v11350
  %v11352 = vpop.f32.mrf.mxu0
  %v11353 = vpop.f32.mrf.mxu0
  %v11354 = vadd.f32 %v11193, %v11353
  %v11355 = vpop.f32.mrf.mxu0
  %11356 = vmatprep.mubr.bf16.mxu0 0
  %11357 = vmatmul.mubr.bf16.gmra.mxu0 %v10549
  %v11358 = vpop.f32.mrf.mxu0
  %v11359 = vadd.f32 %v11198, %v11358
  %v11360 = vpop.f32.mrf.mxu0
  %v11361 = vpop.f32.mrf.mxu0
  %v11362 = vadd.f32 %v11201, %v11361
  %v11363 = vpop.f32.mrf.mxu0
  %11364 = vmatprep.mubr.bf16.mxu0 0
  %11365 = vmatmul.mubr.bf16.gmra.mxu0 %v10551
  %v11366 = vpop.f32.mrf.mxu0
  %v11367 = vadd.f32 %v11206, %v11366
  %v11368 = vpop.f32.mrf.mxu0
  %v11369 = vpop.f32.mrf.mxu0
  %v11370 = vadd.f32 %v11209, %v11369
  %v11371 = vpop.f32.mrf.mxu0
  %11372 = vmatprep.mubr.bf16.mxu0 0
  %11373 = vmatmul.mubr.bf16.gmra.mxu0 %v10553
  %v11374 = vpop.f32.mrf.mxu0
  %v11375 = vadd.f32 %v11214, %v11374
  %v11376 = vpop.f32.mrf.mxu0
  %v11377 = vpop.f32.mrf.mxu0
  %v11378 = vadd.f32 %v11217, %v11377
  %v11379 = vpop.f32.mrf.mxu0
  %11380 = vmatprep.mubr.bf16.mxu0 0
  %11381 = vmatmul.mubr.bf16.gmra.mxu0 %v10555
  %v11382 = vpop.f32.mrf.mxu0
  %v11383 = vadd.f32 %v11222, %v11382
  %v11384 = vpop.f32.mrf.mxu0
  %v11385 = vpop.f32.mrf.mxu0
  %v11386 = vadd.f32 %v11225, %v11385
  %v11387 = vpop.f32.mrf.mxu0
  %11388 = vdwg.mxu0
  %v11389 = vmax.f32 %v10757, %v11263
  %v11390 = vmax.f32 %v10760, %v11266
  %v11391 = vmax.f32 %v10765, %v11271
  %v11392 = vmax.f32 %v10768, %v11274
  %v11393 = vmax.f32 %v10773, %v11279
  %v11394 = vmax.f32 %v10776, %v11282
  %v11395 = vmax.f32 %v10781, %v11287
  %v11396 = vmax.f32 %v10784, %v11290
  %v11397 = vmax.f32 %v10789, %v11295
  %v11398 = vmax.f32 %v10792, %v11298
  %v11399 = vmax.f32 %v10797, %v11303
  %v11400 = vmax.f32 %v10800, %v11306
  %v11401 = vmax.f32 %v10805, %v11311
  %v11402 = vmax.f32 %v10808, %v11314
  %v11403 = vmax.f32 %v10813, %v11319
  %v11404 = vmax.f32 %v10816, %v11322
  %v11405 = vmax.f32 %v10821, %v11327
  %v11406 = vmax.f32 %v10824, %v11330
  %v11407 = vmax.f32 %v10829, %v11335
  %v11408 = vmax.f32 %v10832, %v11338
  %v11409 = vmax.f32 %v10837, %v11343
  %v11410 = vmax.f32 %v10840, %v11346
  %v11411 = vmax.f32 %v10845, %v11351
  %v11412 = vmax.f32 %v10848, %v11354
  %v11413 = vmax.f32 %v10853, %v11359
  %v11414 = vmax.f32 %v10856, %v11362
  %v11415 = vmax.f32 %v10861, %v11367
  %v11416 = vmax.f32 %v10864, %v11370
  %v11417 = vmax.f32 %v10869, %v11375
  %v11418 = vmax.f32 %v10872, %v11378
  %v11419 = vmax.f32 %v10877, %v11383
  %v11420 = vmax.f32 %v10880, %v11386
  %s11421 = scalar_lea.vmem %s3, 360
  %v11422 = vld [vmem:[%s11421] sm:$0xf]
  %v11423 = vld [vmem:[%s11421 + $0x4] sm:$0xf]
  %v11424 = vld [vmem:[%s11421 + $0x8] sm:$0xf]
  %v11425 = vld [vmem:[%s11421 + $0xc] sm:$0xf]
  %v11426 = vld [vmem:[%s11421 + $0x10] sm:$0xf]
  %v11427 = vld [vmem:[%s11421 + $0x14] sm:$0xf]
  %v11428 = vld [vmem:[%s11421 + $0x18] sm:$0xf]
  %v11429 = vld [vmem:[%s11421 + $0x1c] sm:$0xf]
  %v11430 = vld [vmem:[%s11421 + $0x20] sm:$0xf]
  %v11431 = vld [vmem:[%s11421 + $0x24] sm:$0xf]
  %v11432 = vld [vmem:[%s11421 + $0x28] sm:$0xf]
  %v11433 = vld [vmem:[%s11421 + $0x2c] sm:$0xf]
  %v11434 = vld [vmem:[%s11421 + $0x30] sm:$0xf]
  %v11435 = vld [vmem:[%s11421 + $0x34] sm:$0xf]
  %v11436 = vld [vmem:[%s11421 + $0x38] sm:$0xf]
  %v11437 = vld [vmem:[%s11421 + $0x3c] sm:$0xf]
  %v11438 = vld [vmem:[%s11421 + $0x40] sm:$0xf]
  %v11439 = vld [vmem:[%s11421 + $0x44] sm:$0xf]
  %v11440 = vld [vmem:[%s11421 + $0x48] sm:$0xf]
  %v11441 = vld [vmem:[%s11421 + $0x4c] sm:$0xf]
  %v11442 = vld [vmem:[%s11421 + $0x50] sm:$0xf]
  %v11443 = vld [vmem:[%s11421 + $0x54] sm:$0xf]
  %v11444 = vld [vmem:[%s11421 + $0x58] sm:$0xf]
  %v11445 = vld [vmem:[%s11421 + $0x5c] sm:$0xf]
  %v11446 = vld [vmem:[%s11421 + $0x60] sm:$0xf]
  %v11447 = vld [vmem:[%s11421 + $0x64] sm:$0xf]
  %v11448 = vld [vmem:[%s11421 + $0x68] sm:$0xf]
  %v11449 = vld [vmem:[%s11421 + $0x6c] sm:$0xf]
  %v11450 = vld [vmem:[%s11421 + $0x70] sm:$0xf]
  %v11451 = vld [vmem:[%s11421 + $0x74] sm:$0xf]
  %v11452 = vld [vmem:[%s11421 + $0x78] sm:$0xf]
  %v11453 = vld [vmem:[%s11421 + $0x7c] sm:$0xf]
  %v11454 = vld [vmem:[%s11421 + $0x80] sm:$0xf]
  %v11455 = vld [vmem:[%s11421 + $0x84] sm:$0xf]
  %v11456 = vld [vmem:[%s11421 + $0x88] sm:$0xf]
  %v11457 = vld [vmem:[%s11421 + $0x8c] sm:$0xf]
  %v11458 = vld [vmem:[%s11421 + $0x90] sm:$0xf]
  %v11459 = vld [vmem:[%s11421 + $0x94] sm:$0xf]
  %v11460 = vld [vmem:[%s11421 + $0x98] sm:$0xf]
  %v11461 = vld [vmem:[%s11421 + $0x9c] sm:$0xf]
  %v11462 = vld [vmem:[%s11421 + $0xa0] sm:$0xf]
  %v11463 = vld [vmem:[%s11421 + $0xa4] sm:$0xf]
  %v11464 = vld [vmem:[%s11421 + $0xa8] sm:$0xf]
  %v11465 = vld [vmem:[%s11421 + $0xac] sm:$0xf]
  %v11466 = vld [vmem:[%s11421 + $0xb0] sm:$0xf]
  %v11512 = vunpack.c.l.b16 %v11422
  %v11513 = vunpack.c.l.b16 %v11423
  %v11514 = vunpack.c.l.b16 %v11424
  %v11515 = vunpack.c.l.b16 %v11425
  %v11516 = vunpack.c.l.b16 %v11426
  %v11517 = vunpack.c.l.b16 %v11427
  %v11518 = vunpack.c.l.b16 %v11428
  %v11519 = vunpack.c.l.b16 %v11429
  %v11520 = vunpack.c.l.b16 %v11430
  %v11521 = vunpack.c.l.b16 %v11431
  %v11522 = vunpack.c.l.b16 %v11432
  %v11523 = vunpack.c.l.b16 %v11433
  %v11524 = vunpack.c.l.b16 %v11434
  %v11525 = vunpack.c.l.b16 %v11435
  %v11526 = vunpack.c.l.b16 %v11436
  %v11527 = vunpack.c.l.b16 %v11437
  %v11528 = vunpack.c.l.b16 %v11438
  %v11529 = vunpack.c.l.b16 %v11439
  %v11530 = vunpack.c.l.b16 %v11440
  %v11531 = vunpack.c.l.b16 %v11441
  %v11532 = vunpack.c.l.b16 %v11442
  %v11533 = vunpack.c.l.b16 %v11443
  %v11534 = vunpack.c.l.b16 %v11444
  %v11535 = vunpack.c.l.b16 %v11445
  %v11536 = vunpack.c.l.b16 %v11446
  %v11537 = vunpack.c.l.b16 %v11447
  %v11538 = vunpack.c.l.b16 %v11448
  %v11539 = vunpack.c.l.b16 %v11449
  %v11540 = vunpack.c.l.b16 %v11450
  %v11541 = vunpack.c.l.b16 %v11451
  %v11542 = vunpack.c.l.b16 %v11452
  %v11543 = vunpack.c.l.b16 %v11453
  %v11544 = vunpack.c.l.b16 %v11454
  %v11545 = vunpack.c.l.b16 %v11455
  %v11546 = vunpack.c.l.b16 %v11456
  %v11547 = vunpack.c.l.b16 %v11457
  %v11548 = vunpack.c.l.b16 %v11458
  %v11549 = vunpack.c.l.b16 %v11459
  %v11550 = vunpack.c.l.b16 %v11460
  %v11551 = vunpack.c.l.b16 %v11461
  %v11552 = vunpack.c.l.b16 %v11462
  %v11553 = vunpack.c.l.b16 %v11463
  %v11554 = vunpack.c.l.b16 %v11464
  %v11555 = vunpack.c.l.b16 %v11465
  %v11556 = vunpack.c.l.b16 %v11466
  %v11557 = vpack.c.b16 %v11513, %v11512
  %v11558 = vpack.c.b16 %v11515, %v11514
  %v11559 = vpack.c.b16 %v11517, %v11516
  %v11560 = vpack.c.b16 %v11519, %v11518
  %v11561 = vpack.c.b16 %v11521, %v11520
  %v11562 = vpack.c.b16 %v11523, %v11522
  %v11563 = vpack.c.b16 %v11525, %v11524
  %v11564 = vpack.c.b16 %v11527, %v11526
  %v11565 = vpack.c.b16 %v11529, %v11528
  %v11566 = vpack.c.b16 %v11531, %v11530
  %v11567 = vpack.c.b16 %v11533, %v11532
  %v11568 = vpack.c.b16 %v11535, %v11534
  %v11569 = vpack.c.b16 %v11537, %v11536
  %v11570 = vpack.c.b16 %v11539, %v11538
  %v11571 = vpack.c.b16 %v11541, %v11540
  %v11572 = vpack.c.b16 %v11543, %v11542
  %v11573 = vpack.c.b16 %v11545, %v11544
  %v11574 = vpack.c.b16 %v11547, %v11546
  %v11575 = vpack.c.b16 %v11549, %v11548
  %v11576 = vpack.c.b16 %v11551, %v11550
  %v11577 = vpack.c.b16 %v11553, %v11552
  %v11578 = vpack.c.b16 %v11555, %v11554
  %v11579 = vpack.c.b16 %v11556, %v11556
  %v11603 = vsel %vm10557, %v11579, 0
  %11605 = vmatprep.subr.bf16.mxu0 0
  %11606 = vmatpush1.bf16.msra.mxu0 %v11564
  %11607 = vmatprep.subr.bf16.mxu0 0
  %11608 = vmatpush1.bf16.msra.mxu0 %v11563
  %11609 = vmatprep.subr.bf16.mxu0 0
  %11610 = vmatpush1.bf16.msra.mxu0 %v11562
  %11611 = vmatprep.subr.bf16.mxu0 0
  %11612 = vmatpush1.bf16.msra.mxu0 %v11561
  %11613 = vmatprep.subr.bf16.mxu0 0
  %11614 = vmatpush1.bf16.msra.mxu0 %v11560
  %11615 = vmatprep.subr.bf16.mxu0 0
  %11616 = vmatpush1.bf16.msra.mxu0 %v11559
  %11617 = vmatprep.subr.bf16.mxu0 0
  %11618 = vmatpush1.bf16.msra.mxu0 %v11558
  %11619 = vmatprep.subr.bf16.mxu0 0
  %11620 = vmatpush1.bf16.msra.mxu0 %v11557
  %11621 = vmatprep.subr.bf16.mxu0 0
  %11622 = vmatpush2.bf16.msra.mxu0 %v11572
  %11623 = vmatprep.subr.bf16.mxu0 0
  %11624 = vmatpush2.bf16.msra.mxu0 %v11571
  %11625 = vmatprep.subr.bf16.mxu0 0
  %11626 = vmatpush2.bf16.msra.mxu0 %v11570
  %11627 = vmatprep.subr.bf16.mxu0 0
  %11628 = vmatpush2.bf16.msra.mxu0 %v11569
  %11629 = vmatprep.subr.bf16.mxu0 0
  %11630 = vmatpush2.bf16.msra.mxu0 %v11568
  %11631 = vmatprep.subr.bf16.mxu0 0
  %11632 = vmatpush2.bf16.msra.mxu0 %v11567
  %11633 = vmatprep.subr.bf16.mxu0 0
  %11634 = vmatpush2.bf16.msra.mxu0 %v11566
  %11635 = vmatprep.subr.bf16.mxu0 0
  %11636 = vmatpush2.bf16.msra.mxu0 %v11565
  %11637 = vmatprep.mubr.bf16.mxu0 %v10248
  %11638 = vmatmul.mubr.bf16.gmra.mxu0 %v8861
  %v11639 = vpop.f32.mrf.mxu0
  %v11640 = vadd.f32 0.0, %v11639
  %v11641 = vpop.f32.mrf.mxu0
  %v11642 = vpop.f32.mrf.mxu0
  %v11643 = vadd.f32 0.0, %v11642
  %v11644 = vpop.f32.mrf.mxu0
  %11645 = vmatprep.mubr.bf16.mxu0 %v10251
  %11646 = vmatmul.mubr.bf16.gmra.mxu0 %v8864
  %v11647 = vpop.f32.mrf.mxu0
  %v11648 = vadd.f32 0.0, %v11647
  %v11649 = vpop.f32.mrf.mxu0
  %v11650 = vpop.f32.mrf.mxu0
  %v11651 = vadd.f32 0.0, %v11650
  %v11652 = vpop.f32.mrf.mxu0
  %11653 = vmatprep.mubr.bf16.mxu0 %v10254
  %11654 = vmatmul.mubr.bf16.gmra.mxu0 %v8867
  %v11655 = vpop.f32.mrf.mxu0
  %v11656 = vadd.f32 0.0, %v11655
  %v11657 = vpop.f32.mrf.mxu0
  %v11658 = vpop.f32.mrf.mxu0
  %v11659 = vadd.f32 0.0, %v11658
  %v11660 = vpop.f32.mrf.mxu0
  %11661 = vmatprep.mubr.bf16.mxu0 %v10257
  %11662 = vmatmul.mubr.bf16.gmra.mxu0 %v8870
  %v11663 = vpop.f32.mrf.mxu0
  %v11664 = vadd.f32 0.0, %v11663
  %v11665 = vpop.f32.mrf.mxu0
  %v11666 = vpop.f32.mrf.mxu0
  %v11667 = vadd.f32 0.0, %v11666
  %v11668 = vpop.f32.mrf.mxu0
  %11669 = vmatprep.mubr.bf16.mxu0 %v10260
  %11670 = vmatmul.mubr.bf16.gmra.mxu0 %v8873
  %v11671 = vpop.f32.mrf.mxu0
  %v11672 = vadd.f32 0.0, %v11671
  %v11673 = vpop.f32.mrf.mxu0
  %v11674 = vpop.f32.mrf.mxu0
  %v11675 = vadd.f32 0.0, %v11674
  %v11676 = vpop.f32.mrf.mxu0
  %11677 = vmatprep.mubr.bf16.mxu0 %v10263
  %11678 = vmatmul.mubr.bf16.gmra.mxu0 %v8876
  %v11679 = vpop.f32.mrf.mxu0
  %v11680 = vadd.f32 0.0, %v11679
  %v11681 = vpop.f32.mrf.mxu0
  %v11682 = vpop.f32.mrf.mxu0
  %v11683 = vadd.f32 0.0, %v11682
  %v11684 = vpop.f32.mrf.mxu0
  %11685 = vmatprep.mubr.bf16.mxu0 %v10266
  %11686 = vmatmul.mubr.bf16.gmra.mxu0 %v8879
  %v11687 = vpop.f32.mrf.mxu0
  %v11688 = vadd.f32 0.0, %v11687
  %v11689 = vpop.f32.mrf.mxu0
  %v11690 = vpop.f32.mrf.mxu0
  %v11691 = vadd.f32 0.0, %v11690
  %v11692 = vpop.f32.mrf.mxu0
  %11693 = vmatprep.mubr.bf16.mxu0 %v10269
  %11694 = vmatmul.mubr.bf16.gmra.mxu0 %v8882
  %v11695 = vpop.f32.mrf.mxu0
  %v11696 = vadd.f32 0.0, %v11695
  %v11697 = vpop.f32.mrf.mxu0
  %v11698 = vpop.f32.mrf.mxu0
  %v11699 = vadd.f32 0.0, %v11698
  %v11700 = vpop.f32.mrf.mxu0
  %11701 = vmatprep.mubr.bf16.mxu0 %v10272
  %11702 = vmatmul.mubr.bf16.gmra.mxu0 %v8885
  %v11703 = vpop.f32.mrf.mxu0
  %v11704 = vadd.f32 0.0, %v11703
  %v11705 = vpop.f32.mrf.mxu0
  %v11706 = vpop.f32.mrf.mxu0
  %v11707 = vadd.f32 0.0, %v11706
  %v11708 = vpop.f32.mrf.mxu0
  %11709 = vmatprep.mubr.bf16.mxu0 %v10275
  %11710 = vmatmul.mubr.bf16.gmra.mxu0 %v8888
  %v11711 = vpop.f32.mrf.mxu0
  %v11712 = vadd.f32 0.0, %v11711
  %v11713 = vpop.f32.mrf.mxu0
  %v11714 = vpop.f32.mrf.mxu0
  %v11715 = vadd.f32 0.0, %v11714
  %v11716 = vpop.f32.mrf.mxu0
  %11717 = vmatprep.mubr.bf16.mxu0 %v10278
  %11718 = vmatmul.mubr.bf16.gmra.mxu0 %v8891
  %v11719 = vpop.f32.mrf.mxu0
  %v11720 = vadd.f32 0.0, %v11719
  %v11721 = vpop.f32.mrf.mxu0
  %v11722 = vpop.f32.mrf.mxu0
  %v11723 = vadd.f32 0.0, %v11722
  %v11724 = vpop.f32.mrf.mxu0
  %11725 = vmatprep.mubr.bf16.mxu0 %v10281
  %11726 = vmatmul.mubr.bf16.gmra.mxu0 %v8894
  %v11727 = vpop.f32.mrf.mxu0
  %v11728 = vadd.f32 0.0, %v11727
  %v11729 = vpop.f32.mrf.mxu0
  %v11730 = vpop.f32.mrf.mxu0
  %v11731 = vadd.f32 0.0, %v11730
  %v11732 = vpop.f32.mrf.mxu0
  %11733 = vmatprep.mubr.bf16.mxu0 %v10284
  %11734 = vmatmul.mubr.bf16.gmra.mxu0 %v8897
  %v11735 = vpop.f32.mrf.mxu0
  %v11736 = vadd.f32 0.0, %v11735
  %v11737 = vpop.f32.mrf.mxu0
  %v11738 = vpop.f32.mrf.mxu0
  %v11739 = vadd.f32 0.0, %v11738
  %v11740 = vpop.f32.mrf.mxu0
  %11741 = vmatprep.mubr.bf16.mxu0 %v10287
  %11742 = vmatmul.mubr.bf16.gmra.mxu0 %v8900
  %v11743 = vpop.f32.mrf.mxu0
  %v11744 = vadd.f32 0.0, %v11743
  %v11745 = vpop.f32.mrf.mxu0
  %v11746 = vpop.f32.mrf.mxu0
  %v11747 = vadd.f32 0.0, %v11746
  %v11748 = vpop.f32.mrf.mxu0
  %11749 = vmatprep.mubr.bf16.mxu0 %v10290
  %11750 = vmatmul.mubr.bf16.gmra.mxu0 %v8903
  %v11751 = vpop.f32.mrf.mxu0
  %v11752 = vadd.f32 0.0, %v11751
  %v11753 = vpop.f32.mrf.mxu0
  %v11754 = vpop.f32.mrf.mxu0
  %v11755 = vadd.f32 0.0, %v11754
  %v11756 = vpop.f32.mrf.mxu0
  %11757 = vmatprep.mubr.bf16.mxu0 %v10293
  %11758 = vmatmul.mubr.bf16.gmra.mxu0 %v8906
  %v11759 = vpop.f32.mrf.mxu0
  %v11760 = vadd.f32 0.0, %v11759
  %v11761 = vpop.f32.mrf.mxu0
  %v11762 = vpop.f32.mrf.mxu0
  %v11763 = vadd.f32 0.0, %v11762
  %v11764 = vpop.f32.mrf.mxu0
  %11765 = vdwg.mxu0
  %11766 = vmatprep.subr.bf16.mxu0 0
  %11767 = vmatpush1.bf16.msra.mxu0 0
  %11768 = vmatprep.subr.bf16.mxu0 0
  %11769 = vmatpush1.bf16.msra.mxu0 %v11603
  %11770 = vmatprep.subr.bf16.mxu0 0
  %11771 = vmatpush1.bf16.msra.mxu0 %v11578
  %11772 = vmatprep.subr.bf16.mxu0 0
  %11773 = vmatpush1.bf16.msra.mxu0 %v11577
  %11774 = vmatprep.subr.bf16.mxu0 0
  %11775 = vmatpush1.bf16.msra.mxu0 %v11576
  %11776 = vmatprep.subr.bf16.mxu0 0
  %11777 = vmatpush1.bf16.msra.mxu0 %v11575
  %11778 = vmatprep.subr.bf16.mxu0 0
  %11779 = vmatpush1.bf16.msra.mxu0 %v11574
  %11780 = vmatprep.subr.bf16.mxu0 0
  %11781 = vmatpush1.bf16.msra.mxu0 %v11573
  %11782 = vmatprep.subr.bf16.mxu0 0
  %11783 = vmatpush2.bf16.msra.mxu0 0
  %11784 = vmatprep.subr.bf16.mxu0 0
  %11785 = vmatpush2.bf16.msra.mxu0 0
  %11786 = vmatprep.subr.bf16.mxu0 0
  %11787 = vmatpush2.bf16.msra.mxu0 0
  %11788 = vmatprep.subr.bf16.mxu0 0
  %11789 = vmatpush2.bf16.msra.mxu0 0
  %11790 = vmatprep.subr.bf16.mxu0 0
  %11791 = vmatpush2.bf16.msra.mxu0 0
  %11792 = vmatprep.subr.bf16.mxu0 0
  %11793 = vmatpush2.bf16.msra.mxu0 0
  %11794 = vmatprep.subr.bf16.mxu0 0
  %11795 = vmatpush2.bf16.msra.mxu0 0
  %11796 = vmatprep.subr.bf16.mxu0 0
  %11797 = vmatpush2.bf16.msra.mxu0 0
  %11798 = vmatprep.mubr.bf16.mxu0 0
  %11799 = vmatmul.mubr.bf16.gmra.mxu0 %v10525
  %v11800 = vpop.f32.mrf.mxu0
  %v11801 = vadd.f32 %v11640, %v11800
  %v11802 = vpop.f32.mrf.mxu0
  %v11803 = vpop.f32.mrf.mxu0
  %v11804 = vadd.f32 %v11643, %v11803
  %v11805 = vpop.f32.mrf.mxu0
  %11806 = vmatprep.mubr.bf16.mxu0 0
  %11807 = vmatmul.mubr.bf16.gmra.mxu0 %v10527
  %v11808 = vpop.f32.mrf.mxu0
  %v11809 = vadd.f32 %v11648, %v11808
  %v11810 = vpop.f32.mrf.mxu0
  %v11811 = vpop.f32.mrf.mxu0
  %v11812 = vadd.f32 %v11651, %v11811
  %v11813 = vpop.f32.mrf.mxu0
  %11814 = vmatprep.mubr.bf16.mxu0 0
  %11815 = vmatmul.mubr.bf16.gmra.mxu0 %v10529
  %v11816 = vpop.f32.mrf.mxu0
  %v11817 = vadd.f32 %v11656, %v11816
  %v11818 = vpop.f32.mrf.mxu0
  %v11819 = vpop.f32.mrf.mxu0
  %v11820 = vadd.f32 %v11659, %v11819
  %v11821 = vpop.f32.mrf.mxu0
  %11822 = vmatprep.mubr.bf16.mxu0 0
  %11823 = vmatmul.mubr.bf16.gmra.mxu0 %v10531
  %v11824 = vpop.f32.mrf.mxu0
  %v11825 = vadd.f32 %v11664, %v11824
  %v11826 = vpop.f32.mrf.mxu0
  %v11827 = vpop.f32.mrf.mxu0
  %v11828 = vadd.f32 %v11667, %v11827
  %v11829 = vpop.f32.mrf.mxu0
  %11830 = vmatprep.mubr.bf16.mxu0 0
  %11831 = vmatmul.mubr.bf16.gmra.mxu0 %v10533
  %v11832 = vpop.f32.mrf.mxu0
  %v11833 = vadd.f32 %v11672, %v11832
  %v11834 = vpop.f32.mrf.mxu0
  %v11835 = vpop.f32.mrf.mxu0
  %v11836 = vadd.f32 %v11675, %v11835
  %v11837 = vpop.f32.mrf.mxu0
  %11838 = vmatprep.mubr.bf16.mxu0 0
  %11839 = vmatmul.mubr.bf16.gmra.mxu0 %v10535
  %v11840 = vpop.f32.mrf.mxu0
  %v11841 = vadd.f32 %v11680, %v11840
  %v11842 = vpop.f32.mrf.mxu0
  %v11843 = vpop.f32.mrf.mxu0
  %v11844 = vadd.f32 %v11683, %v11843
  %v11845 = vpop.f32.mrf.mxu0
  %11846 = vmatprep.mubr.bf16.mxu0 0
  %11847 = vmatmul.mubr.bf16.gmra.mxu0 %v10537
  %v11848 = vpop.f32.mrf.mxu0
  %v11849 = vadd.f32 %v11688, %v11848
  %v11850 = vpop.f32.mrf.mxu0
  %v11851 = vpop.f32.mrf.mxu0
  %v11852 = vadd.f32 %v11691, %v11851
  %v11853 = vpop.f32.mrf.mxu0
  %11854 = vmatprep.mubr.bf16.mxu0 0
  %11855 = vmatmul.mubr.bf16.gmra.mxu0 %v10539
  %v11856 = vpop.f32.mrf.mxu0
  %v11857 = vadd.f32 %v11696, %v11856
  %v11858 = vpop.f32.mrf.mxu0
  %v11859 = vpop.f32.mrf.mxu0
  %v11860 = vadd.f32 %v11699, %v11859
  %v11861 = vpop.f32.mrf.mxu0
  %11862 = vmatprep.mubr.bf16.mxu0 0
  %11863 = vmatmul.mubr.bf16.gmra.mxu0 %v10541
  %v11864 = vpop.f32.mrf.mxu0
  %v11865 = vadd.f32 %v11704, %v11864
  %v11866 = vpop.f32.mrf.mxu0
  %v11867 = vpop.f32.mrf.mxu0
  %v11868 = vadd.f32 %v11707, %v11867
  %v11869 = vpop.f32.mrf.mxu0
  %11870 = vmatprep.mubr.bf16.mxu0 0
  %11871 = vmatmul.mubr.bf16.gmra.mxu0 %v10543
  %v11872 = vpop.f32.mrf.mxu0
  %v11873 = vadd.f32 %v11712, %v11872
  %v11874 = vpop.f32.mrf.mxu0
  %v11875 = vpop.f32.mrf.mxu0
  %v11876 = vadd.f32 %v11715, %v11875
  %v11877 = vpop.f32.mrf.mxu0
  %11878 = vmatprep.mubr.bf16.mxu0 0
  %11879 = vmatmul.mubr.bf16.gmra.mxu0 %v10545
  %v11880 = vpop.f32.mrf.mxu0
  %v11881 = vadd.f32 %v11720, %v11880
  %v11882 = vpop.f32.mrf.mxu0
  %v11883 = vpop.f32.mrf.mxu0
  %v11884 = vadd.f32 %v11723, %v11883
  %v11885 = vpop.f32.mrf.mxu0
  %11886 = vmatprep.mubr.bf16.mxu0 0
  %11887 = vmatmul.mubr.bf16.gmra.mxu0 %v10547
  %v11888 = vpop.f32.mrf.mxu0
  %v11889 = vadd.f32 %v11728, %v11888
  %v11890 = vpop.f32.mrf.mxu0
  %v11891 = vpop.f32.mrf.mxu0
  %v11892 = vadd.f32 %v11731, %v11891
  %v11893 = vpop.f32.mrf.mxu0
  %11894 = vmatprep.mubr.bf16.mxu0 0
  %11895 = vmatmul.mubr.bf16.gmra.mxu0 %v10549
  %v11896 = vpop.f32.mrf.mxu0
  %v11897 = vadd.f32 %v11736, %v11896
  %v11898 = vpop.f32.mrf.mxu0
  %v11899 = vpop.f32.mrf.mxu0
  %v11900 = vadd.f32 %v11739, %v11899
  %v11901 = vpop.f32.mrf.mxu0
  %11902 = vmatprep.mubr.bf16.mxu0 0
  %11903 = vmatmul.mubr.bf16.gmra.mxu0 %v10551
  %v11904 = vpop.f32.mrf.mxu0
  %v11905 = vadd.f32 %v11744, %v11904
  %v11906 = vpop.f32.mrf.mxu0
  %v11907 = vpop.f32.mrf.mxu0
  %v11908 = vadd.f32 %v11747, %v11907
  %v11909 = vpop.f32.mrf.mxu0
  %11910 = vmatprep.mubr.bf16.mxu0 0
  %11911 = vmatmul.mubr.bf16.gmra.mxu0 %v10553
  %v11912 = vpop.f32.mrf.mxu0
  %v11913 = vadd.f32 %v11752, %v11912
  %v11914 = vpop.f32.mrf.mxu0
  %v11915 = vpop.f32.mrf.mxu0
  %v11916 = vadd.f32 %v11755, %v11915
  %v11917 = vpop.f32.mrf.mxu0
  %11918 = vmatprep.mubr.bf16.mxu0 0
  %11919 = vmatmul.mubr.bf16.gmra.mxu0 %v10555
  %v11920 = vpop.f32.mrf.mxu0
  %v11921 = vadd.f32 %v11760, %v11920
  %v11922 = vpop.f32.mrf.mxu0
  %v11923 = vpop.f32.mrf.mxu0
  %v11924 = vadd.f32 %v11763, %v11923
  %v11925 = vpop.f32.mrf.mxu0
  %11926 = vdwg.mxu0
  %v11927 = vmax.f32 %v11389, %v11801
  %v11928 = vmax.f32 %v11390, %v11804
  %v11929 = vmax.f32 %v11391, %v11809
  %v11930 = vmax.f32 %v11392, %v11812
  %v11931 = vmax.f32 %v11393, %v11817
  %v11932 = vmax.f32 %v11394, %v11820
  %v11933 = vmax.f32 %v11395, %v11825
  %v11934 = vmax.f32 %v11396, %v11828
  %v11935 = vmax.f32 %v11397, %v11833
  %v11936 = vmax.f32 %v11398, %v11836
  %v11937 = vmax.f32 %v11399, %v11841
  %v11938 = vmax.f32 %v11400, %v11844
  %v11939 = vmax.f32 %v11401, %v11849
  %v11940 = vmax.f32 %v11402, %v11852
  %v11941 = vmax.f32 %v11403, %v11857
  %v11942 = vmax.f32 %v11404, %v11860
  %v11943 = vmax.f32 %v11405, %v11865
  %v11944 = vmax.f32 %v11406, %v11868
  %v11945 = vmax.f32 %v11407, %v11873
  %v11946 = vmax.f32 %v11408, %v11876
  %v11947 = vmax.f32 %v11409, %v11881
  %v11948 = vmax.f32 %v11410, %v11884
  %v11949 = vmax.f32 %v11411, %v11889
  %v11950 = vmax.f32 %v11412, %v11892
  %v11951 = vmax.f32 %v11413, %v11897
  %v11952 = vmax.f32 %v11414, %v11900
  %v11953 = vmax.f32 %v11415, %v11905
  %v11954 = vmax.f32 %v11416, %v11908
  %v11955 = vmax.f32 %v11417, %v11913
  %v11956 = vmax.f32 %v11418, %v11916
  %v11957 = vmax.f32 %v11419, %v11921
  %v11958 = vmax.f32 %v11420, %v11924
  %s11959 = scalar_lea.vmem %s3, 540
  %v11960 = vld [vmem:[%s11959] sm:$0xf]
  %v11961 = vld [vmem:[%s11959 + $0x4] sm:$0xf]
  %v11962 = vld [vmem:[%s11959 + $0x8] sm:$0xf]
  %v11963 = vld [vmem:[%s11959 + $0xc] sm:$0xf]
  %v11964 = vld [vmem:[%s11959 + $0x10] sm:$0xf]
  %v11965 = vld [vmem:[%s11959 + $0x14] sm:$0xf]
  %v11966 = vld [vmem:[%s11959 + $0x18] sm:$0xf]
  %v11967 = vld [vmem:[%s11959 + $0x1c] sm:$0xf]
  %v11968 = vld [vmem:[%s11959 + $0x20] sm:$0xf]
  %v11969 = vld [vmem:[%s11959 + $0x24] sm:$0xf]
  %v11970 = vld [vmem:[%s11959 + $0x28] sm:$0xf]
  %v11971 = vld [vmem:[%s11959 + $0x2c] sm:$0xf]
  %v11972 = vld [vmem:[%s11959 + $0x30] sm:$0xf]
  %v11973 = vld [vmem:[%s11959 + $0x34] sm:$0xf]
  %v11974 = vld [vmem:[%s11959 + $0x38] sm:$0xf]
  %v11975 = vld [vmem:[%s11959 + $0x3c] sm:$0xf]
  %v11976 = vld [vmem:[%s11959 + $0x40] sm:$0xf]
  %v11977 = vld [vmem:[%s11959 + $0x44] sm:$0xf]
  %v11978 = vld [vmem:[%s11959 + $0x48] sm:$0xf]
  %v11979 = vld [vmem:[%s11959 + $0x4c] sm:$0xf]
  %v11980 = vld [vmem:[%s11959 + $0x50] sm:$0xf]
  %v11981 = vld [vmem:[%s11959 + $0x54] sm:$0xf]
  %v11982 = vld [vmem:[%s11959 + $0x58] sm:$0xf]
  %v11983 = vld [vmem:[%s11959 + $0x5c] sm:$0xf]
  %v11984 = vld [vmem:[%s11959 + $0x60] sm:$0xf]
  %v11985 = vld [vmem:[%s11959 + $0x64] sm:$0xf]
  %v11986 = vld [vmem:[%s11959 + $0x68] sm:$0xf]
  %v11987 = vld [vmem:[%s11959 + $0x6c] sm:$0xf]
  %v11988 = vld [vmem:[%s11959 + $0x70] sm:$0xf]
  %v11989 = vld [vmem:[%s11959 + $0x74] sm:$0xf]
  %v11990 = vld [vmem:[%s11959 + $0x78] sm:$0xf]
  %v11991 = vld [vmem:[%s11959 + $0x7c] sm:$0xf]
  %v11992 = vld [vmem:[%s11959 + $0x80] sm:$0xf]
  %v11993 = vld [vmem:[%s11959 + $0x84] sm:$0xf]
  %v11994 = vld [vmem:[%s11959 + $0x88] sm:$0xf]
  %v11995 = vld [vmem:[%s11959 + $0x8c] sm:$0xf]
  %v11996 = vld [vmem:[%s11959 + $0x90] sm:$0xf]
  %v11997 = vld [vmem:[%s11959 + $0x94] sm:$0xf]
  %v11998 = vld [vmem:[%s11959 + $0x98] sm:$0xf]
  %v11999 = vld [vmem:[%s11959 + $0x9c] sm:$0xf]
  %v12000 = vld [vmem:[%s11959 + $0xa0] sm:$0xf]
  %v12001 = vld [vmem:[%s11959 + $0xa4] sm:$0xf]
  %v12002 = vld [vmem:[%s11959 + $0xa8] sm:$0xf]
  %v12003 = vld [vmem:[%s11959 + $0xac] sm:$0xf]
  %v12004 = vld [vmem:[%s11959 + $0xb0] sm:$0xf]
  %v12050 = vunpack.c.l.b16 %v11960
  %v12051 = vunpack.c.l.b16 %v11961
  %v12052 = vunpack.c.l.b16 %v11962
  %v12053 = vunpack.c.l.b16 %v11963
  %v12054 = vunpack.c.l.b16 %v11964
  %v12055 = vunpack.c.l.b16 %v11965
  %v12056 = vunpack.c.l.b16 %v11966
  %v12057 = vunpack.c.l.b16 %v11967
  %v12058 = vunpack.c.l.b16 %v11968
  %v12059 = vunpack.c.l.b16 %v11969
  %v12060 = vunpack.c.l.b16 %v11970
  %v12061 = vunpack.c.l.b16 %v11971
  %v12062 = vunpack.c.l.b16 %v11972
  %v12063 = vunpack.c.l.b16 %v11973
  %v12064 = vunpack.c.l.b16 %v11974
  %v12065 = vunpack.c.l.b16 %v11975
  %v12066 = vunpack.c.l.b16 %v11976
  %v12067 = vunpack.c.l.b16 %v11977
  %v12068 = vunpack.c.l.b16 %v11978
  %v12069 = vunpack.c.l.b16 %v11979
  %v12070 = vunpack.c.l.b16 %v11980
  %v12071 = vunpack.c.l.b16 %v11981
  %v12072 = vunpack.c.l.b16 %v11982
  %v12073 = vunpack.c.l.b16 %v11983
  %v12074 = vunpack.c.l.b16 %v11984
  %v12075 = vunpack.c.l.b16 %v11985
  %v12076 = vunpack.c.l.b16 %v11986
  %v12077 = vunpack.c.l.b16 %v11987
  %v12078 = vunpack.c.l.b16 %v11988
  %v12079 = vunpack.c.l.b16 %v11989
  %v12080 = vunpack.c.l.b16 %v11990
  %v12081 = vunpack.c.l.b16 %v11991
  %v12082 = vunpack.c.l.b16 %v11992
  %v12083 = vunpack.c.l.b16 %v11993
  %v12084 = vunpack.c.l.b16 %v11994
  %v12085 = vunpack.c.l.b16 %v11995
  %v12086 = vunpack.c.l.b16 %v11996
  %v12087 = vunpack.c.l.b16 %v11997
  %v12088 = vunpack.c.l.b16 %v11998
  %v12089 = vunpack.c.l.b16 %v11999
  %v12090 = vunpack.c.l.b16 %v12000
  %v12091 = vunpack.c.l.b16 %v12001
  %v12092 = vunpack.c.l.b16 %v12002
  %v12093 = vunpack.c.l.b16 %v12003
  %v12094 = vunpack.c.l.b16 %v12004
  %v12095 = vpack.c.b16 %v12051, %v12050
  %v12096 = vpack.c.b16 %v12053, %v12052
  %v12097 = vpack.c.b16 %v12055, %v12054
  %v12098 = vpack.c.b16 %v12057, %v12056
  %v12099 = vpack.c.b16 %v12059, %v12058
  %v12100 = vpack.c.b16 %v12061, %v12060
  %v12101 = vpack.c.b16 %v12063, %v12062
  %v12102 = vpack.c.b16 %v12065, %v12064
  %v12103 = vpack.c.b16 %v12067, %v12066
  %v12104 = vpack.c.b16 %v12069, %v12068
  %v12105 = vpack.c.b16 %v12071, %v12070
  %v12106 = vpack.c.b16 %v12073, %v12072
  %v12107 = vpack.c.b16 %v12075, %v12074
  %v12108 = vpack.c.b16 %v12077, %v12076
  %v12109 = vpack.c.b16 %v12079, %v12078
  %v12110 = vpack.c.b16 %v12081, %v12080
  %v12111 = vpack.c.b16 %v12083, %v12082
  %v12112 = vpack.c.b16 %v12085, %v12084
  %v12113 = vpack.c.b16 %v12087, %v12086
  %v12114 = vpack.c.b16 %v12089, %v12088
  %v12115 = vpack.c.b16 %v12091, %v12090
  %v12116 = vpack.c.b16 %v12093, %v12092
  %v12117 = vpack.c.b16 %v12094, %v12094
  %v12141 = vsel %vm10557, %v12117, 0
  %12143 = vmatprep.subr.bf16.mxu0 0
  %12144 = vmatpush1.bf16.msra.mxu0 %v12102
  %12145 = vmatprep.subr.bf16.mxu0 0
  %12146 = vmatpush1.bf16.msra.mxu0 %v12101
  %12147 = vmatprep.subr.bf16.mxu0 0
  %12148 = vmatpush1.bf16.msra.mxu0 %v12100
  %12149 = vmatprep.subr.bf16.mxu0 0
  %12150 = vmatpush1.bf16.msra.mxu0 %v12099
  %12151 = vmatprep.subr.bf16.mxu0 0
  %12152 = vmatpush1.bf16.msra.mxu0 %v12098
  %12153 = vmatprep.subr.bf16.mxu0 0
  %12154 = vmatpush1.bf16.msra.mxu0 %v12097
  %12155 = vmatprep.subr.bf16.mxu0 0
  %12156 = vmatpush1.bf16.msra.mxu0 %v12096
  %12157 = vmatprep.subr.bf16.mxu0 0
  %12158 = vmatpush1.bf16.msra.mxu0 %v12095
  %12159 = vmatprep.subr.bf16.mxu0 0
  %12160 = vmatpush2.bf16.msra.mxu0 %v12110
  %12161 = vmatprep.subr.bf16.mxu0 0
  %12162 = vmatpush2.bf16.msra.mxu0 %v12109
  %12163 = vmatprep.subr.bf16.mxu0 0
  %12164 = vmatpush2.bf16.msra.mxu0 %v12108
  %12165 = vmatprep.subr.bf16.mxu0 0
  %12166 = vmatpush2.bf16.msra.mxu0 %v12107
  %12167 = vmatprep.subr.bf16.mxu0 0
  %12168 = vmatpush2.bf16.msra.mxu0 %v12106
  %12169 = vmatprep.subr.bf16.mxu0 0
  %12170 = vmatpush2.bf16.msra.mxu0 %v12105
  %12171 = vmatprep.subr.bf16.mxu0 0
  %12172 = vmatpush2.bf16.msra.mxu0 %v12104
  %12173 = vmatprep.subr.bf16.mxu0 0
  %12174 = vmatpush2.bf16.msra.mxu0 %v12103
  %12175 = vmatprep.mubr.bf16.mxu0 %v10248
  %12176 = vmatmul.mubr.bf16.gmra.mxu0 %v8861
  %v12177 = vpop.f32.mrf.mxu0
  %v12178 = vadd.f32 0.0, %v12177
  %v12179 = vpop.f32.mrf.mxu0
  %v12180 = vpop.f32.mrf.mxu0
  %v12181 = vadd.f32 0.0, %v12180
  %v12182 = vpop.f32.mrf.mxu0
  %12183 = vmatprep.mubr.bf16.mxu0 %v10251
  %12184 = vmatmul.mubr.bf16.gmra.mxu0 %v8864
  %v12185 = vpop.f32.mrf.mxu0
  %v12186 = vadd.f32 0.0, %v12185
  %v12187 = vpop.f32.mrf.mxu0
  %v12188 = vpop.f32.mrf.mxu0
  %v12189 = vadd.f32 0.0, %v12188
  %v12190 = vpop.f32.mrf.mxu0
  %12191 = vmatprep.mubr.bf16.mxu0 %v10254
  %12192 = vmatmul.mubr.bf16.gmra.mxu0 %v8867
  %v12193 = vpop.f32.mrf.mxu0
  %v12194 = vadd.f32 0.0, %v12193
  %v12195 = vpop.f32.mrf.mxu0
  %v12196 = vpop.f32.mrf.mxu0
  %v12197 = vadd.f32 0.0, %v12196
  %v12198 = vpop.f32.mrf.mxu0
  %12199 = vmatprep.mubr.bf16.mxu0 %v10257
  %12200 = vmatmul.mubr.bf16.gmra.mxu0 %v8870
  %v12201 = vpop.f32.mrf.mxu0
  %v12202 = vadd.f32 0.0, %v12201
  %v12203 = vpop.f32.mrf.mxu0
  %v12204 = vpop.f32.mrf.mxu0
  %v12205 = vadd.f32 0.0, %v12204
  %v12206 = vpop.f32.mrf.mxu0
  %12207 = vmatprep.mubr.bf16.mxu0 %v10260
  %12208 = vmatmul.mubr.bf16.gmra.mxu0 %v8873
  %v12209 = vpop.f32.mrf.mxu0
  %v12210 = vadd.f32 0.0, %v12209
  %v12211 = vpop.f32.mrf.mxu0
  %v12212 = vpop.f32.mrf.mxu0
  %v12213 = vadd.f32 0.0, %v12212
  %v12214 = vpop.f32.mrf.mxu0
  %12215 = vmatprep.mubr.bf16.mxu0 %v10263
  %12216 = vmatmul.mubr.bf16.gmra.mxu0 %v8876
  %v12217 = vpop.f32.mrf.mxu0
  %v12218 = vadd.f32 0.0, %v12217
  %v12219 = vpop.f32.mrf.mxu0
  %v12220 = vpop.f32.mrf.mxu0
  %v12221 = vadd.f32 0.0, %v12220
  %v12222 = vpop.f32.mrf.mxu0
  %12223 = vmatprep.mubr.bf16.mxu0 %v10266
  %12224 = vmatmul.mubr.bf16.gmra.mxu0 %v8879
  %v12225 = vpop.f32.mrf.mxu0
  %v12226 = vadd.f32 0.0, %v12225
  %v12227 = vpop.f32.mrf.mxu0
  %v12228 = vpop.f32.mrf.mxu0
  %v12229 = vadd.f32 0.0, %v12228
  %v12230 = vpop.f32.mrf.mxu0
  %12231 = vmatprep.mubr.bf16.mxu0 %v10269
  %12232 = vmatmul.mubr.bf16.gmra.mxu0 %v8882
  %v12233 = vpop.f32.mrf.mxu0
  %v12234 = vadd.f32 0.0, %v12233
  %v12235 = vpop.f32.mrf.mxu0
  %v12236 = vpop.f32.mrf.mxu0
  %v12237 = vadd.f32 0.0, %v12236
  %v12238 = vpop.f32.mrf.mxu0
  %12239 = vmatprep.mubr.bf16.mxu0 %v10272
  %12240 = vmatmul.mubr.bf16.gmra.mxu0 %v8885
  %v12241 = vpop.f32.mrf.mxu0
  %v12242 = vadd.f32 0.0, %v12241
  %v12243 = vpop.f32.mrf.mxu0
  %v12244 = vpop.f32.mrf.mxu0
  %v12245 = vadd.f32 0.0, %v12244
  %v12246 = vpop.f32.mrf.mxu0
  %12247 = vmatprep.mubr.bf16.mxu0 %v10275
  %12248 = vmatmul.mubr.bf16.gmra.mxu0 %v8888
  %v12249 = vpop.f32.mrf.mxu0
  %v12250 = vadd.f32 0.0, %v12249
  %v12251 = vpop.f32.mrf.mxu0
  %v12252 = vpop.f32.mrf.mxu0
  %v12253 = vadd.f32 0.0, %v12252
  %v12254 = vpop.f32.mrf.mxu0
  %12255 = vmatprep.mubr.bf16.mxu0 %v10278
  %12256 = vmatmul.mubr.bf16.gmra.mxu0 %v8891
  %v12257 = vpop.f32.mrf.mxu0
  %v12258 = vadd.f32 0.0, %v12257
  %v12259 = vpop.f32.mrf.mxu0
  %v12260 = vpop.f32.mrf.mxu0
  %v12261 = vadd.f32 0.0, %v12260
  %v12262 = vpop.f32.mrf.mxu0
  %12263 = vmatprep.mubr.bf16.mxu0 %v10281
  %12264 = vmatmul.mubr.bf16.gmra.mxu0 %v8894
  %v12265 = vpop.f32.mrf.mxu0
  %v12266 = vadd.f32 0.0, %v12265
  %v12267 = vpop.f32.mrf.mxu0
  %v12268 = vpop.f32.mrf.mxu0
  %v12269 = vadd.f32 0.0, %v12268
  %v12270 = vpop.f32.mrf.mxu0
  %12271 = vmatprep.mubr.bf16.mxu0 %v10284
  %12272 = vmatmul.mubr.bf16.gmra.mxu0 %v8897
  %v12273 = vpop.f32.mrf.mxu0
  %v12274 = vadd.f32 0.0, %v12273
  %v12275 = vpop.f32.mrf.mxu0
  %v12276 = vpop.f32.mrf.mxu0
  %v12277 = vadd.f32 0.0, %v12276
  %v12278 = vpop.f32.mrf.mxu0
  %12279 = vmatprep.mubr.bf16.mxu0 %v10287
  %12280 = vmatmul.mubr.bf16.gmra.mxu0 %v8900
  %v12281 = vpop.f32.mrf.mxu0
  %v12282 = vadd.f32 0.0, %v12281
  %v12283 = vpop.f32.mrf.mxu0
  %v12284 = vpop.f32.mrf.mxu0
  %v12285 = vadd.f32 0.0, %v12284
  %v12286 = vpop.f32.mrf.mxu0
  %12287 = vmatprep.mubr.bf16.mxu0 %v10290
  %12288 = vmatmul.mubr.bf16.gmra.mxu0 %v8903
  %v12289 = vpop.f32.mrf.mxu0
  %v12290 = vadd.f32 0.0, %v12289
  %v12291 = vpop.f32.mrf.mxu0
  %v12292 = vpop.f32.mrf.mxu0
  %v12293 = vadd.f32 0.0, %v12292
  %v12294 = vpop.f32.mrf.mxu0
  %12295 = vmatprep.mubr.bf16.mxu0 %v10293
  %12296 = vmatmul.mubr.bf16.gmra.mxu0 %v8906
  %v12297 = vpop.f32.mrf.mxu0
  %v12298 = vadd.f32 0.0, %v12297
  %v12299 = vpop.f32.mrf.mxu0
  %v12300 = vpop.f32.mrf.mxu0
  %v12301 = vadd.f32 0.0, %v12300
  %v12302 = vpop.f32.mrf.mxu0
  %12303 = vdwg.mxu0
  %12304 = vmatprep.subr.bf16.mxu0 0
  %12305 = vmatpush1.bf16.msra.mxu0 0
  %12306 = vmatprep.subr.bf16.mxu0 0
  %12307 = vmatpush1.bf16.msra.mxu0 %v12141
  %12308 = vmatprep.subr.bf16.mxu0 0
  %12309 = vmatpush1.bf16.msra.mxu0 %v12116
  %12310 = vmatprep.subr.bf16.mxu0 0
  %12311 = vmatpush1.bf16.msra.mxu0 %v12115
  %12312 = vmatprep.subr.bf16.mxu0 0
  %12313 = vmatpush1.bf16.msra.mxu0 %v12114
  %12314 = vmatprep.subr.bf16.mxu0 0
  %12315 = vmatpush1.bf16.msra.mxu0 %v12113
  %12316 = vmatprep.subr.bf16.mxu0 0
  %12317 = vmatpush1.bf16.msra.mxu0 %v12112
  %12318 = vmatprep.subr.bf16.mxu0 0
  %12319 = vmatpush1.bf16.msra.mxu0 %v12111
  %12320 = vmatprep.subr.bf16.mxu0 0
  %12321 = vmatpush2.bf16.msra.mxu0 0
  %12322 = vmatprep.subr.bf16.mxu0 0
  %12323 = vmatpush2.bf16.msra.mxu0 0
  %12324 = vmatprep.subr.bf16.mxu0 0
  %12325 = vmatpush2.bf16.msra.mxu0 0
  %12326 = vmatprep.subr.bf16.mxu0 0
  %12327 = vmatpush2.bf16.msra.mxu0 0
  %12328 = vmatprep.subr.bf16.mxu0 0
  %12329 = vmatpush2.bf16.msra.mxu0 0
  %12330 = vmatprep.subr.bf16.mxu0 0
  %12331 = vmatpush2.bf16.msra.mxu0 0
  %12332 = vmatprep.subr.bf16.mxu0 0
  %12333 = vmatpush2.bf16.msra.mxu0 0
  %12334 = vmatprep.subr.bf16.mxu0 0
  %12335 = vmatpush2.bf16.msra.mxu0 0
  %12336 = vmatprep.mubr.bf16.mxu0 0
  %12337 = vmatmul.mubr.bf16.gmra.mxu0 %v10525
  %v12338 = vpop.f32.mrf.mxu0
  %v12339 = vadd.f32 %v12178, %v12338
  %v12340 = vpop.f32.mrf.mxu0
  %v12341 = vpop.f32.mrf.mxu0
  %v12342 = vadd.f32 %v12181, %v12341
  %v12343 = vpop.f32.mrf.mxu0
  %12344 = vmatprep.mubr.bf16.mxu0 0
  %12345 = vmatmul.mubr.bf16.gmra.mxu0 %v10527
  %v12346 = vpop.f32.mrf.mxu0
  %v12347 = vadd.f32 %v12186, %v12346
  %v12348 = vpop.f32.mrf.mxu0
  %v12349 = vpop.f32.mrf.mxu0
  %v12350 = vadd.f32 %v12189, %v12349
  %v12351 = vpop.f32.mrf.mxu0
  %12352 = vmatprep.mubr.bf16.mxu0 0
  %12353 = vmatmul.mubr.bf16.gmra.mxu0 %v10529
  %v12354 = vpop.f32.mrf.mxu0
  %v12355 = vadd.f32 %v12194, %v12354
  %v12356 = vpop.f32.mrf.mxu0
  %v12357 = vpop.f32.mrf.mxu0
  %v12358 = vadd.f32 %v12197, %v12357
  %v12359 = vpop.f32.mrf.mxu0
  %12360 = vmatprep.mubr.bf16.mxu0 0
  %12361 = vmatmul.mubr.bf16.gmra.mxu0 %v10531
  %v12362 = vpop.f32.mrf.mxu0
  %v12363 = vadd.f32 %v12202, %v12362
  %v12364 = vpop.f32.mrf.mxu0
  %v12365 = vpop.f32.mrf.mxu0
  %v12366 = vadd.f32 %v12205, %v12365
  %v12367 = vpop.f32.mrf.mxu0
  %12368 = vmatprep.mubr.bf16.mxu0 0
  %12369 = vmatmul.mubr.bf16.gmra.mxu0 %v10533
  %v12370 = vpop.f32.mrf.mxu0
  %v12371 = vadd.f32 %v12210, %v12370
  %v12372 = vpop.f32.mrf.mxu0
  %v12373 = vpop.f32.mrf.mxu0
  %v12374 = vadd.f32 %v12213, %v12373
  %v12375 = vpop.f32.mrf.mxu0
  %12376 = vmatprep.mubr.bf16.mxu0 0
  %12377 = vmatmul.mubr.bf16.gmra.mxu0 %v10535
  %v12378 = vpop.f32.mrf.mxu0
  %v12379 = vadd.f32 %v12218, %v12378
  %v12380 = vpop.f32.mrf.mxu0
  %v12381 = vpop.f32.mrf.mxu0
  %v12382 = vadd.f32 %v12221, %v12381
  %v12383 = vpop.f32.mrf.mxu0
  %12384 = vmatprep.mubr.bf16.mxu0 0
  %12385 = vmatmul.mubr.bf16.gmra.mxu0 %v10537
  %v12386 = vpop.f32.mrf.mxu0
  %v12387 = vadd.f32 %v12226, %v12386
  %v12388 = vpop.f32.mrf.mxu0
  %v12389 = vpop.f32.mrf.mxu0
  %v12390 = vadd.f32 %v12229, %v12389
  %v12391 = vpop.f32.mrf.mxu0
  %12392 = vmatprep.mubr.bf16.mxu0 0
  %12393 = vmatmul.mubr.bf16.gmra.mxu0 %v10539
  %v12394 = vpop.f32.mrf.mxu0
  %v12395 = vadd.f32 %v12234, %v12394
  %v12396 = vpop.f32.mrf.mxu0
  %v12397 = vpop.f32.mrf.mxu0
  %v12398 = vadd.f32 %v12237, %v12397
  %v12399 = vpop.f32.mrf.mxu0
  %12400 = vmatprep.mubr.bf16.mxu0 0
  %12401 = vmatmul.mubr.bf16.gmra.mxu0 %v10541
  %v12402 = vpop.f32.mrf.mxu0
  %v12403 = vadd.f32 %v12242, %v12402
  %v12404 = vpop.f32.mrf.mxu0
  %v12405 = vpop.f32.mrf.mxu0
  %v12406 = vadd.f32 %v12245, %v12405
  %v12407 = vpop.f32.mrf.mxu0
  %12408 = vmatprep.mubr.bf16.mxu0 0
  %12409 = vmatmul.mubr.bf16.gmra.mxu0 %v10543
  %v12410 = vpop.f32.mrf.mxu0
  %v12411 = vadd.f32 %v12250, %v12410
  %v12412 = vpop.f32.mrf.mxu0
  %v12413 = vpop.f32.mrf.mxu0
  %v12414 = vadd.f32 %v12253, %v12413
  %v12415 = vpop.f32.mrf.mxu0
  %12416 = vmatprep.mubr.bf16.mxu0 0
  %12417 = vmatmul.mubr.bf16.gmra.mxu0 %v10545
  %v12418 = vpop.f32.mrf.mxu0
  %v12419 = vadd.f32 %v12258, %v12418
  %v12420 = vpop.f32.mrf.mxu0
  %v12421 = vpop.f32.mrf.mxu0
  %v12422 = vadd.f32 %v12261, %v12421
  %v12423 = vpop.f32.mrf.mxu0
  %12424 = vmatprep.mubr.bf16.mxu0 0
  %12425 = vmatmul.mubr.bf16.gmra.mxu0 %v10547
  %v12426 = vpop.f32.mrf.mxu0
  %v12427 = vadd.f32 %v12266, %v12426
  %v12428 = vpop.f32.mrf.mxu0
  %v12429 = vpop.f32.mrf.mxu0
  %v12430 = vadd.f32 %v12269, %v12429
  %v12431 = vpop.f32.mrf.mxu0
  %12432 = vmatprep.mubr.bf16.mxu0 0
  %12433 = vmatmul.mubr.bf16.gmra.mxu0 %v10549
  %v12434 = vpop.f32.mrf.mxu0
  %v12435 = vadd.f32 %v12274, %v12434
  %v12436 = vpop.f32.mrf.mxu0
  %v12437 = vpop.f32.mrf.mxu0
  %v12438 = vadd.f32 %v12277, %v12437
  %v12439 = vpop.f32.mrf.mxu0
  %12440 = vmatprep.mubr.bf16.mxu0 0
  %12441 = vmatmul.mubr.bf16.gmra.mxu0 %v10551
  %v12442 = vpop.f32.mrf.mxu0
  %v12443 = vadd.f32 %v12282, %v12442
  %v12444 = vpop.f32.mrf.mxu0
  %v12445 = vpop.f32.mrf.mxu0
  %v12446 = vadd.f32 %v12285, %v12445
  %v12447 = vpop.f32.mrf.mxu0
  %12448 = vmatprep.mubr.bf16.mxu0 0
  %12449 = vmatmul.mubr.bf16.gmra.mxu0 %v10553
  %v12450 = vpop.f32.mrf.mxu0
  %v12451 = vadd.f32 %v12290, %v12450
  %v12452 = vpop.f32.mrf.mxu0
  %v12453 = vpop.f32.mrf.mxu0
  %v12454 = vadd.f32 %v12293, %v12453
  %v12455 = vpop.f32.mrf.mxu0
  %12456 = vmatprep.mubr.bf16.mxu0 0
  %12457 = vmatmul.mubr.bf16.gmra.mxu0 %v10555
  %v12458 = vpop.f32.mrf.mxu0
  %v12459 = vadd.f32 %v12298, %v12458
  %v12460 = vpop.f32.mrf.mxu0
  %v12461 = vpop.f32.mrf.mxu0
  %v12462 = vadd.f32 %v12301, %v12461
  %v12463 = vpop.f32.mrf.mxu0
  %12464 = vdwg.mxu0
  %v12465 = vmax.f32 %v11927, %v12339
  %v12466 = vmax.f32 %v11928, %v12342
  %v12467 = vmax.f32 %v11929, %v12347
  %v12468 = vmax.f32 %v11930, %v12350
  %v12469 = vmax.f32 %v11931, %v12355
  %v12470 = vmax.f32 %v11932, %v12358
  %v12471 = vmax.f32 %v11933, %v12363
  %v12472 = vmax.f32 %v11934, %v12366
  %v12473 = vmax.f32 %v11935, %v12371
  %v12474 = vmax.f32 %v11936, %v12374
  %v12475 = vmax.f32 %v11937, %v12379
  %v12476 = vmax.f32 %v11938, %v12382
  %v12477 = vmax.f32 %v11939, %v12387
  %v12478 = vmax.f32 %v11940, %v12390
  %v12479 = vmax.f32 %v11941, %v12395
  %v12480 = vmax.f32 %v11942, %v12398
  %v12481 = vmax.f32 %v11943, %v12403
  %v12482 = vmax.f32 %v11944, %v12406
  %v12483 = vmax.f32 %v11945, %v12411
  %v12484 = vmax.f32 %v11946, %v12414
  %v12485 = vmax.f32 %v11947, %v12419
  %v12486 = vmax.f32 %v11948, %v12422
  %v12487 = vmax.f32 %v11949, %v12427
  %v12488 = vmax.f32 %v11950, %v12430
  %v12489 = vmax.f32 %v11951, %v12435
  %v12490 = vmax.f32 %v11952, %v12438
  %v12491 = vmax.f32 %v11953, %v12443
  %v12492 = vmax.f32 %v11954, %v12446
  %v12493 = vmax.f32 %v11955, %v12451
  %v12494 = vmax.f32 %v11956, %v12454
  %v12495 = vmax.f32 %v11957, %v12459
  %v12496 = vmax.f32 %v11958, %v12462
  %v12497 = vld [vmem:[%s4] sm:$0x1]
  %v12499 = vlaneseq
  %v12500 = vshrl.u32 %v12499, 7
  %v12501 = vsub.s32 0, %v12500
  %v12502 = vrot.slane %v12497, %v12501
  %v12504 = vadd.f32 %v12465, %v12502
  %v12505 = vadd.f32 %v12466, %v12502
  %v12506 = vadd.f32 %v12467, %v12502
  %v12507 = vadd.f32 %v12468, %v12502
  %v12508 = vadd.f32 %v12469, %v12502
  %v12509 = vadd.f32 %v12470, %v12502
  %v12510 = vadd.f32 %v12471, %v12502
  %v12511 = vadd.f32 %v12472, %v12502
  %v12512 = vadd.f32 %v12473, %v12502
  %v12513 = vadd.f32 %v12474, %v12502
  %v12514 = vadd.f32 %v12475, %v12502
  %v12515 = vadd.f32 %v12476, %v12502
  %v12516 = vadd.f32 %v12477, %v12502
  %v12517 = vadd.f32 %v12478, %v12502
  %v12518 = vadd.f32 %v12479, %v12502
  %v12519 = vadd.f32 %v12480, %v12502
  %v12520 = vadd.f32 %v12481, %v12502
  %v12521 = vadd.f32 %v12482, %v12502
  %v12522 = vadd.f32 %v12483, %v12502
  %v12523 = vadd.f32 %v12484, %v12502
  %v12524 = vadd.f32 %v12485, %v12502
  %v12525 = vadd.f32 %v12486, %v12502
  %v12526 = vadd.f32 %v12487, %v12502
  %v12527 = vadd.f32 %v12488, %v12502
  %v12528 = vadd.f32 %v12489, %v12502
  %v12529 = vadd.f32 %v12490, %v12502
  %v12530 = vadd.f32 %v12491, %v12502
  %v12531 = vadd.f32 %v12492, %v12502
  %v12532 = vadd.f32 %v12493, %v12502
  %v12533 = vadd.f32 %v12494, %v12502
  %v12534 = vadd.f32 %v12495, %v12502
  %v12535 = vadd.f32 %v12496, %v12502
  %v12536 = vmax.f32 %v12504, 0.0
  %v12537 = vmax.f32 %v12505, 0.0
  %v12538 = vmax.f32 %v12506, 0.0
  %v12539 = vmax.f32 %v12507, 0.0
  %v12540 = vmax.f32 %v12508, 0.0
  %v12541 = vmax.f32 %v12509, 0.0
  %v12542 = vmax.f32 %v12510, 0.0
  %v12543 = vmax.f32 %v12511, 0.0
  %v12544 = vmax.f32 %v12512, 0.0
  %v12545 = vmax.f32 %v12513, 0.0
  %v12546 = vmax.f32 %v12514, 0.0
  %v12547 = vmax.f32 %v12515, 0.0
  %v12548 = vmax.f32 %v12516, 0.0
  %v12549 = vmax.f32 %v12517, 0.0
  %v12550 = vmax.f32 %v12518, 0.0
  %v12551 = vmax.f32 %v12519, 0.0
  %v12552 = vmax.f32 %v12520, 0.0
  %v12553 = vmax.f32 %v12521, 0.0
  %v12554 = vmax.f32 %v12522, 0.0
  %v12555 = vmax.f32 %v12523, 0.0
  %v12556 = vmax.f32 %v12524, 0.0
  %v12557 = vmax.f32 %v12525, 0.0
  %v12558 = vmax.f32 %v12526, 0.0
  %v12559 = vmax.f32 %v12527, 0.0
  %v12560 = vmax.f32 %v12528, 0.0
  %v12561 = vmax.f32 %v12529, 0.0
  %v12562 = vmax.f32 %v12530, 0.0
  %v12563 = vmax.f32 %v12531, 0.0
  %v12564 = vmax.f32 %v12532, 0.0
  %v12565 = vmax.f32 %v12533, 0.0
  %v12566 = vmax.f32 %v12534, 0.0
  %v12567 = vmax.f32 %v12535, 0.0
  %v12568 = vpack.c.bf16 %v12537, %v12536
  %v12569 = vpack.c.bf16 %v12539, %v12538
  %v12570 = vpack.c.bf16 %v12541, %v12540
  %v12571 = vpack.c.bf16 %v12543, %v12542
  %v12572 = vpack.c.bf16 %v12545, %v12544
  %v12573 = vpack.c.bf16 %v12547, %v12546
  %v12574 = vpack.c.bf16 %v12549, %v12548
  %v12575 = vpack.c.bf16 %v12551, %v12550
  %v12576 = vpack.c.bf16 %v12553, %v12552
  %v12577 = vpack.c.bf16 %v12555, %v12554
  %v12578 = vpack.c.bf16 %v12557, %v12556
  %v12579 = vpack.c.bf16 %v12559, %v12558
  %v12580 = vpack.c.bf16 %v12561, %v12560
  %v12581 = vpack.c.bf16 %v12563, %v12562
  %v12582 = vpack.c.bf16 %v12565, %v12564
  %v12583 = vpack.c.bf16 %v12567, %v12566
  %12585 = vrot.lane.b32.xlu0 %v12569, 20
  %v12586 = vpop.permute.xlu0 %12585
  %12588 = vrot.lane.b32.xlu0 %v12570, 40
  %v12589 = vpop.permute.xlu0 %12588
  %12591 = vrot.lane.b32.xlu0 %v12571, 60
  %v12592 = vpop.permute.xlu0 %12591
  %12594 = vrot.lane.b32.xlu0 %v12572, 80
  %v12595 = vpop.permute.xlu0 %12594
  %12597 = vrot.lane.b32.xlu0 %v12573, 100
  %v12598 = vpop.permute.xlu0 %12597
  %12600 = vrot.lane.b32.xlu0 %v12574, 120
  %v12601 = vpop.permute.xlu0 %12600
  %12603 = vrot.lane.b32.xlu0 %v12575, 12
  %v12604 = vpop.permute.xlu0 %12603
  %12606 = vrot.lane.b32.xlu0 %v12576, 32
  %v12607 = vpop.permute.xlu0 %12606
  %12609 = vrot.lane.b32.xlu0 %v12577, 52
  %v12610 = vpop.permute.xlu0 %12609
  %12612 = vrot.lane.b32.xlu0 %v12578, 72
  %v12613 = vpop.permute.xlu0 %12612
  %12615 = vrot.lane.b32.xlu0 %v12579, 92
  %v12616 = vpop.permute.xlu0 %12615
  %12618 = vrot.lane.b32.xlu0 %v12580, 112
  %v12619 = vpop.permute.xlu0 %12618
  %12621 = vrot.lane.b32.xlu0 %v12581, 4
  %v12622 = vpop.permute.xlu0 %12621
  %12624 = vrot.lane.b32.xlu0 %v12582, 24
  %v12625 = vpop.permute.xlu0 %12624
  %12627 = vrot.lane.b32.xlu0 %v12583, 44
  %v12628 = vpop.permute.xlu0 %12627
  %v12631 = vsel %vm8529, %v12568, %v12586
  %v12633 = vsel %vm8595, %v12631, %v12589
  %v12635 = vsel %vm8661, %v12633, %v12592
  %v12637 = vsel %vm8727, %v12635, %v12595
  %v12639 = vsel %vm8793, %v12637, %v12598
  %v12641 = vsel %vm8859, %v12639, %v12601
  %v12644 = vsel %vm8941, %v12601, %v12604
  %v12646 = vsel %vm10246, %v12644, %v12607
  %vm12647 = vcmask 424960
  %v12649 = vsel %vm12647, %v12646, %v12610
  %vm12650 = vcmask 588800
  %v12652 = vsel %vm12650, %v12649, %v12613
  %vm12653 = vcmask 752640
  %v12655 = vsel %vm12653, %v12652, %v12616
  %vm12656 = vcmask 916480
  %v12658 = vsel %vm12656, %v12655, %v12619
  %vm12660 = vcmask 31744
  %v12662 = vsel %vm12660, %v12619, %v12622
  %vm12663 = vcmask 195584
  %v12665 = vsel %vm12663, %v12662, %v12625
  %vm12666 = vcmask 359424
  %v12668 = vsel %vm12666, %v12665, %v12628
  %v12669 = vld [vmem:[%s5] sm:$0xf]
  %v12670 = vld [vmem:[%s5 + $0x4] sm:$0xf]
  %v12671 = vld [vmem:[%s5 + $0x8] sm:$0xf]
  %v12672 = vld [vmem:[%s5 + $0xc] sm:$0xf]
  %v12673 = vld [vmem:[%s5 + $0x10] sm:$0xf]
  %v12674 = vld [vmem:[%s5 + $0x14] sm:$0xf]
  %v12675 = vld [vmem:[%s5 + $0x18] sm:$0xf]
  %v12676 = vld [vmem:[%s5 + $0x1c] sm:$0xf]
  %v12677 = vld [vmem:[%s5 + $0x20] sm:$0xf]
  %v12678 = vld [vmem:[%s5 + $0x24] sm:$0xf]
  %v12679 = vld [vmem:[%s5 + $0x28] sm:$0xf]
  %v12680 = vld [vmem:[%s5 + $0x2c] sm:$0xf]
  %v12681 = vld [vmem:[%s5 + $0x30] sm:$0xf]
  %v12682 = vld [vmem:[%s5 + $0x34] sm:$0xf]
  %v12683 = vld [vmem:[%s5 + $0x38] sm:$0xf]
  %v12684 = vld [vmem:[%s5 + $0x3c] sm:$0xf]
  %v12685 = vld [vmem:[%s5 + $0x40] sm:$0xf]
  %v12686 = vld [vmem:[%s5 + $0x44] sm:$0xf]
  %v12687 = vld [vmem:[%s5 + $0x48] sm:$0xf]
  %v12688 = vld [vmem:[%s5 + $0x4c] sm:$0xf]
  %v12689 = vld [vmem:[%s5 + $0x50] sm:$0xf]
  %v12690 = vld [vmem:[%s5 + $0x54] sm:$0xf]
  %v12691 = vld [vmem:[%s5 + $0x58] sm:$0xf]
  %v12692 = vld [vmem:[%s5 + $0x5c] sm:$0xf]
  %v12693 = vld [vmem:[%s5 + $0x60] sm:$0xf]
  %v12694 = vld [vmem:[%s5 + $0x64] sm:$0xf]
  %v12695 = vld [vmem:[%s5 + $0x68] sm:$0xf]
  %v12696 = vld [vmem:[%s5 + $0x6c] sm:$0xf]
  %v12697 = vld [vmem:[%s5 + $0x70] sm:$0xf]
  %v12698 = vld [vmem:[%s5 + $0x74] sm:$0xf]
  %v12699 = vld [vmem:[%s5 + $0x78] sm:$0xf]
  %v12700 = vld [vmem:[%s5 + $0x7c] sm:$0xf]
  %v12701 = vld [vmem:[%s5 + $0x80] sm:$0xf]
  %v12702 = vld [vmem:[%s5 + $0x84] sm:$0xf]
  %v12703 = vld [vmem:[%s5 + $0x88] sm:$0xf]
  %v12704 = vld [vmem:[%s5 + $0x8c] sm:$0xf]
  %v12705 = vld [vmem:[%s5 + $0x90] sm:$0xf]
  %v12706 = vld [vmem:[%s5 + $0x94] sm:$0xf]
  %v12707 = vld [vmem:[%s5 + $0x98] sm:$0xf]
  %v12708 = vld [vmem:[%s5 + $0x9c] sm:$0xf]
  %v12709 = vld [vmem:[%s6] sm:$0x1]
  %v12711 = vlaneseq
  %v12712 = vshrl.u32 %v12711, 7
  %v12713 = vsub.s32 0, %v12712
  %v12714 = vrot.slane %v12709, %v12713
  %v12756 = vunpack.c.l.b16 %v12669
  %v12757 = vunpack.c.l.b16 %v12670
  %v12758 = vunpack.c.l.b16 %v12671
  %v12759 = vunpack.c.l.b16 %v12672
  %v12760 = vunpack.c.l.b16 %v12673
  %v12761 = vunpack.c.l.b16 %v12674
  %v12762 = vunpack.c.l.b16 %v12675
  %v12763 = vunpack.c.l.b16 %v12676
  %v12764 = vunpack.c.l.b16 %v12677
  %v12765 = vunpack.c.l.b16 %v12678
  %v12766 = vunpack.c.l.b16 %v12679
  %v12767 = vunpack.c.l.b16 %v12680
  %v12768 = vunpack.c.l.b16 %v12681
  %v12769 = vunpack.c.l.b16 %v12682
  %v12770 = vunpack.c.l.b16 %v12683
  %v12771 = vunpack.c.l.b16 %v12684
  %v12772 = vunpack.c.l.b16 %v12685
  %v12773 = vunpack.c.l.b16 %v12686
  %v12774 = vunpack.c.l.b16 %v12687
  %v12775 = vunpack.c.l.b16 %v12688
  %v12776 = vunpack.c.l.b16 %v12689
  %v12777 = vunpack.c.l.b16 %v12690
  %v12778 = vunpack.c.l.b16 %v12691
  %v12779 = vunpack.c.l.b16 %v12692
  %v12780 = vunpack.c.l.b16 %v12693
  %v12781 = vunpack.c.l.b16 %v12694
  %v12782 = vunpack.c.l.b16 %v12695
  %v12783 = vunpack.c.l.b16 %v12696
  %v12784 = vunpack.c.l.b16 %v12697
  %v12785 = vunpack.c.l.b16 %v12698
  %v12786 = vunpack.c.l.b16 %v12699
  %v12787 = vunpack.c.l.b16 %v12700
  %v12788 = vunpack.c.l.b16 %v12701
  %v12789 = vunpack.c.l.b16 %v12702
  %v12790 = vunpack.c.l.b16 %v12703
  %v12791 = vunpack.c.l.b16 %v12704
  %v12792 = vunpack.c.l.b16 %v12705
  %v12793 = vunpack.c.l.b16 %v12706
  %v12794 = vunpack.c.l.b16 %v12707
  %v12795 = vunpack.c.l.b16 %v12708
  %v12796 = vpack.c.b16 %v12757, %v12756
  %v12797 = vpack.c.b16 %v12759, %v12758
  %v12798 = vpack.c.b16 %v12761, %v12760
  %v12799 = vpack.c.b16 %v12763, %v12762
  %v12800 = vpack.c.b16 %v12765, %v12764
  %v12801 = vpack.c.b16 %v12767, %v12766
  %v12802 = vpack.c.b16 %v12769, %v12768
  %v12803 = vpack.c.b16 %v12771, %v12770
  %v12804 = vpack.c.b16 %v12773, %v12772
  %v12805 = vpack.c.b16 %v12775, %v12774
  %v12806 = vpack.c.b16 %v12777, %v12776
  %v12807 = vpack.c.b16 %v12779, %v12778
  %v12808 = vpack.c.b16 %v12781, %v12780
  %v12809 = vpack.c.b16 %v12783, %v12782
  %v12810 = vpack.c.b16 %v12785, %v12784
  %v12811 = vpack.c.b16 %v12787, %v12786
  %v12812 = vpack.c.b16 %v12789, %v12788
  %v12813 = vpack.c.b16 %v12791, %v12790
  %v12814 = vpack.c.b16 %v12793, %v12792
  %v12815 = vpack.c.b16 %v12795, %v12794
  %v12836 = vsel %vm10295, %v12668, 0
  %12838 = vmatprep.subr.bf16.mxu0 0
  %12839 = vmatpush1.bf16.msra.mxu0 %v12803
  %12840 = vmatprep.subr.bf16.mxu0 0
  %12841 = vmatpush1.bf16.msra.mxu0 %v12802
  %12842 = vmatprep.subr.bf16.mxu0 0
  %12843 = vmatpush1.bf16.msra.mxu0 %v12801
  %12844 = vmatprep.subr.bf16.mxu0 0
  %12845 = vmatpush1.bf16.msra.mxu0 %v12800
  %12846 = vmatprep.subr.bf16.mxu0 0
  %12847 = vmatpush1.bf16.msra.mxu0 %v12799
  %12848 = vmatprep.subr.bf16.mxu0 0
  %12849 = vmatpush1.bf16.msra.mxu0 %v12798
  %12850 = vmatprep.subr.bf16.mxu0 0
  %12851 = vmatpush1.bf16.msra.mxu0 %v12797
  %12852 = vmatprep.subr.bf16.mxu0 0
  %12853 = vmatpush1.bf16.msra.mxu0 %v12796
  %12854 = vmatprep.subr.bf16.mxu0 0
  %12855 = vmatpush2.bf16.msra.mxu0 %v12811
  %12856 = vmatprep.subr.bf16.mxu0 0
  %12857 = vmatpush2.bf16.msra.mxu0 %v12810
  %12858 = vmatprep.subr.bf16.mxu0 0
  %12859 = vmatpush2.bf16.msra.mxu0 %v12809
  %12860 = vmatprep.subr.bf16.mxu0 0
  %12861 = vmatpush2.bf16.msra.mxu0 %v12808
  %12862 = vmatprep.subr.bf16.mxu0 0
  %12863 = vmatpush2.bf16.msra.mxu0 %v12807
  %12864 = vmatprep.subr.bf16.mxu0 0
  %12865 = vmatpush2.bf16.msra.mxu0 %v12806
  %12866 = vmatprep.subr.bf16.mxu0 0
  %12867 = vmatpush2.bf16.msra.mxu0 %v12805
  %12868 = vmatprep.subr.bf16.mxu0 0
  %12869 = vmatpush2.bf16.msra.mxu0 %v12804
  %12870 = vmatprep.mubr.bf16.mxu0 %v12658
  %12871 = vmatmul.mubr.bf16.gmra.mxu0 %v12641
  %v12872 = vpop.f32.mrf.mxu0
  %v12873 = vadd.f32 %v12714, %v12872
  %v12874 = vpop.f32.mrf.mxu0
  %v12875 = vpop.f32.mrf.mxu0
  %v12876 = vadd.f32 %v12714, %v12875
  %v12877 = vpop.f32.mrf.mxu0
  %12878 = vdwg.mxu0
  %12879 = vmatprep.subr.bf16.mxu0 0
  %12880 = vmatpush1.bf16.msra.mxu0 0
  %12881 = vmatprep.subr.bf16.mxu0 0
  %12882 = vmatpush1.bf16.msra.mxu0 0
  %12883 = vmatprep.subr.bf16.mxu0 0
  %12884 = vmatpush1.bf16.msra.mxu0 0
  %12885 = vmatprep.subr.bf16.mxu0 0
  %12886 = vmatpush1.bf16.msra.mxu0 0
  %12887 = vmatprep.subr.bf16.mxu0 0
  %12888 = vmatpush1.bf16.msra.mxu0 %v12815
  %12889 = vmatprep.subr.bf16.mxu0 0
  %12890 = vmatpush1.bf16.msra.mxu0 %v12814
  %12891 = vmatprep.subr.bf16.mxu0 0
  %12892 = vmatpush1.bf16.msra.mxu0 %v12813
  %12893 = vmatprep.subr.bf16.mxu0 0
  %12894 = vmatpush1.bf16.msra.mxu0 %v12812
  %12895 = vmatprep.subr.bf16.mxu0 0
  %12896 = vmatpush2.bf16.msra.mxu0 0
  %12897 = vmatprep.subr.bf16.mxu0 0
  %12898 = vmatpush2.bf16.msra.mxu0 0
  %12899 = vmatprep.subr.bf16.mxu0 0
  %12900 = vmatpush2.bf16.msra.mxu0 0
  %12901 = vmatprep.subr.bf16.mxu0 0
  %12902 = vmatpush2.bf16.msra.mxu0 0
  %12903 = vmatprep.subr.bf16.mxu0 0
  %12904 = vmatpush2.bf16.msra.mxu0 0
  %12905 = vmatprep.subr.bf16.mxu0 0
  %12906 = vmatpush2.bf16.msra.mxu0 0
  %12907 = vmatprep.subr.bf16.mxu0 0
  %12908 = vmatpush2.bf16.msra.mxu0 0
  %12909 = vmatprep.subr.bf16.mxu0 0
  %12910 = vmatpush2.bf16.msra.mxu0 0
  %12911 = vmatprep.mubr.bf16.mxu0 0
  %12912 = vmatmul.mubr.bf16.gmra.mxu0 %v12836
  %v12913 = vpop.f32.mrf.mxu0
  %v12914 = vadd.f32 %v12873, %v12913
  %v12915 = vpop.f32.mrf.mxu0
  %v12916 = vpop.f32.mrf.mxu0
  %v12917 = vadd.f32 %v12876, %v12916
  %v12918 = vpop.f32.mrf.mxu0
  %12919 = vdwg.mxu0
  %12920 = vst.msk [vmem:[%s7] sm:$0xff] %vm8480, %v12914
  %12921 = vst.msk [vmem:[%s7 + $0x8] sm:$0xff] %vm8480, %v12917
  // Predicated region
  $region30: #{net_forward.1} parent=0 // pred_check
    _
  $region31: #{net_forward.1} parent=0 // pred_check_branch
    %12923 = sbr.rel (0) target = $region33
  $region32: #{net_forward.1} parent=0 // pred_region
    _
  $region33: #{net_forward.1} parent=0 // pred_fallthru
    _
  // Predicated region
  $region34: #{net_forward.1} parent=0 // pred_check
    _
  $region35: #{net_forward.1} parent=0 // pred_check_branch
    %12925 = sbr.rel (0) target = $region37
  $region36: #{net_forward.1} parent=0 // pred_region
    _
  $region37: #{net_forward.1} parent=0 // pred_fallthru
    _

</llo_original>
